<compile_context>
chip_gen: v5e
topology: v5e:2x2
jax: 0.10.0
libtpu: 0.0.40
codegen_flags: <defaults>
</compile_context>

<pallas_src>
import functools
import math

import jax
import jax.numpy as jnp
from jax.experimental import pallas as pl
from jax.experimental.pallas import tpu as pltpu

# ----------------------------- config (small, consistent with the module) -----
HIDDEN = 24          # hidden_channels (before conditioning concat)
COND = 8             # conditioning_emb_dim
C = HIDDEN + COND    # transformer width (in == hidden after the += in __init__)
FFN = 64             # hidden_channels_ffn
HEADS = 2
DK = C // HEADS
LAYERS = 2
KSIZE = 3
WINDOW = 4           # rel_attn_window_size
NREL = 2 * WINDOW + 1
OUT = 1              # encoder out_channels is hard-coded to 1 in the module
B = 2
T = 16
EPS = 1e-5


# ----------------------------- fused Pallas kernel -----------------------------
def _layer_norm(z, gamma, beta):
    mu = jnp.mean(z, axis=-1, keepdims=True)
    d = z - mu
    var = jnp.mean(d * d, axis=-1, keepdims=True)
    return d * jax.lax.rsqrt(var + EPS) * gamma + beta


def _encoder_kernel(x_ref, cm_ref, bias_ref, relw_ref,
                    watt_ref, evb_ref, wf1_ref, wf2_ref, vec_ref,
                    out_ref, *, num_layers, num_heads, dk, window, out_channels):
    """Whole RelativePositionTransformer on batch-folded [B*T, C] activations."""
    f32 = jnp.float32
    c = num_heads * dk
    nrel = 2 * window + 1
    bt = x_ref.shape[0]
    ffn = wf1_ref.shape[-1]
    scale = 1.0 / math.sqrt(dk)

    # static column offsets into the packed per-layer attention-row slab [C, 3C | H*R | C | OUT]
    e_qkv = 3 * c
    e_ek = e_qkv + num_heads * nrel
    e_wo = e_ek + c
    e_wp = e_wo + out_channels

    x = x_ref[...]                    # [BT, C]
    m = cm_ref[:, 0:1]                # valid-length mask column
    mprev = cm_ref[:, 1:2]            # row has a previous row inside its own sequence
    mnext = cm_ref[:, 2:3]            # row has a next row inside its own sequence
    bias = bias_ref[...]              # [BT, BT] additive attention bias (0 / -1e4)

    h = x
    for li in range(num_layers):
        last = (li + 1) == num_layers
        cout = out_channels if last else c

        # -------- relative-position multi-head self-attention + residual + LayerNorm --------
        xm = h * m
        qkv = (jnp.dot(xm, watt_ref[li, :, 0:e_qkv], preferred_element_type=f32)
               + vec_ref[li, 0:1, 0:e_qkv])                               # [BT, 3C]
        q = qkv[:, 0:c] * scale       # query scaling feeds both the abs and the rel logits
        k = qkv[:, c:2 * c]
        v = qkv[:, 2 * c:3 * c]
        # relative-key logits for BOTH heads in one matmul: q_scaled @ blockdiag(ek^T, ek^T)
        crel = jnp.dot(q, watt_ref[li, :, e_qkv:e_ek],
                       preferred_element_type=f32)                        # [BT, H*(2W+1)]

        ps = []
        for hh in range(num_heads):
            cs = slice(hh * dk, (hh + 1) * dk)
            s = jax.lax.dot_general(q[:, cs], k[:, cs], (((1,), (1,)), ((), ())),
                                    preferred_element_type=f32)           # [BT, BT]
            s = s + bias              # additive mask: -1e4 on padded / cross-batch entries
            # scatter the (2W+1) relative logits onto the score diagonals (VPU FMAs against
            # VMEM-resident band masks; no vreg-pinned one-hot constants)
            for r in range(nrel):
                s = s + relw_ref[r, :, 0:bt] * crel[:, hh * nrel + r:hh * nrel + r + 1]
            # NOTE: fully length-masked rows softmax over (bias-shifted) garbage; they never
            # leak into valid rows and are zeroed before every reuse and at the very end.
            ex = jnp.exp(s - jnp.max(s, axis=-1, keepdims=True))
            p = ex * pl.reciprocal(jnp.sum(ex, axis=-1, keepdims=True), approx=True)
            ps.append(p)
        p_all = jnp.concatenate(ps, axis=-1)                              # [BT, H*BT]

        # both heads' p @ v with ONE matmul against a block-diagonal V (heads packed on lanes)
        zdk = jnp.zeros((bt, dk), f32)
        v_bd = jnp.concatenate(
            [jnp.concatenate([v[:, hh * dk:(hh + 1) * dk] if j == hh else zdk
                              for j in range(num_heads)], axis=-1)
             for hh in range(num_heads)], axis=0)                         # [H*BT, C]
        o = jnp.dot(p_all, v_bd, preferred_element_type=f32)              # [BT, C]
        # relative-value contribution: accumulating MXU matmuls (no cross-lane reductions)
        for r in range(nrel):
            o = o + jnp.dot(p_all * relw_ref[r], evb_ref[li, r],
                            preferred_element_type=f32)
        y = (jnp.dot(o, watt_ref[li, :, e_ek:e_wo], preferred_element_type=f32)
             + vec_ref[li, 1:2, 0:c])
        h = _layer_norm(xm + y, vec_ref[li, 2:3, 0:c], vec_ref[li, 3:4, 0:c])

        # -------- FFN: two k=3 "same"-padded conv1d as roll + ONE fused matmul each --------
        def taps(u_):
            # prev/next rows via sublane roll (np.roll convention: roll(+1)[i] = u[i-1]);
            # the boundary masks zero rows that would wrap across sequence boundaries.
            up = pltpu.roll(u_, shift=1, axis=0) * mprev
            un = pltpu.roll(u_, shift=bt - 1, axis=0) * mnext
            return jnp.concatenate([up, u_, un], axis=-1)

        u = h * m
        hf = jnp.maximum(
            jnp.dot(taps(u), wf1_ref[li], preferred_element_type=f32)
            + vec_ref[li, 4:5, 0:ffn], 0.0)
        yf = (jnp.dot(taps(hf * m), wf2_ref[li, :, 0:cout], preferred_element_type=f32)
              + vec_ref[li, 5:6, 0:cout]) * m
        if last:   # last layer: 1x1 projection of the residual before the second LayerNorm
            xr = (jnp.dot(h, watt_ref[li, :, e_wo:e_wp], preferred_element_type=f32)
                  + vec_ref[li, 1:2, c:c + out_channels])
        else:
            xr = h
        # NOTE: for the last layer cout == 1, so this LayerNorm over a single channel is
        # degenerate (output == beta).  This mirrors the reference module exactly, which
        # hard-codes out_channels=1 inside RelativePositionTransformer with LayerNorm2(1).
        h = _layer_norm(xr + yf, vec_ref[li, 6:7, 0:cout], vec_ref[li, 7:8, 0:cout])

    # final length mask; host folds the [BT, 1] column back to [B, 1, T]
    out_ref[...] = h * m


# ----------------------------- host-side parameter packing ----------------------
def pack_params(params, bt):
    """Pack the per-tensor parameters into a handful of stacked, DMA-friendly f32 slabs."""
    layers = params["layers"]
    n = len(layers)
    watt, evb, wf1, wf2, vecs = [], [], [], [], []
    for li, lp in enumerate(layers):
        last = (li + 1) == n
        cout = OUT if last else C
        # block-diagonal ek^T over heads: [C, HEADS*(2W+1)]
        ekt = jnp.zeros((C, HEADS * NREL), jnp.float32)
        for hh in range(HEADS):
            ekt = ekt.at[hh * DK:(hh + 1) * DK, hh * NREL:(hh + 1) * NREL].set(lp["ek"].T)
        wp = lp["wp"] if last else jnp.zeros((C, OUT), jnp.float32)
        watt.append(jnp.concatenate([lp["wq"], lp["wk"], lp["wv"], ekt, lp["wo"], wp], axis=1))
        # EVB[r]: rows hh*bt:(hh+1)*bt carry ev[r] broadcast into output cols hh*dk:(hh+1)*dk
        ev_bc = jnp.broadcast_to(lp["ev"][:, None, :], (NREL, bt, DK))
        blocks = []
        for hh in range(HEADS):
            pre = jnp.zeros((NREL, bt, hh * DK), jnp.float32)
            post = jnp.zeros((NREL, bt, C - (hh + 1) * DK), jnp.float32)
            blocks.append(jnp.concatenate([pre, ev_bc, post], axis=-1))
        evb.append(jnp.concatenate(blocks, axis=1))                       # [2W+1, H*BT, C]
        # fused 3-tap conv weights: rows ordered [tap(t-1); tap(t); tap(t+1)]
        wf1.append(lp["w1"].reshape(KSIZE * C, FFN))
        w2p = jnp.zeros((KSIZE, FFN, C), jnp.float32).at[:, :, :cout].set(lp["w2"])
        wf2.append(w2p.reshape(KSIZE * FFN, C))
        # bias / LayerNorm vector slab (one lane-padded row per vector)
        vr = jnp.zeros((8, 128), jnp.float32)
        vr = vr.at[0, 0:3 * C].set(jnp.concatenate([lp["bq"][0], lp["bk"][0], lp["bv"][0]]))
        vr = vr.at[1, 0:C].set(lp["bo"][0])
        if last:
            vr = vr.at[1, C:C + OUT].set(lp["bp"][0])
        vr = vr.at[2, 0:C].set(lp["g1"][0])
        vr = vr.at[3, 0:C].set(lp["bt1"][0])
        vr = vr.at[4, 0:FFN].set(lp["b1"][0])
        vr = vr.at[5, 0:cout].set(lp["b2"][0])
        vr = vr.at[6, 0:cout].set(lp["g2"][0])
        vr = vr.at[7, 0:cout].set(lp["bt2"][0])
        vecs.append(vr)
    return {"watt": jnp.stack(watt), "evb": jnp.stack(evb), "wf1": jnp.stack(wf1),
            "wf2": jnp.stack(wf2), "vecs": jnp.stack(vecs)}


# ----------------------------- host-side wrapper --------------------------------
@jax.jit
def rel_pos_pitch_energy_encoder(x, x_lengths, speaker_emb, packed):
    """x: [B, T, hidden]; speaker_emb: [B, cond, 1] or None; x_lengths: [B].

    Returns [B, 1, T] (same as the PyTorch module)."""
    bn, tn, _ = x.shape
    if speaker_emb is not None:
        se = jnp.transpose(speaker_emb, (0, 2, 1))                   # [B, 1, cond]
        se = jnp.broadcast_to(se, (bn, tn, speaker_emb.shape[1]))
        x = jnp.concatenate([x, se], axis=-1)                        # [B, T, C]
    cn = x.shape[-1]
    if x_lengths is None:
        x_lengths = jnp.full((bn,), tn, jnp.int32)
    mask = (jnp.arange(tn)[None, :] < x_lengths[:, None]).astype(jnp.float32)   # [B, T]

    bt = bn * tn
    x_flat = x.reshape(bt, cn).astype(jnp.float32)                   # batch folded into sublanes
    m_flat = mask.reshape(bt)

    idx = jnp.arange(bt)
    tpos = idx % tn
    bidx = idx // tn
    # [BT, 3] per-row column masks: valid-length, has-prev-in-sequence, has-next-in-sequence
    colmasks = jnp.stack([m_flat,
                          (tpos > 0).astype(jnp.float32),
                          (tpos < tn - 1).astype(jnp.float32)], axis=1)
    # additive attention bias: 0 for valid same-sequence (q,k) pairs, -1e4 otherwise
    # (also makes the folded-batch attention block-diagonal)
    valid = (m_flat[:, None] > 0) & (m_flat[None, :] > 0) & (bidx[:, None] == bidx[None, :])
    bias = jnp.where(valid, 0.0, -1e4).astype(jnp.float32)           # [BT, BT]
    # per-offset relative-position band masks over the folded axis, tiled once per head
    off = idx[None, :] - idx[:, None]
    same_b = bidx[:, None] == bidx[None, :]
    rel = jnp.stack([((off == (r - WINDOW)) & same_b).astype(jnp.float32)
                     for r in range(NREL)], axis=0)                  # [2W+1, BT, BT]
    rel_wide = jnp.tile(rel, (1, 1, HEADS))                          # [2W+1, BT, H*BT]

    kernel = functools.partial(_encoder_kernel, num_layers=LAYERS, num_heads=HEADS,
                               dk=DK, window=WINDOW, out_channels=OUT)
    out = pl.pallas_call(
        kernel,
        out_shape=jax.ShapeDtypeStruct((bt, OUT), jnp.float32),
    )(x_flat, colmasks, bias, rel_wide,
      packed["watt"], packed["evb"], packed["wf1"], packed["wf2"], packed["vecs"])
    return out[:, 0].reshape(bn, tn)[:, None, :]                     # [B, 1, T]


# ----------------------------- parameter setup (glue) ----------------------------
def init_params(key):
    layers = []
    keys = iter(jax.random.split(key, LAYERS * 24))

    def nrm(shape, scale=0.1):
        return jax.random.normal(next(keys), shape, jnp.float32) * scale

    for li in range(LAYERS):
        last = (li + 1) == LAYERS
        cout = OUT if last else C
        lp = {}
        # 1x1 convs of the attention block, stored pre-transposed as [Cin, Cout]
        lp["wq"], lp["bq"] = nrm((C, C)), nrm((1, C), 0.02)
        lp["wk"], lp["bk"] = nrm((C, C)), nrm((1, C), 0.02)
        lp["wv"], lp["bv"] = nrm((C, C)), nrm((1, C), 0.02)
        lp["wo"], lp["bo"] = nrm((C, C)), nrm((1, C), 0.02)
        # raw windowed relative-position embeddings (heads share): [2W+1, dk]
        lp["ek"] = nrm((NREL, DK), DK ** -0.5)
        lp["ev"] = nrm((NREL, DK), DK ** -0.5)
        # LayerNorm after attention
        lp["g1"], lp["bt1"] = jnp.ones((1, C), jnp.float32), jnp.zeros((1, C), jnp.float32)
        # FFN convs, stored as [k, Cin, Cout]; tap k uses in[t + k - 1]
        lp["w1"], lp["b1"] = nrm((KSIZE, C, FFN)), nrm((1, FFN), 0.02)
        lp["w2"], lp["b2"] = nrm((KSIZE, FFN, cout)), nrm((1, cout), 0.02)
        # last-layer 1x1 projection of the residual
        if last:
            lp["wp"], lp["bp"] = nrm((C, OUT)), nrm((1, OUT), 0.02)
        # LayerNorm after FFN
        lp["g2"], lp["bt2"] = jnp.ones((1, cout), jnp.float32), nrm((1, cout), 0.1)
        layers.append(lp)
    return {"layers": layers}


# ----------------------------- main ----------------------------------------------
if __name__ == "__main__":
    key = jax.random.PRNGKey(0)
    kx, ks, kp = jax.random.split(key, 3)
    x = jax.random.normal(kx, (B, T, HIDDEN), jnp.float32)
    speaker_emb = jax.random.normal(ks, (B, COND, 1), jnp.float32)
    x_lengths = jnp.array([T, 11], dtype=jnp.int32)

    params = init_params(kp)
    packed = pack_params(params, B * T)          # pack weight slabs once, reuse every call
    out = rel_pos_pitch_energy_encoder(x, x_lengths, speaker_emb, packed)
    out = jax.block_until_ready(out)
    assert out.shape == (B, 1, T), out.shape
    assert bool(jnp.all(jnp.isfinite(out)))
    print("KERNEL_OK")
</pallas_src>

<mosaic_0001>
module attributes {stable_mosaic.version = 11 : i64} {
  func.func @_encoder_kernel(%arg0: memref<32x32xf32, #tpu.memory_space<vmem>>, %arg1: memref<32x3xf32, #tpu.memory_space<vmem>>, %arg2: memref<32x32xf32, #tpu.memory_space<vmem>>, %arg3: memref<9x32x64xf32, #tpu.memory_space<vmem>>, %arg4: memref<2x32x147xf32, #tpu.memory_space<vmem>>, %arg5: memref<2x9x64x32xf32, #tpu.memory_space<vmem>>, %arg6: memref<2x96x64xf32, #tpu.memory_space<vmem>>, %arg7: memref<2x192x32xf32, #tpu.memory_space<vmem>>, %arg8: memref<2x8x128xf32, #tpu.memory_space<vmem>>, %arg9: memref<32x1xf32, #tpu.memory_space<vmem>>) attributes {dimension_semantics = [], scalar_prefetch = 0 : i64, scratch_operands = 0 : i64, tpu.core_type = #tpu.core_type<tc>} {
    %c0 = arith.constant 0 : index
    %c0_0 = arith.constant 0 : index
    %0 = vector.load %arg0[%c0, %c0_0] : memref<32x32xf32, #tpu.memory_space<vmem>>, vector<32x32xf32>
    %c0_1 = arith.constant 0 : index
    %c0_2 = arith.constant 0 : index
    %1 = vector.load %arg1[%c0_1, %c0_2] : memref<32x3xf32, #tpu.memory_space<vmem>>, vector<32x1xf32>
    %c0_3 = arith.constant 0 : index
    %c1 = arith.constant 1 : index
    %2 = vector.load %arg1[%c0_3, %c1] : memref<32x3xf32, #tpu.memory_space<vmem>>, vector<32x1xf32>
    %c0_4 = arith.constant 0 : index
    %c2 = arith.constant 2 : index
    %3 = vector.load %arg1[%c0_4, %c2] : memref<32x3xf32, #tpu.memory_space<vmem>>, vector<32x1xf32>
    %c0_5 = arith.constant 0 : index
    %c0_6 = arith.constant 0 : index
    %4 = vector.load %arg2[%c0_5, %c0_6] : memref<32x32xf32, #tpu.memory_space<vmem>>, vector<32x32xf32>
    %5 = vector.broadcast %1 : vector<32x1xf32> to vector<32x32xf32>
    %6 = arith.mulf %0, %5 : vector<32x32xf32>
    %c0_7 = arith.constant 0 : index
    %c0_8 = arith.constant 0 : index
    %c0_9 = arith.constant 0 : index
    %7 = vector.load %arg4[%c0_7, %c0_8, %c0_9] : memref<2x32x147xf32, #tpu.memory_space<vmem>>, vector<1x32x96xf32>
    %8 = vector.shape_cast %7 : vector<1x32x96xf32> to vector<32x96xf32>
    %cst = arith.constant dense<0.000000e+00> : vector<32x96xf32>
    %9 = tpu.matmul %6, %8, %cst {dimension_numbers = #tpu.dot_dimension_numbers<[1], [0], [0], [1], [0, 0, 1, 1], [], []>} : vector<32x32xf32>, vector<32x96xf32>, vector<32x96xf32> -> vector<32x96xf32>
    %c0_10 = arith.constant 0 : index
    %c0_11 = arith.constant 0 : index
    %c0_12 = arith.constant 0 : index
    %10 = vector.load %arg8[%c0_10, %c0_11, %c0_12] : memref<2x8x128xf32, #tpu.memory_space<vmem>>, vector<1x1x96xf32>
    %11 = vector.shape_cast %10 : vector<1x1x96xf32> to vector<1x96xf32>
    %12 = vector.broadcast %11 : vector<1x96xf32> to vector<32x96xf32>
    %13 = arith.addf %9, %12 : vector<32x96xf32>
    %14 = vector.extract_strided_slice %13 {offsets = [0, 0], sizes = [32, 32], strides = [1, 1]} : vector<32x96xf32> to vector<32x32xf32>
    %cst_13 = arith.constant 2.500000e-01 : f32
    %15 = vector.broadcast %cst_13 : f32 to vector<32x32xf32>
    %16 = arith.mulf %14, %15 : vector<32x32xf32>
    %17 = vector.extract_strided_slice %13 {offsets = [0, 32], sizes = [32, 32], strides = [1, 1]} : vector<32x96xf32> to vector<32x32xf32>
    %18 = vector.extract_strided_slice %13 {offsets = [0, 64], sizes = [32, 32], strides = [1, 1]} : vector<32x96xf32> to vector<32x32xf32>
    %c0_14 = arith.constant 0 : index
    %c0_15 = arith.constant 0 : index
    %c96 = arith.constant 96 : index
    %19 = vector.load %arg4[%c0_14, %c0_15, %c96] : memref<2x32x147xf32, #tpu.memory_space<vmem>>, vector<1x32x18xf32>
    %20 = vector.shape_cast %19 : vector<1x32x18xf32> to vector<32x18xf32>
    %cst_16 = arith.constant dense<0.000000e+00> : vector<32x18xf32>
    %21 = tpu.matmul %16, %20, %cst_16 {dimension_numbers = #tpu.dot_dimension_numbers<[1], [0], [0], [1], [0, 0, 1, 1], [], []>} : vector<32x32xf32>, vector<32x18xf32>, vector<32x18xf32> -> vector<32x18xf32>
    %22 = vector.extract_strided_slice %16 {offsets = [0, 0], sizes = [32, 16], strides = [1, 1]} : vector<32x32xf32> to vector<32x16xf32>
    %23 = vector.extract_strided_slice %17 {offsets = [0, 0], sizes = [32, 16], strides = [1, 1]} : vector<32x32xf32> to vector<32x16xf32>
    %cst_17 = arith.constant dense<0.000000e+00> : vector<32x32xf32>
    %24 = tpu.matmul %22, %23, %cst_17 {dimension_numbers = #tpu.dot_dimension_numbers<[1], [1], [0], [0], [0, 0, 1, 0], [], []>} : vector<32x16xf32>, vector<32x16xf32>, vector<32x32xf32> -> vector<32x32xf32>
    %25 = arith.addf %24, %4 : vector<32x32xf32>
    %c0_18 = arith.constant 0 : index
    %c0_19 = arith.constant 0 : index
    %c0_20 = arith.constant 0 : index
    %26 = vector.load %arg3[%c0_18, %c0_19, %c0_20] : memref<9x32x64xf32, #tpu.memory_space<vmem>>, vector<1x32x32xf32>
    %27 = vector.shape_cast %26 : vector<1x32x32xf32> to vector<32x32xf32>
    %28 = vector.extract_strided_slice %21 {offsets = [0, 0], sizes = [32, 1], strides = [1, 1]} : vector<32x18xf32> to vector<32x1xf32>
    %29 = vector.broadcast %28 : vector<32x1xf32> to vector<32x32xf32>
    %30 = arith.mulf %27, %29 : vector<32x32xf32>
    %31 = arith.addf %25, %30 : vector<32x32xf32>
    %c1_21 = arith.constant 1 : index
    %c0_22 = arith.constant 0 : index
    %c0_23 = arith.constant 0 : index
    %32 = vector.load %arg3[%c1_21, %c0_22, %c0_23] : memref<9x32x64xf32, #tpu.memory_space<vmem>>, vector<1x32x32xf32>
    %33 = vector.shape_cast %32 : vector<1x32x32xf32> to vector<32x32xf32>
    %34 = vector.extract_strided_slice %21 {offsets = [0, 1], sizes = [32, 1], strides = [1, 1]} : vector<32x18xf32> to vector<32x1xf32>
    %35 = vector.broadcast %34 : vector<32x1xf32> to vector<32x32xf32>
    %36 = arith.mulf %33, %35 : vector<32x32xf32>
    %37 = arith.addf %31, %36 : vector<32x32xf32>
    %c2_24 = arith.constant 2 : index
    %c0_25 = arith.constant 0 : index
    %c0_26 = arith.constant 0 : index
    %38 = vector.load %arg3[%c2_24, %c0_25, %c0_26] : memref<9x32x64xf32, #tpu.memory_space<vmem>>, vector<1x32x32xf32>
    %39 = vector.shape_cast %38 : vector<1x32x32xf32> to vector<32x32xf32>
    %40 = vector.extract_strided_slice %21 {offsets = [0, 2], sizes = [32, 1], strides = [1, 1]} : vector<32x18xf32> to vector<32x1xf32>
    %41 = vector.broadcast %40 : vector<32x1xf32> to vector<32x32xf32>
    %42 = arith.mulf %39, %41 : vector<32x32xf32>
    %43 = arith.addf %37, %42 : vector<32x32xf32>
    %c3 = arith.constant 3 : index
    %c0_27 = arith.constant 0 : index
    %c0_28 = arith.constant 0 : index
    %44 = vector.load %arg3[%c3, %c0_27, %c0_28] : memref<9x32x64xf32, #tpu.memory_space<vmem>>, vector<1x32x32xf32>
    %45 = vector.shape_cast %44 : vector<1x32x32xf32> to vector<32x32xf32>
    %46 = vector.extract_strided_slice %21 {offsets = [0, 3], sizes = [32, 1], strides = [1, 1]} : vector<32x18xf32> to vector<32x1xf32>
    %47 = vector.broadcast %46 : vector<32x1xf32> to vector<32x32xf32>
    %48 = arith.mulf %45, %47 : vector<32x32xf32>
    %49 = arith.addf %43, %48 : vector<32x32xf32>
    %c4 = arith.constant 4 : index
    %c0_29 = arith.constant 0 : index
    %c0_30 = arith.constant 0 : index
    %50 = vector.load %arg3[%c4, %c0_29, %c0_30] : memref<9x32x64xf32, #tpu.memory_space<vmem>>, vector<1x32x32xf32>
    %51 = vector.shape_cast %50 : vector<1x32x32xf32> to vector<32x32xf32>
    %52 = vector.extract_strided_slice %21 {offsets = [0, 4], sizes = [32, 1], strides = [1, 1]} : vector<32x18xf32> to vector<32x1xf32>
    %53 = vector.broadcast %52 : vector<32x1xf32> to vector<32x32xf32>
    %54 = arith.mulf %51, %53 : vector<32x32xf32>
    %55 = arith.addf %49, %54 : vector<32x32xf32>
    %c5 = arith.constant 5 : index
    %c0_31 = arith.constant 0 : index
    %c0_32 = arith.constant 0 : index
    %56 = vector.load %arg3[%c5, %c0_31, %c0_32] : memref<9x32x64xf32, #tpu.memory_space<vmem>>, vector<1x32x32xf32>
    %57 = vector.shape_cast %56 : vector<1x32x32xf32> to vector<32x32xf32>
    %58 = vector.extract_strided_slice %21 {offsets = [0, 5], sizes = [32, 1], strides = [1, 1]} : vector<32x18xf32> to vector<32x1xf32>
    %59 = vector.broadcast %58 : vector<32x1xf32> to vector<32x32xf32>
    %60 = arith.mulf %57, %59 : vector<32x32xf32>
    %61 = arith.addf %55, %60 : vector<32x32xf32>
    %c6 = arith.constant 6 : index
    %c0_33 = arith.constant 0 : index
    %c0_34 = arith.constant 0 : index
    %62 = vector.load %arg3[%c6, %c0_33, %c0_34] : memref<9x32x64xf32, #tpu.memory_space<vmem>>, vector<1x32x32xf32>
    %63 = vector.shape_cast %62 : vector<1x32x32xf32> to vector<32x32xf32>
    %64 = vector.extract_strided_slice %21 {offsets = [0, 6], sizes = [32, 1], strides = [1, 1]} : vector<32x18xf32> to vector<32x1xf32>
    %65 = vector.broadcast %64 : vector<32x1xf32> to vector<32x32xf32>
    %66 = arith.mulf %63, %65 : vector<32x32xf32>
    %67 = arith.addf %61, %66 : vector<32x32xf32>
    %c7 = arith.constant 7 : index
    %c0_35 = arith.constant 0 : index
    %c0_36 = arith.constant 0 : index
    %68 = vector.load %arg3[%c7, %c0_35, %c0_36] : memref<9x32x64xf32, #tpu.memory_space<vmem>>, vector<1x32x32xf32>
    %69 = vector.shape_cast %68 : vector<1x32x32xf32> to vector<32x32xf32>
    %70 = vector.extract_strided_slice %21 {offsets = [0, 7], sizes = [32, 1], strides = [1, 1]} : vector<32x18xf32> to vector<32x1xf32>
    %71 = vector.broadcast %70 : vector<32x1xf32> to vector<32x32xf32>
    %72 = arith.mulf %69, %71 : vector<32x32xf32>
    %73 = arith.addf %67, %72 : vector<32x32xf32>
    %c8 = arith.constant 8 : index
    %c0_37 = arith.constant 0 : index
    %c0_38 = arith.constant 0 : index
    %74 = vector.load %arg3[%c8, %c0_37, %c0_38] : memref<9x32x64xf32, #tpu.memory_space<vmem>>, vector<1x32x32xf32>
    %75 = vector.shape_cast %74 : vector<1x32x32xf32> to vector<32x32xf32>
    %76 = vector.extract_strided_slice %21 {offsets = [0, 8], sizes = [32, 1], strides = [1, 1]} : vector<32x18xf32> to vector<32x1xf32>
    %77 = vector.broadcast %76 : vector<32x1xf32> to vector<32x32xf32>
    %78 = arith.mulf %75, %77 : vector<32x32xf32>
    %79 = arith.addf %73, %78 : vector<32x32xf32>
    %cst_39 = arith.constant dense<0xFF800000> : vector<32xf32>
    %80 = vector.multi_reduction <maximumf>, %79, %cst_39 [1] : vector<32x32xf32> to vector<32xf32>
    %81 = vector.shape_cast %80 : vector<32xf32> to vector<32x1xf32>
    %82 = vector.broadcast %81 : vector<32x1xf32> to vector<32x32xf32>
    %83 = arith.subf %79, %82 : vector<32x32xf32>
    %84 = math.exp %83 : vector<32x32xf32>
    %cst_40 = arith.constant dense<0.000000e+00> : vector<32xf32>
    %85 = vector.multi_reduction <add>, %84, %cst_40 [1] : vector<32x32xf32> to vector<32xf32>
    %86 = vector.shape_cast %85 : vector<32xf32> to vector<32x1xf32>
    %87 = tpu.reciprocal %86 {approx = true} : vector<32x1xf32> -> vector<32x1xf32>
    %88 = vector.broadcast %87 : vector<32x1xf32> to vector<32x32xf32>
    %89 = arith.mulf %84, %88 : vector<32x32xf32>
    %90 = vector.extract_strided_slice %16 {offsets = [0, 16], sizes = [32, 16], strides = [1, 1]} : vector<32x32xf32> to vector<32x16xf32>
    %91 = vector.extract_strided_slice %17 {offsets = [0, 16], sizes = [32, 16], strides = [1, 1]} : vector<32x32xf32> to vector<32x16xf32>
    %cst_41 = arith.constant dense<0.000000e+00> : vector<32x32xf32>
    %92 = tpu.matmul %90, %91, %cst_41 {dimension_numbers = #tpu.dot_dimension_numbers<[1], [1], [0], [0], [0, 0, 1, 0], [], []>} : vector<32x16xf32>, vector<32x16xf32>, vector<32x32xf32> -> vector<32x32xf32>
    %93 = arith.addf %92, %4 : vector<32x32xf32>
    %c0_42 = arith.constant 0 : index
    %c0_43 = arith.constant 0 : index
    %c0_44 = arith.constant 0 : index
    %94 = vector.load %arg3[%c0_42, %c0_43, %c0_44] : memref<9x32x64xf32, #tpu.memory_space<vmem>>, vector<1x32x32xf32>
    %95 = vector.shape_cast %94 : vector<1x32x32xf32> to vector<32x32xf32>
    %96 = vector.extract_strided_slice %21 {offsets = [0, 9], sizes = [32, 1], strides = [1, 1]} : vector<32x18xf32> to vector<32x1xf32>
    %97 = vector.broadcast %96 : vector<32x1xf32> to vector<32x32xf32>
    %98 = arith.mulf %95, %97 : vector<32x32xf32>
    %99 = arith.addf %93, %98 : vector<32x32xf32>
    %c1_45 = arith.constant 1 : index
    %c0_46 = arith.constant 0 : index
    %c0_47 = arith.constant 0 : index
    %100 = vector.load %arg3[%c1_45, %c0_46, %c0_47] : memref<9x32x64xf32, #tpu.memory_space<vmem>>, vector<1x32x32xf32>
    %101 = vector.shape_cast %100 : vector<1x32x32xf32> to vector<32x32xf32>
    %102 = vector.extract_strided_slice %21 {offsets = [0, 10], sizes = [32, 1], strides = [1, 1]} : vector<32x18xf32> to vector<32x1xf32>
    %103 = vector.broadcast %102 : vector<32x1xf32> to vector<32x32xf32>
    %104 = arith.mulf %101, %103 : vector<32x32xf32>
    %105 = arith.addf %99, %104 : vector<32x32xf32>
    %c2_48 = arith.constant 2 : index
    %c0_49 = arith.constant 0 : index
    %c0_50 = arith.constant 0 : index
    %106 = vector.load %arg3[%c2_48, %c0_49, %c0_50] : memref<9x32x64xf32, #tpu.memory_space<vmem>>, vector<1x32x32xf32>
    %107 = vector.shape_cast %106 : vector<1x32x32xf32> to vector<32x32xf32>
    %108 = vector.extract_strided_slice %21 {offsets = [0, 11], sizes = [32, 1], strides = [1, 1]} : vector<32x18xf32> to vector<32x1xf32>
    %109 = vector.broadcast %108 : vector<32x1xf32> to vector<32x32xf32>
    %110 = arith.mulf %107, %109 : vector<32x32xf32>
    %111 = arith.addf %105, %110 : vector<32x32xf32>
    %c3_51 = arith.constant 3 : index
    %c0_52 = arith.constant 0 : index
    %c0_53 = arith.constant 0 : index
    %112 = vector.load %arg3[%c3_51, %c0_52, %c0_53] : memref<9x32x64xf32, #tpu.memory_space<vmem>>, vector<1x32x32xf32>
    %113 = vector.shape_cast %112 : vector<1x32x32xf32> to vector<32x32xf32>
    %114 = vector.extract_strided_slice %21 {offsets = [0, 12], sizes = [32, 1], strides = [1, 1]} : vector<32x18xf32> to vector<32x1xf32>
    %115 = vector.broadcast %114 : vector<32x1xf32> to vector<32x32xf32>
    %116 = arith.mulf %113, %115 : vector<32x32xf32>
    %117 = arith.addf %111, %116 : vector<32x32xf32>
    %c4_54 = arith.constant 4 : index
    %c0_55 = arith.constant 0 : index
    %c0_56 = arith.constant 0 : index
    %118 = vector.load %arg3[%c4_54, %c0_55, %c0_56] : memref<9x32x64xf32, #tpu.memory_space<vmem>>, vector<1x32x32xf32>
    %119 = vector.shape_cast %118 : vector<1x32x32xf32> to vector<32x32xf32>
    %120 = vector.extract_strided_slice %21 {offsets = [0, 13], sizes = [32, 1], strides = [1, 1]} : vector<32x18xf32> to vector<32x1xf32>
    %121 = vector.broadcast %120 : vector<32x1xf32> to vector<32x32xf32>
    %122 = arith.mulf %119, %121 : vector<32x32xf32>
    %123 = arith.addf %117, %122 : vector<32x32xf32>
    %c5_57 = arith.constant 5 : index
    %c0_58 = arith.constant 0 : index
    %c0_59 = arith.constant 0 : index
    %124 = vector.load %arg3[%c5_57, %c0_58, %c0_59] : memref<9x32x64xf32, #tpu.memory_space<vmem>>, vector<1x32x32xf32>
    %125 = vector.shape_cast %124 : vector<1x32x32xf32> to vector<32x32xf32>
    %126 = vector.extract_strided_slice %21 {offsets = [0, 14], sizes = [32, 1], strides = [1, 1]} : vector<32x18xf32> to vector<32x1xf32>
    %127 = vector.broadcast %126 : vector<32x1xf32> to vector<32x32xf32>
    %128 = arith.mulf %125, %127 : vector<32x32xf32>
    %129 = arith.addf %123, %128 : vector<32x32xf32>
    %c6_60 = arith.constant 6 : index
    %c0_61 = arith.constant 0 : index
    %c0_62 = arith.constant 0 : index
    %130 = vector.load %arg3[%c6_60, %c0_61, %c0_62] : memref<9x32x64xf32, #tpu.memory_space<vmem>>, vector<1x32x32xf32>
    %131 = vector.shape_cast %130 : vector<1x32x32xf32> to vector<32x32xf32>
    %132 = vector.extract_strided_slice %21 {offsets = [0, 15], sizes = [32, 1], strides = [1, 1]} : vector<32x18xf32> to vector<32x1xf32>
    %133 = vector.broadcast %132 : vector<32x1xf32> to vector<32x32xf32>
    %134 = arith.mulf %131, %133 : vector<32x32xf32>
    %135 = arith.addf %129, %134 : vector<32x32xf32>
    %c7_63 = arith.constant 7 : index
    %c0_64 = arith.constant 0 : index
    %c0_65 = arith.constant 0 : index
    %136 = vector.load %arg3[%c7_63, %c0_64, %c0_65] : memref<9x32x64xf32, #tpu.memory_space<vmem>>, vector<1x32x32xf32>
    %137 = vector.shape_cast %136 : vector<1x32x32xf32> to vector<32x32xf32>
    %138 = vector.extract_strided_slice %21 {offsets = [0, 16], sizes = [32, 1], strides = [1, 1]} : vector<32x18xf32> to vector<32x1xf32>
    %139 = vector.broadcast %138 : vector<32x1xf32> to vector<32x32xf32>
    %140 = arith.mulf %137, %139 : vector<32x32xf32>
    %141 = arith.addf %135, %140 : vector<32x32xf32>
    %c8_66 = arith.constant 8 : index
    %c0_67 = arith.constant 0 : index
    %c0_68 = arith.constant 0 : index
    %142 = vector.load %arg3[%c8_66, %c0_67, %c0_68] : memref<9x32x64xf32, #tpu.memory_space<vmem>>, vector<1x32x32xf32>
    %143 = vector.shape_cast %142 : vector<1x32x32xf32> to vector<32x32xf32>
    %144 = vector.extract_strided_slice %21 {offsets = [0, 17], sizes = [32, 1], strides = [1, 1]} : vector<32x18xf32> to vector<32x1xf32>
    %145 = vector.broadcast %144 : vector<32x1xf32> to vector<32x32xf32>
    %146 = arith.mulf %143, %145 : vector<32x32xf32>
    %147 = arith.addf %141, %146 : vector<32x32xf32>
    %cst_69 = arith.constant dense<0xFF800000> : vector<32xf32>
    %148 = vector.multi_reduction <maximumf>, %147, %cst_69 [1] : vector<32x32xf32> to vector<32xf32>
    %149 = vector.shape_cast %148 : vector<32xf32> to vector<32x1xf32>
    %150 = vector.broadcast %149 : vector<32x1xf32> to vector<32x32xf32>
    %151 = arith.subf %147, %150 : vector<32x32xf32>
    %152 = math.exp %151 : vector<32x32xf32>
    %cst_70 = arith.constant dense<0.000000e+00> : vector<32xf32>
    %153 = vector.multi_reduction <add>, %152, %cst_70 [1] : vector<32x32xf32> to vector<32xf32>
    %154 = vector.shape_cast %153 : vector<32xf32> to vector<32x1xf32>
    %155 = tpu.reciprocal %154 {approx = true} : vector<32x1xf32> -> vector<32x1xf32>
    %156 = vector.broadcast %155 : vector<32x1xf32> to vector<32x32xf32>
    %157 = arith.mulf %152, %156 : vector<32x32xf32>
    %158 = tpu.concatenate %89, %157 in 1 : vector<32x32xf32>, vector<32x32xf32> -> vector<32x64xf32>
    %cst_71 = arith.constant 0.000000e+00 : f32
    %159 = vector.broadcast %cst_71 : f32 to vector<32x16xf32>
    %160 = vector.extract_strided_slice %18 {offsets = [0, 0], sizes = [32, 16], strides = [1, 1]} : vector<32x32xf32> to vector<32x16xf32>
    %161 = tpu.concatenate %160, %159 in 1 : vector<32x16xf32>, vector<32x16xf32> -> vector<32x32xf32>
    %162 = vector.extract_strided_slice %18 {offsets = [0, 16], sizes = [32, 16], strides = [1, 1]} : vector<32x32xf32> to vector<32x16xf32>
    %163 = tpu.concatenate %159, %162 in 1 : vector<32x16xf32>, vector<32x16xf32> -> vector<32x32xf32>
    %164 = tpu.concatenate %161, %163 in 0 : vector<32x32xf32>, vector<32x32xf32> -> vector<64x32xf32>
    %cst_72 = arith.constant dense<0.000000e+00> : vector<32x32xf32>
    %165 = tpu.matmul %158, %164, %cst_72 {dimension_numbers = #tpu.dot_dimension_numbers<[1], [0], [0], [1], [0, 0, 1, 1], [], []>} : vector<32x64xf32>, vector<64x32xf32>, vector<32x32xf32> -> vector<32x32xf32>
    %c0_73 = arith.constant 0 : index
    %c0_74 = arith.constant 0 : index
    %c0_75 = arith.constant 0 : index
    %166 = vector.load %arg3[%c0_73, %c0_74, %c0_75] : memref<9x32x64xf32, #tpu.memory_space<vmem>>, vector<1x32x64xf32>
    %167 = vector.shape_cast %166 : vector<1x32x64xf32> to vector<32x64xf32>
    %168 = arith.mulf %158, %167 : vector<32x64xf32>
    %c0_76 = arith.constant 0 : index
    %c0_77 = arith.constant 0 : index
    %c0_78 = arith.constant 0 : index
    %c0_79 = arith.constant 0 : index
    %169 = vector.load %arg5[%c0_76, %c0_77, %c0_78, %c0_79] : memref<2x9x64x32xf32, #tpu.memory_space<vmem>>, vector<1x1x64x32xf32>
    %170 = vector.shape_cast %169 : vector<1x1x64x32xf32> to vector<64x32xf32>
    %cst_80 = arith.constant dense<0.000000e+00> : vector<32x32xf32>
    %171 = tpu.matmul %168, %170, %cst_80 {dimension_numbers = #tpu.dot_dimension_numbers<[1], [0], [0], [1], [0, 0, 1, 1], [], []>} : vector<32x64xf32>, vector<64x32xf32>, vector<32x32xf32> -> vector<32x32xf32>
    %172 = arith.addf %165, %171 : vector<32x32xf32>
    %c1_81 = arith.constant 1 : index
    %c0_82 = arith.constant 0 : index
    %c0_83 = arith.constant 0 : index
    %173 = vector.load %arg3[%c1_81, %c0_82, %c0_83] : memref<9x32x64xf32, #tpu.memory_space<vmem>>, vector<1x32x64xf32>
    %174 = vector.shape_cast %173 : vector<1x32x64xf32> to vector<32x64xf32>
    %175 = arith.mulf %158, %174 : vector<32x64xf32>
    %c0_84 = arith.constant 0 : index
    %c1_85 = arith.constant 1 : index
    %c0_86 = arith.constant 0 : index
    %c0_87 = arith.constant 0 : index
    %176 = vector.load %arg5[%c0_84, %c1_85, %c0_86, %c0_87] : memref<2x9x64x32xf32, #tpu.memory_space<vmem>>, vector<1x1x64x32xf32>
    %177 = vector.shape_cast %176 : vector<1x1x64x32xf32> to vector<64x32xf32>
    %cst_88 = arith.constant dense<0.000000e+00> : vector<32x32xf32>
    %178 = tpu.matmul %175, %177, %cst_88 {dimension_numbers = #tpu.dot_dimension_numbers<[1], [0], [0], [1], [0, 0, 1, 1], [], []>} : vector<32x64xf32>, vector<64x32xf32>, vector<32x32xf32> -> vector<32x32xf32>
    %179 = arith.addf %172, %178 : vector<32x32xf32>
    %c2_89 = arith.constant 2 : index
    %c0_90 = arith.constant 0 : index
    %c0_91 = arith.constant 0 : index
    %180 = vector.load %arg3[%c2_89, %c0_90, %c0_91] : memref<9x32x64xf32, #tpu.memory_space<vmem>>, vector<1x32x64xf32>
    %181 = vector.shape_cast %180 : vector<1x32x64xf32> to vector<32x64xf32>
    %182 = arith.mulf %158, %181 : vector<32x64xf32>
    %c0_92 = arith.constant 0 : index
    %c2_93 = arith.constant 2 : index
    %c0_94 = arith.constant 0 : index
    %c0_95 = arith.constant 0 : index
    %183 = vector.load %arg5[%c0_92, %c2_93, %c0_94, %c0_95] : memref<2x9x64x32xf32, #tpu.memory_space<vmem>>, vector<1x1x64x32xf32>
    %184 = vector.shape_cast %183 : vector<1x1x64x32xf32> to vector<64x32xf32>
    %cst_96 = arith.constant dense<0.000000e+00> : vector<32x32xf32>
    %185 = tpu.matmul %182, %184, %cst_96 {dimension_numbers = #tpu.dot_dimension_numbers<[1], [0], [0], [1], [0, 0, 1, 1], [], []>} : vector<32x64xf32>, vector<64x32xf32>, vector<32x32xf32> -> vector<32x32xf32>
    %186 = arith.addf %179, %185 : vector<32x32xf32>
    %c3_97 = arith.constant 3 : index
    %c0_98 = arith.constant 0 : index
    %c0_99 = arith.constant 0 : index
    %187 = vector.load %arg3[%c3_97, %c0_98, %c0_99] : memref<9x32x64xf32, #tpu.memory_space<vmem>>, vector<1x32x64xf32>
    %188 = vector.shape_cast %187 : vector<1x32x64xf32> to vector<32x64xf32>
    %189 = arith.mulf %158, %188 : vector<32x64xf32>
    %c0_100 = arith.constant 0 : index
    %c3_101 = arith.constant 3 : index
    %c0_102 = arith.constant 0 : index
    %c0_103 = arith.constant 0 : index
    %190 = vector.load %arg5[%c0_100, %c3_101, %c0_102, %c0_103] : memref<2x9x64x32xf32, #tpu.memory_space<vmem>>, vector<1x1x64x32xf32>
    %191 = vector.shape_cast %190 : vector<1x1x64x32xf32> to vector<64x32xf32>
    %cst_104 = arith.constant dense<0.000000e+00> : vector<32x32xf32>
    %192 = tpu.matmul %189, %191, %cst_104 {dimension_numbers = #tpu.dot_dimension_numbers<[1], [0], [0], [1], [0, 0, 1, 1], [], []>} : vector<32x64xf32>, vector<64x32xf32>, vector<32x32xf32> -> vector<32x32xf32>
    %193 = arith.addf %186, %192 : vector<32x32xf32>
    %c4_105 = arith.constant 4 : index
    %c0_106 = arith.constant 0 : index
    %c0_107 = arith.constant 0 : index
    %194 = vector.load %arg3[%c4_105, %c0_106, %c0_107] : memref<9x32x64xf32, #tpu.memory_space<vmem>>, vector<1x32x64xf32>
    %195 = vector.shape_cast %194 : vector<1x32x64xf32> to vector<32x64xf32>
    %196 = arith.mulf %158, %195 : vector<32x64xf32>
    %c0_108 = arith.constant 0 : index
    %c4_109 = arith.constant 4 : index
    %c0_110 = arith.constant 0 : index
    %c0_111 = arith.constant 0 : index
    %197 = vector.load %arg5[%c0_108, %c4_109, %c0_110, %c0_111] : memref<2x9x64x32xf32, #tpu.memory_space<vmem>>, vector<1x1x64x32xf32>
    %198 = vector.shape_cast %197 : vector<1x1x64x32xf32> to vector<64x32xf32>
    %cst_112 = arith.constant dense<0.000000e+00> : vector<32x32xf32>
    %199 = tpu.matmul %196, %198, %cst_112 {dimension_numbers = #tpu.dot_dimension_numbers<[1], [0], [0], [1], [0, 0, 1, 1], [], []>} : vector<32x64xf32>, vector<64x32xf32>, vector<32x32xf32> -> vector<32x32xf32>
    %200 = arith.addf %193, %199 : vector<32x32xf32>
    %c5_113 = arith.constant 5 : index
    %c0_114 = arith.constant 0 : index
    %c0_115 = arith.constant 0 : index
    %201 = vector.load %arg3[%c5_113, %c0_114, %c0_115] : memref<9x32x64xf32, #tpu.memory_space<vmem>>, vector<1x32x64xf32>
    %202 = vector.shape_cast %201 : vector<1x32x64xf32> to vector<32x64xf32>
    %203 = arith.mulf %158, %202 : vector<32x64xf32>
    %c0_116 = arith.constant 0 : index
    %c5_117 = arith.constant 5 : index
    %c0_118 = arith.constant 0 : index
    %c0_119 = arith.constant 0 : index
    %204 = vector.load %arg5[%c0_116, %c5_117, %c0_118, %c0_119] : memref<2x9x64x32xf32, #tpu.memory_space<vmem>>, vector<1x1x64x32xf32>
    %205 = vector.shape_cast %204 : vector<1x1x64x32xf32> to vector<64x32xf32>
    %cst_120 = arith.constant dense<0.000000e+00> : vector<32x32xf32>
    %206 = tpu.matmul %203, %205, %cst_120 {dimension_numbers = #tpu.dot_dimension_numbers<[1], [0], [0], [1], [0, 0, 1, 1], [], []>} : vector<32x64xf32>, vector<64x32xf32>, vector<32x32xf32> -> vector<32x32xf32>
    %207 = arith.addf %200, %206 : vector<32x32xf32>
    %c6_121 = arith.constant 6 : index
    %c0_122 = arith.constant 0 : index
    %c0_123 = arith.constant 0 : index
    %208 = vector.load %arg3[%c6_121, %c0_122, %c0_123] : memref<9x32x64xf32, #tpu.memory_space<vmem>>, vector<1x32x64xf32>
    %209 = vector.shape_cast %208 : vector<1x32x64xf32> to vector<32x64xf32>
    %210 = arith.mulf %158, %209 : vector<32x64xf32>
    %c0_124 = arith.constant 0 : index
    %c6_125 = arith.constant 6 : index
    %c0_126 = arith.constant 0 : index
    %c0_127 = arith.constant 0 : index
    %211 = vector.load %arg5[%c0_124, %c6_125, %c0_126, %c0_127] : memref<2x9x64x32xf32, #tpu.memory_space<vmem>>, vector<1x1x64x32xf32>
    %212 = vector.shape_cast %211 : vector<1x1x64x32xf32> to vector<64x32xf32>
    %cst_128 = arith.constant dense<0.000000e+00> : vector<32x32xf32>
    %213 = tpu.matmul %210, %212, %cst_128 {dimension_numbers = #tpu.dot_dimension_numbers<[1], [0], [0], [1], [0, 0, 1, 1], [], []>} : vector<32x64xf32>, vector<64x32xf32>, vector<32x32xf32> -> vector<32x32xf32>
    %214 = arith.addf %207, %213 : vector<32x32xf32>
    %c7_129 = arith.constant 7 : index
    %c0_130 = arith.constant 0 : index
    %c0_131 = arith.constant 0 : index
    %215 = vector.load %arg3[%c7_129, %c0_130, %c0_131] : memref<9x32x64xf32, #tpu.memory_space<vmem>>, vector<1x32x64xf32>
    %216 = vector.shape_cast %215 : vector<1x32x64xf32> to vector<32x64xf32>
    %217 = arith.mulf %158, %216 : vector<32x64xf32>
    %c0_132 = arith.constant 0 : index
    %c7_133 = arith.constant 7 : index
    %c0_134 = arith.constant 0 : index
    %c0_135 = arith.constant 0 : index
    %218 = vector.load %arg5[%c0_132, %c7_133, %c0_134, %c0_135] : memref<2x9x64x32xf32, #tpu.memory_space<vmem>>, vector<1x1x64x32xf32>
    %219 = vector.shape_cast %218 : vector<1x1x64x32xf32> to vector<64x32xf32>
    %cst_136 = arith.constant dense<0.000000e+00> : vector<32x32xf32>
    %220 = tpu.matmul %217, %219, %cst_136 {dimension_numbers = #tpu.dot_dimension_numbers<[1], [0], [0], [1], [0, 0, 1, 1], [], []>} : vector<32x64xf32>, vector<64x32xf32>, vector<32x32xf32> -> vector<32x32xf32>
    %221 = arith.addf %214, %220 : vector<32x32xf32>
    %c8_137 = arith.constant 8 : index
    %c0_138 = arith.constant 0 : index
    %c0_139 = arith.constant 0 : index
    %222 = vector.load %arg3[%c8_137, %c0_138, %c0_139] : memref<9x32x64xf32, #tpu.memory_space<vmem>>, vector<1x32x64xf32>
    %223 = vector.shape_cast %222 : vector<1x32x64xf32> to vector<32x64xf32>
    %224 = arith.mulf %158, %223 : vector<32x64xf32>
    %c0_140 = arith.constant 0 : index
    %c8_141 = arith.constant 8 : index
    %c0_142 = arith.constant 0 : index
    %c0_143 = arith.constant 0 : index
    %225 = vector.load %arg5[%c0_140, %c8_141, %c0_142, %c0_143] : memref<2x9x64x32xf32, #tpu.memory_space<vmem>>, vector<1x1x64x32xf32>
    %226 = vector.shape_cast %225 : vector<1x1x64x32xf32> to vector<64x32xf32>
    %cst_144 = arith.constant dense<0.000000e+00> : vector<32x32xf32>
    %227 = tpu.matmul %224, %226, %cst_144 {dimension_numbers = #tpu.dot_dimension_numbers<[1], [0], [0], [1], [0, 0, 1, 1], [], []>} : vector<32x64xf32>, vector<64x32xf32>, vector<32x32xf32> -> vector<32x32xf32>
    %228 = arith.addf %221, %227 : vector<32x32xf32>
    %c0_145 = arith.constant 0 : index
    %c0_146 = arith.constant 0 : index
    %c114 = arith.constant 114 : index
    %229 = vector.load %arg4[%c0_145, %c0_146, %c114] : memref<2x32x147xf32, #tpu.memory_space<vmem>>, vector<1x32x32xf32>
    %230 = vector.shape_cast %229 : vector<1x32x32xf32> to vector<32x32xf32>
    %cst_147 = arith.constant dense<0.000000e+00> : vector<32x32xf32>
    %231 = tpu.matmul %228, %230, %cst_147 {dimension_numbers = #tpu.dot_dimension_numbers<[1], [0], [0], [1], [0, 0, 1, 1], [], []>} : vector<32x32xf32>, vector<32x32xf32>, vector<32x32xf32> -> vector<32x32xf32>
    %c0_148 = arith.constant 0 : index
    %c1_149 = arith.constant 1 : index
    %c0_150 = arith.constant 0 : index
    %232 = vector.load %arg8[%c0_148, %c1_149, %c0_150] : memref<2x8x128xf32, #tpu.memory_space<vmem>>, vector<1x1x32xf32>
    %233 = vector.shape_cast %232 : vector<1x1x32xf32> to vector<1x32xf32>
    %234 = vector.broadcast %233 : vector<1x32xf32> to vector<32x32xf32>
    %235 = arith.addf %231, %234 : vector<32x32xf32>
    %236 = arith.addf %6, %235 : vector<32x32xf32>
    %c0_151 = arith.constant 0 : index
    %c2_152 = arith.constant 2 : index
    %c0_153 = arith.constant 0 : index
    %237 = vector.load %arg8[%c0_151, %c2_152, %c0_153] : memref<2x8x128xf32, #tpu.memory_space<vmem>>, vector<1x1x32xf32>
    %238 = vector.shape_cast %237 : vector<1x1x32xf32> to vector<1x32xf32>
    %c0_154 = arith.constant 0 : index
    %c3_155 = arith.constant 3 : index
    %c0_156 = arith.constant 0 : index
    %239 = vector.load %arg8[%c0_154, %c3_155, %c0_156] : memref<2x8x128xf32, #tpu.memory_space<vmem>>, vector<1x1x32xf32>
    %240 = vector.shape_cast %239 : vector<1x1x32xf32> to vector<1x32xf32>
    %cst_157 = arith.constant dense<0.000000e+00> : vector<32xf32>
    %241 = vector.multi_reduction <add>, %236, %cst_157 [1] : vector<32x32xf32> to vector<32xf32>
    %242 = vector.shape_cast %241 : vector<32xf32> to vector<32x1xf32>
    %cst_158 = arith.constant 3.200000e+01 : f32
    %243 = vector.broadcast %cst_158 : f32 to vector<32x1xf32>
    %244 = arith.divf %242, %243 : vector<32x1xf32>
    %245 = vector.broadcast %244 : vector<32x1xf32> to vector<32x32xf32>
    %246 = arith.subf %236, %245 : vector<32x32xf32>
    %247 = arith.mulf %246, %246 : vector<32x32xf32>
    %cst_159 = arith.constant dense<0.000000e+00> : vector<32xf32>
    %248 = vector.multi_reduction <add>, %247, %cst_159 [1] : vector<32x32xf32> to vector<32xf32>
    %249 = vector.shape_cast %248 : vector<32xf32> to vector<32x1xf32>
    %cst_160 = arith.constant 3.200000e+01 : f32
    %250 = vector.broadcast %cst_160 : f32 to vector<32x1xf32>
    %251 = arith.divf %249, %250 : vector<32x1xf32>
    %cst_161 = arith.constant 9.99999974E-6 : f32
    %252 = vector.broadcast %cst_161 : f32 to vector<32x1xf32>
    %253 = arith.addf %251, %252 : vector<32x1xf32>
    %254 = math.rsqrt %253 : vector<32x1xf32>
    %255 = vector.broadcast %254 : vector<32x1xf32> to vector<32x32xf32>
    %256 = arith.mulf %246, %255 : vector<32x32xf32>
    %257 = vector.broadcast %238 : vector<1x32xf32> to vector<32x32xf32>
    %258 = arith.mulf %256, %257 : vector<32x32xf32>
    %259 = vector.broadcast %240 : vector<1x32xf32> to vector<32x32xf32>
    %260 = arith.addf %258, %259 : vector<32x32xf32>
    %261 = vector.broadcast %1 : vector<32x1xf32> to vector<32x32xf32>
    %262 = arith.mulf %260, %261 : vector<32x32xf32>
    %c1_i32 = arith.constant 1 : i32
    %263 = tpu.dynamic_rotate %262 by %c1_i32 dim 0 : vector<32x32xf32>, i32 -> vector<32x32xf32>
    %264 = vector.broadcast %2 : vector<32x1xf32> to vector<32x32xf32>
    %265 = arith.mulf %263, %264 : vector<32x32xf32>
    %c31_i32 = arith.constant 31 : i32
    %266 = tpu.dynamic_rotate %262 by %c31_i32 dim 0 : vector<32x32xf32>, i32 -> vector<32x32xf32>
    %267 = vector.broadcast %3 : vector<32x1xf32> to vector<32x32xf32>
    %268 = arith.mulf %266, %267 : vector<32x32xf32>
    %269 = tpu.concatenate %265, %262, %268 in 1 : vector<32x32xf32>, vector<32x32xf32>, vector<32x32xf32> -> vector<32x96xf32>
    %c0_162 = arith.constant 0 : index
    %c0_163 = arith.constant 0 : index
    %c0_164 = arith.constant 0 : index
    %270 = vector.load %arg6[%c0_162, %c0_163, %c0_164] : memref<2x96x64xf32, #tpu.memory_space<vmem>>, vector<1x96x64xf32>
    %271 = vector.shape_cast %270 : vector<1x96x64xf32> to vector<96x64xf32>
    %cst_165 = arith.constant dense<0.000000e+00> : vector<32x64xf32>
    %272 = tpu.matmul %269, %271, %cst_165 {dimension_numbers = #tpu.dot_dimension_numbers<[1], [0], [0], [1], [0, 0, 1, 1], [], []>} : vector<32x96xf32>, vector<96x64xf32>, vector<32x64xf32> -> vector<32x64xf32>
    %c0_166 = arith.constant 0 : index
    %c4_167 = arith.constant 4 : index
    %c0_168 = arith.constant 0 : index
    %273 = vector.load %arg8[%c0_166, %c4_167, %c0_168] : memref<2x8x128xf32, #tpu.memory_space<vmem>>, vector<1x1x64xf32>
    %274 = vector.shape_cast %273 : vector<1x1x64xf32> to vector<1x64xf32>
    %275 = vector.broadcast %274 : vector<1x64xf32> to vector<32x64xf32>
    %276 = arith.addf %272, %275 : vector<32x64xf32>
    %cst_169 = arith.constant 0.000000e+00 : f32
    %277 = vector.broadcast %cst_169 : f32 to vector<32x64xf32>
    %278 = arith.maximumf %276, %277 : vector<32x64xf32>
    %279 = vector.broadcast %1 : vector<32x1xf32> to vector<32x64xf32>
    %280 = arith.mulf %278, %279 : vector<32x64xf32>
    %c1_i32_170 = arith.constant 1 : i32
    %281 = tpu.dynamic_rotate %280 by %c1_i32_170 dim 0 : vector<32x64xf32>, i32 -> vector<32x64xf32>
    %282 = vector.broadcast %2 : vector<32x1xf32> to vector<32x64xf32>
    %283 = arith.mulf %281, %282 : vector<32x64xf32>
    %c31_i32_171 = arith.constant 31 : i32
    %284 = tpu.dynamic_rotate %280 by %c31_i32_171 dim 0 : vector<32x64xf32>, i32 -> vector<32x64xf32>
    %285 = vector.broadcast %3 : vector<32x1xf32> to vector<32x64xf32>
    %286 = arith.mulf %284, %285 : vector<32x64xf32>
    %287 = tpu.concatenate %283, %280, %286 in 1 : vector<32x64xf32>, vector<32x64xf32>, vector<32x64xf32> -> vector<32x192xf32>
    %c0_172 = arith.constant 0 : index
    %c0_173 = arith.constant 0 : index
    %c0_174 = arith.constant 0 : index
    %288 = vector.load %arg7[%c0_172, %c0_173, %c0_174] : memref<2x192x32xf32, #tpu.memory_space<vmem>>, vector<1x192x32xf32>
    %289 = vector.shape_cast %288 : vector<1x192x32xf32> to vector<192x32xf32>
    %cst_175 = arith.constant dense<0.000000e+00> : vector<32x32xf32>
    %290 = tpu.matmul %287, %289, %cst_175 {dimension_numbers = #tpu.dot_dimension_numbers<[1], [0], [0], [1], [0, 0, 1, 1], [], []>} : vector<32x192xf32>, vector<192x32xf32>, vector<32x32xf32> -> vector<32x32xf32>
    %c0_176 = arith.constant 0 : index
    %c5_177 = arith.constant 5 : index
    %c0_178 = arith.constant 0 : index
    %291 = vector.load %arg8[%c0_176, %c5_177, %c0_178] : memref<2x8x128xf32, #tpu.memory_space<vmem>>, vector<1x1x32xf32>
    %292 = vector.shape_cast %291 : vector<1x1x32xf32> to vector<1x32xf32>
    %293 = vector.broadcast %292 : vector<1x32xf32> to vector<32x32xf32>
    %294 = arith.addf %290, %293 : vector<32x32xf32>
    %295 = vector.broadcast %1 : vector<32x1xf32> to vector<32x32xf32>
    %296 = arith.mulf %294, %295 : vector<32x32xf32>
    %297 = arith.addf %260, %296 : vector<32x32xf32>
    %c0_179 = arith.constant 0 : index
    %c6_180 = arith.constant 6 : index
    %c0_181 = arith.constant 0 : index
    %298 = vector.load %arg8[%c0_179, %c6_180, %c0_181] : memref<2x8x128xf32, #tpu.memory_space<vmem>>, vector<1x1x32xf32>
    %299 = vector.shape_cast %298 : vector<1x1x32xf32> to vector<1x32xf32>
    %c0_182 = arith.constant 0 : index
    %c7_183 = arith.constant 7 : index
    %c0_184 = arith.constant 0 : index
    %300 = vector.load %arg8[%c0_182, %c7_183, %c0_184] : memref<2x8x128xf32, #tpu.memory_space<vmem>>, vector<1x1x32xf32>
    %301 = vector.shape_cast %300 : vector<1x1x32xf32> to vector<1x32xf32>
    %cst_185 = arith.constant dense<0.000000e+00> : vector<32xf32>
    %302 = vector.multi_reduction <add>, %297, %cst_185 [1] : vector<32x32xf32> to vector<32xf32>
    %303 = vector.shape_cast %302 : vector<32xf32> to vector<32x1xf32>
    %cst_186 = arith.constant 3.200000e+01 : f32
    %304 = vector.broadcast %cst_186 : f32 to vector<32x1xf32>
    %305 = arith.divf %303, %304 : vector<32x1xf32>
    %306 = vector.broadcast %305 : vector<32x1xf32> to vector<32x32xf32>
    %307 = arith.subf %297, %306 : vector<32x32xf32>
    %308 = arith.mulf %307, %307 : vector<32x32xf32>
    %cst_187 = arith.constant dense<0.000000e+00> : vector<32xf32>
    %309 = vector.multi_reduction <add>, %308, %cst_187 [1] : vector<32x32xf32> to vector<32xf32>
    %310 = vector.shape_cast %309 : vector<32xf32> to vector<32x1xf32>
    %cst_188 = arith.constant 3.200000e+01 : f32
    %311 = vector.broadcast %cst_188 : f32 to vector<32x1xf32>
    %312 = arith.divf %310, %311 : vector<32x1xf32>
    %cst_189 = arith.constant 9.99999974E-6 : f32
    %313 = vector.broadcast %cst_189 : f32 to vector<32x1xf32>
    %314 = arith.addf %312, %313 : vector<32x1xf32>
    %315 = math.rsqrt %314 : vector<32x1xf32>
    %316 = vector.broadcast %315 : vector<32x1xf32> to vector<32x32xf32>
    %317 = arith.mulf %307, %316 : vector<32x32xf32>
    %318 = vector.broadcast %299 : vector<1x32xf32> to vector<32x32xf32>
    %319 = arith.mulf %317, %318 : vector<32x32xf32>
    %320 = vector.broadcast %301 : vector<1x32xf32> to vector<32x32xf32>
    %321 = arith.addf %319, %320 : vector<32x32xf32>
    %322 = vector.broadcast %1 : vector<32x1xf32> to vector<32x32xf32>
    %323 = arith.mulf %321, %322 : vector<32x32xf32>
    %c1_190 = arith.constant 1 : index
    %c0_191 = arith.constant 0 : index
    %c0_192 = arith.constant 0 : index
    %324 = vector.load %arg4[%c1_190, %c0_191, %c0_192] : memref<2x32x147xf32, #tpu.memory_space<vmem>>, vector<1x32x96xf32>
    %325 = vector.shape_cast %324 : vector<1x32x96xf32> to vector<32x96xf32>
    %cst_193 = arith.constant dense<0.000000e+00> : vector<32x96xf32>
    %326 = tpu.matmul %323, %325, %cst_193 {dimension_numbers = #tpu.dot_dimension_numbers<[1], [0], [0], [1], [0, 0, 1, 1], [], []>} : vector<32x32xf32>, vector<32x96xf32>, vector<32x96xf32> -> vector<32x96xf32>
    %c1_194 = arith.constant 1 : index
    %c0_195 = arith.constant 0 : index
    %c0_196 = arith.constant 0 : index
    %327 = vector.load %arg8[%c1_194, %c0_195, %c0_196] : memref<2x8x128xf32, #tpu.memory_space<vmem>>, vector<1x1x96xf32>
    %328 = vector.shape_cast %327 : vector<1x1x96xf32> to vector<1x96xf32>
    %329 = vector.broadcast %328 : vector<1x96xf32> to vector<32x96xf32>
    %330 = arith.addf %326, %329 : vector<32x96xf32>
    %331 = vector.extract_strided_slice %330 {offsets = [0, 0], sizes = [32, 32], strides = [1, 1]} : vector<32x96xf32> to vector<32x32xf32>
    %cst_197 = arith.constant 2.500000e-01 : f32
    %332 = vector.broadcast %cst_197 : f32 to vector<32x32xf32>
    %333 = arith.mulf %331, %332 : vector<32x32xf32>
    %334 = vector.extract_strided_slice %330 {offsets = [0, 32], sizes = [32, 32], strides = [1, 1]} : vector<32x96xf32> to vector<32x32xf32>
    %335 = vector.extract_strided_slice %330 {offsets = [0, 64], sizes = [32, 32], strides = [1, 1]} : vector<32x96xf32> to vector<32x32xf32>
    %c1_198 = arith.constant 1 : index
    %c0_199 = arith.constant 0 : index
    %c96_200 = arith.constant 96 : index
    %336 = vector.load %arg4[%c1_198, %c0_199, %c96_200] : memref<2x32x147xf32, #tpu.memory_space<vmem>>, vector<1x32x18xf32>
    %337 = vector.shape_cast %336 : vector<1x32x18xf32> to vector<32x18xf32>
    %cst_201 = arith.constant dense<0.000000e+00> : vector<32x18xf32>
    %338 = tpu.matmul %333, %337, %cst_201 {dimension_numbers = #tpu.dot_dimension_numbers<[1], [0], [0], [1], [0, 0, 1, 1], [], []>} : vector<32x32xf32>, vector<32x18xf32>, vector<32x18xf32> -> vector<32x18xf32>
    %339 = vector.extract_strided_slice %333 {offsets = [0, 0], sizes = [32, 16], strides = [1, 1]} : vector<32x32xf32> to vector<32x16xf32>
    %340 = vector.extract_strided_slice %334 {offsets = [0, 0], sizes = [32, 16], strides = [1, 1]} : vector<32x32xf32> to vector<32x16xf32>
    %cst_202 = arith.constant dense<0.000000e+00> : vector<32x32xf32>
    %341 = tpu.matmul %339, %340, %cst_202 {dimension_numbers = #tpu.dot_dimension_numbers<[1], [1], [0], [0], [0, 0, 1, 0], [], []>} : vector<32x16xf32>, vector<32x16xf32>, vector<32x32xf32> -> vector<32x32xf32>
    %342 = arith.addf %341, %4 : vector<32x32xf32>
    %c0_203 = arith.constant 0 : index
    %c0_204 = arith.constant 0 : index
    %c0_205 = arith.constant 0 : index
    %343 = vector.load %arg3[%c0_203, %c0_204, %c0_205] : memref<9x32x64xf32, #tpu.memory_space<vmem>>, vector<1x32x32xf32>
    %344 = vector.shape_cast %343 : vector<1x32x32xf32> to vector<32x32xf32>
    %345 = vector.extract_strided_slice %338 {offsets = [0, 0], sizes = [32, 1], strides = [1, 1]} : vector<32x18xf32> to vector<32x1xf32>
    %346 = vector.broadcast %345 : vector<32x1xf32> to vector<32x32xf32>
    %347 = arith.mulf %344, %346 : vector<32x32xf32>
    %348 = arith.addf %342, %347 : vector<32x32xf32>
    %c1_206 = arith.constant 1 : index
    %c0_207 = arith.constant 0 : index
    %c0_208 = arith.constant 0 : index
    %349 = vector.load %arg3[%c1_206, %c0_207, %c0_208] : memref<9x32x64xf32, #tpu.memory_space<vmem>>, vector<1x32x32xf32>
    %350 = vector.shape_cast %349 : vector<1x32x32xf32> to vector<32x32xf32>
    %351 = vector.extract_strided_slice %338 {offsets = [0, 1], sizes = [32, 1], strides = [1, 1]} : vector<32x18xf32> to vector<32x1xf32>
    %352 = vector.broadcast %351 : vector<32x1xf32> to vector<32x32xf32>
    %353 = arith.mulf %350, %352 : vector<32x32xf32>
    %354 = arith.addf %348, %353 : vector<32x32xf32>
    %c2_209 = arith.constant 2 : index
    %c0_210 = arith.constant 0 : index
    %c0_211 = arith.constant 0 : index
    %355 = vector.load %arg3[%c2_209, %c0_210, %c0_211] : memref<9x32x64xf32, #tpu.memory_space<vmem>>, vector<1x32x32xf32>
    %356 = vector.shape_cast %355 : vector<1x32x32xf32> to vector<32x32xf32>
    %357 = vector.extract_strided_slice %338 {offsets = [0, 2], sizes = [32, 1], strides = [1, 1]} : vector<32x18xf32> to vector<32x1xf32>
    %358 = vector.broadcast %357 : vector<32x1xf32> to vector<32x32xf32>
    %359 = arith.mulf %356, %358 : vector<32x32xf32>
    %360 = arith.addf %354, %359 : vector<32x32xf32>
    %c3_212 = arith.constant 3 : index
    %c0_213 = arith.constant 0 : index
    %c0_214 = arith.constant 0 : index
    %361 = vector.load %arg3[%c3_212, %c0_213, %c0_214] : memref<9x32x64xf32, #tpu.memory_space<vmem>>, vector<1x32x32xf32>
    %362 = vector.shape_cast %361 : vector<1x32x32xf32> to vector<32x32xf32>
    %363 = vector.extract_strided_slice %338 {offsets = [0, 3], sizes = [32, 1], strides = [1, 1]} : vector<32x18xf32> to vector<32x1xf32>
    %364 = vector.broadcast %363 : vector<32x1xf32> to vector<32x32xf32>
    %365 = arith.mulf %362, %364 : vector<32x32xf32>
    %366 = arith.addf %360, %365 : vector<32x32xf32>
    %c4_215 = arith.constant 4 : index
    %c0_216 = arith.constant 0 : index
    %c0_217 = arith.constant 0 : index
    %367 = vector.load %arg3[%c4_215, %c0_216, %c0_217] : memref<9x32x64xf32, #tpu.memory_space<vmem>>, vector<1x32x32xf32>
    %368 = vector.shape_cast %367 : vector<1x32x32xf32> to vector<32x32xf32>
    %369 = vector.extract_strided_slice %338 {offsets = [0, 4], sizes = [32, 1], strides = [1, 1]} : vector<32x18xf32> to vector<32x1xf32>
    %370 = vector.broadcast %369 : vector<32x1xf32> to vector<32x32xf32>
    %371 = arith.mulf %368, %370 : vector<32x32xf32>
    %372 = arith.addf %366, %371 : vector<32x32xf32>
    %c5_218 = arith.constant 5 : index
    %c0_219 = arith.constant 0 : index
    %c0_220 = arith.constant 0 : index
    %373 = vector.load %arg3[%c5_218, %c0_219, %c0_220] : memref<9x32x64xf32, #tpu.memory_space<vmem>>, vector<1x32x32xf32>
    %374 = vector.shape_cast %373 : vector<1x32x32xf32> to vector<32x32xf32>
    %375 = vector.extract_strided_slice %338 {offsets = [0, 5], sizes = [32, 1], strides = [1, 1]} : vector<32x18xf32> to vector<32x1xf32>
    %376 = vector.broadcast %375 : vector<32x1xf32> to vector<32x32xf32>
    %377 = arith.mulf %374, %376 : vector<32x32xf32>
    %378 = arith.addf %372, %377 : vector<32x32xf32>
    %c6_221 = arith.constant 6 : index
    %c0_222 = arith.constant 0 : index
    %c0_223 = arith.constant 0 : index
    %379 = vector.load %arg3[%c6_221, %c0_222, %c0_223] : memref<9x32x64xf32, #tpu.memory_space<vmem>>, vector<1x32x32xf32>
    %380 = vector.shape_cast %379 : vector<1x32x32xf32> to vector<32x32xf32>
    %381 = vector.extract_strided_slice %338 {offsets = [0, 6], sizes = [32, 1], strides = [1, 1]} : vector<32x18xf32> to vector<32x1xf32>
    %382 = vector.broadcast %381 : vector<32x1xf32> to vector<32x32xf32>
    %383 = arith.mulf %380, %382 : vector<32x32xf32>
    %384 = arith.addf %378, %383 : vector<32x32xf32>
    %c7_224 = arith.constant 7 : index
    %c0_225 = arith.constant 0 : index
    %c0_226 = arith.constant 0 : index
    %385 = vector.load %arg3[%c7_224, %c0_225, %c0_226] : memref<9x32x64xf32, #tpu.memory_space<vmem>>, vector<1x32x32xf32>
    %386 = vector.shape_cast %385 : vector<1x32x32xf32> to vector<32x32xf32>
    %387 = vector.extract_strided_slice %338 {offsets = [0, 7], sizes = [32, 1], strides = [1, 1]} : vector<32x18xf32> to vector<32x1xf32>
    %388 = vector.broadcast %387 : vector<32x1xf32> to vector<32x32xf32>
    %389 = arith.mulf %386, %388 : vector<32x32xf32>
    %390 = arith.addf %384, %389 : vector<32x32xf32>
    %c8_227 = arith.constant 8 : index
    %c0_228 = arith.constant 0 : index
    %c0_229 = arith.constant 0 : index
    %391 = vector.load %arg3[%c8_227, %c0_228, %c0_229] : memref<9x32x64xf32, #tpu.memory_space<vmem>>, vector<1x32x32xf32>
    %392 = vector.shape_cast %391 : vector<1x32x32xf32> to vector<32x32xf32>
    %393 = vector.extract_strided_slice %338 {offsets = [0, 8], sizes = [32, 1], strides = [1, 1]} : vector<32x18xf32> to vector<32x1xf32>
    %394 = vector.broadcast %393 : vector<32x1xf32> to vector<32x32xf32>
    %395 = arith.mulf %392, %394 : vector<32x32xf32>
    %396 = arith.addf %390, %395 : vector<32x32xf32>
    %cst_230 = arith.constant dense<0xFF800000> : vector<32xf32>
    %397 = vector.multi_reduction <maximumf>, %396, %cst_230 [1] : vector<32x32xf32> to vector<32xf32>
    %398 = vector.shape_cast %397 : vector<32xf32> to vector<32x1xf32>
    %399 = vector.broadcast %398 : vector<32x1xf32> to vector<32x32xf32>
    %400 = arith.subf %396, %399 : vector<32x32xf32>
    %401 = math.exp %400 : vector<32x32xf32>
    %cst_231 = arith.constant dense<0.000000e+00> : vector<32xf32>
    %402 = vector.multi_reduction <add>, %401, %cst_231 [1] : vector<32x32xf32> to vector<32xf32>
    %403 = vector.shape_cast %402 : vector<32xf32> to vector<32x1xf32>
    %404 = tpu.reciprocal %403 {approx = true} : vector<32x1xf32> -> vector<32x1xf32>
    %405 = vector.broadcast %404 : vector<32x1xf32> to vector<32x32xf32>
    %406 = arith.mulf %401, %405 : vector<32x32xf32>
    %407 = vector.extract_strided_slice %333 {offsets = [0, 16], sizes = [32, 16], strides = [1, 1]} : vector<32x32xf32> to vector<32x16xf32>
    %408 = vector.extract_strided_slice %334 {offsets = [0, 16], sizes = [32, 16], strides = [1, 1]} : vector<32x32xf32> to vector<32x16xf32>
    %cst_232 = arith.constant dense<0.000000e+00> : vector<32x32xf32>
    %409 = tpu.matmul %407, %408, %cst_232 {dimension_numbers = #tpu.dot_dimension_numbers<[1], [1], [0], [0], [0, 0, 1, 0], [], []>} : vector<32x16xf32>, vector<32x16xf32>, vector<32x32xf32> -> vector<32x32xf32>
    %410 = arith.addf %409, %4 : vector<32x32xf32>
    %c0_233 = arith.constant 0 : index
    %c0_234 = arith.constant 0 : index
    %c0_235 = arith.constant 0 : index
    %411 = vector.load %arg3[%c0_233, %c0_234, %c0_235] : memref<9x32x64xf32, #tpu.memory_space<vmem>>, vector<1x32x32xf32>
    %412 = vector.shape_cast %411 : vector<1x32x32xf32> to vector<32x32xf32>
    %413 = vector.extract_strided_slice %338 {offsets = [0, 9], sizes = [32, 1], strides = [1, 1]} : vector<32x18xf32> to vector<32x1xf32>
    %414 = vector.broadcast %413 : vector<32x1xf32> to vector<32x32xf32>
    %415 = arith.mulf %412, %414 : vector<32x32xf32>
    %416 = arith.addf %410, %415 : vector<32x32xf32>
    %c1_236 = arith.constant 1 : index
    %c0_237 = arith.constant 0 : index
    %c0_238 = arith.constant 0 : index
    %417 = vector.load %arg3[%c1_236, %c0_237, %c0_238] : memref<9x32x64xf32, #tpu.memory_space<vmem>>, vector<1x32x32xf32>
    %418 = vector.shape_cast %417 : vector<1x32x32xf32> to vector<32x32xf32>
    %419 = vector.extract_strided_slice %338 {offsets = [0, 10], sizes = [32, 1], strides = [1, 1]} : vector<32x18xf32> to vector<32x1xf32>
    %420 = vector.broadcast %419 : vector<32x1xf32> to vector<32x32xf32>
    %421 = arith.mulf %418, %420 : vector<32x32xf32>
    %422 = arith.addf %416, %421 : vector<32x32xf32>
    %c2_239 = arith.constant 2 : index
    %c0_240 = arith.constant 0 : index
    %c0_241 = arith.constant 0 : index
    %423 = vector.load %arg3[%c2_239, %c0_240, %c0_241] : memref<9x32x64xf32, #tpu.memory_space<vmem>>, vector<1x32x32xf32>
    %424 = vector.shape_cast %423 : vector<1x32x32xf32> to vector<32x32xf32>
    %425 = vector.extract_strided_slice %338 {offsets = [0, 11], sizes = [32, 1], strides = [1, 1]} : vector<32x18xf32> to vector<32x1xf32>
    %426 = vector.broadcast %425 : vector<32x1xf32> to vector<32x32xf32>
    %427 = arith.mulf %424, %426 : vector<32x32xf32>
    %428 = arith.addf %422, %427 : vector<32x32xf32>
    %c3_242 = arith.constant 3 : index
    %c0_243 = arith.constant 0 : index
    %c0_244 = arith.constant 0 : index
    %429 = vector.load %arg3[%c3_242, %c0_243, %c0_244] : memref<9x32x64xf32, #tpu.memory_space<vmem>>, vector<1x32x32xf32>
    %430 = vector.shape_cast %429 : vector<1x32x32xf32> to vector<32x32xf32>
    %431 = vector.extract_strided_slice %338 {offsets = [0, 12], sizes = [32, 1], strides = [1, 1]} : vector<32x18xf32> to vector<32x1xf32>
    %432 = vector.broadcast %431 : vector<32x1xf32> to vector<32x32xf32>
    %433 = arith.mulf %430, %432 : vector<32x32xf32>
    %434 = arith.addf %428, %433 : vector<32x32xf32>
    %c4_245 = arith.constant 4 : index
    %c0_246 = arith.constant 0 : index
    %c0_247 = arith.constant 0 : index
    %435 = vector.load %arg3[%c4_245, %c0_246, %c0_247] : memref<9x32x64xf32, #tpu.memory_space<vmem>>, vector<1x32x32xf32>
    %436 = vector.shape_cast %435 : vector<1x32x32xf32> to vector<32x32xf32>
    %437 = vector.extract_strided_slice %338 {offsets = [0, 13], sizes = [32, 1], strides = [1, 1]} : vector<32x18xf32> to vector<32x1xf32>
    %438 = vector.broadcast %437 : vector<32x1xf32> to vector<32x32xf32>
    %439 = arith.mulf %436, %438 : vector<32x32xf32>
    %440 = arith.addf %434, %439 : vector<32x32xf32>
    %c5_248 = arith.constant 5 : index
    %c0_249 = arith.constant 0 : index
    %c0_250 = arith.constant 0 : index
    %441 = vector.load %arg3[%c5_248, %c0_249, %c0_250] : memref<9x32x64xf32, #tpu.memory_space<vmem>>, vector<1x32x32xf32>
    %442 = vector.shape_cast %441 : vector<1x32x32xf32> to vector<32x32xf32>
    %443 = vector.extract_strided_slice %338 {offsets = [0, 14], sizes = [32, 1], strides = [1, 1]} : vector<32x18xf32> to vector<32x1xf32>
    %444 = vector.broadcast %443 : vector<32x1xf32> to vector<32x32xf32>
    %445 = arith.mulf %442, %444 : vector<32x32xf32>
    %446 = arith.addf %440, %445 : vector<32x32xf32>
    %c6_251 = arith.constant 6 : index
    %c0_252 = arith.constant 0 : index
    %c0_253 = arith.constant 0 : index
    %447 = vector.load %arg3[%c6_251, %c0_252, %c0_253] : memref<9x32x64xf32, #tpu.memory_space<vmem>>, vector<1x32x32xf32>
    %448 = vector.shape_cast %447 : vector<1x32x32xf32> to vector<32x32xf32>
    %449 = vector.extract_strided_slice %338 {offsets = [0, 15], sizes = [32, 1], strides = [1, 1]} : vector<32x18xf32> to vector<32x1xf32>
    %450 = vector.broadcast %449 : vector<32x1xf32> to vector<32x32xf32>
    %451 = arith.mulf %448, %450 : vector<32x32xf32>
    %452 = arith.addf %446, %451 : vector<32x32xf32>
    %c7_254 = arith.constant 7 : index
    %c0_255 = arith.constant 0 : index
    %c0_256 = arith.constant 0 : index
    %453 = vector.load %arg3[%c7_254, %c0_255, %c0_256] : memref<9x32x64xf32, #tpu.memory_space<vmem>>, vector<1x32x32xf32>
    %454 = vector.shape_cast %453 : vector<1x32x32xf32> to vector<32x32xf32>
    %455 = vector.extract_strided_slice %338 {offsets = [0, 16], sizes = [32, 1], strides = [1, 1]} : vector<32x18xf32> to vector<32x1xf32>
    %456 = vector.broadcast %455 : vector<32x1xf32> to vector<32x32xf32>
    %457 = arith.mulf %454, %456 : vector<32x32xf32>
    %458 = arith.addf %452, %457 : vector<32x32xf32>
    %c8_257 = arith.constant 8 : index
    %c0_258 = arith.constant 0 : index
    %c0_259 = arith.constant 0 : index
    %459 = vector.load %arg3[%c8_257, %c0_258, %c0_259] : memref<9x32x64xf32, #tpu.memory_space<vmem>>, vector<1x32x32xf32>
    %460 = vector.shape_cast %459 : vector<1x32x32xf32> to vector<32x32xf32>
    %461 = vector.extract_strided_slice %338 {offsets = [0, 17], sizes = [32, 1], strides = [1, 1]} : vector<32x18xf32> to vector<32x1xf32>
    %462 = vector.broadcast %461 : vector<32x1xf32> to vector<32x32xf32>
    %463 = arith.mulf %460, %462 : vector<32x32xf32>
    %464 = arith.addf %458, %463 : vector<32x32xf32>
    %cst_260 = arith.constant dense<0xFF800000> : vector<32xf32>
    %465 = vector.multi_reduction <maximumf>, %464, %cst_260 [1] : vector<32x32xf32> to vector<32xf32>
    %466 = vector.shape_cast %465 : vector<32xf32> to vector<32x1xf32>
    %467 = vector.broadcast %466 : vector<32x1xf32> to vector<32x32xf32>
    %468 = arith.subf %464, %467 : vector<32x32xf32>
    %469 = math.exp %468 : vector<32x32xf32>
    %cst_261 = arith.constant dense<0.000000e+00> : vector<32xf32>
    %470 = vector.multi_reduction <add>, %469, %cst_261 [1] : vector<32x32xf32> to vector<32xf32>
    %471 = vector.shape_cast %470 : vector<32xf32> to vector<32x1xf32>
    %472 = tpu.reciprocal %471 {approx = true} : vector<32x1xf32> -> vector<32x1xf32>
    %473 = vector.broadcast %472 : vector<32x1xf32> to vector<32x32xf32>
    %474 = arith.mulf %469, %473 : vector<32x32xf32>
    %475 = tpu.concatenate %406, %474 in 1 : vector<32x32xf32>, vector<32x32xf32> -> vector<32x64xf32>
    %cst_262 = arith.constant 0.000000e+00 : f32
    %476 = vector.broadcast %cst_262 : f32 to vector<32x16xf32>
    %477 = vector.extract_strided_slice %335 {offsets = [0, 0], sizes = [32, 16], strides = [1, 1]} : vector<32x32xf32> to vector<32x16xf32>
    %478 = tpu.concatenate %477, %476 in 1 : vector<32x16xf32>, vector<32x16xf32> -> vector<32x32xf32>
    %479 = vector.extract_strided_slice %335 {offsets = [0, 16], sizes = [32, 16], strides = [1, 1]} : vector<32x32xf32> to vector<32x16xf32>
    %480 = tpu.concatenate %476, %479 in 1 : vector<32x16xf32>, vector<32x16xf32> -> vector<32x32xf32>
    %481 = tpu.concatenate %478, %480 in 0 : vector<32x32xf32>, vector<32x32xf32> -> vector<64x32xf32>
    %cst_263 = arith.constant dense<0.000000e+00> : vector<32x32xf32>
    %482 = tpu.matmul %475, %481, %cst_263 {dimension_numbers = #tpu.dot_dimension_numbers<[1], [0], [0], [1], [0, 0, 1, 1], [], []>} : vector<32x64xf32>, vector<64x32xf32>, vector<32x32xf32> -> vector<32x32xf32>
    %c0_264 = arith.constant 0 : index
    %c0_265 = arith.constant 0 : index
    %c0_266 = arith.constant 0 : index
    %483 = vector.load %arg3[%c0_264, %c0_265, %c0_266] : memref<9x32x64xf32, #tpu.memory_space<vmem>>, vector<1x32x64xf32>
    %484 = vector.shape_cast %483 : vector<1x32x64xf32> to vector<32x64xf32>
    %485 = arith.mulf %475, %484 : vector<32x64xf32>
    %c1_267 = arith.constant 1 : index
    %c0_268 = arith.constant 0 : index
    %c0_269 = arith.constant 0 : index
    %c0_270 = arith.constant 0 : index
    %486 = vector.load %arg5[%c1_267, %c0_268, %c0_269, %c0_270] : memref<2x9x64x32xf32, #tpu.memory_space<vmem>>, vector<1x1x64x32xf32>
    %487 = vector.shape_cast %486 : vector<1x1x64x32xf32> to vector<64x32xf32>
    %cst_271 = arith.constant dense<0.000000e+00> : vector<32x32xf32>
    %488 = tpu.matmul %485, %487, %cst_271 {dimension_numbers = #tpu.dot_dimension_numbers<[1], [0], [0], [1], [0, 0, 1, 1], [], []>} : vector<32x64xf32>, vector<64x32xf32>, vector<32x32xf32> -> vector<32x32xf32>
    %489 = arith.addf %482, %488 : vector<32x32xf32>
    %c1_272 = arith.constant 1 : index
    %c0_273 = arith.constant 0 : index
    %c0_274 = arith.constant 0 : index
    %490 = vector.load %arg3[%c1_272, %c0_273, %c0_274] : memref<9x32x64xf32, #tpu.memory_space<vmem>>, vector<1x32x64xf32>
    %491 = vector.shape_cast %490 : vector<1x32x64xf32> to vector<32x64xf32>
    %492 = arith.mulf %475, %491 : vector<32x64xf32>
    %c1_275 = arith.constant 1 : index
    %c1_276 = arith.constant 1 : index
    %c0_277 = arith.constant 0 : index
    %c0_278 = arith.constant 0 : index
    %493 = vector.load %arg5[%c1_275, %c1_276, %c0_277, %c0_278] : memref<2x9x64x32xf32, #tpu.memory_space<vmem>>, vector<1x1x64x32xf32>
    %494 = vector.shape_cast %493 : vector<1x1x64x32xf32> to vector<64x32xf32>
    %cst_279 = arith.constant dense<0.000000e+00> : vector<32x32xf32>
    %495 = tpu.matmul %492, %494, %cst_279 {dimension_numbers = #tpu.dot_dimension_numbers<[1], [0], [0], [1], [0, 0, 1, 1], [], []>} : vector<32x64xf32>, vector<64x32xf32>, vector<32x32xf32> -> vector<32x32xf32>
    %496 = arith.addf %489, %495 : vector<32x32xf32>
    %c2_280 = arith.constant 2 : index
    %c0_281 = arith.constant 0 : index
    %c0_282 = arith.constant 0 : index
    %497 = vector.load %arg3[%c2_280, %c0_281, %c0_282] : memref<9x32x64xf32, #tpu.memory_space<vmem>>, vector<1x32x64xf32>
    %498 = vector.shape_cast %497 : vector<1x32x64xf32> to vector<32x64xf32>
    %499 = arith.mulf %475, %498 : vector<32x64xf32>
    %c1_283 = arith.constant 1 : index
    %c2_284 = arith.constant 2 : index
    %c0_285 = arith.constant 0 : index
    %c0_286 = arith.constant 0 : index
    %500 = vector.load %arg5[%c1_283, %c2_284, %c0_285, %c0_286] : memref<2x9x64x32xf32, #tpu.memory_space<vmem>>, vector<1x1x64x32xf32>
    %501 = vector.shape_cast %500 : vector<1x1x64x32xf32> to vector<64x32xf32>
    %cst_287 = arith.constant dense<0.000000e+00> : vector<32x32xf32>
    %502 = tpu.matmul %499, %501, %cst_287 {dimension_numbers = #tpu.dot_dimension_numbers<[1], [0], [0], [1], [0, 0, 1, 1], [], []>} : vector<32x64xf32>, vector<64x32xf32>, vector<32x32xf32> -> vector<32x32xf32>
    %503 = arith.addf %496, %502 : vector<32x32xf32>
    %c3_288 = arith.constant 3 : index
    %c0_289 = arith.constant 0 : index
    %c0_290 = arith.constant 0 : index
    %504 = vector.load %arg3[%c3_288, %c0_289, %c0_290] : memref<9x32x64xf32, #tpu.memory_space<vmem>>, vector<1x32x64xf32>
    %505 = vector.shape_cast %504 : vector<1x32x64xf32> to vector<32x64xf32>
    %506 = arith.mulf %475, %505 : vector<32x64xf32>
    %c1_291 = arith.constant 1 : index
    %c3_292 = arith.constant 3 : index
    %c0_293 = arith.constant 0 : index
    %c0_294 = arith.constant 0 : index
    %507 = vector.load %arg5[%c1_291, %c3_292, %c0_293, %c0_294] : memref<2x9x64x32xf32, #tpu.memory_space<vmem>>, vector<1x1x64x32xf32>
    %508 = vector.shape_cast %507 : vector<1x1x64x32xf32> to vector<64x32xf32>
    %cst_295 = arith.constant dense<0.000000e+00> : vector<32x32xf32>
    %509 = tpu.matmul %506, %508, %cst_295 {dimension_numbers = #tpu.dot_dimension_numbers<[1], [0], [0], [1], [0, 0, 1, 1], [], []>} : vector<32x64xf32>, vector<64x32xf32>, vector<32x32xf32> -> vector<32x32xf32>
    %510 = arith.addf %503, %509 : vector<32x32xf32>
    %c4_296 = arith.constant 4 : index
    %c0_297 = arith.constant 0 : index
    %c0_298 = arith.constant 0 : index
    %511 = vector.load %arg3[%c4_296, %c0_297, %c0_298] : memref<9x32x64xf32, #tpu.memory_space<vmem>>, vector<1x32x64xf32>
    %512 = vector.shape_cast %511 : vector<1x32x64xf32> to vector<32x64xf32>
    %513 = arith.mulf %475, %512 : vector<32x64xf32>
    %c1_299 = arith.constant 1 : index
    %c4_300 = arith.constant 4 : index
    %c0_301 = arith.constant 0 : index
    %c0_302 = arith.constant 0 : index
    %514 = vector.load %arg5[%c1_299, %c4_300, %c0_301, %c0_302] : memref<2x9x64x32xf32, #tpu.memory_space<vmem>>, vector<1x1x64x32xf32>
    %515 = vector.shape_cast %514 : vector<1x1x64x32xf32> to vector<64x32xf32>
    %cst_303 = arith.constant dense<0.000000e+00> : vector<32x32xf32>
    %516 = tpu.matmul %513, %515, %cst_303 {dimension_numbers = #tpu.dot_dimension_numbers<[1], [0], [0], [1], [0, 0, 1, 1], [], []>} : vector<32x64xf32>, vector<64x32xf32>, vector<32x32xf32> -> vector<32x32xf32>
    %517 = arith.addf %510, %516 : vector<32x32xf32>
    %c5_304 = arith.constant 5 : index
    %c0_305 = arith.constant 0 : index
    %c0_306 = arith.constant 0 : index
    %518 = vector.load %arg3[%c5_304, %c0_305, %c0_306] : memref<9x32x64xf32, #tpu.memory_space<vmem>>, vector<1x32x64xf32>
    %519 = vector.shape_cast %518 : vector<1x32x64xf32> to vector<32x64xf32>
    %520 = arith.mulf %475, %519 : vector<32x64xf32>
    %c1_307 = arith.constant 1 : index
    %c5_308 = arith.constant 5 : index
    %c0_309 = arith.constant 0 : index
    %c0_310 = arith.constant 0 : index
    %521 = vector.load %arg5[%c1_307, %c5_308, %c0_309, %c0_310] : memref<2x9x64x32xf32, #tpu.memory_space<vmem>>, vector<1x1x64x32xf32>
    %522 = vector.shape_cast %521 : vector<1x1x64x32xf32> to vector<64x32xf32>
    %cst_311 = arith.constant dense<0.000000e+00> : vector<32x32xf32>
    %523 = tpu.matmul %520, %522, %cst_311 {dimension_numbers = #tpu.dot_dimension_numbers<[1], [0], [0], [1], [0, 0, 1, 1], [], []>} : vector<32x64xf32>, vector<64x32xf32>, vector<32x32xf32> -> vector<32x32xf32>
    %524 = arith.addf %517, %523 : vector<32x32xf32>
    %c6_312 = arith.constant 6 : index
    %c0_313 = arith.constant 0 : index
    %c0_314 = arith.constant 0 : index
    %525 = vector.load %arg3[%c6_312, %c0_313, %c0_314] : memref<9x32x64xf32, #tpu.memory_space<vmem>>, vector<1x32x64xf32>
    %526 = vector.shape_cast %525 : vector<1x32x64xf32> to vector<32x64xf32>
    %527 = arith.mulf %475, %526 : vector<32x64xf32>
    %c1_315 = arith.constant 1 : index
    %c6_316 = arith.constant 6 : index
    %c0_317 = arith.constant 0 : index
    %c0_318 = arith.constant 0 : index
    %528 = vector.load %arg5[%c1_315, %c6_316, %c0_317, %c0_318] : memref<2x9x64x32xf32, #tpu.memory_space<vmem>>, vector<1x1x64x32xf32>
    %529 = vector.shape_cast %528 : vector<1x1x64x32xf32> to vector<64x32xf32>
    %cst_319 = arith.constant dense<0.000000e+00> : vector<32x32xf32>
    %530 = tpu.matmul %527, %529, %cst_319 {dimension_numbers = #tpu.dot_dimension_numbers<[1], [0], [0], [1], [0, 0, 1, 1], [], []>} : vector<32x64xf32>, vector<64x32xf32>, vector<32x32xf32> -> vector<32x32xf32>
    %531 = arith.addf %524, %530 : vector<32x32xf32>
    %c7_320 = arith.constant 7 : index
    %c0_321 = arith.constant 0 : index
    %c0_322 = arith.constant 0 : index
    %532 = vector.load %arg3[%c7_320, %c0_321, %c0_322] : memref<9x32x64xf32, #tpu.memory_space<vmem>>, vector<1x32x64xf32>
    %533 = vector.shape_cast %532 : vector<1x32x64xf32> to vector<32x64xf32>
    %534 = arith.mulf %475, %533 : vector<32x64xf32>
    %c1_323 = arith.constant 1 : index
    %c7_324 = arith.constant 7 : index
    %c0_325 = arith.constant 0 : index
    %c0_326 = arith.constant 0 : index
    %535 = vector.load %arg5[%c1_323, %c7_324, %c0_325, %c0_326] : memref<2x9x64x32xf32, #tpu.memory_space<vmem>>, vector<1x1x64x32xf32>
    %536 = vector.shape_cast %535 : vector<1x1x64x32xf32> to vector<64x32xf32>
    %cst_327 = arith.constant dense<0.000000e+00> : vector<32x32xf32>
    %537 = tpu.matmul %534, %536, %cst_327 {dimension_numbers = #tpu.dot_dimension_numbers<[1], [0], [0], [1], [0, 0, 1, 1], [], []>} : vector<32x64xf32>, vector<64x32xf32>, vector<32x32xf32> -> vector<32x32xf32>
    %538 = arith.addf %531, %537 : vector<32x32xf32>
    %c8_328 = arith.constant 8 : index
    %c0_329 = arith.constant 0 : index
    %c0_330 = arith.constant 0 : index
    %539 = vector.load %arg3[%c8_328, %c0_329, %c0_330] : memref<9x32x64xf32, #tpu.memory_space<vmem>>, vector<1x32x64xf32>
    %540 = vector.shape_cast %539 : vector<1x32x64xf32> to vector<32x64xf32>
    %541 = arith.mulf %475, %540 : vector<32x64xf32>
    %c1_331 = arith.constant 1 : index
    %c8_332 = arith.constant 8 : index
    %c0_333 = arith.constant 0 : index
    %c0_334 = arith.constant 0 : index
    %542 = vector.load %arg5[%c1_331, %c8_332, %c0_333, %c0_334] : memref<2x9x64x32xf32, #tpu.memory_space<vmem>>, vector<1x1x64x32xf32>
    %543 = vector.shape_cast %542 : vector<1x1x64x32xf32> to vector<64x32xf32>
    %cst_335 = arith.constant dense<0.000000e+00> : vector<32x32xf32>
    %544 = tpu.matmul %541, %543, %cst_335 {dimension_numbers = #tpu.dot_dimension_numbers<[1], [0], [0], [1], [0, 0, 1, 1], [], []>} : vector<32x64xf32>, vector<64x32xf32>, vector<32x32xf32> -> vector<32x32xf32>
    %545 = arith.addf %538, %544 : vector<32x32xf32>
    %c1_336 = arith.constant 1 : index
    %c0_337 = arith.constant 0 : index
    %c114_338 = arith.constant 114 : index
    %546 = vector.load %arg4[%c1_336, %c0_337, %c114_338] : memref<2x32x147xf32, #tpu.memory_space<vmem>>, vector<1x32x32xf32>
    %547 = vector.shape_cast %546 : vector<1x32x32xf32> to vector<32x32xf32>
    %cst_339 = arith.constant dense<0.000000e+00> : vector<32x32xf32>
    %548 = tpu.matmul %545, %547, %cst_339 {dimension_numbers = #tpu.dot_dimension_numbers<[1], [0], [0], [1], [0, 0, 1, 1], [], []>} : vector<32x32xf32>, vector<32x32xf32>, vector<32x32xf32> -> vector<32x32xf32>
    %c1_340 = arith.constant 1 : index
    %c1_341 = arith.constant 1 : index
    %c0_342 = arith.constant 0 : index
    %549 = vector.load %arg8[%c1_340, %c1_341, %c0_342] : memref<2x8x128xf32, #tpu.memory_space<vmem>>, vector<1x1x32xf32>
    %550 = vector.shape_cast %549 : vector<1x1x32xf32> to vector<1x32xf32>
    %551 = vector.broadcast %550 : vector<1x32xf32> to vector<32x32xf32>
    %552 = arith.addf %548, %551 : vector<32x32xf32>
    %553 = arith.addf %323, %552 : vector<32x32xf32>
    %c1_343 = arith.constant 1 : index
    %c2_344 = arith.constant 2 : index
    %c0_345 = arith.constant 0 : index
    %554 = vector.load %arg8[%c1_343, %c2_344, %c0_345] : memref<2x8x128xf32, #tpu.memory_space<vmem>>, vector<1x1x32xf32>
    %555 = vector.shape_cast %554 : vector<1x1x32xf32> to vector<1x32xf32>
    %c1_346 = arith.constant 1 : index
    %c3_347 = arith.constant 3 : index
    %c0_348 = arith.constant 0 : index
    %556 = vector.load %arg8[%c1_346, %c3_347, %c0_348] : memref<2x8x128xf32, #tpu.memory_space<vmem>>, vector<1x1x32xf32>
    %557 = vector.shape_cast %556 : vector<1x1x32xf32> to vector<1x32xf32>
    %cst_349 = arith.constant dense<0.000000e+00> : vector<32xf32>
    %558 = vector.multi_reduction <add>, %553, %cst_349 [1] : vector<32x32xf32> to vector<32xf32>
    %559 = vector.shape_cast %558 : vector<32xf32> to vector<32x1xf32>
    %cst_350 = arith.constant 3.200000e+01 : f32
    %560 = vector.broadcast %cst_350 : f32 to vector<32x1xf32>
    %561 = arith.divf %559, %560 : vector<32x1xf32>
    %562 = vector.broadcast %561 : vector<32x1xf32> to vector<32x32xf32>
    %563 = arith.subf %553, %562 : vector<32x32xf32>
    %564 = arith.mulf %563, %563 : vector<32x32xf32>
    %cst_351 = arith.constant dense<0.000000e+00> : vector<32xf32>
    %565 = vector.multi_reduction <add>, %564, %cst_351 [1] : vector<32x32xf32> to vector<32xf32>
    %566 = vector.shape_cast %565 : vector<32xf32> to vector<32x1xf32>
    %cst_352 = arith.constant 3.200000e+01 : f32
    %567 = vector.broadcast %cst_352 : f32 to vector<32x1xf32>
    %568 = arith.divf %566, %567 : vector<32x1xf32>
    %cst_353 = arith.constant 9.99999974E-6 : f32
    %569 = vector.broadcast %cst_353 : f32 to vector<32x1xf32>
    %570 = arith.addf %568, %569 : vector<32x1xf32>
    %571 = math.rsqrt %570 : vector<32x1xf32>
    %572 = vector.broadcast %571 : vector<32x1xf32> to vector<32x32xf32>
    %573 = arith.mulf %563, %572 : vector<32x32xf32>
    %574 = vector.broadcast %555 : vector<1x32xf32> to vector<32x32xf32>
    %575 = arith.mulf %573, %574 : vector<32x32xf32>
    %576 = vector.broadcast %557 : vector<1x32xf32> to vector<32x32xf32>
    %577 = arith.addf %575, %576 : vector<32x32xf32>
    %578 = vector.broadcast %1 : vector<32x1xf32> to vector<32x32xf32>
    %579 = arith.mulf %577, %578 : vector<32x32xf32>
    %c1_i32_354 = arith.constant 1 : i32
    %580 = tpu.dynamic_rotate %579 by %c1_i32_354 dim 0 : vector<32x32xf32>, i32 -> vector<32x32xf32>
    %581 = vector.broadcast %2 : vector<32x1xf32> to vector<32x32xf32>
    %582 = arith.mulf %580, %581 : vector<32x32xf32>
    %c31_i32_355 = arith.constant 31 : i32
    %583 = tpu.dynamic_rotate %579 by %c31_i32_355 dim 0 : vector<32x32xf32>, i32 -> vector<32x32xf32>
    %584 = vector.broadcast %3 : vector<32x1xf32> to vector<32x32xf32>
    %585 = arith.mulf %583, %584 : vector<32x32xf32>
    %586 = tpu.concatenate %582, %579, %585 in 1 : vector<32x32xf32>, vector<32x32xf32>, vector<32x32xf32> -> vector<32x96xf32>
    %c1_356 = arith.constant 1 : index
    %c0_357 = arith.constant 0 : index
    %c0_358 = arith.constant 0 : index
    %587 = vector.load %arg6[%c1_356, %c0_357, %c0_358] : memref<2x96x64xf32, #tpu.memory_space<vmem>>, vector<1x96x64xf32>
    %588 = vector.shape_cast %587 : vector<1x96x64xf32> to vector<96x64xf32>
    %cst_359 = arith.constant dense<0.000000e+00> : vector<32x64xf32>
    %589 = tpu.matmul %586, %588, %cst_359 {dimension_numbers = #tpu.dot_dimension_numbers<[1], [0], [0], [1], [0, 0, 1, 1], [], []>} : vector<32x96xf32>, vector<96x64xf32>, vector<32x64xf32> -> vector<32x64xf32>
    %c1_360 = arith.constant 1 : index
    %c4_361 = arith.constant 4 : index
    %c0_362 = arith.constant 0 : index
    %590 = vector.load %arg8[%c1_360, %c4_361, %c0_362] : memref<2x8x128xf32, #tpu.memory_space<vmem>>, vector<1x1x64xf32>
    %591 = vector.shape_cast %590 : vector<1x1x64xf32> to vector<1x64xf32>
    %592 = vector.broadcast %591 : vector<1x64xf32> to vector<32x64xf32>
    %593 = arith.addf %589, %592 : vector<32x64xf32>
    %cst_363 = arith.constant 0.000000e+00 : f32
    %594 = vector.broadcast %cst_363 : f32 to vector<32x64xf32>
    %595 = arith.maximumf %593, %594 : vector<32x64xf32>
    %596 = vector.broadcast %1 : vector<32x1xf32> to vector<32x64xf32>
    %597 = arith.mulf %595, %596 : vector<32x64xf32>
    %c1_i32_364 = arith.constant 1 : i32
    %598 = tpu.dynamic_rotate %597 by %c1_i32_364 dim 0 : vector<32x64xf32>, i32 -> vector<32x64xf32>
    %599 = vector.broadcast %2 : vector<32x1xf32> to vector<32x64xf32>
    %600 = arith.mulf %598, %599 : vector<32x64xf32>
    %c31_i32_365 = arith.constant 31 : i32
    %601 = tpu.dynamic_rotate %597 by %c31_i32_365 dim 0 : vector<32x64xf32>, i32 -> vector<32x64xf32>
    %602 = vector.broadcast %3 : vector<32x1xf32> to vector<32x64xf32>
    %603 = arith.mulf %601, %602 : vector<32x64xf32>
    %604 = tpu.concatenate %600, %597, %603 in 1 : vector<32x64xf32>, vector<32x64xf32>, vector<32x64xf32> -> vector<32x192xf32>
    %c1_366 = arith.constant 1 : index
    %c0_367 = arith.constant 0 : index
    %c0_368 = arith.constant 0 : index
    %605 = vector.load %arg7[%c1_366, %c0_367, %c0_368] : memref<2x192x32xf32, #tpu.memory_space<vmem>>, vector<1x192x1xf32>
    %606 = vector.shape_cast %605 : vector<1x192x1xf32> to vector<192x1xf32>
    %cst_369 = arith.constant dense<0.000000e+00> : vector<32x1xf32>
    %607 = tpu.matmul %604, %606, %cst_369 {dimension_numbers = #tpu.dot_dimension_numbers<[1], [0], [0], [1], [0, 0, 1, 1], [], []>} : vector<32x192xf32>, vector<192x1xf32>, vector<32x1xf32> -> vector<32x1xf32>
    %c1_370 = arith.constant 1 : index
    %c5_371 = arith.constant 5 : index
    %c0_372 = arith.constant 0 : index
    %608 = vector.load %arg8[%c1_370, %c5_371, %c0_372] : memref<2x8x128xf32, #tpu.memory_space<vmem>>, vector<1x1x1xf32>
    %609 = vector.shape_cast %608 : vector<1x1x1xf32> to vector<1x1xf32>
    %610 = vector.broadcast %609 : vector<1x1xf32> to vector<32x1xf32>
    %611 = arith.addf %607, %610 : vector<32x1xf32>
    %612 = arith.mulf %611, %1 : vector<32x1xf32>
    %c1_373 = arith.constant 1 : index
    %c0_374 = arith.constant 0 : index
    %c146 = arith.constant 146 : index
    %613 = vector.load %arg4[%c1_373, %c0_374, %c146] : memref<2x32x147xf32, #tpu.memory_space<vmem>>, vector<1x32x1xf32>
    %614 = vector.shape_cast %613 : vector<1x32x1xf32> to vector<32x1xf32>
    %cst_375 = arith.constant dense<0.000000e+00> : vector<32x1xf32>
    %615 = tpu.matmul %577, %614, %cst_375 {dimension_numbers = #tpu.dot_dimension_numbers<[1], [0], [0], [1], [0, 0, 1, 1], [], []>} : vector<32x32xf32>, vector<32x1xf32>, vector<32x1xf32> -> vector<32x1xf32>
    %c1_376 = arith.constant 1 : index
    %c1_377 = arith.constant 1 : index
    %c32 = arith.constant 32 : index
    %616 = vector.load %arg8[%c1_376, %c1_377, %c32] : memref<2x8x128xf32, #tpu.memory_space<vmem>>, vector<1x1x1xf32>
    %617 = vector.shape_cast %616 : vector<1x1x1xf32> to vector<1x1xf32>
    %618 = vector.broadcast %617 : vector<1x1xf32> to vector<32x1xf32>
    %619 = arith.addf %615, %618 : vector<32x1xf32>
    %620 = arith.addf %619, %612 : vector<32x1xf32>
    %c1_378 = arith.constant 1 : index
    %c6_379 = arith.constant 6 : index
    %c0_380 = arith.constant 0 : index
    %621 = vector.load %arg8[%c1_378, %c6_379, %c0_380] : memref<2x8x128xf32, #tpu.memory_space<vmem>>, vector<1x1x1xf32>
    %622 = vector.shape_cast %621 : vector<1x1x1xf32> to vector<1x1xf32>
    %c1_381 = arith.constant 1 : index
    %c7_382 = arith.constant 7 : index
    %c0_383 = arith.constant 0 : index
    %623 = vector.load %arg8[%c1_381, %c7_382, %c0_383] : memref<2x8x128xf32, #tpu.memory_space<vmem>>, vector<1x1x1xf32>
    %624 = vector.shape_cast %623 : vector<1x1x1xf32> to vector<1x1xf32>
    %cst_384 = arith.constant dense<0.000000e+00> : vector<32xf32>
    %625 = vector.multi_reduction <add>, %620, %cst_384 [1] : vector<32x1xf32> to vector<32xf32>
    %626 = vector.shape_cast %625 : vector<32xf32> to vector<32x1xf32>
    %cst_385 = arith.constant 1.000000e+00 : f32
    %627 = vector.broadcast %cst_385 : f32 to vector<32x1xf32>
    %628 = arith.divf %626, %627 : vector<32x1xf32>
    %629 = arith.subf %620, %628 : vector<32x1xf32>
    %630 = arith.mulf %629, %629 : vector<32x1xf32>
    %cst_386 = arith.constant dense<0.000000e+00> : vector<32xf32>
    %631 = vector.multi_reduction <add>, %630, %cst_386 [1] : vector<32x1xf32> to vector<32xf32>
    %632 = vector.shape_cast %631 : vector<32xf32> to vector<32x1xf32>
    %cst_387 = arith.constant 1.000000e+00 : f32
    %633 = vector.broadcast %cst_387 : f32 to vector<32x1xf32>
    %634 = arith.divf %632, %633 : vector<32x1xf32>
    %cst_388 = arith.constant 9.99999974E-6 : f32
    %635 = vector.broadcast %cst_388 : f32 to vector<32x1xf32>
    %636 = arith.addf %634, %635 : vector<32x1xf32>
    %637 = math.rsqrt %636 : vector<32x1xf32>
    %638 = arith.mulf %629, %637 : vector<32x1xf32>
    %639 = vector.broadcast %622 : vector<1x1xf32> to vector<32x1xf32>
    %640 = arith.mulf %638, %639 : vector<32x1xf32>
    %641 = vector.broadcast %624 : vector<1x1xf32> to vector<32x1xf32>
    %642 = arith.addf %640, %641 : vector<32x1xf32>
    %643 = arith.mulf %642, %1 : vector<32x1xf32>
    %c0_389 = arith.constant 0 : index
    %c0_390 = arith.constant 0 : index
    %644 = vector.load %arg9[%c0_389, %c0_390] : memref<32x1xf32, #tpu.memory_space<vmem>>, vector<32x1xf32>
    tpu.vector_store %arg9[%c0_389, %c0_390], %643 {strides = array<i32>} : memref<32x1xf32, #tpu.memory_space<vmem>>, vector<32x1xf32>,
    return
  }
}

</mosaic_0001>

<llo_original>
// kernel: tile.9
$region0: #{tile.9}
  %s0 = inlined_call_operand.vmem [shape: f32[9,32,2,32], index: 0, kind: input, shape index: {}]
  %s1 = inlined_call_operand.vmem [shape: f32[9,32,64], index: 1, kind: output, shape index: {}]
  $region1: #{tile.9} parent=0
    #allocation0 [shape = 'u8[1179648]{0}', space=vmem, size = 0x120000, scoped, tag = 'scoped mem for input reshape']
    %s3 = ssub.s32 4, 1
    %s4 = scalar_lea.vmem %s0, 574
    %v5 = vld [vmem:[%s4] sm:%s3]
    %s6 = scalar_lea.vmem [#allocation0], 2296
    %7 = vst [vmem:[%s6] sm:%s3] %v5
    %s8 = scalar_lea.vmem %s0, 572
    %v9 = vld [vmem:[%s8] sm:%s3]
    %s10 = scalar_lea.vmem [#allocation0], 2288
    %11 = vst [vmem:[%s10] sm:%s3] %v9
    %s12 = scalar_lea.vmem %s0, 570
    %v13 = vld [vmem:[%s12] sm:%s3]
    %s14 = scalar_lea.vmem [#allocation0], 2280
    %15 = vst [vmem:[%s14] sm:%s3] %v13
    %s16 = scalar_lea.vmem %s0, 568
    %v17 = vld [vmem:[%s16] sm:%s3]
    %s18 = scalar_lea.vmem [#allocation0], 2272
    %19 = vst [vmem:[%s18] sm:%s3] %v17
    %s20 = scalar_lea.vmem %s0, 566
    %v21 = vld [vmem:[%s20] sm:%s3]
    %s22 = scalar_lea.vmem [#allocation0], 2264
    %23 = vst [vmem:[%s22] sm:%s3] %v21
    %s24 = scalar_lea.vmem %s0, 564
    %v25 = vld [vmem:[%s24] sm:%s3]
    %s26 = scalar_lea.vmem [#allocation0], 2256
    %27 = vst [vmem:[%s26] sm:%s3] %v25
    %s28 = scalar_lea.vmem %s0, 562
    %v29 = vld [vmem:[%s28] sm:%s3]
    %s30 = scalar_lea.vmem [#allocation0], 2248
    %31 = vst [vmem:[%s30] sm:%s3] %v29
    %s32 = scalar_lea.vmem %s0, 560
    %v33 = vld [vmem:[%s32] sm:%s3]
    %s34 = scalar_lea.vmem [#allocation0], 2240
    %35 = vst [vmem:[%s34] sm:%s3] %v33
    %s36 = scalar_lea.vmem %s0, 558
    %v37 = vld [vmem:[%s36] sm:%s3]
    %s38 = scalar_lea.vmem [#allocation0], 2232
    %39 = vst [vmem:[%s38] sm:%s3] %v37
    %s40 = scalar_lea.vmem %s0, 556
    %v41 = vld [vmem:[%s40] sm:%s3]
    %s42 = scalar_lea.vmem [#allocation0], 2224
    %43 = vst [vmem:[%s42] sm:%s3] %v41
    %s44 = scalar_lea.vmem %s0, 554
    %v45 = vld [vmem:[%s44] sm:%s3]
    %s46 = scalar_lea.vmem [#allocation0], 2216
    %47 = vst [vmem:[%s46] sm:%s3] %v45
    %s48 = scalar_lea.vmem %s0, 552
    %v49 = vld [vmem:[%s48] sm:%s3]
    %s50 = scalar_lea.vmem [#allocation0], 2208
    %51 = vst [vmem:[%s50] sm:%s3] %v49
    %s52 = scalar_lea.vmem %s0, 550
    %v53 = vld [vmem:[%s52] sm:%s3]
    %s54 = scalar_lea.vmem [#allocation0], 2200
    %55 = vst [vmem:[%s54] sm:%s3] %v53
    %s56 = scalar_lea.vmem %s0, 548
    %v57 = vld [vmem:[%s56] sm:%s3]
    %s58 = scalar_lea.vmem [#allocation0], 2192
    %59 = vst [vmem:[%s58] sm:%s3] %v57
    %s60 = scalar_lea.vmem %s0, 546
    %v61 = vld [vmem:[%s60] sm:%s3]
    %s62 = scalar_lea.vmem [#allocation0], 2184
    %63 = vst [vmem:[%s62] sm:%s3] %v61
    %s64 = scalar_lea.vmem %s0, 544
    %v65 = vld [vmem:[%s64] sm:%s3]
    %s66 = scalar_lea.vmem [#allocation0], 2176
    %67 = vst [vmem:[%s66] sm:%s3] %v65
    %s68 = scalar_lea.vmem %s0, 542
    %v69 = vld [vmem:[%s68] sm:%s3]
    %s70 = scalar_lea.vmem [#allocation0], 2168
    %71 = vst [vmem:[%s70] sm:%s3] %v69
    %s72 = scalar_lea.vmem %s0, 540
    %v73 = vld [vmem:[%s72] sm:%s3]
    %s74 = scalar_lea.vmem [#allocation0], 2160
    %75 = vst [vmem:[%s74] sm:%s3] %v73
    %s76 = scalar_lea.vmem %s0, 538
    %v77 = vld [vmem:[%s76] sm:%s3]
    %s78 = scalar_lea.vmem [#allocation0], 2152
    %79 = vst [vmem:[%s78] sm:%s3] %v77
    %s80 = scalar_lea.vmem %s0, 536
    %v81 = vld [vmem:[%s80] sm:%s3]
    %s82 = scalar_lea.vmem [#allocation0], 2144
    %83 = vst [vmem:[%s82] sm:%s3] %v81
    %s84 = scalar_lea.vmem %s0, 534
    %v85 = vld [vmem:[%s84] sm:%s3]
    %s86 = scalar_lea.vmem [#allocation0], 2136
    %87 = vst [vmem:[%s86] sm:%s3] %v85
    %s88 = scalar_lea.vmem %s0, 532
    %v89 = vld [vmem:[%s88] sm:%s3]
    %s90 = scalar_lea.vmem [#allocation0], 2128
    %91 = vst [vmem:[%s90] sm:%s3] %v89
    %s92 = scalar_lea.vmem %s0, 530
    %v93 = vld [vmem:[%s92] sm:%s3]
    %s94 = scalar_lea.vmem [#allocation0], 2120
    %95 = vst [vmem:[%s94] sm:%s3] %v93
    %s96 = scalar_lea.vmem %s0, 528
    %v97 = vld [vmem:[%s96] sm:%s3]
    %s98 = scalar_lea.vmem [#allocation0], 2112
    %99 = vst [vmem:[%s98] sm:%s3] %v97
    %s100 = scalar_lea.vmem %s0, 526
    %v101 = vld [vmem:[%s100] sm:%s3]
    %s102 = scalar_lea.vmem [#allocation0], 2104
    %103 = vst [vmem:[%s102] sm:%s3] %v101
    %s104 = scalar_lea.vmem %s0, 524
    %v105 = vld [vmem:[%s104] sm:%s3]
    %s106 = scalar_lea.vmem [#allocation0], 2096
    %107 = vst [vmem:[%s106] sm:%s3] %v105
    %s108 = scalar_lea.vmem %s0, 522
    %v109 = vld [vmem:[%s108] sm:%s3]
    %s110 = scalar_lea.vmem [#allocation0], 2088
    %111 = vst [vmem:[%s110] sm:%s3] %v109
    %s112 = scalar_lea.vmem %s0, 520
    %v113 = vld [vmem:[%s112] sm:%s3]
    %s114 = scalar_lea.vmem [#allocation0], 2080
    %115 = vst [vmem:[%s114] sm:%s3] %v113
    %s116 = scalar_lea.vmem %s0, 518
    %v117 = vld [vmem:[%s116] sm:%s3]
    %s118 = scalar_lea.vmem [#allocation0], 2072
    %119 = vst [vmem:[%s118] sm:%s3] %v117
    %s120 = scalar_lea.vmem %s0, 516
    %v121 = vld [vmem:[%s120] sm:%s3]
    %s122 = scalar_lea.vmem [#allocation0], 2064
    %123 = vst [vmem:[%s122] sm:%s3] %v121
    %s124 = scalar_lea.vmem %s0, 514
    %v125 = vld [vmem:[%s124] sm:%s3]
    %s126 = scalar_lea.vmem [#allocation0], 2056
    %127 = vst [vmem:[%s126] sm:%s3] %v125
    %s128 = scalar_lea.vmem %s0, 512
    %v129 = vld [vmem:[%s128] sm:%s3]
    %s130 = scalar_lea.vmem [#allocation0], 2048
    %131 = vst [vmem:[%s130] sm:%s3] %v129
    %s132 = scalar_lea.vmem %s0, 510
    %v133 = vld [vmem:[%s132] sm:%s3]
    %s134 = scalar_lea.vmem [#allocation0], 2040
    %135 = vst [vmem:[%s134] sm:%s3] %v133
    %s136 = scalar_lea.vmem %s0, 508
    %v137 = vld [vmem:[%s136] sm:%s3]
    %s138 = scalar_lea.vmem [#allocation0], 2032
    %139 = vst [vmem:[%s138] sm:%s3] %v137
    %s140 = scalar_lea.vmem %s0, 506
    %v141 = vld [vmem:[%s140] sm:%s3]
    %s142 = scalar_lea.vmem [#allocation0], 2024
    %143 = vst [vmem:[%s142] sm:%s3] %v141
    %s144 = scalar_lea.vmem %s0, 504
    %v145 = vld [vmem:[%s144] sm:%s3]
    %s146 = scalar_lea.vmem [#allocation0], 2016
    %147 = vst [vmem:[%s146] sm:%s3] %v145
    %s148 = scalar_lea.vmem %s0, 502
    %v149 = vld [vmem:[%s148] sm:%s3]
    %s150 = scalar_lea.vmem [#allocation0], 2008
    %151 = vst [vmem:[%s150] sm:%s3] %v149
    %s152 = scalar_lea.vmem %s0, 500
    %v153 = vld [vmem:[%s152] sm:%s3]
    %s154 = scalar_lea.vmem [#allocation0], 2000
    %155 = vst [vmem:[%s154] sm:%s3] %v153
    %s156 = scalar_lea.vmem %s0, 498
    %v157 = vld [vmem:[%s156] sm:%s3]
    %s158 = scalar_lea.vmem [#allocation0], 1992
    %159 = vst [vmem:[%s158] sm:%s3] %v157
    %s160 = scalar_lea.vmem %s0, 496
    %v161 = vld [vmem:[%s160] sm:%s3]
    %s162 = scalar_lea.vmem [#allocation0], 1984
    %163 = vst [vmem:[%s162] sm:%s3] %v161
    %s164 = scalar_lea.vmem %s0, 494
    %v165 = vld [vmem:[%s164] sm:%s3]
    %s166 = scalar_lea.vmem [#allocation0], 1976
    %167 = vst [vmem:[%s166] sm:%s3] %v165
    %s168 = scalar_lea.vmem %s0, 492
    %v169 = vld [vmem:[%s168] sm:%s3]
    %s170 = scalar_lea.vmem [#allocation0], 1968
    %171 = vst [vmem:[%s170] sm:%s3] %v169
    %s172 = scalar_lea.vmem %s0, 490
    %v173 = vld [vmem:[%s172] sm:%s3]
    %s174 = scalar_lea.vmem [#allocation0], 1960
    %175 = vst [vmem:[%s174] sm:%s3] %v173
    %s176 = scalar_lea.vmem %s0, 488
    %v177 = vld [vmem:[%s176] sm:%s3]
    %s178 = scalar_lea.vmem [#allocation0], 1952
    %179 = vst [vmem:[%s178] sm:%s3] %v177
    %s180 = scalar_lea.vmem %s0, 486
    %v181 = vld [vmem:[%s180] sm:%s3]
    %s182 = scalar_lea.vmem [#allocation0], 1944
    %183 = vst [vmem:[%s182] sm:%s3] %v181
    %s184 = scalar_lea.vmem %s0, 484
    %v185 = vld [vmem:[%s184] sm:%s3]
    %s186 = scalar_lea.vmem [#allocation0], 1936
    %187 = vst [vmem:[%s186] sm:%s3] %v185
    %s188 = scalar_lea.vmem %s0, 482
    %v189 = vld [vmem:[%s188] sm:%s3]
    %s190 = scalar_lea.vmem [#allocation0], 1928
    %191 = vst [vmem:[%s190] sm:%s3] %v189
    %s192 = scalar_lea.vmem %s0, 480
    %v193 = vld [vmem:[%s192] sm:%s3]
    %s194 = scalar_lea.vmem [#allocation0], 1920
    %195 = vst [vmem:[%s194] sm:%s3] %v193
    %s196 = scalar_lea.vmem %s0, 478
    %v197 = vld [vmem:[%s196] sm:%s3]
    %s198 = scalar_lea.vmem [#allocation0], 1912
    %199 = vst [vmem:[%s198] sm:%s3] %v197
    %s200 = scalar_lea.vmem %s0, 476
    %v201 = vld [vmem:[%s200] sm:%s3]
    %s202 = scalar_lea.vmem [#allocation0], 1904
    %203 = vst [vmem:[%s202] sm:%s3] %v201
    %s204 = scalar_lea.vmem %s0, 474
    %v205 = vld [vmem:[%s204] sm:%s3]
    %s206 = scalar_lea.vmem [#allocation0], 1896
    %207 = vst [vmem:[%s206] sm:%s3] %v205
    %s208 = scalar_lea.vmem %s0, 472
    %v209 = vld [vmem:[%s208] sm:%s3]
    %s210 = scalar_lea.vmem [#allocation0], 1888
    %211 = vst [vmem:[%s210] sm:%s3] %v209
    %s212 = scalar_lea.vmem %s0, 470
    %v213 = vld [vmem:[%s212] sm:%s3]
    %s214 = scalar_lea.vmem [#allocation0], 1880
    %215 = vst [vmem:[%s214] sm:%s3] %v213
    %s216 = scalar_lea.vmem %s0, 468
    %v217 = vld [vmem:[%s216] sm:%s3]
    %s218 = scalar_lea.vmem [#allocation0], 1872
    %219 = vst [vmem:[%s218] sm:%s3] %v217
    %s220 = scalar_lea.vmem %s0, 466
    %v221 = vld [vmem:[%s220] sm:%s3]
    %s222 = scalar_lea.vmem [#allocation0], 1864
    %223 = vst [vmem:[%s222] sm:%s3] %v221
    %s224 = scalar_lea.vmem %s0, 464
    %v225 = vld [vmem:[%s224] sm:%s3]
    %s226 = scalar_lea.vmem [#allocation0], 1856
    %227 = vst [vmem:[%s226] sm:%s3] %v225
    %s228 = scalar_lea.vmem %s0, 462
    %v229 = vld [vmem:[%s228] sm:%s3]
    %s230 = scalar_lea.vmem [#allocation0], 1848
    %231 = vst [vmem:[%s230] sm:%s3] %v229
    %s232 = scalar_lea.vmem %s0, 460
    %v233 = vld [vmem:[%s232] sm:%s3]
    %s234 = scalar_lea.vmem [#allocation0], 1840
    %235 = vst [vmem:[%s234] sm:%s3] %v233
    %s236 = scalar_lea.vmem %s0, 458
    %v237 = vld [vmem:[%s236] sm:%s3]
    %s238 = scalar_lea.vmem [#allocation0], 1832
    %239 = vst [vmem:[%s238] sm:%s3] %v237
    %s240 = scalar_lea.vmem %s0, 456
    %v241 = vld [vmem:[%s240] sm:%s3]
    %s242 = scalar_lea.vmem [#allocation0], 1824
    %243 = vst [vmem:[%s242] sm:%s3] %v241
    %s244 = scalar_lea.vmem %s0, 454
    %v245 = vld [vmem:[%s244] sm:%s3]
    %s246 = scalar_lea.vmem [#allocation0], 1816
    %247 = vst [vmem:[%s246] sm:%s3] %v245
    %s248 = scalar_lea.vmem %s0, 452
    %v249 = vld [vmem:[%s248] sm:%s3]
    %s250 = scalar_lea.vmem [#allocation0], 1808
    %251 = vst [vmem:[%s250] sm:%s3] %v249
    %s252 = scalar_lea.vmem %s0, 450
    %v253 = vld [vmem:[%s252] sm:%s3]
    %s254 = scalar_lea.vmem [#allocation0], 1800
    %255 = vst [vmem:[%s254] sm:%s3] %v253
    %s256 = scalar_lea.vmem %s0, 448
    %v257 = vld [vmem:[%s256] sm:%s3]
    %s258 = scalar_lea.vmem [#allocation0], 1792
    %259 = vst [vmem:[%s258] sm:%s3] %v257
    %s260 = scalar_lea.vmem %s0, 446
    %v261 = vld [vmem:[%s260] sm:%s3]
    %s262 = scalar_lea.vmem [#allocation0], 1784
    %263 = vst [vmem:[%s262] sm:%s3] %v261
    %s264 = scalar_lea.vmem %s0, 444
    %v265 = vld [vmem:[%s264] sm:%s3]
    %s266 = scalar_lea.vmem [#allocation0], 1776
    %267 = vst [vmem:[%s266] sm:%s3] %v265
    %s268 = scalar_lea.vmem %s0, 442
    %v269 = vld [vmem:[%s268] sm:%s3]
    %s270 = scalar_lea.vmem [#allocation0], 1768
    %271 = vst [vmem:[%s270] sm:%s3] %v269
    %s272 = scalar_lea.vmem %s0, 440
    %v273 = vld [vmem:[%s272] sm:%s3]
    %s274 = scalar_lea.vmem [#allocation0], 1760
    %275 = vst [vmem:[%s274] sm:%s3] %v273
    %s276 = scalar_lea.vmem %s0, 438
    %v277 = vld [vmem:[%s276] sm:%s3]
    %s278 = scalar_lea.vmem [#allocation0], 1752
    %279 = vst [vmem:[%s278] sm:%s3] %v277
    %s280 = scalar_lea.vmem %s0, 436
    %v281 = vld [vmem:[%s280] sm:%s3]
    %s282 = scalar_lea.vmem [#allocation0], 1744
    %283 = vst [vmem:[%s282] sm:%s3] %v281
    %s284 = scalar_lea.vmem %s0, 434
    %v285 = vld [vmem:[%s284] sm:%s3]
    %s286 = scalar_lea.vmem [#allocation0], 1736
    %287 = vst [vmem:[%s286] sm:%s3] %v285
    %s288 = scalar_lea.vmem %s0, 432
    %v289 = vld [vmem:[%s288] sm:%s3]
    %s290 = scalar_lea.vmem [#allocation0], 1728
    %291 = vst [vmem:[%s290] sm:%s3] %v289
    %s292 = scalar_lea.vmem %s0, 430
    %v293 = vld [vmem:[%s292] sm:%s3]
    %s294 = scalar_lea.vmem [#allocation0], 1720
    %295 = vst [vmem:[%s294] sm:%s3] %v293
    %s296 = scalar_lea.vmem %s0, 428
    %v297 = vld [vmem:[%s296] sm:%s3]
    %s298 = scalar_lea.vmem [#allocation0], 1712
    %299 = vst [vmem:[%s298] sm:%s3] %v297
    %s300 = scalar_lea.vmem %s0, 426
    %v301 = vld [vmem:[%s300] sm:%s3]
    %s302 = scalar_lea.vmem [#allocation0], 1704
    %303 = vst [vmem:[%s302] sm:%s3] %v301
    %s304 = scalar_lea.vmem %s0, 424
    %v305 = vld [vmem:[%s304] sm:%s3]
    %s306 = scalar_lea.vmem [#allocation0], 1696
    %307 = vst [vmem:[%s306] sm:%s3] %v305
    %s308 = scalar_lea.vmem %s0, 422
    %v309 = vld [vmem:[%s308] sm:%s3]
    %s310 = scalar_lea.vmem [#allocation0], 1688
    %311 = vst [vmem:[%s310] sm:%s3] %v309
    %s312 = scalar_lea.vmem %s0, 420
    %v313 = vld [vmem:[%s312] sm:%s3]
    %s314 = scalar_lea.vmem [#allocation0], 1680
    %315 = vst [vmem:[%s314] sm:%s3] %v313
    %s316 = scalar_lea.vmem %s0, 418
    %v317 = vld [vmem:[%s316] sm:%s3]
    %s318 = scalar_lea.vmem [#allocation0], 1672
    %319 = vst [vmem:[%s318] sm:%s3] %v317
    %s320 = scalar_lea.vmem %s0, 416
    %v321 = vld [vmem:[%s320] sm:%s3]
    %s322 = scalar_lea.vmem [#allocation0], 1664
    %323 = vst [vmem:[%s322] sm:%s3] %v321
    %s324 = scalar_lea.vmem %s0, 414
    %v325 = vld [vmem:[%s324] sm:%s3]
    %s326 = scalar_lea.vmem [#allocation0], 1656
    %327 = vst [vmem:[%s326] sm:%s3] %v325
    %s328 = scalar_lea.vmem %s0, 412
    %v329 = vld [vmem:[%s328] sm:%s3]
    %s330 = scalar_lea.vmem [#allocation0], 1648
    %331 = vst [vmem:[%s330] sm:%s3] %v329
    %s332 = scalar_lea.vmem %s0, 410
    %v333 = vld [vmem:[%s332] sm:%s3]
    %s334 = scalar_lea.vmem [#allocation0], 1640
    %335 = vst [vmem:[%s334] sm:%s3] %v333
    %s336 = scalar_lea.vmem %s0, 408
    %v337 = vld [vmem:[%s336] sm:%s3]
    %s338 = scalar_lea.vmem [#allocation0], 1632
    %339 = vst [vmem:[%s338] sm:%s3] %v337
    %s340 = scalar_lea.vmem %s0, 406
    %v341 = vld [vmem:[%s340] sm:%s3]
    %s342 = scalar_lea.vmem [#allocation0], 1624
    %343 = vst [vmem:[%s342] sm:%s3] %v341
    %s344 = scalar_lea.vmem %s0, 404
    %v345 = vld [vmem:[%s344] sm:%s3]
    %s346 = scalar_lea.vmem [#allocation0], 1616
    %347 = vst [vmem:[%s346] sm:%s3] %v345
    %s348 = scalar_lea.vmem %s0, 402
    %v349 = vld [vmem:[%s348] sm:%s3]
    %s350 = scalar_lea.vmem [#allocation0], 1608
    %351 = vst [vmem:[%s350] sm:%s3] %v349
    %s352 = scalar_lea.vmem %s0, 400
    %v353 = vld [vmem:[%s352] sm:%s3]
    %s354 = scalar_lea.vmem [#allocation0], 1600
    %355 = vst [vmem:[%s354] sm:%s3] %v353
    %s356 = scalar_lea.vmem %s0, 398
    %v357 = vld [vmem:[%s356] sm:%s3]
    %s358 = scalar_lea.vmem [#allocation0], 1592
    %359 = vst [vmem:[%s358] sm:%s3] %v357
    %s360 = scalar_lea.vmem %s0, 396
    %v361 = vld [vmem:[%s360] sm:%s3]
    %s362 = scalar_lea.vmem [#allocation0], 1584
    %363 = vst [vmem:[%s362] sm:%s3] %v361
    %s364 = scalar_lea.vmem %s0, 394
    %v365 = vld [vmem:[%s364] sm:%s3]
    %s366 = scalar_lea.vmem [#allocation0], 1576
    %367 = vst [vmem:[%s366] sm:%s3] %v365
    %s368 = scalar_lea.vmem %s0, 392
    %v369 = vld [vmem:[%s368] sm:%s3]
    %s370 = scalar_lea.vmem [#allocation0], 1568
    %371 = vst [vmem:[%s370] sm:%s3] %v369
    %s372 = scalar_lea.vmem %s0, 390
    %v373 = vld [vmem:[%s372] sm:%s3]
    %s374 = scalar_lea.vmem [#allocation0], 1560
    %375 = vst [vmem:[%s374] sm:%s3] %v373
    %s376 = scalar_lea.vmem %s0, 388
    %v377 = vld [vmem:[%s376] sm:%s3]
    %s378 = scalar_lea.vmem [#allocation0], 1552
    %379 = vst [vmem:[%s378] sm:%s3] %v377
    %s380 = scalar_lea.vmem %s0, 386
    %v381 = vld [vmem:[%s380] sm:%s3]
    %s382 = scalar_lea.vmem [#allocation0], 1544
    %383 = vst [vmem:[%s382] sm:%s3] %v381
    %s384 = scalar_lea.vmem %s0, 384
    %v385 = vld [vmem:[%s384] sm:%s3]
    %s386 = scalar_lea.vmem [#allocation0], 1536
    %387 = vst [vmem:[%s386] sm:%s3] %v385
    %s388 = scalar_lea.vmem %s0, 382
    %v389 = vld [vmem:[%s388] sm:%s3]
    %s390 = scalar_lea.vmem [#allocation0], 1528
    %391 = vst [vmem:[%s390] sm:%s3] %v389
    %s392 = scalar_lea.vmem %s0, 380
    %v393 = vld [vmem:[%s392] sm:%s3]
    %s394 = scalar_lea.vmem [#allocation0], 1520
    %395 = vst [vmem:[%s394] sm:%s3] %v393
    %s396 = scalar_lea.vmem %s0, 378
    %v397 = vld [vmem:[%s396] sm:%s3]
    %s398 = scalar_lea.vmem [#allocation0], 1512
    %399 = vst [vmem:[%s398] sm:%s3] %v397
    %s400 = scalar_lea.vmem %s0, 376
    %v401 = vld [vmem:[%s400] sm:%s3]
    %s402 = scalar_lea.vmem [#allocation0], 1504
    %403 = vst [vmem:[%s402] sm:%s3] %v401
    %s404 = scalar_lea.vmem %s0, 374
    %v405 = vld [vmem:[%s404] sm:%s3]
    %s406 = scalar_lea.vmem [#allocation0], 1496
    %407 = vst [vmem:[%s406] sm:%s3] %v405
    %s408 = scalar_lea.vmem %s0, 372
    %v409 = vld [vmem:[%s408] sm:%s3]
    %s410 = scalar_lea.vmem [#allocation0], 1488
    %411 = vst [vmem:[%s410] sm:%s3] %v409
    %s412 = scalar_lea.vmem %s0, 370
    %v413 = vld [vmem:[%s412] sm:%s3]
    %s414 = scalar_lea.vmem [#allocation0], 1480
    %415 = vst [vmem:[%s414] sm:%s3] %v413
    %s416 = scalar_lea.vmem %s0, 368
    %v417 = vld [vmem:[%s416] sm:%s3]
    %s418 = scalar_lea.vmem [#allocation0], 1472
    %419 = vst [vmem:[%s418] sm:%s3] %v417
    %s420 = scalar_lea.vmem %s0, 366
    %v421 = vld [vmem:[%s420] sm:%s3]
    %s422 = scalar_lea.vmem [#allocation0], 1464
    %423 = vst [vmem:[%s422] sm:%s3] %v421
    %s424 = scalar_lea.vmem %s0, 364
    %v425 = vld [vmem:[%s424] sm:%s3]
    %s426 = scalar_lea.vmem [#allocation0], 1456
    %427 = vst [vmem:[%s426] sm:%s3] %v425
    %s428 = scalar_lea.vmem %s0, 362
    %v429 = vld [vmem:[%s428] sm:%s3]
    %s430 = scalar_lea.vmem [#allocation0], 1448
    %431 = vst [vmem:[%s430] sm:%s3] %v429
    %s432 = scalar_lea.vmem %s0, 360
    %v433 = vld [vmem:[%s432] sm:%s3]
    %s434 = scalar_lea.vmem [#allocation0], 1440
    %435 = vst [vmem:[%s434] sm:%s3] %v433
    %s436 = scalar_lea.vmem %s0, 358
    %v437 = vld [vmem:[%s436] sm:%s3]
    %s438 = scalar_lea.vmem [#allocation0], 1432
    %439 = vst [vmem:[%s438] sm:%s3] %v437
    %s440 = scalar_lea.vmem %s0, 356
    %v441 = vld [vmem:[%s440] sm:%s3]
    %s442 = scalar_lea.vmem [#allocation0], 1424
    %443 = vst [vmem:[%s442] sm:%s3] %v441
    %s444 = scalar_lea.vmem %s0, 354
    %v445 = vld [vmem:[%s444] sm:%s3]
    %s446 = scalar_lea.vmem [#allocation0], 1416
    %447 = vst [vmem:[%s446] sm:%s3] %v445
    %s448 = scalar_lea.vmem %s0, 352
    %v449 = vld [vmem:[%s448] sm:%s3]
    %s450 = scalar_lea.vmem [#allocation0], 1408
    %451 = vst [vmem:[%s450] sm:%s3] %v449
    %s452 = scalar_lea.vmem %s0, 350
    %v453 = vld [vmem:[%s452] sm:%s3]
    %s454 = scalar_lea.vmem [#allocation0], 1400
    %455 = vst [vmem:[%s454] sm:%s3] %v453
    %s456 = scalar_lea.vmem %s0, 348
    %v457 = vld [vmem:[%s456] sm:%s3]
    %s458 = scalar_lea.vmem [#allocation0], 1392
    %459 = vst [vmem:[%s458] sm:%s3] %v457
    %s460 = scalar_lea.vmem %s0, 346
    %v461 = vld [vmem:[%s460] sm:%s3]
    %s462 = scalar_lea.vmem [#allocation0], 1384
    %463 = vst [vmem:[%s462] sm:%s3] %v461
    %s464 = scalar_lea.vmem %s0, 344
    %v465 = vld [vmem:[%s464] sm:%s3]
    %s466 = scalar_lea.vmem [#allocation0], 1376
    %467 = vst [vmem:[%s466] sm:%s3] %v465
    %s468 = scalar_lea.vmem %s0, 342
    %v469 = vld [vmem:[%s468] sm:%s3]
    %s470 = scalar_lea.vmem [#allocation0], 1368
    %471 = vst [vmem:[%s470] sm:%s3] %v469
    %s472 = scalar_lea.vmem %s0, 340
    %v473 = vld [vmem:[%s472] sm:%s3]
    %s474 = scalar_lea.vmem [#allocation0], 1360
    %475 = vst [vmem:[%s474] sm:%s3] %v473
    %s476 = scalar_lea.vmem %s0, 338
    %v477 = vld [vmem:[%s476] sm:%s3]
    %s478 = scalar_lea.vmem [#allocation0], 1352
    %479 = vst [vmem:[%s478] sm:%s3] %v477
    %s480 = scalar_lea.vmem %s0, 336
    %v481 = vld [vmem:[%s480] sm:%s3]
    %s482 = scalar_lea.vmem [#allocation0], 1344
    %483 = vst [vmem:[%s482] sm:%s3] %v481
    %s484 = scalar_lea.vmem %s0, 334
    %v485 = vld [vmem:[%s484] sm:%s3]
    %s486 = scalar_lea.vmem [#allocation0], 1336
    %487 = vst [vmem:[%s486] sm:%s3] %v485
    %s488 = scalar_lea.vmem %s0, 332
    %v489 = vld [vmem:[%s488] sm:%s3]
    %s490 = scalar_lea.vmem [#allocation0], 1328
    %491 = vst [vmem:[%s490] sm:%s3] %v489
    %s492 = scalar_lea.vmem %s0, 330
    %v493 = vld [vmem:[%s492] sm:%s3]
    %s494 = scalar_lea.vmem [#allocation0], 1320
    %495 = vst [vmem:[%s494] sm:%s3] %v493
    %s496 = scalar_lea.vmem %s0, 328
    %v497 = vld [vmem:[%s496] sm:%s3]
    %s498 = scalar_lea.vmem [#allocation0], 1312
    %499 = vst [vmem:[%s498] sm:%s3] %v497
    %s500 = scalar_lea.vmem %s0, 326
    %v501 = vld [vmem:[%s500] sm:%s3]
    %s502 = scalar_lea.vmem [#allocation0], 1304
    %503 = vst [vmem:[%s502] sm:%s3] %v501
    %s504 = scalar_lea.vmem %s0, 324
    %v505 = vld [vmem:[%s504] sm:%s3]
    %s506 = scalar_lea.vmem [#allocation0], 1296
    %507 = vst [vmem:[%s506] sm:%s3] %v505
    %s508 = scalar_lea.vmem %s0, 322
    %v509 = vld [vmem:[%s508] sm:%s3]
    %s510 = scalar_lea.vmem [#allocation0], 1288
    %511 = vst [vmem:[%s510] sm:%s3] %v509
    %s512 = scalar_lea.vmem %s0, 320
    %v513 = vld [vmem:[%s512] sm:%s3]
    %s514 = scalar_lea.vmem [#allocation0], 1280
    %515 = vst [vmem:[%s514] sm:%s3] %v513
    %s516 = scalar_lea.vmem %s0, 318
    %v517 = vld [vmem:[%s516] sm:%s3]
    %s518 = scalar_lea.vmem [#allocation0], 1272
    %519 = vst [vmem:[%s518] sm:%s3] %v517
    %s520 = scalar_lea.vmem %s0, 316
    %v521 = vld [vmem:[%s520] sm:%s3]
    %s522 = scalar_lea.vmem [#allocation0], 1264
    %523 = vst [vmem:[%s522] sm:%s3] %v521
    %s524 = scalar_lea.vmem %s0, 314
    %v525 = vld [vmem:[%s524] sm:%s3]
    %s526 = scalar_lea.vmem [#allocation0], 1256
    %527 = vst [vmem:[%s526] sm:%s3] %v525
    %s528 = scalar_lea.vmem %s0, 312
    %v529 = vld [vmem:[%s528] sm:%s3]
    %s530 = scalar_lea.vmem [#allocation0], 1248
    %531 = vst [vmem:[%s530] sm:%s3] %v529
    %s532 = scalar_lea.vmem %s0, 310
    %v533 = vld [vmem:[%s532] sm:%s3]
    %s534 = scalar_lea.vmem [#allocation0], 1240
    %535 = vst [vmem:[%s534] sm:%s3] %v533
    %s536 = scalar_lea.vmem %s0, 308
    %v537 = vld [vmem:[%s536] sm:%s3]
    %s538 = scalar_lea.vmem [#allocation0], 1232
    %539 = vst [vmem:[%s538] sm:%s3] %v537
    %s540 = scalar_lea.vmem %s0, 306
    %v541 = vld [vmem:[%s540] sm:%s3]
    %s542 = scalar_lea.vmem [#allocation0], 1224
    %543 = vst [vmem:[%s542] sm:%s3] %v541
    %s544 = scalar_lea.vmem %s0, 304
    %v545 = vld [vmem:[%s544] sm:%s3]
    %s546 = scalar_lea.vmem [#allocation0], 1216
    %547 = vst [vmem:[%s546] sm:%s3] %v545
    %s548 = scalar_lea.vmem %s0, 302
    %v549 = vld [vmem:[%s548] sm:%s3]
    %s550 = scalar_lea.vmem [#allocation0], 1208
    %551 = vst [vmem:[%s550] sm:%s3] %v549
    %s552 = scalar_lea.vmem %s0, 300
    %v553 = vld [vmem:[%s552] sm:%s3]
    %s554 = scalar_lea.vmem [#allocation0], 1200
    %555 = vst [vmem:[%s554] sm:%s3] %v553
    %s556 = scalar_lea.vmem %s0, 298
    %v557 = vld [vmem:[%s556] sm:%s3]
    %s558 = scalar_lea.vmem [#allocation0], 1192
    %559 = vst [vmem:[%s558] sm:%s3] %v557
    %s560 = scalar_lea.vmem %s0, 296
    %v561 = vld [vmem:[%s560] sm:%s3]
    %s562 = scalar_lea.vmem [#allocation0], 1184
    %563 = vst [vmem:[%s562] sm:%s3] %v561
    %s564 = scalar_lea.vmem %s0, 294
    %v565 = vld [vmem:[%s564] sm:%s3]
    %s566 = scalar_lea.vmem [#allocation0], 1176
    %567 = vst [vmem:[%s566] sm:%s3] %v565
    %s568 = scalar_lea.vmem %s0, 292
    %v569 = vld [vmem:[%s568] sm:%s3]
    %s570 = scalar_lea.vmem [#allocation0], 1168
    %571 = vst [vmem:[%s570] sm:%s3] %v569
    %s572 = scalar_lea.vmem %s0, 290
    %v573 = vld [vmem:[%s572] sm:%s3]
    %s574 = scalar_lea.vmem [#allocation0], 1160
    %575 = vst [vmem:[%s574] sm:%s3] %v573
    %s576 = scalar_lea.vmem %s0, 288
    %v577 = vld [vmem:[%s576] sm:%s3]
    %s578 = scalar_lea.vmem [#allocation0], 1152
    %579 = vst [vmem:[%s578] sm:%s3] %v577
    %s580 = scalar_lea.vmem %s0, 286
    %v581 = vld [vmem:[%s580] sm:%s3]
    %s582 = scalar_lea.vmem [#allocation0], 1144
    %583 = vst [vmem:[%s582] sm:%s3] %v581
    %s584 = scalar_lea.vmem %s0, 284
    %v585 = vld [vmem:[%s584] sm:%s3]
    %s586 = scalar_lea.vmem [#allocation0], 1136
    %587 = vst [vmem:[%s586] sm:%s3] %v585
    %s588 = scalar_lea.vmem %s0, 282
    %v589 = vld [vmem:[%s588] sm:%s3]
    %s590 = scalar_lea.vmem [#allocation0], 1128
    %591 = vst [vmem:[%s590] sm:%s3] %v589
    %s592 = scalar_lea.vmem %s0, 280
    %v593 = vld [vmem:[%s592] sm:%s3]
    %s594 = scalar_lea.vmem [#allocation0], 1120
    %595 = vst [vmem:[%s594] sm:%s3] %v593
    %s596 = scalar_lea.vmem %s0, 278
    %v597 = vld [vmem:[%s596] sm:%s3]
    %s598 = scalar_lea.vmem [#allocation0], 1112
    %599 = vst [vmem:[%s598] sm:%s3] %v597
    %s600 = scalar_lea.vmem %s0, 276
    %v601 = vld [vmem:[%s600] sm:%s3]
    %s602 = scalar_lea.vmem [#allocation0], 1104
    %603 = vst [vmem:[%s602] sm:%s3] %v601
    %s604 = scalar_lea.vmem %s0, 274
    %v605 = vld [vmem:[%s604] sm:%s3]
    %s606 = scalar_lea.vmem [#allocation0], 1096
    %607 = vst [vmem:[%s606] sm:%s3] %v605
    %s608 = scalar_lea.vmem %s0, 272
    %v609 = vld [vmem:[%s608] sm:%s3]
    %s610 = scalar_lea.vmem [#allocation0], 1088
    %611 = vst [vmem:[%s610] sm:%s3] %v609
    %s612 = scalar_lea.vmem %s0, 270
    %v613 = vld [vmem:[%s612] sm:%s3]
    %s614 = scalar_lea.vmem [#allocation0], 1080
    %615 = vst [vmem:[%s614] sm:%s3] %v613
    %s616 = scalar_lea.vmem %s0, 268
    %v617 = vld [vmem:[%s616] sm:%s3]
    %s618 = scalar_lea.vmem [#allocation0], 1072
    %619 = vst [vmem:[%s618] sm:%s3] %v617
    %s620 = scalar_lea.vmem %s0, 266
    %v621 = vld [vmem:[%s620] sm:%s3]
    %s622 = scalar_lea.vmem [#allocation0], 1064
    %623 = vst [vmem:[%s622] sm:%s3] %v621
    %s624 = scalar_lea.vmem %s0, 264
    %v625 = vld [vmem:[%s624] sm:%s3]
    %s626 = scalar_lea.vmem [#allocation0], 1056
    %627 = vst [vmem:[%s626] sm:%s3] %v625
    %s628 = scalar_lea.vmem %s0, 262
    %v629 = vld [vmem:[%s628] sm:%s3]
    %s630 = scalar_lea.vmem [#allocation0], 1048
    %631 = vst [vmem:[%s630] sm:%s3] %v629
    %s632 = scalar_lea.vmem %s0, 260
    %v633 = vld [vmem:[%s632] sm:%s3]
    %s634 = scalar_lea.vmem [#allocation0], 1040
    %635 = vst [vmem:[%s634] sm:%s3] %v633
    %s636 = scalar_lea.vmem %s0, 258
    %v637 = vld [vmem:[%s636] sm:%s3]
    %s638 = scalar_lea.vmem [#allocation0], 1032
    %639 = vst [vmem:[%s638] sm:%s3] %v637
    %s640 = scalar_lea.vmem %s0, 256
    %v641 = vld [vmem:[%s640] sm:%s3]
    %s642 = scalar_lea.vmem [#allocation0], 1024
    %643 = vst [vmem:[%s642] sm:%s3] %v641
    %s644 = scalar_lea.vmem %s0, 254
    %v645 = vld [vmem:[%s644] sm:%s3]
    %s646 = scalar_lea.vmem [#allocation0], 1016
    %647 = vst [vmem:[%s646] sm:%s3] %v645
    %s648 = scalar_lea.vmem %s0, 252
    %v649 = vld [vmem:[%s648] sm:%s3]
    %s650 = scalar_lea.vmem [#allocation0], 1008
    %651 = vst [vmem:[%s650] sm:%s3] %v649
    %s652 = scalar_lea.vmem %s0, 250
    %v653 = vld [vmem:[%s652] sm:%s3]
    %s654 = scalar_lea.vmem [#allocation0], 1000
    %655 = vst [vmem:[%s654] sm:%s3] %v653
    %s656 = scalar_lea.vmem %s0, 248
    %v657 = vld [vmem:[%s656] sm:%s3]
    %s658 = scalar_lea.vmem [#allocation0], 992
    %659 = vst [vmem:[%s658] sm:%s3] %v657
    %s660 = scalar_lea.vmem %s0, 246
    %v661 = vld [vmem:[%s660] sm:%s3]
    %s662 = scalar_lea.vmem [#allocation0], 984
    %663 = vst [vmem:[%s662] sm:%s3] %v661
    %s664 = scalar_lea.vmem %s0, 244
    %v665 = vld [vmem:[%s664] sm:%s3]
    %s666 = scalar_lea.vmem [#allocation0], 976
    %667 = vst [vmem:[%s666] sm:%s3] %v665
    %s668 = scalar_lea.vmem %s0, 242
    %v669 = vld [vmem:[%s668] sm:%s3]
    %s670 = scalar_lea.vmem [#allocation0], 968
    %671 = vst [vmem:[%s670] sm:%s3] %v669
    %s672 = scalar_lea.vmem %s0, 240
    %v673 = vld [vmem:[%s672] sm:%s3]
    %s674 = scalar_lea.vmem [#allocation0], 960
    %675 = vst [vmem:[%s674] sm:%s3] %v673
    %s676 = scalar_lea.vmem %s0, 238
    %v677 = vld [vmem:[%s676] sm:%s3]
    %s678 = scalar_lea.vmem [#allocation0], 952
    %679 = vst [vmem:[%s678] sm:%s3] %v677
    %s680 = scalar_lea.vmem %s0, 236
    %v681 = vld [vmem:[%s680] sm:%s3]
    %s682 = scalar_lea.vmem [#allocation0], 944
    %683 = vst [vmem:[%s682] sm:%s3] %v681
    %s684 = scalar_lea.vmem %s0, 234
    %v685 = vld [vmem:[%s684] sm:%s3]
    %s686 = scalar_lea.vmem [#allocation0], 936
    %687 = vst [vmem:[%s686] sm:%s3] %v685
    %s688 = scalar_lea.vmem %s0, 232
    %v689 = vld [vmem:[%s688] sm:%s3]
    %s690 = scalar_lea.vmem [#allocation0], 928
    %691 = vst [vmem:[%s690] sm:%s3] %v689
    %s692 = scalar_lea.vmem %s0, 230
    %v693 = vld [vmem:[%s692] sm:%s3]
    %s694 = scalar_lea.vmem [#allocation0], 920
    %695 = vst [vmem:[%s694] sm:%s3] %v693
    %s696 = scalar_lea.vmem %s0, 228
    %v697 = vld [vmem:[%s696] sm:%s3]
    %s698 = scalar_lea.vmem [#allocation0], 912
    %699 = vst [vmem:[%s698] sm:%s3] %v697
    %s700 = scalar_lea.vmem %s0, 226
    %v701 = vld [vmem:[%s700] sm:%s3]
    %s702 = scalar_lea.vmem [#allocation0], 904
    %703 = vst [vmem:[%s702] sm:%s3] %v701
    %s704 = scalar_lea.vmem %s0, 224
    %v705 = vld [vmem:[%s704] sm:%s3]
    %s706 = scalar_lea.vmem [#allocation0], 896
    %707 = vst [vmem:[%s706] sm:%s3] %v705
    %s708 = scalar_lea.vmem %s0, 222
    %v709 = vld [vmem:[%s708] sm:%s3]
    %s710 = scalar_lea.vmem [#allocation0], 888
    %711 = vst [vmem:[%s710] sm:%s3] %v709
    %s712 = scalar_lea.vmem %s0, 220
    %v713 = vld [vmem:[%s712] sm:%s3]
    %s714 = scalar_lea.vmem [#allocation0], 880
    %715 = vst [vmem:[%s714] sm:%s3] %v713
    %s716 = scalar_lea.vmem %s0, 218
    %v717 = vld [vmem:[%s716] sm:%s3]
    %s718 = scalar_lea.vmem [#allocation0], 872
    %719 = vst [vmem:[%s718] sm:%s3] %v717
    %s720 = scalar_lea.vmem %s0, 216
    %v721 = vld [vmem:[%s720] sm:%s3]
    %s722 = scalar_lea.vmem [#allocation0], 864
    %723 = vst [vmem:[%s722] sm:%s3] %v721
    %s724 = scalar_lea.vmem %s0, 214
    %v725 = vld [vmem:[%s724] sm:%s3]
    %s726 = scalar_lea.vmem [#allocation0], 856
    %727 = vst [vmem:[%s726] sm:%s3] %v725
    %s728 = scalar_lea.vmem %s0, 212
    %v729 = vld [vmem:[%s728] sm:%s3]
    %s730 = scalar_lea.vmem [#allocation0], 848
    %731 = vst [vmem:[%s730] sm:%s3] %v729
    %s732 = scalar_lea.vmem %s0, 210
    %v733 = vld [vmem:[%s732] sm:%s3]
    %s734 = scalar_lea.vmem [#allocation0], 840
    %735 = vst [vmem:[%s734] sm:%s3] %v733
    %s736 = scalar_lea.vmem %s0, 208
    %v737 = vld [vmem:[%s736] sm:%s3]
    %s738 = scalar_lea.vmem [#allocation0], 832
    %739 = vst [vmem:[%s738] sm:%s3] %v737
    %s740 = scalar_lea.vmem %s0, 206
    %v741 = vld [vmem:[%s740] sm:%s3]
    %s742 = scalar_lea.vmem [#allocation0], 824
    %743 = vst [vmem:[%s742] sm:%s3] %v741
    %s744 = scalar_lea.vmem %s0, 204
    %v745 = vld [vmem:[%s744] sm:%s3]
    %s746 = scalar_lea.vmem [#allocation0], 816
    %747 = vst [vmem:[%s746] sm:%s3] %v745
    %s748 = scalar_lea.vmem %s0, 202
    %v749 = vld [vmem:[%s748] sm:%s3]
    %s750 = scalar_lea.vmem [#allocation0], 808
    %751 = vst [vmem:[%s750] sm:%s3] %v749
    %s752 = scalar_lea.vmem %s0, 200
    %v753 = vld [vmem:[%s752] sm:%s3]
    %s754 = scalar_lea.vmem [#allocation0], 800
    %755 = vst [vmem:[%s754] sm:%s3] %v753
    %s756 = scalar_lea.vmem %s0, 198
    %v757 = vld [vmem:[%s756] sm:%s3]
    %s758 = scalar_lea.vmem [#allocation0], 792
    %759 = vst [vmem:[%s758] sm:%s3] %v757
    %s760 = scalar_lea.vmem %s0, 196
    %v761 = vld [vmem:[%s760] sm:%s3]
    %s762 = scalar_lea.vmem [#allocation0], 784
    %763 = vst [vmem:[%s762] sm:%s3] %v761
    %s764 = scalar_lea.vmem %s0, 194
    %v765 = vld [vmem:[%s764] sm:%s3]
    %s766 = scalar_lea.vmem [#allocation0], 776
    %767 = vst [vmem:[%s766] sm:%s3] %v765
    %s768 = scalar_lea.vmem %s0, 192
    %v769 = vld [vmem:[%s768] sm:%s3]
    %s770 = scalar_lea.vmem [#allocation0], 768
    %771 = vst [vmem:[%s770] sm:%s3] %v769
    %s772 = scalar_lea.vmem %s0, 190
    %v773 = vld [vmem:[%s772] sm:%s3]
    %s774 = scalar_lea.vmem [#allocation0], 760
    %775 = vst [vmem:[%s774] sm:%s3] %v773
    %s776 = scalar_lea.vmem %s0, 188
    %v777 = vld [vmem:[%s776] sm:%s3]
    %s778 = scalar_lea.vmem [#allocation0], 752
    %779 = vst [vmem:[%s778] sm:%s3] %v777
    %s780 = scalar_lea.vmem %s0, 186
    %v781 = vld [vmem:[%s780] sm:%s3]
    %s782 = scalar_lea.vmem [#allocation0], 744
    %783 = vst [vmem:[%s782] sm:%s3] %v781
    %s784 = scalar_lea.vmem %s0, 184
    %v785 = vld [vmem:[%s784] sm:%s3]
    %s786 = scalar_lea.vmem [#allocation0], 736
    %787 = vst [vmem:[%s786] sm:%s3] %v785
    %s788 = scalar_lea.vmem %s0, 182
    %v789 = vld [vmem:[%s788] sm:%s3]
    %s790 = scalar_lea.vmem [#allocation0], 728
    %791 = vst [vmem:[%s790] sm:%s3] %v789
    %s792 = scalar_lea.vmem %s0, 180
    %v793 = vld [vmem:[%s792] sm:%s3]
    %s794 = scalar_lea.vmem [#allocation0], 720
    %795 = vst [vmem:[%s794] sm:%s3] %v793
    %s796 = scalar_lea.vmem %s0, 178
    %v797 = vld [vmem:[%s796] sm:%s3]
    %s798 = scalar_lea.vmem [#allocation0], 712
    %799 = vst [vmem:[%s798] sm:%s3] %v797
    %s800 = scalar_lea.vmem %s0, 176
    %v801 = vld [vmem:[%s800] sm:%s3]
    %s802 = scalar_lea.vmem [#allocation0], 704
    %803 = vst [vmem:[%s802] sm:%s3] %v801
    %s804 = scalar_lea.vmem %s0, 174
    %v805 = vld [vmem:[%s804] sm:%s3]
    %s806 = scalar_lea.vmem [#allocation0], 696
    %807 = vst [vmem:[%s806] sm:%s3] %v805
    %s808 = scalar_lea.vmem %s0, 172
    %v809 = vld [vmem:[%s808] sm:%s3]
    %s810 = scalar_lea.vmem [#allocation0], 688
    %811 = vst [vmem:[%s810] sm:%s3] %v809
    %s812 = scalar_lea.vmem %s0, 170
    %v813 = vld [vmem:[%s812] sm:%s3]
    %s814 = scalar_lea.vmem [#allocation0], 680
    %815 = vst [vmem:[%s814] sm:%s3] %v813
    %s816 = scalar_lea.vmem %s0, 168
    %v817 = vld [vmem:[%s816] sm:%s3]
    %s818 = scalar_lea.vmem [#allocation0], 672
    %819 = vst [vmem:[%s818] sm:%s3] %v817
    %s820 = scalar_lea.vmem %s0, 166
    %v821 = vld [vmem:[%s820] sm:%s3]
    %s822 = scalar_lea.vmem [#allocation0], 664
    %823 = vst [vmem:[%s822] sm:%s3] %v821
    %s824 = scalar_lea.vmem %s0, 164
    %v825 = vld [vmem:[%s824] sm:%s3]
    %s826 = scalar_lea.vmem [#allocation0], 656
    %827 = vst [vmem:[%s826] sm:%s3] %v825
    %s828 = scalar_lea.vmem %s0, 162
    %v829 = vld [vmem:[%s828] sm:%s3]
    %s830 = scalar_lea.vmem [#allocation0], 648
    %831 = vst [vmem:[%s830] sm:%s3] %v829
    %s832 = scalar_lea.vmem %s0, 160
    %v833 = vld [vmem:[%s832] sm:%s3]
    %s834 = scalar_lea.vmem [#allocation0], 640
    %835 = vst [vmem:[%s834] sm:%s3] %v833
    %s836 = scalar_lea.vmem %s0, 158
    %v837 = vld [vmem:[%s836] sm:%s3]
    %s838 = scalar_lea.vmem [#allocation0], 632
    %839 = vst [vmem:[%s838] sm:%s3] %v837
    %s840 = scalar_lea.vmem %s0, 156
    %v841 = vld [vmem:[%s840] sm:%s3]
    %s842 = scalar_lea.vmem [#allocation0], 624
    %843 = vst [vmem:[%s842] sm:%s3] %v841
    %s844 = scalar_lea.vmem %s0, 154
    %v845 = vld [vmem:[%s844] sm:%s3]
    %s846 = scalar_lea.vmem [#allocation0], 616
    %847 = vst [vmem:[%s846] sm:%s3] %v845
    %s848 = scalar_lea.vmem %s0, 152
    %v849 = vld [vmem:[%s848] sm:%s3]
    %s850 = scalar_lea.vmem [#allocation0], 608
    %851 = vst [vmem:[%s850] sm:%s3] %v849
    %s852 = scalar_lea.vmem %s0, 150
    %v853 = vld [vmem:[%s852] sm:%s3]
    %s854 = scalar_lea.vmem [#allocation0], 600
    %855 = vst [vmem:[%s854] sm:%s3] %v853
    %s856 = scalar_lea.vmem %s0, 148
    %v857 = vld [vmem:[%s856] sm:%s3]
    %s858 = scalar_lea.vmem [#allocation0], 592
    %859 = vst [vmem:[%s858] sm:%s3] %v857
    %s860 = scalar_lea.vmem %s0, 146
    %v861 = vld [vmem:[%s860] sm:%s3]
    %s862 = scalar_lea.vmem [#allocation0], 584
    %863 = vst [vmem:[%s862] sm:%s3] %v861
    %s864 = scalar_lea.vmem %s0, 144
    %v865 = vld [vmem:[%s864] sm:%s3]
    %s866 = scalar_lea.vmem [#allocation0], 576
    %867 = vst [vmem:[%s866] sm:%s3] %v865
    %s868 = scalar_lea.vmem %s0, 142
    %v869 = vld [vmem:[%s868] sm:%s3]
    %s870 = scalar_lea.vmem [#allocation0], 568
    %871 = vst [vmem:[%s870] sm:%s3] %v869
    %s872 = scalar_lea.vmem %s0, 140
    %v873 = vld [vmem:[%s872] sm:%s3]
    %s874 = scalar_lea.vmem [#allocation0], 560
    %875 = vst [vmem:[%s874] sm:%s3] %v873
    %s876 = scalar_lea.vmem %s0, 138
    %v877 = vld [vmem:[%s876] sm:%s3]
    %s878 = scalar_lea.vmem [#allocation0], 552
    %879 = vst [vmem:[%s878] sm:%s3] %v877
    %s880 = scalar_lea.vmem %s0, 136
    %v881 = vld [vmem:[%s880] sm:%s3]
    %s882 = scalar_lea.vmem [#allocation0], 544
    %883 = vst [vmem:[%s882] sm:%s3] %v881
    %s884 = scalar_lea.vmem %s0, 134
    %v885 = vld [vmem:[%s884] sm:%s3]
    %s886 = scalar_lea.vmem [#allocation0], 536
    %887 = vst [vmem:[%s886] sm:%s3] %v885
    %s888 = scalar_lea.vmem %s0, 132
    %v889 = vld [vmem:[%s888] sm:%s3]
    %s890 = scalar_lea.vmem [#allocation0], 528
    %891 = vst [vmem:[%s890] sm:%s3] %v889
    %s892 = scalar_lea.vmem %s0, 130
    %v893 = vld [vmem:[%s892] sm:%s3]
    %s894 = scalar_lea.vmem [#allocation0], 520
    %895 = vst [vmem:[%s894] sm:%s3] %v893
    %s896 = scalar_lea.vmem %s0, 128
    %v897 = vld [vmem:[%s896] sm:%s3]
    %s898 = scalar_lea.vmem [#allocation0], 512
    %899 = vst [vmem:[%s898] sm:%s3] %v897
    %s900 = scalar_lea.vmem %s0, 126
    %v901 = vld [vmem:[%s900] sm:%s3]
    %s902 = scalar_lea.vmem [#allocation0], 504
    %903 = vst [vmem:[%s902] sm:%s3] %v901
    %s904 = scalar_lea.vmem %s0, 124
    %v905 = vld [vmem:[%s904] sm:%s3]
    %s906 = scalar_lea.vmem [#allocation0], 496
    %907 = vst [vmem:[%s906] sm:%s3] %v905
    %s908 = scalar_lea.vmem %s0, 122
    %v909 = vld [vmem:[%s908] sm:%s3]
    %s910 = scalar_lea.vmem [#allocation0], 488
    %911 = vst [vmem:[%s910] sm:%s3] %v909
    %s912 = scalar_lea.vmem %s0, 120
    %v913 = vld [vmem:[%s912] sm:%s3]
    %s914 = scalar_lea.vmem [#allocation0], 480
    %915 = vst [vmem:[%s914] sm:%s3] %v913
    %s916 = scalar_lea.vmem %s0, 118
    %v917 = vld [vmem:[%s916] sm:%s3]
    %s918 = scalar_lea.vmem [#allocation0], 472
    %919 = vst [vmem:[%s918] sm:%s3] %v917
    %s920 = scalar_lea.vmem %s0, 116
    %v921 = vld [vmem:[%s920] sm:%s3]
    %s922 = scalar_lea.vmem [#allocation0], 464
    %923 = vst [vmem:[%s922] sm:%s3] %v921
    %s924 = scalar_lea.vmem %s0, 114
    %v925 = vld [vmem:[%s924] sm:%s3]
    %s926 = scalar_lea.vmem [#allocation0], 456
    %927 = vst [vmem:[%s926] sm:%s3] %v925
    %s928 = scalar_lea.vmem %s0, 112
    %v929 = vld [vmem:[%s928] sm:%s3]
    %s930 = scalar_lea.vmem [#allocation0], 448
    %931 = vst [vmem:[%s930] sm:%s3] %v929
    %s932 = scalar_lea.vmem %s0, 110
    %v933 = vld [vmem:[%s932] sm:%s3]
    %s934 = scalar_lea.vmem [#allocation0], 440
    %935 = vst [vmem:[%s934] sm:%s3] %v933
    %s936 = scalar_lea.vmem %s0, 108
    %v937 = vld [vmem:[%s936] sm:%s3]
    %s938 = scalar_lea.vmem [#allocation0], 432
    %939 = vst [vmem:[%s938] sm:%s3] %v937
    %s940 = scalar_lea.vmem %s0, 106
    %v941 = vld [vmem:[%s940] sm:%s3]
    %s942 = scalar_lea.vmem [#allocation0], 424
    %943 = vst [vmem:[%s942] sm:%s3] %v941
    %s944 = scalar_lea.vmem %s0, 104
    %v945 = vld [vmem:[%s944] sm:%s3]
    %s946 = scalar_lea.vmem [#allocation0], 416
    %947 = vst [vmem:[%s946] sm:%s3] %v945
    %s948 = scalar_lea.vmem %s0, 102
    %v949 = vld [vmem:[%s948] sm:%s3]
    %s950 = scalar_lea.vmem [#allocation0], 408
    %951 = vst [vmem:[%s950] sm:%s3] %v949
    %s952 = scalar_lea.vmem %s0, 100
    %v953 = vld [vmem:[%s952] sm:%s3]
    %s954 = scalar_lea.vmem [#allocation0], 400
    %955 = vst [vmem:[%s954] sm:%s3] %v953
    %s956 = scalar_lea.vmem %s0, 98
    %v957 = vld [vmem:[%s956] sm:%s3]
    %s958 = scalar_lea.vmem [#allocation0], 392
    %959 = vst [vmem:[%s958] sm:%s3] %v957
    %s960 = scalar_lea.vmem %s0, 96
    %v961 = vld [vmem:[%s960] sm:%s3]
    %s962 = scalar_lea.vmem [#allocation0], 384
    %963 = vst [vmem:[%s962] sm:%s3] %v961
    %s964 = scalar_lea.vmem %s0, 94
    %v965 = vld [vmem:[%s964] sm:%s3]
    %s966 = scalar_lea.vmem [#allocation0], 376
    %967 = vst [vmem:[%s966] sm:%s3] %v965
    %s968 = scalar_lea.vmem %s0, 92
    %v969 = vld [vmem:[%s968] sm:%s3]
    %s970 = scalar_lea.vmem [#allocation0], 368
    %971 = vst [vmem:[%s970] sm:%s3] %v969
    %s972 = scalar_lea.vmem %s0, 90
    %v973 = vld [vmem:[%s972] sm:%s3]
    %s974 = scalar_lea.vmem [#allocation0], 360
    %975 = vst [vmem:[%s974] sm:%s3] %v973
    %s976 = scalar_lea.vmem %s0, 88
    %v977 = vld [vmem:[%s976] sm:%s3]
    %s978 = scalar_lea.vmem [#allocation0], 352
    %979 = vst [vmem:[%s978] sm:%s3] %v977
    %s980 = scalar_lea.vmem %s0, 86
    %v981 = vld [vmem:[%s980] sm:%s3]
    %s982 = scalar_lea.vmem [#allocation0], 344
    %983 = vst [vmem:[%s982] sm:%s3] %v981
    %s984 = scalar_lea.vmem %s0, 84
    %v985 = vld [vmem:[%s984] sm:%s3]
    %s986 = scalar_lea.vmem [#allocation0], 336
    %987 = vst [vmem:[%s986] sm:%s3] %v985
    %s988 = scalar_lea.vmem %s0, 82
    %v989 = vld [vmem:[%s988] sm:%s3]
    %s990 = scalar_lea.vmem [#allocation0], 328
    %991 = vst [vmem:[%s990] sm:%s3] %v989
    %s992 = scalar_lea.vmem %s0, 80
    %v993 = vld [vmem:[%s992] sm:%s3]
    %s994 = scalar_lea.vmem [#allocation0], 320
    %995 = vst [vmem:[%s994] sm:%s3] %v993
    %s996 = scalar_lea.vmem %s0, 78
    %v997 = vld [vmem:[%s996] sm:%s3]
    %s998 = scalar_lea.vmem [#allocation0], 312
    %999 = vst [vmem:[%s998] sm:%s3] %v997
    %s1000 = scalar_lea.vmem %s0, 76
    %v1001 = vld [vmem:[%s1000] sm:%s3]
    %s1002 = scalar_lea.vmem [#allocation0], 304
    %1003 = vst [vmem:[%s1002] sm:%s3] %v1001
    %s1004 = scalar_lea.vmem %s0, 74
    %v1005 = vld [vmem:[%s1004] sm:%s3]
    %s1006 = scalar_lea.vmem [#allocation0], 296
    %1007 = vst [vmem:[%s1006] sm:%s3] %v1005
    %s1008 = scalar_lea.vmem %s0, 72
    %v1009 = vld [vmem:[%s1008] sm:%s3]
    %s1010 = scalar_lea.vmem [#allocation0], 288
    %1011 = vst [vmem:[%s1010] sm:%s3] %v1009
    %s1012 = scalar_lea.vmem %s0, 70
    %v1013 = vld [vmem:[%s1012] sm:%s3]
    %s1014 = scalar_lea.vmem [#allocation0], 280
    %1015 = vst [vmem:[%s1014] sm:%s3] %v1013
    %s1016 = scalar_lea.vmem %s0, 68
    %v1017 = vld [vmem:[%s1016] sm:%s3]
    %s1018 = scalar_lea.vmem [#allocation0], 272
    %1019 = vst [vmem:[%s1018] sm:%s3] %v1017
    %s1020 = scalar_lea.vmem %s0, 66
    %v1021 = vld [vmem:[%s1020] sm:%s3]
    %s1022 = scalar_lea.vmem [#allocation0], 264
    %1023 = vst [vmem:[%s1022] sm:%s3] %v1021
    %s1024 = scalar_lea.vmem %s0, 64
    %v1025 = vld [vmem:[%s1024] sm:%s3]
    %s1026 = scalar_lea.vmem [#allocation0], 256
    %1027 = vst [vmem:[%s1026] sm:%s3] %v1025
    %s1028 = scalar_lea.vmem %s0, 62
    %v1029 = vld [vmem:[%s1028] sm:%s3]
    %s1030 = scalar_lea.vmem [#allocation0], 248
    %1031 = vst [vmem:[%s1030] sm:%s3] %v1029
    %s1032 = scalar_lea.vmem %s0, 60
    %v1033 = vld [vmem:[%s1032] sm:%s3]
    %s1034 = scalar_lea.vmem [#allocation0], 240
    %1035 = vst [vmem:[%s1034] sm:%s3] %v1033
    %s1036 = scalar_lea.vmem %s0, 58
    %v1037 = vld [vmem:[%s1036] sm:%s3]
    %s1038 = scalar_lea.vmem [#allocation0], 232
    %1039 = vst [vmem:[%s1038] sm:%s3] %v1037
    %s1040 = scalar_lea.vmem %s0, 56
    %v1041 = vld [vmem:[%s1040] sm:%s3]
    %s1042 = scalar_lea.vmem [#allocation0], 224
    %1043 = vst [vmem:[%s1042] sm:%s3] %v1041
    %s1044 = scalar_lea.vmem %s0, 54
    %v1045 = vld [vmem:[%s1044] sm:%s3]
    %s1046 = scalar_lea.vmem [#allocation0], 216
    %1047 = vst [vmem:[%s1046] sm:%s3] %v1045
    %s1048 = scalar_lea.vmem %s0, 52
    %v1049 = vld [vmem:[%s1048] sm:%s3]
    %s1050 = scalar_lea.vmem [#allocation0], 208
    %1051 = vst [vmem:[%s1050] sm:%s3] %v1049
    %s1052 = scalar_lea.vmem %s0, 50
    %v1053 = vld [vmem:[%s1052] sm:%s3]
    %s1054 = scalar_lea.vmem [#allocation0], 200
    %1055 = vst [vmem:[%s1054] sm:%s3] %v1053
    %s1056 = scalar_lea.vmem %s0, 48
    %v1057 = vld [vmem:[%s1056] sm:%s3]
    %s1058 = scalar_lea.vmem [#allocation0], 192
    %1059 = vst [vmem:[%s1058] sm:%s3] %v1057
    %s1060 = scalar_lea.vmem %s0, 46
    %v1061 = vld [vmem:[%s1060] sm:%s3]
    %s1062 = scalar_lea.vmem [#allocation0], 184
    %1063 = vst [vmem:[%s1062] sm:%s3] %v1061
    %s1064 = scalar_lea.vmem %s0, 44
    %v1065 = vld [vmem:[%s1064] sm:%s3]
    %s1066 = scalar_lea.vmem [#allocation0], 176
    %1067 = vst [vmem:[%s1066] sm:%s3] %v1065
    %s1068 = scalar_lea.vmem %s0, 42
    %v1069 = vld [vmem:[%s1068] sm:%s3]
    %s1070 = scalar_lea.vmem [#allocation0], 168
    %1071 = vst [vmem:[%s1070] sm:%s3] %v1069
    %s1072 = scalar_lea.vmem %s0, 40
    %v1073 = vld [vmem:[%s1072] sm:%s3]
    %s1074 = scalar_lea.vmem [#allocation0], 160
    %1075 = vst [vmem:[%s1074] sm:%s3] %v1073
    %s1076 = scalar_lea.vmem %s0, 38
    %v1077 = vld [vmem:[%s1076] sm:%s3]
    %s1078 = scalar_lea.vmem [#allocation0], 152
    %1079 = vst [vmem:[%s1078] sm:%s3] %v1077
    %s1080 = scalar_lea.vmem %s0, 36
    %v1081 = vld [vmem:[%s1080] sm:%s3]
    %s1082 = scalar_lea.vmem [#allocation0], 144
    %1083 = vst [vmem:[%s1082] sm:%s3] %v1081
    %s1084 = scalar_lea.vmem %s0, 34
    %v1085 = vld [vmem:[%s1084] sm:%s3]
    %s1086 = scalar_lea.vmem [#allocation0], 136
    %1087 = vst [vmem:[%s1086] sm:%s3] %v1085
    %s1088 = scalar_lea.vmem %s0, 32
    %v1089 = vld [vmem:[%s1088] sm:%s3]
    %s1090 = scalar_lea.vmem [#allocation0], 128
    %1091 = vst [vmem:[%s1090] sm:%s3] %v1089
    %s1092 = scalar_lea.vmem %s0, 30
    %v1093 = vld [vmem:[%s1092] sm:%s3]
    %s1094 = scalar_lea.vmem [#allocation0], 120
    %1095 = vst [vmem:[%s1094] sm:%s3] %v1093
    %s1096 = scalar_lea.vmem %s0, 28
    %v1097 = vld [vmem:[%s1096] sm:%s3]
    %s1098 = scalar_lea.vmem [#allocation0], 112
    %1099 = vst [vmem:[%s1098] sm:%s3] %v1097
    %s1100 = scalar_lea.vmem %s0, 26
    %v1101 = vld [vmem:[%s1100] sm:%s3]
    %s1102 = scalar_lea.vmem [#allocation0], 104
    %1103 = vst [vmem:[%s1102] sm:%s3] %v1101
    %s1104 = scalar_lea.vmem %s0, 24
    %v1105 = vld [vmem:[%s1104] sm:%s3]
    %s1106 = scalar_lea.vmem [#allocation0], 96
    %1107 = vst [vmem:[%s1106] sm:%s3] %v1105
    %s1108 = scalar_lea.vmem %s0, 22
    %v1109 = vld [vmem:[%s1108] sm:%s3]
    %s1110 = scalar_lea.vmem [#allocation0], 88
    %1111 = vst [vmem:[%s1110] sm:%s3] %v1109
    %s1112 = scalar_lea.vmem %s0, 20
    %v1113 = vld [vmem:[%s1112] sm:%s3]
    %s1114 = scalar_lea.vmem [#allocation0], 80
    %1115 = vst [vmem:[%s1114] sm:%s3] %v1113
    %s1116 = scalar_lea.vmem %s0, 18
    %v1117 = vld [vmem:[%s1116] sm:%s3]
    %s1118 = scalar_lea.vmem [#allocation0], 72
    %1119 = vst [vmem:[%s1118] sm:%s3] %v1117
    %s1120 = scalar_lea.vmem %s0, 16
    %v1121 = vld [vmem:[%s1120] sm:%s3]
    %s1122 = scalar_lea.vmem [#allocation0], 64
    %1123 = vst [vmem:[%s1122] sm:%s3] %v1121
    %s1124 = scalar_lea.vmem %s0, 14
    %v1125 = vld [vmem:[%s1124] sm:%s3]
    %s1126 = scalar_lea.vmem [#allocation0], 56
    %1127 = vst [vmem:[%s1126] sm:%s3] %v1125
    %s1128 = scalar_lea.vmem %s0, 12
    %v1129 = vld [vmem:[%s1128] sm:%s3]
    %s1130 = scalar_lea.vmem [#allocation0], 48
    %1131 = vst [vmem:[%s1130] sm:%s3] %v1129
    %s1132 = scalar_lea.vmem %s0, 10
    %v1133 = vld [vmem:[%s1132] sm:%s3]
    %s1134 = scalar_lea.vmem [#allocation0], 40
    %1135 = vst [vmem:[%s1134] sm:%s3] %v1133
    %s1136 = scalar_lea.vmem %s0, 8
    %v1137 = vld [vmem:[%s1136] sm:%s3]
    %s1138 = scalar_lea.vmem [#allocation0], 32
    %1139 = vst [vmem:[%s1138] sm:%s3] %v1137
    %s1140 = scalar_lea.vmem %s0, 6
    %v1141 = vld [vmem:[%s1140] sm:%s3]
    %s1142 = scalar_lea.vmem [#allocation0], 24
    %1143 = vst [vmem:[%s1142] sm:%s3] %v1141
    %s1144 = scalar_lea.vmem %s0, 4
    %v1145 = vld [vmem:[%s1144] sm:%s3]
    %s1146 = scalar_lea.vmem [#allocation0], 16
    %1147 = vst [vmem:[%s1146] sm:%s3] %v1145
    %s1148 = scalar_lea.vmem %s0, 2
    %v1149 = vld [vmem:[%s1148] sm:%s3]
    %s1150 = scalar_lea.vmem [#allocation0], 8
    %1151 = vst [vmem:[%s1150] sm:%s3] %v1149
    %v1152 = vld [vmem:[%s0] sm:%s3]
    %1153 = vst [vmem:[#allocation0] sm:%s3] %v1152
    %v1154 = vld [vmem:[#allocation0] ss:$8 sm:$0xf]
    %v1155 = vld [vmem:[#allocation0] ss:$8 sm:$0xf0]
    %vm1156 = vcmask 1047556
    %v1157 = vsel %vm1156, %v1155, %v1154
    %vm1158 = vcmask 261120
    %1159 = vst.msk [vmem:[%s1] sm:$0xff] %vm1158, %v1157
    %s1160 = scalar_lea.vmem [#allocation0], 64
    %v1161 = vld [vmem:[%s1160] ss:$8 sm:$0xf]
    %s1162 = scalar_lea.vmem [#allocation0], 64
    %v1163 = vld [vmem:[%s1162] ss:$8 sm:$0xf0]
    %vm1164 = vcmask 1047556
    %v1165 = vsel %vm1164, %v1163, %v1161
    %vm1166 = vcmask 261120
    %s1167 = scalar_lea.vmem %s1, 8
    %1168 = vst.msk [vmem:[%s1167] sm:$0xff] %vm1166, %v1165
    %s1169 = scalar_lea.vmem [#allocation0], 128
    %v1170 = vld [vmem:[%s1169] ss:$8 sm:$0xf]
    %s1171 = scalar_lea.vmem [#allocation0], 128
    %v1172 = vld [vmem:[%s1171] ss:$8 sm:$0xf0]
    %vm1173 = vcmask 1047556
    %v1174 = vsel %vm1173, %v1172, %v1170
    %vm1175 = vcmask 261120
    %s1176 = scalar_lea.vmem %s1, 16
    %1177 = vst.msk [vmem:[%s1176] sm:$0xff] %vm1175, %v1174
    %s1178 = scalar_lea.vmem [#allocation0], 192
    %v1179 = vld [vmem:[%s1178] ss:$8 sm:$0xf]
    %s1180 = scalar_lea.vmem [#allocation0], 192
    %v1181 = vld [vmem:[%s1180] ss:$8 sm:$0xf0]
    %vm1182 = vcmask 1047556
    %v1183 = vsel %vm1182, %v1181, %v1179
    %vm1184 = vcmask 261120
    %s1185 = scalar_lea.vmem %s1, 24
    %1186 = vst.msk [vmem:[%s1185] sm:$0xff] %vm1184, %v1183
    %s1187 = scalar_lea.vmem [#allocation0], 256
    %v1188 = vld [vmem:[%s1187] ss:$8 sm:$0xf]
    %s1189 = scalar_lea.vmem [#allocation0], 256
    %v1190 = vld [vmem:[%s1189] ss:$8 sm:$0xf0]
    %vm1191 = vcmask 1047556
    %v1192 = vsel %vm1191, %v1190, %v1188
    %vm1193 = vcmask 261120
    %s1194 = scalar_lea.vmem %s1, 32
    %1195 = vst.msk [vmem:[%s1194] sm:$0xff] %vm1193, %v1192
    %s1196 = scalar_lea.vmem [#allocation0], 320
    %v1197 = vld [vmem:[%s1196] ss:$8 sm:$0xf]
    %s1198 = scalar_lea.vmem [#allocation0], 320
    %v1199 = vld [vmem:[%s1198] ss:$8 sm:$0xf0]
    %vm1200 = vcmask 1047556
    %v1201 = vsel %vm1200, %v1199, %v1197
    %vm1202 = vcmask 261120
    %s1203 = scalar_lea.vmem %s1, 40
    %1204 = vst.msk [vmem:[%s1203] sm:$0xff] %vm1202, %v1201
    %s1205 = scalar_lea.vmem [#allocation0], 384
    %v1206 = vld [vmem:[%s1205] ss:$8 sm:$0xf]
    %s1207 = scalar_lea.vmem [#allocation0], 384
    %v1208 = vld [vmem:[%s1207] ss:$8 sm:$0xf0]
    %vm1209 = vcmask 1047556
    %v1210 = vsel %vm1209, %v1208, %v1206
    %vm1211 = vcmask 261120
    %s1212 = scalar_lea.vmem %s1, 48
    %1213 = vst.msk [vmem:[%s1212] sm:$0xff] %vm1211, %v1210
    %s1214 = scalar_lea.vmem [#allocation0], 448
    %v1215 = vld [vmem:[%s1214] ss:$8 sm:$0xf]
    %s1216 = scalar_lea.vmem [#allocation0], 448
    %v1217 = vld [vmem:[%s1216] ss:$8 sm:$0xf0]
    %vm1218 = vcmask 1047556
    %v1219 = vsel %vm1218, %v1217, %v1215
    %vm1220 = vcmask 261120
    %s1221 = scalar_lea.vmem %s1, 56
    %1222 = vst.msk [vmem:[%s1221] sm:$0xff] %vm1220, %v1219
    %s1223 = scalar_lea.vmem [#allocation0], 512
    %v1224 = vld [vmem:[%s1223] ss:$8 sm:$0xf]
    %s1225 = scalar_lea.vmem [#allocation0], 512
    %v1226 = vld [vmem:[%s1225] ss:$8 sm:$0xf0]
    %vm1227 = vcmask 1047556
    %v1228 = vsel %vm1227, %v1226, %v1224
    %vm1229 = vcmask 261120
    %s1230 = scalar_lea.vmem %s1, 64
    %1231 = vst.msk [vmem:[%s1230] sm:$0xff] %vm1229, %v1228
    %s1232 = scalar_lea.vmem [#allocation0], 576
    %v1233 = vld [vmem:[%s1232] ss:$8 sm:$0xf]
    %s1234 = scalar_lea.vmem [#allocation0], 576
    %v1235 = vld [vmem:[%s1234] ss:$8 sm:$0xf0]
    %vm1236 = vcmask 1047556
    %v1237 = vsel %vm1236, %v1235, %v1233
    %vm1238 = vcmask 261120
    %s1239 = scalar_lea.vmem %s1, 72
    %1240 = vst.msk [vmem:[%s1239] sm:$0xff] %vm1238, %v1237
    %s1241 = scalar_lea.vmem [#allocation0], 640
    %v1242 = vld [vmem:[%s1241] ss:$8 sm:$0xf]
    %s1243 = scalar_lea.vmem [#allocation0], 640
    %v1244 = vld [vmem:[%s1243] ss:$8 sm:$0xf0]
    %vm1245 = vcmask 1047556
    %v1246 = vsel %vm1245, %v1244, %v1242
    %vm1247 = vcmask 261120
    %s1248 = scalar_lea.vmem %s1, 80
    %1249 = vst.msk [vmem:[%s1248] sm:$0xff] %vm1247, %v1246
    %s1250 = scalar_lea.vmem [#allocation0], 704
    %v1251 = vld [vmem:[%s1250] ss:$8 sm:$0xf]
    %s1252 = scalar_lea.vmem [#allocation0], 704
    %v1253 = vld [vmem:[%s1252] ss:$8 sm:$0xf0]
    %vm1254 = vcmask 1047556
    %v1255 = vsel %vm1254, %v1253, %v1251
    %vm1256 = vcmask 261120
    %s1257 = scalar_lea.vmem %s1, 88
    %1258 = vst.msk [vmem:[%s1257] sm:$0xff] %vm1256, %v1255
    %s1259 = scalar_lea.vmem [#allocation0], 768
    %v1260 = vld [vmem:[%s1259] ss:$8 sm:$0xf]
    %s1261 = scalar_lea.vmem [#allocation0], 768
    %v1262 = vld [vmem:[%s1261] ss:$8 sm:$0xf0]
    %vm1263 = vcmask 1047556
    %v1264 = vsel %vm1263, %v1262, %v1260
    %vm1265 = vcmask 261120
    %s1266 = scalar_lea.vmem %s1, 96
    %1267 = vst.msk [vmem:[%s1266] sm:$0xff] %vm1265, %v1264
    %s1268 = scalar_lea.vmem [#allocation0], 832
    %v1269 = vld [vmem:[%s1268] ss:$8 sm:$0xf]
    %s1270 = scalar_lea.vmem [#allocation0], 832
    %v1271 = vld [vmem:[%s1270] ss:$8 sm:$0xf0]
    %vm1272 = vcmask 1047556
    %v1273 = vsel %vm1272, %v1271, %v1269
    %vm1274 = vcmask 261120
    %s1275 = scalar_lea.vmem %s1, 104
    %1276 = vst.msk [vmem:[%s1275] sm:$0xff] %vm1274, %v1273
    %s1277 = scalar_lea.vmem [#allocation0], 896
    %v1278 = vld [vmem:[%s1277] ss:$8 sm:$0xf]
    %s1279 = scalar_lea.vmem [#allocation0], 896
    %v1280 = vld [vmem:[%s1279] ss:$8 sm:$0xf0]
    %vm1281 = vcmask 1047556
    %v1282 = vsel %vm1281, %v1280, %v1278
    %vm1283 = vcmask 261120
    %s1284 = scalar_lea.vmem %s1, 112
    %1285 = vst.msk [vmem:[%s1284] sm:$0xff] %vm1283, %v1282
    %s1286 = scalar_lea.vmem [#allocation0], 960
    %v1287 = vld [vmem:[%s1286] ss:$8 sm:$0xf]
    %s1288 = scalar_lea.vmem [#allocation0], 960
    %v1289 = vld [vmem:[%s1288] ss:$8 sm:$0xf0]
    %vm1290 = vcmask 1047556
    %v1291 = vsel %vm1290, %v1289, %v1287
    %vm1292 = vcmask 261120
    %s1293 = scalar_lea.vmem %s1, 120
    %1294 = vst.msk [vmem:[%s1293] sm:$0xff] %vm1292, %v1291
    %s1295 = scalar_lea.vmem [#allocation0], 1024
    %v1296 = vld [vmem:[%s1295] ss:$8 sm:$0xf]
    %s1297 = scalar_lea.vmem [#allocation0], 1024
    %v1298 = vld [vmem:[%s1297] ss:$8 sm:$0xf0]
    %vm1299 = vcmask 1047556
    %v1300 = vsel %vm1299, %v1298, %v1296
    %vm1301 = vcmask 261120
    %s1302 = scalar_lea.vmem %s1, 128
    %1303 = vst.msk [vmem:[%s1302] sm:$0xff] %vm1301, %v1300
    %s1304 = scalar_lea.vmem [#allocation0], 1088
    %v1305 = vld [vmem:[%s1304] ss:$8 sm:$0xf]
    %s1306 = scalar_lea.vmem [#allocation0], 1088
    %v1307 = vld [vmem:[%s1306] ss:$8 sm:$0xf0]
    %vm1308 = vcmask 1047556
    %v1309 = vsel %vm1308, %v1307, %v1305
    %vm1310 = vcmask 261120
    %s1311 = scalar_lea.vmem %s1, 136
    %1312 = vst.msk [vmem:[%s1311] sm:$0xff] %vm1310, %v1309
    %s1313 = scalar_lea.vmem [#allocation0], 1152
    %v1314 = vld [vmem:[%s1313] ss:$8 sm:$0xf]
    %s1315 = scalar_lea.vmem [#allocation0], 1152
    %v1316 = vld [vmem:[%s1315] ss:$8 sm:$0xf0]
    %vm1317 = vcmask 1047556
    %v1318 = vsel %vm1317, %v1316, %v1314
    %vm1319 = vcmask 261120
    %s1320 = scalar_lea.vmem %s1, 144
    %1321 = vst.msk [vmem:[%s1320] sm:$0xff] %vm1319, %v1318
    %s1322 = scalar_lea.vmem [#allocation0], 1216
    %v1323 = vld [vmem:[%s1322] ss:$8 sm:$0xf]
    %s1324 = scalar_lea.vmem [#allocation0], 1216
    %v1325 = vld [vmem:[%s1324] ss:$8 sm:$0xf0]
    %vm1326 = vcmask 1047556
    %v1327 = vsel %vm1326, %v1325, %v1323
    %vm1328 = vcmask 261120
    %s1329 = scalar_lea.vmem %s1, 152
    %1330 = vst.msk [vmem:[%s1329] sm:$0xff] %vm1328, %v1327
    %s1331 = scalar_lea.vmem [#allocation0], 1280
    %v1332 = vld [vmem:[%s1331] ss:$8 sm:$0xf]
    %s1333 = scalar_lea.vmem [#allocation0], 1280
    %v1334 = vld [vmem:[%s1333] ss:$8 sm:$0xf0]
    %vm1335 = vcmask 1047556
    %v1336 = vsel %vm1335, %v1334, %v1332
    %vm1337 = vcmask 261120
    %s1338 = scalar_lea.vmem %s1, 160
    %1339 = vst.msk [vmem:[%s1338] sm:$0xff] %vm1337, %v1336
    %s1340 = scalar_lea.vmem [#allocation0], 1344
    %v1341 = vld [vmem:[%s1340] ss:$8 sm:$0xf]
    %s1342 = scalar_lea.vmem [#allocation0], 1344
    %v1343 = vld [vmem:[%s1342] ss:$8 sm:$0xf0]
    %vm1344 = vcmask 1047556
    %v1345 = vsel %vm1344, %v1343, %v1341
    %vm1346 = vcmask 261120
    %s1347 = scalar_lea.vmem %s1, 168
    %1348 = vst.msk [vmem:[%s1347] sm:$0xff] %vm1346, %v1345
    %s1349 = scalar_lea.vmem [#allocation0], 1408
    %v1350 = vld [vmem:[%s1349] ss:$8 sm:$0xf]
    %s1351 = scalar_lea.vmem [#allocation0], 1408
    %v1352 = vld [vmem:[%s1351] ss:$8 sm:$0xf0]
    %vm1353 = vcmask 1047556
    %v1354 = vsel %vm1353, %v1352, %v1350
    %vm1355 = vcmask 261120
    %s1356 = scalar_lea.vmem %s1, 176
    %1357 = vst.msk [vmem:[%s1356] sm:$0xff] %vm1355, %v1354
    %s1358 = scalar_lea.vmem [#allocation0], 1472
    %v1359 = vld [vmem:[%s1358] ss:$8 sm:$0xf]
    %s1360 = scalar_lea.vmem [#allocation0], 1472
    %v1361 = vld [vmem:[%s1360] ss:$8 sm:$0xf0]
    %vm1362 = vcmask 1047556
    %v1363 = vsel %vm1362, %v1361, %v1359
    %vm1364 = vcmask 261120
    %s1365 = scalar_lea.vmem %s1, 184
    %1366 = vst.msk [vmem:[%s1365] sm:$0xff] %vm1364, %v1363
    %s1367 = scalar_lea.vmem [#allocation0], 1536
    %v1368 = vld [vmem:[%s1367] ss:$8 sm:$0xf]
    %s1369 = scalar_lea.vmem [#allocation0], 1536
    %v1370 = vld [vmem:[%s1369] ss:$8 sm:$0xf0]
    %vm1371 = vcmask 1047556
    %v1372 = vsel %vm1371, %v1370, %v1368
    %vm1373 = vcmask 261120
    %s1374 = scalar_lea.vmem %s1, 192
    %1375 = vst.msk [vmem:[%s1374] sm:$0xff] %vm1373, %v1372
    %s1376 = scalar_lea.vmem [#allocation0], 1600
    %v1377 = vld [vmem:[%s1376] ss:$8 sm:$0xf]
    %s1378 = scalar_lea.vmem [#allocation0], 1600
    %v1379 = vld [vmem:[%s1378] ss:$8 sm:$0xf0]
    %vm1380 = vcmask 1047556
    %v1381 = vsel %vm1380, %v1379, %v1377
    %vm1382 = vcmask 261120
    %s1383 = scalar_lea.vmem %s1, 200
    %1384 = vst.msk [vmem:[%s1383] sm:$0xff] %vm1382, %v1381
    %s1385 = scalar_lea.vmem [#allocation0], 1664
    %v1386 = vld [vmem:[%s1385] ss:$8 sm:$0xf]
    %s1387 = scalar_lea.vmem [#allocation0], 1664
    %v1388 = vld [vmem:[%s1387] ss:$8 sm:$0xf0]
    %vm1389 = vcmask 1047556
    %v1390 = vsel %vm1389, %v1388, %v1386
    %vm1391 = vcmask 261120
    %s1392 = scalar_lea.vmem %s1, 208
    %1393 = vst.msk [vmem:[%s1392] sm:$0xff] %vm1391, %v1390
    %s1394 = scalar_lea.vmem [#allocation0], 1728
    %v1395 = vld [vmem:[%s1394] ss:$8 sm:$0xf]
    %s1396 = scalar_lea.vmem [#allocation0], 1728
    %v1397 = vld [vmem:[%s1396] ss:$8 sm:$0xf0]
    %vm1398 = vcmask 1047556
    %v1399 = vsel %vm1398, %v1397, %v1395
    %vm1400 = vcmask 261120
    %s1401 = scalar_lea.vmem %s1, 216
    %1402 = vst.msk [vmem:[%s1401] sm:$0xff] %vm1400, %v1399
    %s1403 = scalar_lea.vmem [#allocation0], 1792
    %v1404 = vld [vmem:[%s1403] ss:$8 sm:$0xf]
    %s1405 = scalar_lea.vmem [#allocation0], 1792
    %v1406 = vld [vmem:[%s1405] ss:$8 sm:$0xf0]
    %vm1407 = vcmask 1047556
    %v1408 = vsel %vm1407, %v1406, %v1404
    %vm1409 = vcmask 261120
    %s1410 = scalar_lea.vmem %s1, 224
    %1411 = vst.msk [vmem:[%s1410] sm:$0xff] %vm1409, %v1408
    %s1412 = scalar_lea.vmem [#allocation0], 1856
    %v1413 = vld [vmem:[%s1412] ss:$8 sm:$0xf]
    %s1414 = scalar_lea.vmem [#allocation0], 1856
    %v1415 = vld [vmem:[%s1414] ss:$8 sm:$0xf0]
    %vm1416 = vcmask 1047556
    %v1417 = vsel %vm1416, %v1415, %v1413
    %vm1418 = vcmask 261120
    %s1419 = scalar_lea.vmem %s1, 232
    %1420 = vst.msk [vmem:[%s1419] sm:$0xff] %vm1418, %v1417
    %s1421 = scalar_lea.vmem [#allocation0], 1920
    %v1422 = vld [vmem:[%s1421] ss:$8 sm:$0xf]
    %s1423 = scalar_lea.vmem [#allocation0], 1920
    %v1424 = vld [vmem:[%s1423] ss:$8 sm:$0xf0]
    %vm1425 = vcmask 1047556
    %v1426 = vsel %vm1425, %v1424, %v1422
    %vm1427 = vcmask 261120
    %s1428 = scalar_lea.vmem %s1, 240
    %1429 = vst.msk [vmem:[%s1428] sm:$0xff] %vm1427, %v1426
    %s1430 = scalar_lea.vmem [#allocation0], 1984
    %v1431 = vld [vmem:[%s1430] ss:$8 sm:$0xf]
    %s1432 = scalar_lea.vmem [#allocation0], 1984
    %v1433 = vld [vmem:[%s1432] ss:$8 sm:$0xf0]
    %vm1434 = vcmask 1047556
    %v1435 = vsel %vm1434, %v1433, %v1431
    %vm1436 = vcmask 261120
    %s1437 = scalar_lea.vmem %s1, 248
    %1438 = vst.msk [vmem:[%s1437] sm:$0xff] %vm1436, %v1435
    %s1439 = scalar_lea.vmem [#allocation0], 2048
    %v1440 = vld [vmem:[%s1439] ss:$8 sm:$0xf]
    %s1441 = scalar_lea.vmem [#allocation0], 2048
    %v1442 = vld [vmem:[%s1441] ss:$8 sm:$0xf0]
    %vm1443 = vcmask 1047556
    %v1444 = vsel %vm1443, %v1442, %v1440
    %vm1445 = vcmask 261120
    %s1446 = scalar_lea.vmem %s1, 256
    %1447 = vst.msk [vmem:[%s1446] sm:$0xff] %vm1445, %v1444
    %s1448 = scalar_lea.vmem [#allocation0], 2112
    %v1449 = vld [vmem:[%s1448] ss:$8 sm:$0xf]
    %s1450 = scalar_lea.vmem [#allocation0], 2112
    %v1451 = vld [vmem:[%s1450] ss:$8 sm:$0xf0]
    %vm1452 = vcmask 1047556
    %v1453 = vsel %vm1452, %v1451, %v1449
    %vm1454 = vcmask 261120
    %s1455 = scalar_lea.vmem %s1, 264
    %1456 = vst.msk [vmem:[%s1455] sm:$0xff] %vm1454, %v1453
    %s1457 = scalar_lea.vmem [#allocation0], 2176
    %v1458 = vld [vmem:[%s1457] ss:$8 sm:$0xf]
    %s1459 = scalar_lea.vmem [#allocation0], 2176
    %v1460 = vld [vmem:[%s1459] ss:$8 sm:$0xf0]
    %vm1461 = vcmask 1047556
    %v1462 = vsel %vm1461, %v1460, %v1458
    %vm1463 = vcmask 261120
    %s1464 = scalar_lea.vmem %s1, 272
    %1465 = vst.msk [vmem:[%s1464] sm:$0xff] %vm1463, %v1462
    %s1466 = scalar_lea.vmem [#allocation0], 2240
    %v1467 = vld [vmem:[%s1466] ss:$8 sm:$0xf]
    %s1468 = scalar_lea.vmem [#allocation0], 2240
    %v1469 = vld [vmem:[%s1468] ss:$8 sm:$0xf0]
    %vm1470 = vcmask 1047556
    %v1471 = vsel %vm1470, %v1469, %v1467
    %vm1472 = vcmask 261120
    %s1473 = scalar_lea.vmem %s1, 280
    %1474 = vst.msk [vmem:[%s1473] sm:$0xff] %vm1472, %v1471
    %s1475 = scalar_lea.vmem [#allocation0], 1
    %v1476 = vld [vmem:[%s1475] ss:$8 sm:$0xf]
    %s1477 = scalar_lea.vmem [#allocation0], 1
    %v1478 = vld [vmem:[%s1477] ss:$8 sm:$0xf0]
    %vm1479 = vcmask 1047556
    %v1480 = vsel %vm1479, %v1478, %v1476
    %1481 = vrot.lane.b32.xlu0 %v1480, 32
    %v1482 = vpop.permute.xlu0 %1481
    %vm1483 = vcmask 523520
    %1484 = vst.msk [vmem:[%s1] sm:$0xff] %vm1483, %v1482
    %s1485 = scalar_lea.vmem [#allocation0], 257
    %v1486 = vld [vmem:[%s1485] ss:$8 sm:$0xf]
    %s1487 = scalar_lea.vmem [#allocation0], 257
    %v1488 = vld [vmem:[%s1487] ss:$8 sm:$0xf0]
    %vm1489 = vcmask 1047556
    %v1490 = vsel %vm1489, %v1488, %v1486
    %1491 = vrot.lane.b32.xlu0 %v1490, 32
    %v1492 = vpop.permute.xlu0 %1491
    %vm1493 = vcmask 523520
    %s1494 = scalar_lea.vmem %s1, 32
    %1495 = vst.msk [vmem:[%s1494] sm:$0xff] %vm1493, %v1492
    %s1496 = scalar_lea.vmem [#allocation0], 513
    %v1497 = vld [vmem:[%s1496] ss:$8 sm:$0xf]
    %s1498 = scalar_lea.vmem [#allocation0], 513
    %v1499 = vld [vmem:[%s1498] ss:$8 sm:$0xf0]
    %vm1500 = vcmask 1047556
    %v1501 = vsel %vm1500, %v1499, %v1497
    %1502 = vrot.lane.b32.xlu0 %v1501, 32
    %v1503 = vpop.permute.xlu0 %1502
    %vm1504 = vcmask 523520
    %s1505 = scalar_lea.vmem %s1, 64
    %1506 = vst.msk [vmem:[%s1505] sm:$0xff] %vm1504, %v1503
    %s1507 = scalar_lea.vmem [#allocation0], 769
    %v1508 = vld [vmem:[%s1507] ss:$8 sm:$0xf]
    %s1509 = scalar_lea.vmem [#allocation0], 769
    %v1510 = vld [vmem:[%s1509] ss:$8 sm:$0xf0]
    %vm1511 = vcmask 1047556
    %v1512 = vsel %vm1511, %v1510, %v1508
    %1513 = vrot.lane.b32.xlu0 %v1512, 32
    %v1514 = vpop.permute.xlu0 %1513
    %vm1515 = vcmask 523520
    %s1516 = scalar_lea.vmem %s1, 96
    %1517 = vst.msk [vmem:[%s1516] sm:$0xff] %vm1515, %v1514
    %s1518 = scalar_lea.vmem [#allocation0], 1025
    %v1519 = vld [vmem:[%s1518] ss:$8 sm:$0xf]
    %s1520 = scalar_lea.vmem [#allocation0], 1025
    %v1521 = vld [vmem:[%s1520] ss:$8 sm:$0xf0]
    %vm1522 = vcmask 1047556
    %v1523 = vsel %vm1522, %v1521, %v1519
    %1524 = vrot.lane.b32.xlu0 %v1523, 32
    %v1525 = vpop.permute.xlu0 %1524
    %vm1526 = vcmask 523520
    %s1527 = scalar_lea.vmem %s1, 128
    %1528 = vst.msk [vmem:[%s1527] sm:$0xff] %vm1526, %v1525
    %s1529 = scalar_lea.vmem [#allocation0], 1281
    %v1530 = vld [vmem:[%s1529] ss:$8 sm:$0xf]
    %s1531 = scalar_lea.vmem [#allocation0], 1281
    %v1532 = vld [vmem:[%s1531] ss:$8 sm:$0xf0]
    %vm1533 = vcmask 1047556
    %v1534 = vsel %vm1533, %v1532, %v1530
    %1535 = vrot.lane.b32.xlu0 %v1534, 32
    %v1536 = vpop.permute.xlu0 %1535
    %vm1537 = vcmask 523520
    %s1538 = scalar_lea.vmem %s1, 160
    %1539 = vst.msk [vmem:[%s1538] sm:$0xff] %vm1537, %v1536
    %s1540 = scalar_lea.vmem [#allocation0], 1537
    %v1541 = vld [vmem:[%s1540] ss:$8 sm:$0xf]
    %s1542 = scalar_lea.vmem [#allocation0], 1537
    %v1543 = vld [vmem:[%s1542] ss:$8 sm:$0xf0]
    %vm1544 = vcmask 1047556
    %v1545 = vsel %vm1544, %v1543, %v1541
    %1546 = vrot.lane.b32.xlu0 %v1545, 32
    %v1547 = vpop.permute.xlu0 %1546
    %vm1548 = vcmask 523520
    %s1549 = scalar_lea.vmem %s1, 192
    %1550 = vst.msk [vmem:[%s1549] sm:$0xff] %vm1548, %v1547
    %s1551 = scalar_lea.vmem [#allocation0], 1793
    %v1552 = vld [vmem:[%s1551] ss:$8 sm:$0xf]
    %s1553 = scalar_lea.vmem [#allocation0], 1793
    %v1554 = vld [vmem:[%s1553] ss:$8 sm:$0xf0]
    %vm1555 = vcmask 1047556
    %v1556 = vsel %vm1555, %v1554, %v1552
    %1557 = vrot.lane.b32.xlu0 %v1556, 32
    %v1558 = vpop.permute.xlu0 %1557
    %vm1559 = vcmask 523520
    %s1560 = scalar_lea.vmem %s1, 224
    %1561 = vst.msk [vmem:[%s1560] sm:$0xff] %vm1559, %v1558
    %s1562 = scalar_lea.vmem [#allocation0], 2049
    %v1563 = vld [vmem:[%s1562] ss:$8 sm:$0xf]
    %s1564 = scalar_lea.vmem [#allocation0], 2049
    %v1565 = vld [vmem:[%s1564] ss:$8 sm:$0xf0]
    %vm1566 = vcmask 1047556
    %v1567 = vsel %vm1566, %v1565, %v1563
    %1568 = vrot.lane.b32.xlu0 %v1567, 32
    %v1569 = vpop.permute.xlu0 %1568
    %vm1570 = vcmask 523520
    %s1571 = scalar_lea.vmem %s1, 256
    %1572 = vst.msk [vmem:[%s1571] sm:$0xff] %vm1570, %v1569
    %s1573 = scalar_lea.vmem [#allocation0], 65
    %v1574 = vld [vmem:[%s1573] ss:$8 sm:$0xf]
    %s1575 = scalar_lea.vmem [#allocation0], 65
    %v1576 = vld [vmem:[%s1575] ss:$8 sm:$0xf0]
    %vm1577 = vcmask 1047556
    %v1578 = vsel %vm1577, %v1576, %v1574
    %1579 = vrot.lane.b32.xlu0 %v1578, 32
    %v1580 = vpop.permute.xlu0 %1579
    %vm1581 = vcmask 523520
    %s1582 = scalar_lea.vmem %s1, 8
    %1583 = vst.msk [vmem:[%s1582] sm:$0xff] %vm1581, %v1580
    %s1584 = scalar_lea.vmem [#allocation0], 321
    %v1585 = vld [vmem:[%s1584] ss:$8 sm:$0xf]
    %s1586 = scalar_lea.vmem [#allocation0], 321
    %v1587 = vld [vmem:[%s1586] ss:$8 sm:$0xf0]
    %vm1588 = vcmask 1047556
    %v1589 = vsel %vm1588, %v1587, %v1585
    %1590 = vrot.lane.b32.xlu0 %v1589, 32
    %v1591 = vpop.permute.xlu0 %1590
    %vm1592 = vcmask 523520
    %s1593 = scalar_lea.vmem %s1, 40
    %1594 = vst.msk [vmem:[%s1593] sm:$0xff] %vm1592, %v1591
    %s1595 = scalar_lea.vmem [#allocation0], 577
    %v1596 = vld [vmem:[%s1595] ss:$8 sm:$0xf]
    %s1597 = scalar_lea.vmem [#allocation0], 577
    %v1598 = vld [vmem:[%s1597] ss:$8 sm:$0xf0]
    %vm1599 = vcmask 1047556
    %v1600 = vsel %vm1599, %v1598, %v1596
    %1601 = vrot.lane.b32.xlu0 %v1600, 32
    %v1602 = vpop.permute.xlu0 %1601
    %vm1603 = vcmask 523520
    %s1604 = scalar_lea.vmem %s1, 72
    %1605 = vst.msk [vmem:[%s1604] sm:$0xff] %vm1603, %v1602
    %s1606 = scalar_lea.vmem [#allocation0], 833
    %v1607 = vld [vmem:[%s1606] ss:$8 sm:$0xf]
    %s1608 = scalar_lea.vmem [#allocation0], 833
    %v1609 = vld [vmem:[%s1608] ss:$8 sm:$0xf0]
    %vm1610 = vcmask 1047556
    %v1611 = vsel %vm1610, %v1609, %v1607
    %1612 = vrot.lane.b32.xlu0 %v1611, 32
    %v1613 = vpop.permute.xlu0 %1612
    %vm1614 = vcmask 523520
    %s1615 = scalar_lea.vmem %s1, 104
    %1616 = vst.msk [vmem:[%s1615] sm:$0xff] %vm1614, %v1613
    %s1617 = scalar_lea.vmem [#allocation0], 1089
    %v1618 = vld [vmem:[%s1617] ss:$8 sm:$0xf]
    %s1619 = scalar_lea.vmem [#allocation0], 1089
    %v1620 = vld [vmem:[%s1619] ss:$8 sm:$0xf0]
    %vm1621 = vcmask 1047556
    %v1622 = vsel %vm1621, %v1620, %v1618
    %1623 = vrot.lane.b32.xlu0 %v1622, 32
    %v1624 = vpop.permute.xlu0 %1623
    %vm1625 = vcmask 523520
    %s1626 = scalar_lea.vmem %s1, 136
    %1627 = vst.msk [vmem:[%s1626] sm:$0xff] %vm1625, %v1624
    %s1628 = scalar_lea.vmem [#allocation0], 1345
    %v1629 = vld [vmem:[%s1628] ss:$8 sm:$0xf]
    %s1630 = scalar_lea.vmem [#allocation0], 1345
    %v1631 = vld [vmem:[%s1630] ss:$8 sm:$0xf0]
    %vm1632 = vcmask 1047556
    %v1633 = vsel %vm1632, %v1631, %v1629
    %1634 = vrot.lane.b32.xlu0 %v1633, 32
    %v1635 = vpop.permute.xlu0 %1634
    %vm1636 = vcmask 523520
    %s1637 = scalar_lea.vmem %s1, 168
    %1638 = vst.msk [vmem:[%s1637] sm:$0xff] %vm1636, %v1635
    %s1639 = scalar_lea.vmem [#allocation0], 1601
    %v1640 = vld [vmem:[%s1639] ss:$8 sm:$0xf]
    %s1641 = scalar_lea.vmem [#allocation0], 1601
    %v1642 = vld [vmem:[%s1641] ss:$8 sm:$0xf0]
    %vm1643 = vcmask 1047556
    %v1644 = vsel %vm1643, %v1642, %v1640
    %1645 = vrot.lane.b32.xlu0 %v1644, 32
    %v1646 = vpop.permute.xlu0 %1645
    %vm1647 = vcmask 523520
    %s1648 = scalar_lea.vmem %s1, 200
    %1649 = vst.msk [vmem:[%s1648] sm:$0xff] %vm1647, %v1646
    %s1650 = scalar_lea.vmem [#allocation0], 1857
    %v1651 = vld [vmem:[%s1650] ss:$8 sm:$0xf]
    %s1652 = scalar_lea.vmem [#allocation0], 1857
    %v1653 = vld [vmem:[%s1652] ss:$8 sm:$0xf0]
    %vm1654 = vcmask 1047556
    %v1655 = vsel %vm1654, %v1653, %v1651
    %1656 = vrot.lane.b32.xlu0 %v1655, 32
    %v1657 = vpop.permute.xlu0 %1656
    %vm1658 = vcmask 523520
    %s1659 = scalar_lea.vmem %s1, 232
    %1660 = vst.msk [vmem:[%s1659] sm:$0xff] %vm1658, %v1657
    %s1661 = scalar_lea.vmem [#allocation0], 2113
    %v1662 = vld [vmem:[%s1661] ss:$8 sm:$0xf]
    %s1663 = scalar_lea.vmem [#allocation0], 2113
    %v1664 = vld [vmem:[%s1663] ss:$8 sm:$0xf0]
    %vm1665 = vcmask 1047556
    %v1666 = vsel %vm1665, %v1664, %v1662
    %1667 = vrot.lane.b32.xlu0 %v1666, 32
    %v1668 = vpop.permute.xlu0 %1667
    %vm1669 = vcmask 523520
    %s1670 = scalar_lea.vmem %s1, 264
    %1671 = vst.msk [vmem:[%s1670] sm:$0xff] %vm1669, %v1668
    %s1672 = scalar_lea.vmem [#allocation0], 129
    %v1673 = vld [vmem:[%s1672] ss:$8 sm:$0xf]
    %s1674 = scalar_lea.vmem [#allocation0], 129
    %v1675 = vld [vmem:[%s1674] ss:$8 sm:$0xf0]
    %vm1676 = vcmask 1047556
    %v1677 = vsel %vm1676, %v1675, %v1673
    %1678 = vrot.lane.b32.xlu0 %v1677, 32
    %v1679 = vpop.permute.xlu0 %1678
    %vm1680 = vcmask 523520
    %s1681 = scalar_lea.vmem %s1, 16
    %1682 = vst.msk [vmem:[%s1681] sm:$0xff] %vm1680, %v1679
    %s1683 = scalar_lea.vmem [#allocation0], 385
    %v1684 = vld [vmem:[%s1683] ss:$8 sm:$0xf]
    %s1685 = scalar_lea.vmem [#allocation0], 385
    %v1686 = vld [vmem:[%s1685] ss:$8 sm:$0xf0]
    %vm1687 = vcmask 1047556
    %v1688 = vsel %vm1687, %v1686, %v1684
    %1689 = vrot.lane.b32.xlu0 %v1688, 32
    %v1690 = vpop.permute.xlu0 %1689
    %vm1691 = vcmask 523520
    %s1692 = scalar_lea.vmem %s1, 48
    %1693 = vst.msk [vmem:[%s1692] sm:$0xff] %vm1691, %v1690
    %s1694 = scalar_lea.vmem [#allocation0], 641
    %v1695 = vld [vmem:[%s1694] ss:$8 sm:$0xf]
    %s1696 = scalar_lea.vmem [#allocation0], 641
    %v1697 = vld [vmem:[%s1696] ss:$8 sm:$0xf0]
    %vm1698 = vcmask 1047556
    %v1699 = vsel %vm1698, %v1697, %v1695
    %1700 = vrot.lane.b32.xlu0 %v1699, 32
    %v1701 = vpop.permute.xlu0 %1700
    %vm1702 = vcmask 523520
    %s1703 = scalar_lea.vmem %s1, 80
    %1704 = vst.msk [vmem:[%s1703] sm:$0xff] %vm1702, %v1701
    %s1705 = scalar_lea.vmem [#allocation0], 897
    %v1706 = vld [vmem:[%s1705] ss:$8 sm:$0xf]
    %s1707 = scalar_lea.vmem [#allocation0], 897
    %v1708 = vld [vmem:[%s1707] ss:$8 sm:$0xf0]
    %vm1709 = vcmask 1047556
    %v1710 = vsel %vm1709, %v1708, %v1706
    %1711 = vrot.lane.b32.xlu0 %v1710, 32
    %v1712 = vpop.permute.xlu0 %1711
    %vm1713 = vcmask 523520
    %s1714 = scalar_lea.vmem %s1, 112
    %1715 = vst.msk [vmem:[%s1714] sm:$0xff] %vm1713, %v1712
    %s1716 = scalar_lea.vmem [#allocation0], 1153
    %v1717 = vld [vmem:[%s1716] ss:$8 sm:$0xf]
    %s1718 = scalar_lea.vmem [#allocation0], 1153
    %v1719 = vld [vmem:[%s1718] ss:$8 sm:$0xf0]
    %vm1720 = vcmask 1047556
    %v1721 = vsel %vm1720, %v1719, %v1717
    %1722 = vrot.lane.b32.xlu0 %v1721, 32
    %v1723 = vpop.permute.xlu0 %1722
    %vm1724 = vcmask 523520
    %s1725 = scalar_lea.vmem %s1, 144
    %1726 = vst.msk [vmem:[%s1725] sm:$0xff] %vm1724, %v1723
    %s1727 = scalar_lea.vmem [#allocation0], 1409
    %v1728 = vld [vmem:[%s1727] ss:$8 sm:$0xf]
    %s1729 = scalar_lea.vmem [#allocation0], 1409
    %v1730 = vld [vmem:[%s1729] ss:$8 sm:$0xf0]
    %vm1731 = vcmask 1047556
    %v1732 = vsel %vm1731, %v1730, %v1728
    %1733 = vrot.lane.b32.xlu0 %v1732, 32
    %v1734 = vpop.permute.xlu0 %1733
    %vm1735 = vcmask 523520
    %s1736 = scalar_lea.vmem %s1, 176
    %1737 = vst.msk [vmem:[%s1736] sm:$0xff] %vm1735, %v1734
    %s1738 = scalar_lea.vmem [#allocation0], 1665
    %v1739 = vld [vmem:[%s1738] ss:$8 sm:$0xf]
    %s1740 = scalar_lea.vmem [#allocation0], 1665
    %v1741 = vld [vmem:[%s1740] ss:$8 sm:$0xf0]
    %vm1742 = vcmask 1047556
    %v1743 = vsel %vm1742, %v1741, %v1739
    %1744 = vrot.lane.b32.xlu0 %v1743, 32
    %v1745 = vpop.permute.xlu0 %1744
    %vm1746 = vcmask 523520
    %s1747 = scalar_lea.vmem %s1, 208
    %1748 = vst.msk [vmem:[%s1747] sm:$0xff] %vm1746, %v1745
    %s1749 = scalar_lea.vmem [#allocation0], 1921
    %v1750 = vld [vmem:[%s1749] ss:$8 sm:$0xf]
    %s1751 = scalar_lea.vmem [#allocation0], 1921
    %v1752 = vld [vmem:[%s1751] ss:$8 sm:$0xf0]
    %vm1753 = vcmask 1047556
    %v1754 = vsel %vm1753, %v1752, %v1750
    %1755 = vrot.lane.b32.xlu0 %v1754, 32
    %v1756 = vpop.permute.xlu0 %1755
    %vm1757 = vcmask 523520
    %s1758 = scalar_lea.vmem %s1, 240
    %1759 = vst.msk [vmem:[%s1758] sm:$0xff] %vm1757, %v1756
    %s1760 = scalar_lea.vmem [#allocation0], 2177
    %v1761 = vld [vmem:[%s1760] ss:$8 sm:$0xf]
    %s1762 = scalar_lea.vmem [#allocation0], 2177
    %v1763 = vld [vmem:[%s1762] ss:$8 sm:$0xf0]
    %vm1764 = vcmask 1047556
    %v1765 = vsel %vm1764, %v1763, %v1761
    %1766 = vrot.lane.b32.xlu0 %v1765, 32
    %v1767 = vpop.permute.xlu0 %1766
    %vm1768 = vcmask 523520
    %s1769 = scalar_lea.vmem %s1, 272
    %1770 = vst.msk [vmem:[%s1769] sm:$0xff] %vm1768, %v1767
    %s1771 = scalar_lea.vmem [#allocation0], 193
    %v1772 = vld [vmem:[%s1771] ss:$8 sm:$0xf]
    %s1773 = scalar_lea.vmem [#allocation0], 193
    %v1774 = vld [vmem:[%s1773] ss:$8 sm:$0xf0]
    %vm1775 = vcmask 1047556
    %v1776 = vsel %vm1775, %v1774, %v1772
    %1777 = vrot.lane.b32.xlu0 %v1776, 32
    %v1778 = vpop.permute.xlu0 %1777
    %vm1779 = vcmask 523520
    %s1780 = scalar_lea.vmem %s1, 24
    %1781 = vst.msk [vmem:[%s1780] sm:$0xff] %vm1779, %v1778
    %s1782 = scalar_lea.vmem [#allocation0], 449
    %v1783 = vld [vmem:[%s1782] ss:$8 sm:$0xf]
    %s1784 = scalar_lea.vmem [#allocation0], 449
    %v1785 = vld [vmem:[%s1784] ss:$8 sm:$0xf0]
    %vm1786 = vcmask 1047556
    %v1787 = vsel %vm1786, %v1785, %v1783
    %1788 = vrot.lane.b32.xlu0 %v1787, 32
    %v1789 = vpop.permute.xlu0 %1788
    %vm1790 = vcmask 523520
    %s1791 = scalar_lea.vmem %s1, 56
    %1792 = vst.msk [vmem:[%s1791] sm:$0xff] %vm1790, %v1789
    %s1793 = scalar_lea.vmem [#allocation0], 705
    %v1794 = vld [vmem:[%s1793] ss:$8 sm:$0xf]
    %s1795 = scalar_lea.vmem [#allocation0], 705
    %v1796 = vld [vmem:[%s1795] ss:$8 sm:$0xf0]
    %vm1797 = vcmask 1047556
    %v1798 = vsel %vm1797, %v1796, %v1794
    %1799 = vrot.lane.b32.xlu0 %v1798, 32
    %v1800 = vpop.permute.xlu0 %1799
    %vm1801 = vcmask 523520
    %s1802 = scalar_lea.vmem %s1, 88
    %1803 = vst.msk [vmem:[%s1802] sm:$0xff] %vm1801, %v1800
    %s1804 = scalar_lea.vmem [#allocation0], 961
    %v1805 = vld [vmem:[%s1804] ss:$8 sm:$0xf]
    %s1806 = scalar_lea.vmem [#allocation0], 961
    %v1807 = vld [vmem:[%s1806] ss:$8 sm:$0xf0]
    %vm1808 = vcmask 1047556
    %v1809 = vsel %vm1808, %v1807, %v1805
    %1810 = vrot.lane.b32.xlu0 %v1809, 32
    %v1811 = vpop.permute.xlu0 %1810
    %vm1812 = vcmask 523520
    %s1813 = scalar_lea.vmem %s1, 120
    %1814 = vst.msk [vmem:[%s1813] sm:$0xff] %vm1812, %v1811
    %s1815 = scalar_lea.vmem [#allocation0], 1217
    %v1816 = vld [vmem:[%s1815] ss:$8 sm:$0xf]
    %s1817 = scalar_lea.vmem [#allocation0], 1217
    %v1818 = vld [vmem:[%s1817] ss:$8 sm:$0xf0]
    %vm1819 = vcmask 1047556
    %v1820 = vsel %vm1819, %v1818, %v1816
    %1821 = vrot.lane.b32.xlu0 %v1820, 32
    %v1822 = vpop.permute.xlu0 %1821
    %vm1823 = vcmask 523520
    %s1824 = scalar_lea.vmem %s1, 152
    %1825 = vst.msk [vmem:[%s1824] sm:$0xff] %vm1823, %v1822
    %s1826 = scalar_lea.vmem [#allocation0], 1473
    %v1827 = vld [vmem:[%s1826] ss:$8 sm:$0xf]
    %s1828 = scalar_lea.vmem [#allocation0], 1473
    %v1829 = vld [vmem:[%s1828] ss:$8 sm:$0xf0]
    %vm1830 = vcmask 1047556
    %v1831 = vsel %vm1830, %v1829, %v1827
    %1832 = vrot.lane.b32.xlu0 %v1831, 32
    %v1833 = vpop.permute.xlu0 %1832
    %vm1834 = vcmask 523520
    %s1835 = scalar_lea.vmem %s1, 184
    %1836 = vst.msk [vmem:[%s1835] sm:$0xff] %vm1834, %v1833
    %s1837 = scalar_lea.vmem [#allocation0], 1729
    %v1838 = vld [vmem:[%s1837] ss:$8 sm:$0xf]
    %s1839 = scalar_lea.vmem [#allocation0], 1729
    %v1840 = vld [vmem:[%s1839] ss:$8 sm:$0xf0]
    %vm1841 = vcmask 1047556
    %v1842 = vsel %vm1841, %v1840, %v1838
    %1843 = vrot.lane.b32.xlu0 %v1842, 32
    %v1844 = vpop.permute.xlu0 %1843
    %vm1845 = vcmask 523520
    %s1846 = scalar_lea.vmem %s1, 216
    %1847 = vst.msk [vmem:[%s1846] sm:$0xff] %vm1845, %v1844
    %s1848 = scalar_lea.vmem [#allocation0], 1985
    %v1849 = vld [vmem:[%s1848] ss:$8 sm:$0xf]
    %s1850 = scalar_lea.vmem [#allocation0], 1985
    %v1851 = vld [vmem:[%s1850] ss:$8 sm:$0xf0]
    %vm1852 = vcmask 1047556
    %v1853 = vsel %vm1852, %v1851, %v1849
    %1854 = vrot.lane.b32.xlu0 %v1853, 32
    %v1855 = vpop.permute.xlu0 %1854
    %vm1856 = vcmask 523520
    %s1857 = scalar_lea.vmem %s1, 248
    %1858 = vst.msk [vmem:[%s1857] sm:$0xff] %vm1856, %v1855
    %s1859 = scalar_lea.vmem [#allocation0], 2241
    %v1860 = vld [vmem:[%s1859] ss:$8 sm:$0xf]
    %s1861 = scalar_lea.vmem [#allocation0], 2241
    %v1862 = vld [vmem:[%s1861] ss:$8 sm:$0xf0]
    %vm1863 = vcmask 1047556
    %v1864 = vsel %vm1863, %v1862, %v1860
    %1865 = vrot.lane.b32.xlu0 %v1864, 32
    %v1866 = vpop.permute.xlu0 %1865
    %vm1867 = vcmask 523520
    %s1868 = scalar_lea.vmem %s1, 280
    %1869 = vst.msk [vmem:[%s1868] sm:$0xff] %vm1867, %v1866

// kernel: squeeze.1
$region0: #{squeeze.1}
  %s0 = inlined_call_operand.vmem [shape: f32[32], index: 0, kind: input, shape index: {}]
  %s1 = inlined_call_operand.hbm [shape: f32[2,1,16], index: 1, kind: output, shape index: {}]
  $region1: #{squeeze.1} parent=0
    #allocation0 [shape = 'u8[1024]{0}', space=vmem, size = 0x400, scoped, tag = 'operand span for operand 1']
    #allocation1 [shape = 's32[1]{0}', space=sflag, size = 0x4, scoped, tag = 'scoped memory for squeeze.1']
    #allocation2 [shape = 'u8[4096]{0}', space=vmem, size = 0x1000, scoped, tag = 'scoped mem for output reshape']
    #allocation3 [shape = 'u8[4096]{0}', space=vmem, size = 0x1000, scoped, tag = 'scoped mem for input reshape']
    %2 = vsyncpa [#allocation1], 0
    %s4 = ssub.s32 2, 1
    %v5 = vld [vmem:[%s0] sm:%s4]
    %6 = vst [vmem:[#allocation3] sm:%s4] %v5
    %v7 = vld [vmem:[#allocation3] sm:$0x1]
    %vm8 = vcmask 130048
    %9 = vst.msk [vmem:[#allocation2] sm:$0x1] %vm8, %v7
    %v10 = vld [vmem:[#allocation3] sm:$0x1]
    %11 = vrot.lane.b32.xlu0 %v10, 112
    %v12 = vpop.permute.xlu0 %11
    %vm13 = vcmask 130048
    %s14 = scalar_lea.vmem [#allocation2], 1
    %15 = vst.msk [vmem:[%s14] sm:$0x1] %vm13, %v12
    %s17 = ssub.s32 4, 1
    %v18 = vld [vmem:[#allocation2] sm:%s17]
    %s20 = ssub.s32 4, 1
    %21 = vst [vmem:[#allocation0] sm:%s20] %v18
    %23 = vsyncadd [#allocation1], 0
    %s25 = sshll.u32 [#allocation0], 4
    %s26 = int_to_ptr.vmem [resolvable:$true] %s25
    %s27 = sshll.u32 %s1, 4
    %s28 = int_to_ptr.hbm [resolvable:$true] %s27
    %30 = dma.vmem_to_hbm [thread:$0]  %s26, 32, %s28, [#allocation1]
    %32 = dma.done [#allocation1], 32
    %33 = vsyncpa [#allocation1], 1

// kernel: rel_pos_pitch_energy_encoder.1
$region0: #{rel_pos_pitch_energy_encoder.1}
  #allocation0 [shape = 'u32[]', space=smem, size = 0x4, offset = 0x4, fixed_abs, tag = 'smem constant byte address 0x4 - core index']
  #allocation1 [shape = 'u32[72,128]{1,0:T(1,128)}', space=vmem, size = 0x9000, scoped, tag = 'internal scratch']
  %s0 = inlined_call_operand.vmem [shape: f32[32,32], index: 0, kind: input, shape index: {}]
  %s1 = inlined_call_operand.vmem [shape: f32[32,3], index: 1, kind: input, shape index: {}]
  %s2 = inlined_call_operand.vmem [shape: f32[32,32], index: 2, kind: input, shape index: {}]
  %s3 = inlined_call_operand.vmem [shape: f32[9,32,64], index: 3, kind: input, shape index: {}]
  %s4 = inlined_call_operand.vmem [shape: f32[2,32,147], index: 4, kind: input, shape index: {}]
  %s5 = inlined_call_operand.vmem [shape: f32[2,9,64,32], index: 5, kind: input, shape index: {}]
  %s6 = inlined_call_operand.vmem [shape: f32[2,96,64], index: 6, kind: input, shape index: {}]
  %s7 = inlined_call_operand.vmem [shape: f32[2,192,32], index: 7, kind: input, shape index: {}]
  %s8 = inlined_call_operand.vmem [shape: f32[2,8,128], index: 8, kind: input, shape index: {}]
  %s9 = inlined_call_operand.vmem [shape: f32[32,1], index: 9, kind: output, shape index: {}]
  %s10 = sld [smem:[#allocation0]]
  $region46: #{rel_pos_pitch_energy_encoder.1} parent=0
    _
  %s12 = ssub.s32 1, %s10
  %s13 = scalar_select 0, %s12, %s10
  // Predicated region
  $region2: #{rel_pos_pitch_energy_encoder.1} parent=0 // pred_check
    _
  $region3: #{rel_pos_pitch_energy_encoder.1} parent=0 // pred_check_branch
    %15 = sbr.rel (0) target = $region5
  $region4: #{rel_pos_pitch_energy_encoder.1} parent=0 // pred_region
    _
  $region5: #{rel_pos_pitch_energy_encoder.1} parent=0 // pred_fallthru
    _
  // Predicated region
  $region6: #{rel_pos_pitch_energy_encoder.1} parent=0 // pred_check
    _
  $region7: #{rel_pos_pitch_energy_encoder.1} parent=0 // pred_check_branch
    %17 = sbr.rel (0) target = $region9
  $region8: #{rel_pos_pitch_energy_encoder.1} parent=0 // pred_region
    _
  $region9: #{rel_pos_pitch_energy_encoder.1} parent=0 // pred_fallthru
    _
  // Predicated region
  $region10: #{rel_pos_pitch_energy_encoder.1} parent=0 // pred_check
    _
  $region11: #{rel_pos_pitch_energy_encoder.1} parent=0 // pred_check_branch
    %19 = sbr.rel (0) target = $region13
  $region12: #{rel_pos_pitch_energy_encoder.1} parent=0 // pred_region
    _
  $region13: #{rel_pos_pitch_energy_encoder.1} parent=0 // pred_fallthru
    _
  // Predicated region
  $region14: #{rel_pos_pitch_energy_encoder.1} parent=0 // pred_check
    _
  $region15: #{rel_pos_pitch_energy_encoder.1} parent=0 // pred_check_branch
    %21 = sbr.rel (0) target = $region17
  $region16: #{rel_pos_pitch_energy_encoder.1} parent=0 // pred_region
    _
  $region17: #{rel_pos_pitch_energy_encoder.1} parent=0 // pred_fallthru
    _
  // Predicated region
  $region18: #{rel_pos_pitch_energy_encoder.1} parent=0 // pred_check
    _
  $region19: #{rel_pos_pitch_energy_encoder.1} parent=0 // pred_check_branch
    %23 = sbr.rel (0) target = $region21
  $region20: #{rel_pos_pitch_energy_encoder.1} parent=0 // pred_region
    _
  $region21: #{rel_pos_pitch_energy_encoder.1} parent=0 // pred_fallthru
    _
  // Predicated region
  $region22: #{rel_pos_pitch_energy_encoder.1} parent=0 // pred_check
    _
  $region23: #{rel_pos_pitch_energy_encoder.1} parent=0 // pred_check_branch
    %25 = sbr.rel (0) target = $region25
  $region24: #{rel_pos_pitch_energy_encoder.1} parent=0 // pred_region
    _
  $region25: #{rel_pos_pitch_energy_encoder.1} parent=0 // pred_fallthru
    _
  // Predicated region
  $region26: #{rel_pos_pitch_energy_encoder.1} parent=0 // pred_check
    _
  $region27: #{rel_pos_pitch_energy_encoder.1} parent=0 // pred_check_branch
    %27 = sbr.rel (0) target = $region29
  $region28: #{rel_pos_pitch_energy_encoder.1} parent=0 // pred_region
    _
  $region29: #{rel_pos_pitch_energy_encoder.1} parent=0 // pred_fallthru
    _
  // Predicated region
  $region30: #{rel_pos_pitch_energy_encoder.1} parent=0 // pred_check
    _
  $region31: #{rel_pos_pitch_energy_encoder.1} parent=0 // pred_check_branch
    %29 = sbr.rel (0) target = $region33
  $region32: #{rel_pos_pitch_energy_encoder.1} parent=0 // pred_region
    _
  $region33: #{rel_pos_pitch_energy_encoder.1} parent=0 // pred_fallthru
    _
  // Predicated region
  $region34: #{rel_pos_pitch_energy_encoder.1} parent=0 // pred_check
    _
  $region35: #{rel_pos_pitch_energy_encoder.1} parent=0 // pred_check_branch
    %31 = sbr.rel (0) target = $region37
  $region36: #{rel_pos_pitch_energy_encoder.1} parent=0 // pred_region
    _
  $region37: #{rel_pos_pitch_energy_encoder.1} parent=0 // pred_fallthru
    _
  %v32 = vld [vmem:[%s0] sm:$0xff]
  %v33 = vld [vmem:[%s0 + $0x8] sm:$0xff]
  %v34 = vld [vmem:[%s0 + $0x10] sm:$0xff]
  %v35 = vld [vmem:[%s0 + $0x18] sm:$0xff]
  %v36 = vld [vmem:[%s1] sm:$0xff]
  %v37 = vld [vmem:[%s1 + $0x8] sm:$0xff]
  %v38 = vld [vmem:[%s1 + $0x10] sm:$0xff]
  %v39 = vld [vmem:[%s1 + $0x18] sm:$0xff]
  %v40 = vld [vmem:[%s2] sm:$0xff]
  %v41 = vld [vmem:[%s2 + $0x8] sm:$0xff]
  %v42 = vld [vmem:[%s2 + $0x10] sm:$0xff]
  %v43 = vld [vmem:[%s2 + $0x18] sm:$0xff]
  %45 = vset.pattern.permute.xlu0 0
  %46 = vperm.xlu0 %45, %v36
  %v47 = vpop.permute.xlu0 %46
  %50 = vset.pattern.permute.xlu0 0
  %51 = vperm.xlu0 %50, %v37
  %v52 = vpop.permute.xlu0 %51
  %55 = vset.pattern.permute.xlu0 0
  %56 = vperm.xlu0 %55, %v38
  %v57 = vpop.permute.xlu0 %56
  %60 = vset.pattern.permute.xlu0 0
  %61 = vperm.xlu0 %60, %v39
  %v62 = vpop.permute.xlu0 %61
  %v64 = vmul.f32 %v32, %v47
  %v65 = vmul.f32 %v33, %v52
  %v66 = vmul.f32 %v34, %v57
  %v67 = vmul.f32 %v35, %v62
  %v68 = vld [vmem:[%s4] sm:$0xff]
  %v69 = vld [vmem:[%s4 + $0x10] sm:$0xff]
  %v70 = vld [vmem:[%s4 + $0x20] sm:$0xff]
  %v71 = vld [vmem:[%s4 + $0x30] sm:$0xff]
  %v72 = vld [vmem:[%s8] sm:$0x1]
  %v73 = vperm.slane %v72, 0
  %vm74 = vcmask 261120
  %v76 = vsel %vm74, %v64, 0
  %v79 = vsel %vm74, %v65, 0
  %v82 = vsel %vm74, %v66, 0
  %v85 = vsel %vm74, %v67, 0
  %87 = vmatpush.msra.mxu0 0.0
  %88 = vmatpush.msra.mxu0 0.0
  %89 = vmatpush.msra.mxu0 0.0
  %90 = vmatpush.msra.mxu0 0.0
  %91 = vmatpush.msra.mxu0 0.0
  %92 = vmatpush.msra.mxu0 0.0
  %93 = vmatpush.msra.mxu0 0.0
  %94 = vmatpush.msra.mxu0 0.0
  %95 = vmatpush.msra.mxu0 0.0
  %96 = vmatpush.msra.mxu0 0.0
  %97 = vmatpush.msra.mxu0 0.0
  %98 = vmatpush.msra.mxu0 0.0
  %99 = vmatpush.msra.mxu0 %v71
  %100 = vmatpush.msra.mxu0 %v70
  %101 = vmatpush.msra.mxu0 %v69
  %102 = vmatpush.msra.mxu0 %v68
  %103 = vmatmul.f32.gmra.mxu0 %v76
  %v104 = vpop.f32.mrf.mxu0
  %v105 = vadd.f32 %v73, %v104
  %106 = vmatmul.f32.gmra.mxu0 %v79
  %v107 = vpop.f32.mrf.mxu0
  %v108 = vadd.f32 %v73, %v107
  %109 = vmatmul.f32.gmra.mxu0 %v82
  %v110 = vpop.f32.mrf.mxu0
  %v111 = vadd.f32 %v73, %v110
  %112 = vmatmul.f32.gmra.mxu0 %v85
  %v113 = vpop.f32.mrf.mxu0
  %v114 = vadd.f32 %v73, %v113
  %115 = vdwg.mxu0
  %v116 = vmul.f32 %v105, 0.25
  %v117 = vmul.f32 %v108, 0.25
  %v118 = vmul.f32 %v111, 0.25
  %v119 = vmul.f32 %v114, 0.25
  %124 = vrot.lane.b32.xlu0 %v68, 32
  %v125 = vpop.permute.xlu0 %124
  %126 = vrot.lane.b32.xlu0 %v69, 32
  %v127 = vpop.permute.xlu0 %126
  %128 = vrot.lane.b32.xlu0 %v70, 32
  %v129 = vpop.permute.xlu0 %128
  %130 = vrot.lane.b32.xlu0 %v71, 32
  %v131 = vpop.permute.xlu0 %130
  %v137 = vsel %vm74, %v116, 0
  %v140 = vsel %vm74, %v117, 0
  %v143 = vsel %vm74, %v118, 0
  %v146 = vsel %vm74, %v119, 0
  %148 = vmatpush.msra.mxu0 0.0
  %149 = vmatpush.msra.mxu0 0.0
  %150 = vmatpush.msra.mxu0 0.0
  %151 = vmatpush.msra.mxu0 0.0
  %152 = vmatpush.msra.mxu0 0.0
  %153 = vmatpush.msra.mxu0 0.0
  %154 = vmatpush.msra.mxu0 0.0
  %155 = vmatpush.msra.mxu0 0.0
  %156 = vmatpush.msra.mxu0 0.0
  %157 = vmatpush.msra.mxu0 0.0
  %158 = vmatpush.msra.mxu0 0.0
  %159 = vmatpush.msra.mxu0 0.0
  %160 = vmatpush.msra.mxu0 %v131
  %161 = vmatpush.msra.mxu0 %v129
  %162 = vmatpush.msra.mxu0 %v127
  %163 = vmatpush.msra.mxu0 %v125
  %164 = vmatmul.f32.gmra.mxu0 %v137
  %v165 = vpop.f32.mrf.mxu0
  %v166 = vadd.f32 0.0, %v165
  %167 = vmatmul.f32.gmra.mxu0 %v140
  %v168 = vpop.f32.mrf.mxu0
  %v169 = vadd.f32 0.0, %v168
  %170 = vmatmul.f32.gmra.mxu0 %v143
  %v171 = vpop.f32.mrf.mxu0
  %v172 = vadd.f32 0.0, %v171
  %173 = vmatmul.f32.gmra.mxu0 %v146
  %v174 = vpop.f32.mrf.mxu0
  %v175 = vadd.f32 0.0, %v174
  %176 = vdwg.mxu0
  %181 = vrot.lane.b32.xlu0 %v105, 96
  %v182 = vpop.permute.xlu0 %181
  %183 = vrot.lane.b32.xlu0 %v108, 96
  %v184 = vpop.permute.xlu0 %183
  %185 = vrot.lane.b32.xlu0 %v111, 96
  %v186 = vpop.permute.xlu0 %185
  %187 = vrot.lane.b32.xlu0 %v114, 96
  %v188 = vpop.permute.xlu0 %187
  %vm189 = vcmask 130048
  %v190 = vsel %vm189, %v116, 0
  %v192 = vsel %vm189, %v117, 0
  %v194 = vsel %vm189, %v118, 0
  %v196 = vsel %vm189, %v119, 0
  %v198 = vsel %vm189, %v182, 0
  %v200 = vsel %vm189, %v184, 0
  %v202 = vsel %vm189, %v186, 0
  %v204 = vsel %vm189, %v188, 0
  %206 = vmatpush.xpose.msra.mxu0 0.0
  %207 = vmatpush.xpose.msra.mxu0 0.0
  %208 = vmatpush.xpose.msra.mxu0 0.0
  %209 = vmatpush.xpose.msra.mxu0 0.0
  %210 = vmatpush.xpose.msra.mxu0 0.0
  %211 = vmatpush.xpose.msra.mxu0 0.0
  %212 = vmatpush.xpose.msra.mxu0 0.0
  %213 = vmatpush.xpose.msra.mxu0 0.0
  %214 = vmatpush.xpose.msra.mxu0 0.0
  %215 = vmatpush.xpose.msra.mxu0 0.0
  %216 = vmatpush.xpose.msra.mxu0 0.0
  %217 = vmatpush.xpose.msra.mxu0 0.0
  %218 = vmatpush.xpose.msra.mxu0 %v204
  %219 = vmatpush.xpose.msra.mxu0 %v202
  %220 = vmatpush.xpose.msra.mxu0 %v200
  %221 = vmatpush.xpose.msra.mxu0 %v198
  %222 = vmatmul.f32.gmra.mxu0 %v190
  %v223 = vpop.f32.mrf.mxu0
  %v224 = vadd.f32 %v40, %v223
  %225 = vmatmul.f32.gmra.mxu0 %v192
  %v226 = vpop.f32.mrf.mxu0
  %v227 = vadd.f32 %v41, %v226
  %228 = vmatmul.f32.gmra.mxu0 %v194
  %v229 = vpop.f32.mrf.mxu0
  %v230 = vadd.f32 %v42, %v229
  %231 = vmatmul.f32.gmra.mxu0 %v196
  %v232 = vpop.f32.mrf.mxu0
  %v233 = vadd.f32 %v43, %v232
  %234 = vdwg.mxu0
  %v235 = vld [vmem:[%s3] sm:$0xff]
  %v236 = vld [vmem:[%s3 + $0x8] sm:$0xff]
  %v237 = vld [vmem:[%s3 + $0x10] sm:$0xff]
  %v238 = vld [vmem:[%s3 + $0x18] sm:$0xff]
  %240 = vset.pattern.permute.xlu0 0
  %241 = vperm.xlu0 %240, %v166
  %v242 = vpop.permute.xlu0 %241
  %245 = vset.pattern.permute.xlu0 0
  %246 = vperm.xlu0 %245, %v169
  %v247 = vpop.permute.xlu0 %246
  %250 = vset.pattern.permute.xlu0 0
  %251 = vperm.xlu0 %250, %v172
  %v252 = vpop.permute.xlu0 %251
  %255 = vset.pattern.permute.xlu0 0
  %256 = vperm.xlu0 %255, %v175
  %v257 = vpop.permute.xlu0 %256
  %v259 = vmul.f32 %v235, %v242
  %v260 = vmul.f32 %v236, %v247
  %v261 = vmul.f32 %v237, %v252
  %v262 = vmul.f32 %v238, %v257
  %v263 = vadd.f32 %v224, %v259
  %v264 = vadd.f32 %v227, %v260
  %v265 = vadd.f32 %v230, %v261
  %v266 = vadd.f32 %v233, %v262
  %s267 = scalar_lea.vmem %s3, 32
  %v268 = vld [vmem:[%s267] sm:$0xff]
  %v269 = vld [vmem:[%s267 + $0x8] sm:$0xff]
  %v270 = vld [vmem:[%s267 + $0x10] sm:$0xff]
  %v271 = vld [vmem:[%s267 + $0x18] sm:$0xff]
  %272 = vset.pattern.permute.xlu0 1
  %273 = vperm.xlu0 %272, %v166
  %v274 = vpop.permute.xlu0 %273
  %276 = vset.pattern.permute.xlu0 1
  %277 = vperm.xlu0 %276, %v169
  %v278 = vpop.permute.xlu0 %277
  %280 = vset.pattern.permute.xlu0 1
  %281 = vperm.xlu0 %280, %v172
  %v282 = vpop.permute.xlu0 %281
  %284 = vset.pattern.permute.xlu0 1
  %285 = vperm.xlu0 %284, %v175
  %v286 = vpop.permute.xlu0 %285
  %v288 = vmul.f32 %v268, %v274
  %v289 = vmul.f32 %v269, %v278
  %v290 = vmul.f32 %v270, %v282
  %v291 = vmul.f32 %v271, %v286
  %v292 = vadd.f32 %v263, %v288
  %v293 = vadd.f32 %v264, %v289
  %v294 = vadd.f32 %v265, %v290
  %v295 = vadd.f32 %v266, %v291
  %s296 = scalar_lea.vmem %s3, 64
  %v297 = vld [vmem:[%s296] sm:$0xff]
  %v298 = vld [vmem:[%s296 + $0x8] sm:$0xff]
  %v299 = vld [vmem:[%s296 + $0x10] sm:$0xff]
  %v300 = vld [vmem:[%s296 + $0x18] sm:$0xff]
  %301 = vset.pattern.permute.xlu0 2
  %302 = vperm.xlu0 %301, %v166
  %v303 = vpop.permute.xlu0 %302
  %305 = vset.pattern.permute.xlu0 2
  %306 = vperm.xlu0 %305, %v169
  %v307 = vpop.permute.xlu0 %306
  %309 = vset.pattern.permute.xlu0 2
  %310 = vperm.xlu0 %309, %v172
  %v311 = vpop.permute.xlu0 %310
  %313 = vset.pattern.permute.xlu0 2
  %314 = vperm.xlu0 %313, %v175
  %v315 = vpop.permute.xlu0 %314
  %v317 = vmul.f32 %v297, %v303
  %v318 = vmul.f32 %v298, %v307
  %v319 = vmul.f32 %v299, %v311
  %v320 = vmul.f32 %v300, %v315
  %v321 = vadd.f32 %v292, %v317
  %v322 = vadd.f32 %v293, %v318
  %v323 = vadd.f32 %v294, %v319
  %v324 = vadd.f32 %v295, %v320
  %s325 = scalar_lea.vmem %s3, 96
  %v326 = vld [vmem:[%s325] sm:$0xff]
  %v327 = vld [vmem:[%s325 + $0x8] sm:$0xff]
  %v328 = vld [vmem:[%s325 + $0x10] sm:$0xff]
  %v329 = vld [vmem:[%s325 + $0x18] sm:$0xff]
  %330 = vset.pattern.permute.xlu0 3
  %331 = vperm.xlu0 %330, %v166
  %v332 = vpop.permute.xlu0 %331
  %334 = vset.pattern.permute.xlu0 3
  %335 = vperm.xlu0 %334, %v169
  %v336 = vpop.permute.xlu0 %335
  %338 = vset.pattern.permute.xlu0 3
  %339 = vperm.xlu0 %338, %v172
  %v340 = vpop.permute.xlu0 %339
  %342 = vset.pattern.permute.xlu0 3
  %343 = vperm.xlu0 %342, %v175
  %v344 = vpop.permute.xlu0 %343
  %v346 = vmul.f32 %v326, %v332
  %v347 = vmul.f32 %v327, %v336
  %v348 = vmul.f32 %v328, %v340
  %v349 = vmul.f32 %v329, %v344
  %v350 = vadd.f32 %v321, %v346
  %v351 = vadd.f32 %v322, %v347
  %v352 = vadd.f32 %v323, %v348
  %v353 = vadd.f32 %v324, %v349
  %s354 = scalar_lea.vmem %s3, 128
  %v355 = vld [vmem:[%s354] sm:$0xff]
  %v356 = vld [vmem:[%s354 + $0x8] sm:$0xff]
  %v357 = vld [vmem:[%s354 + $0x10] sm:$0xff]
  %v358 = vld [vmem:[%s354 + $0x18] sm:$0xff]
  %359 = vset.pattern.permute.xlu0 4
  %360 = vperm.xlu0 %359, %v166
  %v361 = vpop.permute.xlu0 %360
  %363 = vset.pattern.permute.xlu0 4
  %364 = vperm.xlu0 %363, %v169
  %v365 = vpop.permute.xlu0 %364
  %367 = vset.pattern.permute.xlu0 4
  %368 = vperm.xlu0 %367, %v172
  %v369 = vpop.permute.xlu0 %368
  %371 = vset.pattern.permute.xlu0 4
  %372 = vperm.xlu0 %371, %v175
  %v373 = vpop.permute.xlu0 %372
  %v375 = vmul.f32 %v355, %v361
  %v376 = vmul.f32 %v356, %v365
  %v377 = vmul.f32 %v357, %v369
  %v378 = vmul.f32 %v358, %v373
  %v379 = vadd.f32 %v350, %v375
  %v380 = vadd.f32 %v351, %v376
  %v381 = vadd.f32 %v352, %v377
  %v382 = vadd.f32 %v353, %v378
  %s383 = scalar_lea.vmem %s3, 160
  %v384 = vld [vmem:[%s383] sm:$0xff]
  %v385 = vld [vmem:[%s383 + $0x8] sm:$0xff]
  %v386 = vld [vmem:[%s383 + $0x10] sm:$0xff]
  %v387 = vld [vmem:[%s383 + $0x18] sm:$0xff]
  %388 = vset.pattern.permute.xlu0 5
  %389 = vperm.xlu0 %388, %v166
  %v390 = vpop.permute.xlu0 %389
  %392 = vset.pattern.permute.xlu0 5
  %393 = vperm.xlu0 %392, %v169
  %v394 = vpop.permute.xlu0 %393
  %396 = vset.pattern.permute.xlu0 5
  %397 = vperm.xlu0 %396, %v172
  %v398 = vpop.permute.xlu0 %397
  %400 = vset.pattern.permute.xlu0 5
  %401 = vperm.xlu0 %400, %v175
  %v402 = vpop.permute.xlu0 %401
  %v404 = vmul.f32 %v384, %v390
  %v405 = vmul.f32 %v385, %v394
  %v406 = vmul.f32 %v386, %v398
  %v407 = vmul.f32 %v387, %v402
  %v408 = vadd.f32 %v379, %v404
  %v409 = vadd.f32 %v380, %v405
  %v410 = vadd.f32 %v381, %v406
  %v411 = vadd.f32 %v382, %v407
  %s412 = scalar_lea.vmem %s3, 192
  %v413 = vld [vmem:[%s412] sm:$0xff]
  %v414 = vld [vmem:[%s412 + $0x8] sm:$0xff]
  %v415 = vld [vmem:[%s412 + $0x10] sm:$0xff]
  %v416 = vld [vmem:[%s412 + $0x18] sm:$0xff]
  %417 = vset.pattern.permute.xlu0 6
  %418 = vperm.xlu0 %417, %v166
  %v419 = vpop.permute.xlu0 %418
  %421 = vset.pattern.permute.xlu0 6
  %422 = vperm.xlu0 %421, %v169
  %v423 = vpop.permute.xlu0 %422
  %425 = vset.pattern.permute.xlu0 6
  %426 = vperm.xlu0 %425, %v172
  %v427 = vpop.permute.xlu0 %426
  %429 = vset.pattern.permute.xlu0 6
  %430 = vperm.xlu0 %429, %v175
  %v431 = vpop.permute.xlu0 %430
  %v433 = vmul.f32 %v413, %v419
  %v434 = vmul.f32 %v414, %v423
  %v435 = vmul.f32 %v415, %v427
  %v436 = vmul.f32 %v416, %v431
  %v437 = vadd.f32 %v408, %v433
  %v438 = vadd.f32 %v409, %v434
  %v439 = vadd.f32 %v410, %v435
  %v440 = vadd.f32 %v411, %v436
  %s441 = scalar_lea.vmem %s3, 224
  %v442 = vld [vmem:[%s441] sm:$0xff]
  %v443 = vld [vmem:[%s441 + $0x8] sm:$0xff]
  %v444 = vld [vmem:[%s441 + $0x10] sm:$0xff]
  %v445 = vld [vmem:[%s441 + $0x18] sm:$0xff]
  %446 = vset.pattern.permute.xlu0 7
  %447 = vperm.xlu0 %446, %v166
  %v448 = vpop.permute.xlu0 %447
  %450 = vset.pattern.permute.xlu0 7
  %451 = vperm.xlu0 %450, %v169
  %v452 = vpop.permute.xlu0 %451
  %454 = vset.pattern.permute.xlu0 7
  %455 = vperm.xlu0 %454, %v172
  %v456 = vpop.permute.xlu0 %455
  %458 = vset.pattern.permute.xlu0 7
  %459 = vperm.xlu0 %458, %v175
  %v460 = vpop.permute.xlu0 %459
  %v462 = vmul.f32 %v442, %v448
  %v463 = vmul.f32 %v443, %v452
  %v464 = vmul.f32 %v444, %v456
  %v465 = vmul.f32 %v445, %v460
  %v466 = vadd.f32 %v437, %v462
  %v467 = vadd.f32 %v438, %v463
  %v468 = vadd.f32 %v439, %v464
  %v469 = vadd.f32 %v440, %v465
  %s470 = scalar_lea.vmem %s3, 256
  %v471 = vld [vmem:[%s470] sm:$0xff]
  %v472 = vld [vmem:[%s470 + $0x8] sm:$0xff]
  %v473 = vld [vmem:[%s470 + $0x10] sm:$0xff]
  %v474 = vld [vmem:[%s470 + $0x18] sm:$0xff]
  %475 = vset.pattern.permute.xlu0 8
  %476 = vperm.xlu0 %475, %v166
  %v477 = vpop.permute.xlu0 %476
  %479 = vset.pattern.permute.xlu0 8
  %480 = vperm.xlu0 %479, %v169
  %v481 = vpop.permute.xlu0 %480
  %483 = vset.pattern.permute.xlu0 8
  %484 = vperm.xlu0 %483, %v172
  %v485 = vpop.permute.xlu0 %484
  %487 = vset.pattern.permute.xlu0 8
  %488 = vperm.xlu0 %487, %v175
  %v489 = vpop.permute.xlu0 %488
  %v491 = vmul.f32 %v471, %v477
  %v492 = vmul.f32 %v472, %v481
  %v493 = vmul.f32 %v473, %v485
  %v494 = vmul.f32 %v474, %v489
  %v495 = vadd.f32 %v466, %v491
  %v496 = vadd.f32 %v467, %v492
  %v497 = vadd.f32 %v468, %v493
  %v498 = vadd.f32 %v469, %v494
  %v499 = vsel %vm74, %v495, -inf
  %500 = vmax.xlane.f32.xlu0 %v499
  %v501 = vpop.xlane.xlu0 %500
  %v502 = vsel %vm74, %v496, -inf
  %503 = vmax.xlane.f32.xlu0 %v502
  %v504 = vpop.xlane.xlu0 %503
  %v505 = vsel %vm74, %v497, -inf
  %506 = vmax.xlane.f32.xlu0 %v505
  %v507 = vpop.xlane.xlu0 %506
  %v508 = vsel %vm74, %v498, -inf
  %509 = vmax.xlane.f32.xlu0 %v508
  %v510 = vpop.xlane.xlu0 %509
  %v511 = vsub.f32 %v495, %v501
  %v512 = vsub.f32 %v496, %v504
  %v513 = vsub.f32 %v497, %v507
  %v514 = vsub.f32 %v498, %v510
  %v515 = vmul.f32 %v511, 1.442695
  %v516 = vpow.pop %v515
  %v517 = vmul.f32 %v512, 1.442695
  %v518 = vpow.pop %v517
  %v519 = vmul.f32 %v513, 1.442695
  %v520 = vpow.pop %v519
  %v521 = vmul.f32 %v514, 1.442695
  %v522 = vpow.pop %v521
  %v523 = vsel %vm74, %v516, 0.0
  %524 = vadd.xlane.f32.xlu0 %v523
  %v525 = vpop.xlane.xlu0 %524
  %v526 = vsel %vm74, %v518, 0.0
  %527 = vadd.xlane.f32.xlu0 %v526
  %v528 = vpop.xlane.xlu0 %527
  %v529 = vsel %vm74, %v520, 0.0
  %530 = vadd.xlane.f32.xlu0 %v529
  %v531 = vpop.xlane.xlu0 %530
  %v532 = vsel %vm74, %v522, 0.0
  %533 = vadd.xlane.f32.xlu0 %v532
  %v534 = vpop.xlane.xlu0 %533
  %v535 = vrcp.pop %v525
  %v536 = vrcp.pop %v528
  %v537 = vrcp.pop %v531
  %v538 = vrcp.pop %v534
  %v539 = vmul.f32 %v516, %v535
  %v540 = vmul.f32 %v518, %v536
  %v541 = vmul.f32 %v520, %v537
  %v542 = vmul.f32 %v522, %v538
  %543 = vrot.lane.b32.xlu0 %v116, 112
  %v544 = vpop.permute.xlu0 %543
  %545 = vrot.lane.b32.xlu0 %v117, 112
  %v546 = vpop.permute.xlu0 %545
  %547 = vrot.lane.b32.xlu0 %v118, 112
  %v548 = vpop.permute.xlu0 %547
  %549 = vrot.lane.b32.xlu0 %v119, 112
  %v550 = vpop.permute.xlu0 %549
  %551 = vrot.lane.b32.xlu0 %v105, 80
  %v552 = vpop.permute.xlu0 %551
  %553 = vrot.lane.b32.xlu0 %v108, 80
  %v554 = vpop.permute.xlu0 %553
  %555 = vrot.lane.b32.xlu0 %v111, 80
  %v556 = vpop.permute.xlu0 %555
  %557 = vrot.lane.b32.xlu0 %v114, 80
  %v558 = vpop.permute.xlu0 %557
  %v559 = vsel %vm189, %v544, 0
  %v561 = vsel %vm189, %v546, 0
  %v563 = vsel %vm189, %v548, 0
  %v565 = vsel %vm189, %v550, 0
  %v567 = vsel %vm189, %v552, 0
  %v569 = vsel %vm189, %v554, 0
  %v571 = vsel %vm189, %v556, 0
  %v573 = vsel %vm189, %v558, 0
  %575 = vmatpush.xpose.msra.mxu0 0.0
  %576 = vmatpush.xpose.msra.mxu0 0.0
  %577 = vmatpush.xpose.msra.mxu0 0.0
  %578 = vmatpush.xpose.msra.mxu0 0.0
  %579 = vmatpush.xpose.msra.mxu0 0.0
  %580 = vmatpush.xpose.msra.mxu0 0.0
  %581 = vmatpush.xpose.msra.mxu0 0.0
  %582 = vmatpush.xpose.msra.mxu0 0.0
  %583 = vmatpush.xpose.msra.mxu0 0.0
  %584 = vmatpush.xpose.msra.mxu0 0.0
  %585 = vmatpush.xpose.msra.mxu0 0.0
  %586 = vmatpush.xpose.msra.mxu0 0.0
  %587 = vmatpush.xpose.msra.mxu0 %v573
  %588 = vmatpush.xpose.msra.mxu0 %v571
  %589 = vmatpush.xpose.msra.mxu0 %v569
  %590 = vmatpush.xpose.msra.mxu0 %v567
  %591 = vmatmul.f32.gmra.mxu0 %v559
  %v592 = vpop.f32.mrf.mxu0
  %v593 = vadd.f32 %v40, %v592
  %594 = vmatmul.f32.gmra.mxu0 %v561
  %v595 = vpop.f32.mrf.mxu0
  %v596 = vadd.f32 %v41, %v595
  %597 = vmatmul.f32.gmra.mxu0 %v563
  %v598 = vpop.f32.mrf.mxu0
  %v599 = vadd.f32 %v42, %v598
  %600 = vmatmul.f32.gmra.mxu0 %v565
  %v601 = vpop.f32.mrf.mxu0
  %v602 = vadd.f32 %v43, %v601
  %603 = vdwg.mxu0
  %604 = vset.pattern.permute.xlu0 9
  %605 = vperm.xlu0 %604, %v166
  %v606 = vpop.permute.xlu0 %605
  %608 = vset.pattern.permute.xlu0 9
  %609 = vperm.xlu0 %608, %v169
  %v610 = vpop.permute.xlu0 %609
  %612 = vset.pattern.permute.xlu0 9
  %613 = vperm.xlu0 %612, %v172
  %v614 = vpop.permute.xlu0 %613
  %616 = vset.pattern.permute.xlu0 9
  %617 = vperm.xlu0 %616, %v175
  %v618 = vpop.permute.xlu0 %617
  %v620 = vmul.f32 %v235, %v606
  %v621 = vmul.f32 %v236, %v610
  %v622 = vmul.f32 %v237, %v614
  %v623 = vmul.f32 %v238, %v618
  %v624 = vadd.f32 %v593, %v620
  %v625 = vadd.f32 %v596, %v621
  %v626 = vadd.f32 %v599, %v622
  %v627 = vadd.f32 %v602, %v623
  %628 = vset.pattern.permute.xlu0 10
  %629 = vperm.xlu0 %628, %v166
  %v630 = vpop.permute.xlu0 %629
  %632 = vset.pattern.permute.xlu0 10
  %633 = vperm.xlu0 %632, %v169
  %v634 = vpop.permute.xlu0 %633
  %636 = vset.pattern.permute.xlu0 10
  %637 = vperm.xlu0 %636, %v172
  %v638 = vpop.permute.xlu0 %637
  %640 = vset.pattern.permute.xlu0 10
  %641 = vperm.xlu0 %640, %v175
  %v642 = vpop.permute.xlu0 %641
  %v644 = vmul.f32 %v268, %v630
  %v645 = vmul.f32 %v269, %v634
  %v646 = vmul.f32 %v270, %v638
  %v647 = vmul.f32 %v271, %v642
  %v648 = vadd.f32 %v624, %v644
  %v649 = vadd.f32 %v625, %v645
  %v650 = vadd.f32 %v626, %v646
  %v651 = vadd.f32 %v627, %v647
  %652 = vset.pattern.permute.xlu0 11
  %653 = vperm.xlu0 %652, %v166
  %v654 = vpop.permute.xlu0 %653
  %656 = vset.pattern.permute.xlu0 11
  %657 = vperm.xlu0 %656, %v169
  %v658 = vpop.permute.xlu0 %657
  %660 = vset.pattern.permute.xlu0 11
  %661 = vperm.xlu0 %660, %v172
  %v662 = vpop.permute.xlu0 %661
  %664 = vset.pattern.permute.xlu0 11
  %665 = vperm.xlu0 %664, %v175
  %v666 = vpop.permute.xlu0 %665
  %v668 = vmul.f32 %v297, %v654
  %v669 = vmul.f32 %v298, %v658
  %v670 = vmul.f32 %v299, %v662
  %v671 = vmul.f32 %v300, %v666
  %v672 = vadd.f32 %v648, %v668
  %v673 = vadd.f32 %v649, %v669
  %v674 = vadd.f32 %v650, %v670
  %v675 = vadd.f32 %v651, %v671
  %676 = vset.pattern.permute.xlu0 12
  %677 = vperm.xlu0 %676, %v166
  %v678 = vpop.permute.xlu0 %677
  %680 = vset.pattern.permute.xlu0 12
  %681 = vperm.xlu0 %680, %v169
  %v682 = vpop.permute.xlu0 %681
  %684 = vset.pattern.permute.xlu0 12
  %685 = vperm.xlu0 %684, %v172
  %v686 = vpop.permute.xlu0 %685
  %688 = vset.pattern.permute.xlu0 12
  %689 = vperm.xlu0 %688, %v175
  %v690 = vpop.permute.xlu0 %689
  %v692 = vmul.f32 %v326, %v678
  %v693 = vmul.f32 %v327, %v682
  %v694 = vmul.f32 %v328, %v686
  %v695 = vmul.f32 %v329, %v690
  %v696 = vadd.f32 %v672, %v692
  %v697 = vadd.f32 %v673, %v693
  %v698 = vadd.f32 %v674, %v694
  %v699 = vadd.f32 %v675, %v695
  %700 = vset.pattern.permute.xlu0 13
  %701 = vperm.xlu0 %700, %v166
  %v702 = vpop.permute.xlu0 %701
  %704 = vset.pattern.permute.xlu0 13
  %705 = vperm.xlu0 %704, %v169
  %v706 = vpop.permute.xlu0 %705
  %708 = vset.pattern.permute.xlu0 13
  %709 = vperm.xlu0 %708, %v172
  %v710 = vpop.permute.xlu0 %709
  %712 = vset.pattern.permute.xlu0 13
  %713 = vperm.xlu0 %712, %v175
  %v714 = vpop.permute.xlu0 %713
  %v716 = vmul.f32 %v355, %v702
  %v717 = vmul.f32 %v356, %v706
  %v718 = vmul.f32 %v357, %v710
  %v719 = vmul.f32 %v358, %v714
  %v720 = vadd.f32 %v696, %v716
  %v721 = vadd.f32 %v697, %v717
  %v722 = vadd.f32 %v698, %v718
  %v723 = vadd.f32 %v699, %v719
  %724 = vset.pattern.permute.xlu0 14
  %725 = vperm.xlu0 %724, %v166
  %v726 = vpop.permute.xlu0 %725
  %728 = vset.pattern.permute.xlu0 14
  %729 = vperm.xlu0 %728, %v169
  %v730 = vpop.permute.xlu0 %729
  %732 = vset.pattern.permute.xlu0 14
  %733 = vperm.xlu0 %732, %v172
  %v734 = vpop.permute.xlu0 %733
  %736 = vset.pattern.permute.xlu0 14
  %737 = vperm.xlu0 %736, %v175
  %v738 = vpop.permute.xlu0 %737
  %v740 = vmul.f32 %v384, %v726
  %v741 = vmul.f32 %v385, %v730
  %v742 = vmul.f32 %v386, %v734
  %v743 = vmul.f32 %v387, %v738
  %v744 = vadd.f32 %v720, %v740
  %v745 = vadd.f32 %v721, %v741
  %v746 = vadd.f32 %v722, %v742
  %v747 = vadd.f32 %v723, %v743
  %748 = vset.pattern.permute.xlu0 15
  %749 = vperm.xlu0 %748, %v166
  %v750 = vpop.permute.xlu0 %749
  %752 = vset.pattern.permute.xlu0 15
  %753 = vperm.xlu0 %752, %v169
  %v754 = vpop.permute.xlu0 %753
  %756 = vset.pattern.permute.xlu0 15
  %757 = vperm.xlu0 %756, %v172
  %v758 = vpop.permute.xlu0 %757
  %760 = vset.pattern.permute.xlu0 15
  %761 = vperm.xlu0 %760, %v175
  %v762 = vpop.permute.xlu0 %761
  %v764 = vmul.f32 %v413, %v750
  %v765 = vmul.f32 %v414, %v754
  %v766 = vmul.f32 %v415, %v758
  %v767 = vmul.f32 %v416, %v762
  %v768 = vadd.f32 %v744, %v764
  %v769 = vadd.f32 %v745, %v765
  %v770 = vadd.f32 %v746, %v766
  %v771 = vadd.f32 %v747, %v767
  %772 = vset.pattern.permute.xlu0 16
  %773 = vperm.xlu0 %772, %v166
  %v774 = vpop.permute.xlu0 %773
  %776 = vset.pattern.permute.xlu0 16
  %777 = vperm.xlu0 %776, %v169
  %v778 = vpop.permute.xlu0 %777
  %780 = vset.pattern.permute.xlu0 16
  %781 = vperm.xlu0 %780, %v172
  %v782 = vpop.permute.xlu0 %781
  %784 = vset.pattern.permute.xlu0 16
  %785 = vperm.xlu0 %784, %v175
  %v786 = vpop.permute.xlu0 %785
  %v788 = vmul.f32 %v442, %v774
  %v789 = vmul.f32 %v443, %v778
  %v790 = vmul.f32 %v444, %v782
  %v791 = vmul.f32 %v445, %v786
  %v792 = vadd.f32 %v768, %v788
  %v793 = vadd.f32 %v769, %v789
  %v794 = vadd.f32 %v770, %v790
  %v795 = vadd.f32 %v771, %v791
  %796 = vset.pattern.permute.xlu0 17
  %797 = vperm.xlu0 %796, %v166
  %v798 = vpop.permute.xlu0 %797
  %800 = vset.pattern.permute.xlu0 17
  %801 = vperm.xlu0 %800, %v169
  %v802 = vpop.permute.xlu0 %801
  %804 = vset.pattern.permute.xlu0 17
  %805 = vperm.xlu0 %804, %v172
  %v806 = vpop.permute.xlu0 %805
  %808 = vset.pattern.permute.xlu0 17
  %809 = vperm.xlu0 %808, %v175
  %v810 = vpop.permute.xlu0 %809
  %v812 = vmul.f32 %v471, %v798
  %v813 = vmul.f32 %v472, %v802
  %v814 = vmul.f32 %v473, %v806
  %v815 = vmul.f32 %v474, %v810
  %v816 = vadd.f32 %v792, %v812
  %v817 = vadd.f32 %v793, %v813
  %v818 = vadd.f32 %v794, %v814
  %v819 = vadd.f32 %v795, %v815
  %v820 = vsel %vm74, %v816, -inf
  %821 = vmax.xlane.f32.xlu0 %v820
  %v822 = vpop.xlane.xlu0 %821
  %v823 = vsel %vm74, %v817, -inf
  %824 = vmax.xlane.f32.xlu0 %v823
  %v825 = vpop.xlane.xlu0 %824
  %v826 = vsel %vm74, %v818, -inf
  %827 = vmax.xlane.f32.xlu0 %v826
  %v828 = vpop.xlane.xlu0 %827
  %v829 = vsel %vm74, %v819, -inf
  %830 = vmax.xlane.f32.xlu0 %v829
  %v831 = vpop.xlane.xlu0 %830
  %v832 = vsub.f32 %v816, %v822
  %v833 = vsub.f32 %v817, %v825
  %v834 = vsub.f32 %v818, %v828
  %v835 = vsub.f32 %v819, %v831
  %v836 = vmul.f32 %v832, 1.442695
  %v837 = vpow.pop %v836
  %v838 = vmul.f32 %v833, 1.442695
  %v839 = vpow.pop %v838
  %v840 = vmul.f32 %v834, 1.442695
  %v841 = vpow.pop %v840
  %v842 = vmul.f32 %v835, 1.442695
  %v843 = vpow.pop %v842
  %v844 = vsel %vm74, %v837, 0.0
  %845 = vadd.xlane.f32.xlu0 %v844
  %v846 = vpop.xlane.xlu0 %845
  %v847 = vsel %vm74, %v839, 0.0
  %848 = vadd.xlane.f32.xlu0 %v847
  %v849 = vpop.xlane.xlu0 %848
  %v850 = vsel %vm74, %v841, 0.0
  %851 = vadd.xlane.f32.xlu0 %v850
  %v852 = vpop.xlane.xlu0 %851
  %v853 = vsel %vm74, %v843, 0.0
  %854 = vadd.xlane.f32.xlu0 %v853
  %v855 = vpop.xlane.xlu0 %854
  %v856 = vrcp.pop %v846
  %v857 = vrcp.pop %v849
  %v858 = vrcp.pop %v852
  %v859 = vrcp.pop %v855
  %v860 = vmul.f32 %v837, %v856
  %v861 = vmul.f32 %v839, %v857
  %v862 = vmul.f32 %v841, %v858
  %v863 = vmul.f32 %v843, %v859
  %868 = vrot.lane.b32.xlu0 %v860, 32
  %v869 = vpop.permute.xlu0 %868
  %870 = vrot.lane.b32.xlu0 %v861, 32
  %v871 = vpop.permute.xlu0 %870
  %872 = vrot.lane.b32.xlu0 %v862, 32
  %v873 = vpop.permute.xlu0 %872
  %874 = vrot.lane.b32.xlu0 %v863, 32
  %v875 = vpop.permute.xlu0 %874
  %v880 = vsel %vm74, %v539, %v869
  %v881 = vsel %vm74, %v540, %v871
  %v882 = vsel %vm74, %v541, %v873
  %v883 = vsel %vm74, %v542, %v875
  %884 = vrot.lane.b32.xlu0 %v105, 64
  %v885 = vpop.permute.xlu0 %884
  %886 = vrot.lane.b32.xlu0 %v108, 64
  %v887 = vpop.permute.xlu0 %886
  %888 = vrot.lane.b32.xlu0 %v111, 64
  %v889 = vpop.permute.xlu0 %888
  %890 = vrot.lane.b32.xlu0 %v114, 64
  %v891 = vpop.permute.xlu0 %890
  %v896 = vsel %vm189, %v885, 0.0
  %v897 = vsel %vm189, %v887, 0.0
  %v898 = vsel %vm189, %v889, 0.0
  %v899 = vsel %vm189, %v891, 0.0
  %v900 = vsel %vm189, 0.0, %v885
  %v901 = vsel %vm189, 0.0, %v887
  %v902 = vsel %vm189, 0.0, %v889
  %v903 = vsel %vm189, 0.0, %v891
  %v904 = vmul.f32 %v880, %v235
  %v905 = vmul.f32 %v881, %v236
  %v906 = vmul.f32 %v882, %v237
  %v907 = vmul.f32 %v883, %v238
  %v908 = vld [vmem:[%s5] sm:$0xff]
  %v909 = vld [vmem:[%s5 + $0x8] sm:$0xff]
  %v910 = vld [vmem:[%s5 + $0x10] sm:$0xff]
  %v911 = vld [vmem:[%s5 + $0x18] sm:$0xff]
  %v912 = vld [vmem:[%s5 + $0x20] sm:$0xff]
  %v913 = vld [vmem:[%s5 + $0x28] sm:$0xff]
  %v914 = vld [vmem:[%s5 + $0x30] sm:$0xff]
  %v915 = vld [vmem:[%s5 + $0x38] sm:$0xff]
  %vm916 = vcmask 523264
  %v918 = vsel %vm916, %v904, 0
  %v921 = vsel %vm916, %v905, 0
  %v924 = vsel %vm916, %v906, 0
  %v927 = vsel %vm916, %v907, 0
  %929 = vmatpush.msra.mxu0 0.0
  %930 = vmatpush.msra.mxu0 0.0
  %931 = vmatpush.msra.mxu0 0.0
  %932 = vmatpush.msra.mxu0 0.0
  %933 = vmatpush.msra.mxu0 0.0
  %934 = vmatpush.msra.mxu0 0.0
  %935 = vmatpush.msra.mxu0 0.0
  %936 = vmatpush.msra.mxu0 0.0
  %937 = vmatpush.msra.mxu0 %v915
  %938 = vmatpush.msra.mxu0 %v914
  %939 = vmatpush.msra.mxu0 %v913
  %940 = vmatpush.msra.mxu0 %v912
  %941 = vmatpush.msra.mxu0 %v911
  %942 = vmatpush.msra.mxu0 %v910
  %943 = vmatpush.msra.mxu0 %v909
  %944 = vmatpush.msra.mxu0 %v908
  %945 = vmatmul.f32.gmra.mxu0 %v918
  %v946 = vpop.f32.mrf.mxu0
  %v947 = vadd.f32 0.0, %v946
  %948 = vmatmul.f32.gmra.mxu0 %v921
  %v949 = vpop.f32.mrf.mxu0
  %v950 = vadd.f32 0.0, %v949
  %951 = vmatmul.f32.gmra.mxu0 %v924
  %v952 = vpop.f32.mrf.mxu0
  %v953 = vadd.f32 0.0, %v952
  %954 = vmatmul.f32.gmra.mxu0 %v927
  %v955 = vpop.f32.mrf.mxu0
  %v956 = vadd.f32 0.0, %v955
  %957 = vdwg.mxu0
  %v959 = vsel %vm916, %v880, 0
  %v962 = vsel %vm916, %v881, 0
  %v965 = vsel %vm916, %v882, 0
  %v968 = vsel %vm916, %v883, 0
  %970 = vmatpush.msra.mxu0 0.0
  %971 = vmatpush.msra.mxu0 0.0
  %972 = vmatpush.msra.mxu0 0.0
  %973 = vmatpush.msra.mxu0 0.0
  %974 = vmatpush.msra.mxu0 0.0
  %975 = vmatpush.msra.mxu0 0.0
  %976 = vmatpush.msra.mxu0 0.0
  %977 = vmatpush.msra.mxu0 0.0
  %978 = vmatpush.msra.mxu0 %v903
  %979 = vmatpush.msra.mxu0 %v902
  %980 = vmatpush.msra.mxu0 %v901
  %981 = vmatpush.msra.mxu0 %v900
  %982 = vmatpush.msra.mxu0 %v899
  %983 = vmatpush.msra.mxu0 %v898
  %984 = vmatpush.msra.mxu0 %v897
  %985 = vmatpush.msra.mxu0 %v896
  %986 = vmatmul.f32.gmra.mxu0 %v959
  %v987 = vpop.f32.mrf.mxu0
  %v988 = vadd.f32 %v947, %v987
  %989 = vmatmul.f32.gmra.mxu0 %v962
  %v990 = vpop.f32.mrf.mxu0
  %v991 = vadd.f32 %v950, %v990
  %992 = vmatmul.f32.gmra.mxu0 %v965
  %v993 = vpop.f32.mrf.mxu0
  %v994 = vadd.f32 %v953, %v993
  %995 = vmatmul.f32.gmra.mxu0 %v968
  %v996 = vpop.f32.mrf.mxu0
  %v997 = vadd.f32 %v956, %v996
  %998 = vdwg.mxu0
  %v999 = vmul.f32 %v880, %v268
  %v1000 = vmul.f32 %v881, %v269
  %v1001 = vmul.f32 %v882, %v270
  %v1002 = vmul.f32 %v883, %v271
  %s1003 = scalar_lea.vmem %s5, 64
  %v1004 = vld [vmem:[%s1003] sm:$0xff]
  %v1005 = vld [vmem:[%s1003 + $0x8] sm:$0xff]
  %v1006 = vld [vmem:[%s1003 + $0x10] sm:$0xff]
  %v1007 = vld [vmem:[%s1003 + $0x18] sm:$0xff]
  %v1008 = vld [vmem:[%s1003 + $0x20] sm:$0xff]
  %v1009 = vld [vmem:[%s1003 + $0x28] sm:$0xff]
  %v1010 = vld [vmem:[%s1003 + $0x30] sm:$0xff]
  %v1011 = vld [vmem:[%s1003 + $0x38] sm:$0xff]
  %v1013 = vsel %vm916, %v999, 0
  %v1016 = vsel %vm916, %v1000, 0
  %v1019 = vsel %vm916, %v1001, 0
  %v1022 = vsel %vm916, %v1002, 0
  %1024 = vmatpush.msra.mxu0 0.0
  %1025 = vmatpush.msra.mxu0 0.0
  %1026 = vmatpush.msra.mxu0 0.0
  %1027 = vmatpush.msra.mxu0 0.0
  %1028 = vmatpush.msra.mxu0 0.0
  %1029 = vmatpush.msra.mxu0 0.0
  %1030 = vmatpush.msra.mxu0 0.0
  %1031 = vmatpush.msra.mxu0 0.0
  %1032 = vmatpush.msra.mxu0 %v1011
  %1033 = vmatpush.msra.mxu0 %v1010
  %1034 = vmatpush.msra.mxu0 %v1009
  %1035 = vmatpush.msra.mxu0 %v1008
  %1036 = vmatpush.msra.mxu0 %v1007
  %1037 = vmatpush.msra.mxu0 %v1006
  %1038 = vmatpush.msra.mxu0 %v1005
  %1039 = vmatpush.msra.mxu0 %v1004
  %1040 = vmatmul.f32.gmra.mxu0 %v1013
  %v1041 = vpop.f32.mrf.mxu0
  %v1042 = vadd.f32 0.0, %v1041
  %1043 = vmatmul.f32.gmra.mxu0 %v1016
  %v1044 = vpop.f32.mrf.mxu0
  %v1045 = vadd.f32 0.0, %v1044
  %1046 = vmatmul.f32.gmra.mxu0 %v1019
  %v1047 = vpop.f32.mrf.mxu0
  %v1048 = vadd.f32 0.0, %v1047
  %1049 = vmatmul.f32.gmra.mxu0 %v1022
  %v1050 = vpop.f32.mrf.mxu0
  %v1051 = vadd.f32 0.0, %v1050
  %1052 = vdwg.mxu0
  %v1053 = vadd.f32 %v988, %v1042
  %v1054 = vadd.f32 %v991, %v1045
  %v1055 = vadd.f32 %v994, %v1048
  %v1056 = vadd.f32 %v997, %v1051
  %v1057 = vmul.f32 %v880, %v297
  %v1058 = vmul.f32 %v881, %v298
  %v1059 = vmul.f32 %v882, %v299
  %v1060 = vmul.f32 %v883, %v300
  %s1061 = scalar_lea.vmem %s5, 128
  %v1062 = vld [vmem:[%s1061] sm:$0xff]
  %v1063 = vld [vmem:[%s1061 + $0x8] sm:$0xff]
  %v1064 = vld [vmem:[%s1061 + $0x10] sm:$0xff]
  %v1065 = vld [vmem:[%s1061 + $0x18] sm:$0xff]
  %v1066 = vld [vmem:[%s1061 + $0x20] sm:$0xff]
  %v1067 = vld [vmem:[%s1061 + $0x28] sm:$0xff]
  %v1068 = vld [vmem:[%s1061 + $0x30] sm:$0xff]
  %v1069 = vld [vmem:[%s1061 + $0x38] sm:$0xff]
  %v1071 = vsel %vm916, %v1057, 0
  %v1074 = vsel %vm916, %v1058, 0
  %v1077 = vsel %vm916, %v1059, 0
  %v1080 = vsel %vm916, %v1060, 0
  %1082 = vmatpush.msra.mxu0 0.0
  %1083 = vmatpush.msra.mxu0 0.0
  %1084 = vmatpush.msra.mxu0 0.0
  %1085 = vmatpush.msra.mxu0 0.0
  %1086 = vmatpush.msra.mxu0 0.0
  %1087 = vmatpush.msra.mxu0 0.0
  %1088 = vmatpush.msra.mxu0 0.0
  %1089 = vmatpush.msra.mxu0 0.0
  %1090 = vmatpush.msra.mxu0 %v1069
  %1091 = vmatpush.msra.mxu0 %v1068
  %1092 = vmatpush.msra.mxu0 %v1067
  %1093 = vmatpush.msra.mxu0 %v1066
  %1094 = vmatpush.msra.mxu0 %v1065
  %1095 = vmatpush.msra.mxu0 %v1064
  %1096 = vmatpush.msra.mxu0 %v1063
  %1097 = vmatpush.msra.mxu0 %v1062
  %1098 = vmatmul.f32.gmra.mxu0 %v1071
  %v1099 = vpop.f32.mrf.mxu0
  %v1100 = vadd.f32 0.0, %v1099
  %1101 = vmatmul.f32.gmra.mxu0 %v1074
  %v1102 = vpop.f32.mrf.mxu0
  %v1103 = vadd.f32 0.0, %v1102
  %1104 = vmatmul.f32.gmra.mxu0 %v1077
  %v1105 = vpop.f32.mrf.mxu0
  %v1106 = vadd.f32 0.0, %v1105
  %1107 = vmatmul.f32.gmra.mxu0 %v1080
  %v1108 = vpop.f32.mrf.mxu0
  %v1109 = vadd.f32 0.0, %v1108
  %1110 = vdwg.mxu0
  %v1111 = vadd.f32 %v1053, %v1100
  %v1112 = vadd.f32 %v1054, %v1103
  %v1113 = vadd.f32 %v1055, %v1106
  %v1114 = vadd.f32 %v1056, %v1109
  %v1115 = vmul.f32 %v880, %v326
  %v1116 = vmul.f32 %v881, %v327
  %v1117 = vmul.f32 %v882, %v328
  %v1118 = vmul.f32 %v883, %v329
  %s1119 = scalar_lea.vmem %s5, 192
  %v1120 = vld [vmem:[%s1119] sm:$0xff]
  %v1121 = vld [vmem:[%s1119 + $0x8] sm:$0xff]
  %v1122 = vld [vmem:[%s1119 + $0x10] sm:$0xff]
  %v1123 = vld [vmem:[%s1119 + $0x18] sm:$0xff]
  %v1124 = vld [vmem:[%s1119 + $0x20] sm:$0xff]
  %v1125 = vld [vmem:[%s1119 + $0x28] sm:$0xff]
  %v1126 = vld [vmem:[%s1119 + $0x30] sm:$0xff]
  %v1127 = vld [vmem:[%s1119 + $0x38] sm:$0xff]
  %v1129 = vsel %vm916, %v1115, 0
  %v1132 = vsel %vm916, %v1116, 0
  %v1135 = vsel %vm916, %v1117, 0
  %v1138 = vsel %vm916, %v1118, 0
  %1140 = vmatpush.msra.mxu0 0.0
  %1141 = vmatpush.msra.mxu0 0.0
  %1142 = vmatpush.msra.mxu0 0.0
  %1143 = vmatpush.msra.mxu0 0.0
  %1144 = vmatpush.msra.mxu0 0.0
  %1145 = vmatpush.msra.mxu0 0.0
  %1146 = vmatpush.msra.mxu0 0.0
  %1147 = vmatpush.msra.mxu0 0.0
  %1148 = vmatpush.msra.mxu0 %v1127
  %1149 = vmatpush.msra.mxu0 %v1126
  %1150 = vmatpush.msra.mxu0 %v1125
  %1151 = vmatpush.msra.mxu0 %v1124
  %1152 = vmatpush.msra.mxu0 %v1123
  %1153 = vmatpush.msra.mxu0 %v1122
  %1154 = vmatpush.msra.mxu0 %v1121
  %1155 = vmatpush.msra.mxu0 %v1120
  %1156 = vmatmul.f32.gmra.mxu0 %v1129
  %v1157 = vpop.f32.mrf.mxu0
  %v1158 = vadd.f32 0.0, %v1157
  %1159 = vmatmul.f32.gmra.mxu0 %v1132
  %v1160 = vpop.f32.mrf.mxu0
  %v1161 = vadd.f32 0.0, %v1160
  %1162 = vmatmul.f32.gmra.mxu0 %v1135
  %v1163 = vpop.f32.mrf.mxu0
  %v1164 = vadd.f32 0.0, %v1163
  %1165 = vmatmul.f32.gmra.mxu0 %v1138
  %v1166 = vpop.f32.mrf.mxu0
  %v1167 = vadd.f32 0.0, %v1166
  %1168 = vdwg.mxu0
  %v1169 = vadd.f32 %v1111, %v1158
  %v1170 = vadd.f32 %v1112, %v1161
  %v1171 = vadd.f32 %v1113, %v1164
  %v1172 = vadd.f32 %v1114, %v1167
  %v1173 = vmul.f32 %v880, %v355
  %v1174 = vmul.f32 %v881, %v356
  %v1175 = vmul.f32 %v882, %v357
  %v1176 = vmul.f32 %v883, %v358
  %s1177 = scalar_lea.vmem %s5, 256
  %v1178 = vld [vmem:[%s1177] sm:$0xff]
  %v1179 = vld [vmem:[%s1177 + $0x8] sm:$0xff]
  %v1180 = vld [vmem:[%s1177 + $0x10] sm:$0xff]
  %v1181 = vld [vmem:[%s1177 + $0x18] sm:$0xff]
  %v1182 = vld [vmem:[%s1177 + $0x20] sm:$0xff]
  %v1183 = vld [vmem:[%s1177 + $0x28] sm:$0xff]
  %v1184 = vld [vmem:[%s1177 + $0x30] sm:$0xff]
  %v1185 = vld [vmem:[%s1177 + $0x38] sm:$0xff]
  %v1187 = vsel %vm916, %v1173, 0
  %v1190 = vsel %vm916, %v1174, 0
  %v1193 = vsel %vm916, %v1175, 0
  %v1196 = vsel %vm916, %v1176, 0
  %1198 = vmatpush.msra.mxu0 0.0
  %1199 = vmatpush.msra.mxu0 0.0
  %1200 = vmatpush.msra.mxu0 0.0
  %1201 = vmatpush.msra.mxu0 0.0
  %1202 = vmatpush.msra.mxu0 0.0
  %1203 = vmatpush.msra.mxu0 0.0
  %1204 = vmatpush.msra.mxu0 0.0
  %1205 = vmatpush.msra.mxu0 0.0
  %1206 = vmatpush.msra.mxu0 %v1185
  %1207 = vmatpush.msra.mxu0 %v1184
  %1208 = vmatpush.msra.mxu0 %v1183
  %1209 = vmatpush.msra.mxu0 %v1182
  %1210 = vmatpush.msra.mxu0 %v1181
  %1211 = vmatpush.msra.mxu0 %v1180
  %1212 = vmatpush.msra.mxu0 %v1179
  %1213 = vmatpush.msra.mxu0 %v1178
  %1214 = vmatmul.f32.gmra.mxu0 %v1187
  %v1215 = vpop.f32.mrf.mxu0
  %v1216 = vadd.f32 0.0, %v1215
  %1217 = vmatmul.f32.gmra.mxu0 %v1190
  %v1218 = vpop.f32.mrf.mxu0
  %v1219 = vadd.f32 0.0, %v1218
  %1220 = vmatmul.f32.gmra.mxu0 %v1193
  %v1221 = vpop.f32.mrf.mxu0
  %v1222 = vadd.f32 0.0, %v1221
  %1223 = vmatmul.f32.gmra.mxu0 %v1196
  %v1224 = vpop.f32.mrf.mxu0
  %v1225 = vadd.f32 0.0, %v1224
  %1226 = vdwg.mxu0
  %v1227 = vadd.f32 %v1169, %v1216
  %v1228 = vadd.f32 %v1170, %v1219
  %v1229 = vadd.f32 %v1171, %v1222
  %v1230 = vadd.f32 %v1172, %v1225
  %v1231 = vmul.f32 %v880, %v384
  %v1232 = vmul.f32 %v881, %v385
  %v1233 = vmul.f32 %v882, %v386
  %v1234 = vmul.f32 %v883, %v387
  %s1235 = scalar_lea.vmem %s5, 320
  %v1236 = vld [vmem:[%s1235] sm:$0xff]
  %v1237 = vld [vmem:[%s1235 + $0x8] sm:$0xff]
  %v1238 = vld [vmem:[%s1235 + $0x10] sm:$0xff]
  %v1239 = vld [vmem:[%s1235 + $0x18] sm:$0xff]
  %v1240 = vld [vmem:[%s1235 + $0x20] sm:$0xff]
  %v1241 = vld [vmem:[%s1235 + $0x28] sm:$0xff]
  %v1242 = vld [vmem:[%s1235 + $0x30] sm:$0xff]
  %v1243 = vld [vmem:[%s1235 + $0x38] sm:$0xff]
  %v1245 = vsel %vm916, %v1231, 0
  %v1248 = vsel %vm916, %v1232, 0
  %v1251 = vsel %vm916, %v1233, 0
  %v1254 = vsel %vm916, %v1234, 0
  %1256 = vmatpush.msra.mxu0 0.0
  %1257 = vmatpush.msra.mxu0 0.0
  %1258 = vmatpush.msra.mxu0 0.0
  %1259 = vmatpush.msra.mxu0 0.0
  %1260 = vmatpush.msra.mxu0 0.0
  %1261 = vmatpush.msra.mxu0 0.0
  %1262 = vmatpush.msra.mxu0 0.0
  %1263 = vmatpush.msra.mxu0 0.0
  %1264 = vmatpush.msra.mxu0 %v1243
  %1265 = vmatpush.msra.mxu0 %v1242
  %1266 = vmatpush.msra.mxu0 %v1241
  %1267 = vmatpush.msra.mxu0 %v1240
  %1268 = vmatpush.msra.mxu0 %v1239
  %1269 = vmatpush.msra.mxu0 %v1238
  %1270 = vmatpush.msra.mxu0 %v1237
  %1271 = vmatpush.msra.mxu0 %v1236
  %1272 = vmatmul.f32.gmra.mxu0 %v1245
  %v1273 = vpop.f32.mrf.mxu0
  %v1274 = vadd.f32 0.0, %v1273
  %1275 = vmatmul.f32.gmra.mxu0 %v1248
  %v1276 = vpop.f32.mrf.mxu0
  %v1277 = vadd.f32 0.0, %v1276
  %1278 = vmatmul.f32.gmra.mxu0 %v1251
  %v1279 = vpop.f32.mrf.mxu0
  %v1280 = vadd.f32 0.0, %v1279
  %1281 = vmatmul.f32.gmra.mxu0 %v1254
  %v1282 = vpop.f32.mrf.mxu0
  %v1283 = vadd.f32 0.0, %v1282
  %1284 = vdwg.mxu0
  %v1285 = vadd.f32 %v1227, %v1274
  %v1286 = vadd.f32 %v1228, %v1277
  %v1287 = vadd.f32 %v1229, %v1280
  %v1288 = vadd.f32 %v1230, %v1283
  %v1289 = vmul.f32 %v880, %v413
  %v1290 = vmul.f32 %v881, %v414
  %v1291 = vmul.f32 %v882, %v415
  %v1292 = vmul.f32 %v883, %v416
  %s1293 = scalar_lea.vmem %s5, 384
  %v1294 = vld [vmem:[%s1293] sm:$0xff]
  %v1295 = vld [vmem:[%s1293 + $0x8] sm:$0xff]
  %v1296 = vld [vmem:[%s1293 + $0x10] sm:$0xff]
  %v1297 = vld [vmem:[%s1293 + $0x18] sm:$0xff]
  %v1298 = vld [vmem:[%s1293 + $0x20] sm:$0xff]
  %v1299 = vld [vmem:[%s1293 + $0x28] sm:$0xff]
  %v1300 = vld [vmem:[%s1293 + $0x30] sm:$0xff]
  %v1301 = vld [vmem:[%s1293 + $0x38] sm:$0xff]
  %v1303 = vsel %vm916, %v1289, 0
  %v1306 = vsel %vm916, %v1290, 0
  %v1309 = vsel %vm916, %v1291, 0
  %v1312 = vsel %vm916, %v1292, 0
  %1314 = vmatpush.msra.mxu0 0.0
  %1315 = vmatpush.msra.mxu0 0.0
  %1316 = vmatpush.msra.mxu0 0.0
  %1317 = vmatpush.msra.mxu0 0.0
  %1318 = vmatpush.msra.mxu0 0.0
  %1319 = vmatpush.msra.mxu0 0.0
  %1320 = vmatpush.msra.mxu0 0.0
  %1321 = vmatpush.msra.mxu0 0.0
  %1322 = vmatpush.msra.mxu0 %v1301
  %1323 = vmatpush.msra.mxu0 %v1300
  %1324 = vmatpush.msra.mxu0 %v1299
  %1325 = vmatpush.msra.mxu0 %v1298
  %1326 = vmatpush.msra.mxu0 %v1297
  %1327 = vmatpush.msra.mxu0 %v1296
  %1328 = vmatpush.msra.mxu0 %v1295
  %1329 = vmatpush.msra.mxu0 %v1294
  %1330 = vmatmul.f32.gmra.mxu0 %v1303
  %v1331 = vpop.f32.mrf.mxu0
  %v1332 = vadd.f32 0.0, %v1331
  %1333 = vmatmul.f32.gmra.mxu0 %v1306
  %v1334 = vpop.f32.mrf.mxu0
  %v1335 = vadd.f32 0.0, %v1334
  %1336 = vmatmul.f32.gmra.mxu0 %v1309
  %v1337 = vpop.f32.mrf.mxu0
  %v1338 = vadd.f32 0.0, %v1337
  %1339 = vmatmul.f32.gmra.mxu0 %v1312
  %v1340 = vpop.f32.mrf.mxu0
  %v1341 = vadd.f32 0.0, %v1340
  %1342 = vdwg.mxu0
  %v1343 = vadd.f32 %v1285, %v1332
  %v1344 = vadd.f32 %v1286, %v1335
  %v1345 = vadd.f32 %v1287, %v1338
  %v1346 = vadd.f32 %v1288, %v1341
  %v1347 = vmul.f32 %v880, %v442
  %v1348 = vmul.f32 %v881, %v443
  %v1349 = vmul.f32 %v882, %v444
  %v1350 = vmul.f32 %v883, %v445
  %s1351 = scalar_lea.vmem %s5, 448
  %v1352 = vld [vmem:[%s1351] sm:$0xff]
  %v1353 = vld [vmem:[%s1351 + $0x8] sm:$0xff]
  %v1354 = vld [vmem:[%s1351 + $0x10] sm:$0xff]
  %v1355 = vld [vmem:[%s1351 + $0x18] sm:$0xff]
  %v1356 = vld [vmem:[%s1351 + $0x20] sm:$0xff]
  %v1357 = vld [vmem:[%s1351 + $0x28] sm:$0xff]
  %v1358 = vld [vmem:[%s1351 + $0x30] sm:$0xff]
  %v1359 = vld [vmem:[%s1351 + $0x38] sm:$0xff]
  %v1361 = vsel %vm916, %v1347, 0
  %v1364 = vsel %vm916, %v1348, 0
  %v1367 = vsel %vm916, %v1349, 0
  %v1370 = vsel %vm916, %v1350, 0
  %1372 = vmatpush.msra.mxu0 0.0
  %1373 = vmatpush.msra.mxu0 0.0
  %1374 = vmatpush.msra.mxu0 0.0
  %1375 = vmatpush.msra.mxu0 0.0
  %1376 = vmatpush.msra.mxu0 0.0
  %1377 = vmatpush.msra.mxu0 0.0
  %1378 = vmatpush.msra.mxu0 0.0
  %1379 = vmatpush.msra.mxu0 0.0
  %1380 = vmatpush.msra.mxu0 %v1359
  %1381 = vmatpush.msra.mxu0 %v1358
  %1382 = vmatpush.msra.mxu0 %v1357
  %1383 = vmatpush.msra.mxu0 %v1356
  %1384 = vmatpush.msra.mxu0 %v1355
  %1385 = vmatpush.msra.mxu0 %v1354
  %1386 = vmatpush.msra.mxu0 %v1353
  %1387 = vmatpush.msra.mxu0 %v1352
  %1388 = vmatmul.f32.gmra.mxu0 %v1361
  %v1389 = vpop.f32.mrf.mxu0
  %v1390 = vadd.f32 0.0, %v1389
  %1391 = vmatmul.f32.gmra.mxu0 %v1364
  %v1392 = vpop.f32.mrf.mxu0
  %v1393 = vadd.f32 0.0, %v1392
  %1394 = vmatmul.f32.gmra.mxu0 %v1367
  %v1395 = vpop.f32.mrf.mxu0
  %v1396 = vadd.f32 0.0, %v1395
  %1397 = vmatmul.f32.gmra.mxu0 %v1370
  %v1398 = vpop.f32.mrf.mxu0
  %v1399 = vadd.f32 0.0, %v1398
  %1400 = vdwg.mxu0
  %v1401 = vadd.f32 %v1343, %v1390
  %v1402 = vadd.f32 %v1344, %v1393
  %v1403 = vadd.f32 %v1345, %v1396
  %v1404 = vadd.f32 %v1346, %v1399
  %v1405 = vmul.f32 %v880, %v471
  %v1406 = vmul.f32 %v881, %v472
  %v1407 = vmul.f32 %v882, %v473
  %v1408 = vmul.f32 %v883, %v474
  %s1409 = scalar_lea.vmem %s5, 512
  %v1410 = vld [vmem:[%s1409] sm:$0xff]
  %v1411 = vld [vmem:[%s1409 + $0x8] sm:$0xff]
  %v1412 = vld [vmem:[%s1409 + $0x10] sm:$0xff]
  %v1413 = vld [vmem:[%s1409 + $0x18] sm:$0xff]
  %v1414 = vld [vmem:[%s1409 + $0x20] sm:$0xff]
  %v1415 = vld [vmem:[%s1409 + $0x28] sm:$0xff]
  %v1416 = vld [vmem:[%s1409 + $0x30] sm:$0xff]
  %v1417 = vld [vmem:[%s1409 + $0x38] sm:$0xff]
  %v1419 = vsel %vm916, %v1405, 0
  %v1422 = vsel %vm916, %v1406, 0
  %v1425 = vsel %vm916, %v1407, 0
  %v1428 = vsel %vm916, %v1408, 0
  %1430 = vmatpush.msra.mxu0 0.0
  %1431 = vmatpush.msra.mxu0 0.0
  %1432 = vmatpush.msra.mxu0 0.0
  %1433 = vmatpush.msra.mxu0 0.0
  %1434 = vmatpush.msra.mxu0 0.0
  %1435 = vmatpush.msra.mxu0 0.0
  %1436 = vmatpush.msra.mxu0 0.0
  %1437 = vmatpush.msra.mxu0 0.0
  %1438 = vmatpush.msra.mxu0 %v1417
  %1439 = vmatpush.msra.mxu0 %v1416
  %1440 = vmatpush.msra.mxu0 %v1415
  %1441 = vmatpush.msra.mxu0 %v1414
  %1442 = vmatpush.msra.mxu0 %v1413
  %1443 = vmatpush.msra.mxu0 %v1412
  %1444 = vmatpush.msra.mxu0 %v1411
  %1445 = vmatpush.msra.mxu0 %v1410
  %1446 = vmatmul.f32.gmra.mxu0 %v1419
  %v1447 = vpop.f32.mrf.mxu0
  %v1448 = vadd.f32 0.0, %v1447
  %1449 = vmatmul.f32.gmra.mxu0 %v1422
  %v1450 = vpop.f32.mrf.mxu0
  %v1451 = vadd.f32 0.0, %v1450
  %1452 = vmatmul.f32.gmra.mxu0 %v1425
  %v1453 = vpop.f32.mrf.mxu0
  %v1454 = vadd.f32 0.0, %v1453
  %1455 = vmatmul.f32.gmra.mxu0 %v1428
  %v1456 = vpop.f32.mrf.mxu0
  %v1457 = vadd.f32 0.0, %v1456
  %1458 = vdwg.mxu0
  %v1459 = vadd.f32 %v1401, %v1448
  %v1460 = vadd.f32 %v1402, %v1451
  %v1461 = vadd.f32 %v1403, %v1454
  %v1462 = vadd.f32 %v1404, %v1457
  %v1463 = vld [vmem:[%s4] sm:$0xff]
  %v1464 = vld [vmem:[%s4 + $0x8] sm:$0xff]
  %v1465 = vld [vmem:[%s4 + $0x10] sm:$0xff]
  %v1466 = vld [vmem:[%s4 + $0x18] sm:$0xff]
  %v1467 = vld [vmem:[%s4 + $0x20] sm:$0xff]
  %v1468 = vld [vmem:[%s4 + $0x28] sm:$0xff]
  %v1469 = vld [vmem:[%s4 + $0x30] sm:$0xff]
  %v1470 = vld [vmem:[%s4 + $0x38] sm:$0xff]
  %v1471 = vld [vmem:[%s8 + $0x1] sm:$0x1]
  %v1472 = vperm.slane %v1471, 0
  %1481 = vrot.lane.b32.xlu0 %v1463, 14
  %v1482 = vpop.permute.xlu0 %1481
  %1483 = vrot.lane.b32.xlu0 %v1464, 14
  %v1484 = vpop.permute.xlu0 %1483
  %1485 = vrot.lane.b32.xlu0 %v1465, 14
  %v1486 = vpop.permute.xlu0 %1485
  %1487 = vrot.lane.b32.xlu0 %v1466, 14
  %v1488 = vpop.permute.xlu0 %1487
  %1489 = vrot.lane.b32.xlu0 %v1467, 14
  %v1490 = vpop.permute.xlu0 %1489
  %1491 = vrot.lane.b32.xlu0 %v1468, 14
  %v1492 = vpop.permute.xlu0 %1491
  %1493 = vrot.lane.b32.xlu0 %v1469, 14
  %v1494 = vpop.permute.xlu0 %1493
  %1495 = vrot.lane.b32.xlu0 %v1470, 14
  %v1496 = vpop.permute.xlu0 %1495
  %vm1497 = vcmask 113664
  %v1498 = vsel %vm1497, %v1482, %v1484
  %v1499 = vsel %vm1497, %v1486, %v1488
  %v1500 = vsel %vm1497, %v1490, %v1492
  %v1501 = vsel %vm1497, %v1494, %v1496
  %v1507 = vsel %vm74, %v1459, 0
  %v1510 = vsel %vm74, %v1460, 0
  %v1513 = vsel %vm74, %v1461, 0
  %v1516 = vsel %vm74, %v1462, 0
  %1518 = vmatpush.msra.mxu0 0.0
  %1519 = vmatpush.msra.mxu0 0.0
  %1520 = vmatpush.msra.mxu0 0.0
  %1521 = vmatpush.msra.mxu0 0.0
  %1522 = vmatpush.msra.mxu0 0.0
  %1523 = vmatpush.msra.mxu0 0.0
  %1524 = vmatpush.msra.mxu0 0.0
  %1525 = vmatpush.msra.mxu0 0.0
  %1526 = vmatpush.msra.mxu0 0.0
  %1527 = vmatpush.msra.mxu0 0.0
  %1528 = vmatpush.msra.mxu0 0.0
  %1529 = vmatpush.msra.mxu0 0.0
  %1530 = vmatpush.msra.mxu0 %v1501
  %1531 = vmatpush.msra.mxu0 %v1500
  %1532 = vmatpush.msra.mxu0 %v1499
  %1533 = vmatpush.msra.mxu0 %v1498
  %1534 = vmatmul.f32.gmra.mxu0 %v1507
  %v1535 = vpop.f32.mrf.mxu0
  %v1536 = vadd.f32 %v1472, %v1535
  %1537 = vmatmul.f32.gmra.mxu0 %v1510
  %v1538 = vpop.f32.mrf.mxu0
  %v1539 = vadd.f32 %v1472, %v1538
  %1540 = vmatmul.f32.gmra.mxu0 %v1513
  %v1541 = vpop.f32.mrf.mxu0
  %v1542 = vadd.f32 %v1472, %v1541
  %1543 = vmatmul.f32.gmra.mxu0 %v1516
  %v1544 = vpop.f32.mrf.mxu0
  %v1545 = vadd.f32 %v1472, %v1544
  %1546 = vdwg.mxu0
  %v1547 = vadd.f32 %v64, %v1536
  %v1548 = vadd.f32 %v65, %v1539
  %v1549 = vadd.f32 %v66, %v1542
  %v1550 = vadd.f32 %v67, %v1545
  %v1551 = vld [vmem:[%s8 + $0x2] sm:$0x1]
  %v1552 = vld [vmem:[%s8 + $0x3] sm:$0x1]
  %v1553 = vsel %vm74, %v1547, 0.0
  %1554 = vadd.xlane.f32.xlu0 %v1553
  %v1555 = vpop.xlane.xlu0 %1554
  %v1556 = vsel %vm74, %v1548, 0.0
  %1557 = vadd.xlane.f32.xlu0 %v1556
  %v1558 = vpop.xlane.xlu0 %1557
  %v1559 = vsel %vm74, %v1549, 0.0
  %1560 = vadd.xlane.f32.xlu0 %v1559
  %v1561 = vpop.xlane.xlu0 %1560
  %v1562 = vsel %vm74, %v1550, 0.0
  %1563 = vadd.xlane.f32.xlu0 %v1562
  %v1564 = vpop.xlane.xlu0 %1563
  %v1565 = vrcp.pop 32.0
  %v1566 = vmul.f32 32.0, %v1565
  %v1567 = vsub.f32 1.0, %v1566
  %v1568 = vmul.f32 %v1565, %v1567
  %v1569 = vadd.f32 %v1565, %v1568
  %vm1570 = vweird.f32 %v1565
  %v1571 = vsel %vm1570, %v1565, %v1569
  %v1572 = vmul.f32 %v1555, %v1571
  %v1573 = vmul.f32 %v1558, %v1571
  %v1574 = vmul.f32 %v1561, %v1571
  %v1575 = vmul.f32 %v1564, %v1571
  %v1576 = vsub.f32 %v1547, %v1572
  %v1577 = vsub.f32 %v1548, %v1573
  %v1578 = vsub.f32 %v1549, %v1574
  %v1579 = vsub.f32 %v1550, %v1575
  %v1580 = vmul.f32 %v1576, %v1576
  %v1581 = vmul.f32 %v1577, %v1577
  %v1582 = vmul.f32 %v1578, %v1578
  %v1583 = vmul.f32 %v1579, %v1579
  %v1584 = vsel %vm74, %v1580, 0.0
  %1585 = vadd.xlane.f32.xlu0 %v1584
  %v1586 = vpop.xlane.xlu0 %1585
  %v1587 = vsel %vm74, %v1581, 0.0
  %1588 = vadd.xlane.f32.xlu0 %v1587
  %v1589 = vpop.xlane.xlu0 %1588
  %v1590 = vsel %vm74, %v1582, 0.0
  %1591 = vadd.xlane.f32.xlu0 %v1590
  %v1592 = vpop.xlane.xlu0 %1591
  %v1593 = vsel %vm74, %v1583, 0.0
  %1594 = vadd.xlane.f32.xlu0 %v1593
  %v1595 = vpop.xlane.xlu0 %1594
  %v1596 = vmul.f32 %v1586, %v1571
  %v1597 = vmul.f32 %v1589, %v1571
  %v1598 = vmul.f32 %v1592, %v1571
  %v1599 = vmul.f32 %v1595, %v1571
  %v1600 = vadd.f32 %v1596, 1e-05
  %v1601 = vadd.f32 %v1597, 1e-05
  %v1602 = vadd.f32 %v1598, 1e-05
  %v1603 = vadd.f32 %v1599, 1e-05
  %v1604 = vrsqrt.pop %v1600
  %v1605 = vmul.f32 %v1604, %v1600
  %v1606 = vmul.f32 %v1605, %v1604
  %v1607 = vmul.f32 0.5, %v1606
  %v1608 = vsub.f32 1.5, %v1607
  %v1609 = vmul.f32 %v1604, %v1608
  %vm1610 = vweird.f32 %v1600
  %vm1611 = vweird.f32 %v1604
  %vm1612 = vmor %vm1610, %vm1611
  %v1613 = vsel %vm1612, %v1604, %v1609
  %v1614 = vrsqrt.pop %v1601
  %v1615 = vmul.f32 %v1614, %v1601
  %v1616 = vmul.f32 %v1615, %v1614
  %v1617 = vmul.f32 0.5, %v1616
  %v1618 = vsub.f32 1.5, %v1617
  %v1619 = vmul.f32 %v1614, %v1618
  %vm1620 = vweird.f32 %v1601
  %vm1621 = vweird.f32 %v1614
  %vm1622 = vmor %vm1620, %vm1621
  %v1623 = vsel %vm1622, %v1614, %v1619
  %v1624 = vrsqrt.pop %v1602
  %v1625 = vmul.f32 %v1624, %v1602
  %v1626 = vmul.f32 %v1625, %v1624
  %v1627 = vmul.f32 0.5, %v1626
  %v1628 = vsub.f32 1.5, %v1627
  %v1629 = vmul.f32 %v1624, %v1628
  %vm1630 = vweird.f32 %v1602
  %vm1631 = vweird.f32 %v1624
  %vm1632 = vmor %vm1630, %vm1631
  %v1633 = vsel %vm1632, %v1624, %v1629
  %v1634 = vrsqrt.pop %v1603
  %v1635 = vmul.f32 %v1634, %v1603
  %v1636 = vmul.f32 %v1635, %v1634
  %v1637 = vmul.f32 0.5, %v1636
  %v1638 = vsub.f32 1.5, %v1637
  %v1639 = vmul.f32 %v1634, %v1638
  %vm1640 = vweird.f32 %v1603
  %vm1641 = vweird.f32 %v1634
  %vm1642 = vmor %vm1640, %vm1641
  %v1643 = vsel %vm1642, %v1634, %v1639
  %v1644 = vmul.f32 %v1576, %v1613
  %v1645 = vmul.f32 %v1577, %v1623
  %v1646 = vmul.f32 %v1578, %v1633
  %v1647 = vmul.f32 %v1579, %v1643
  %v1648 = vperm.slane %v1551, 0
  %v1649 = vmul.f32 %v1644, %v1648
  %v1650 = vmul.f32 %v1645, %v1648
  %v1651 = vmul.f32 %v1646, %v1648
  %v1652 = vmul.f32 %v1647, %v1648
  %v1653 = vperm.slane %v1552, 0
  %v1654 = vadd.f32 %v1649, %v1653
  %v1655 = vadd.f32 %v1650, %v1653
  %v1656 = vadd.f32 %v1651, %v1653
  %v1657 = vadd.f32 %v1652, %v1653
  %v1658 = vmul.f32 %v1654, %v47
  %v1659 = vmul.f32 %v1655, %v52
  %v1660 = vmul.f32 %v1656, %v57
  %v1661 = vmul.f32 %v1657, %v62
  %v1662 = vrot.slane %v1658, 7
  %v1663 = vrot.slane %v1659, 7
  %v1664 = vrot.slane %v1660, 7
  %v1665 = vrot.slane %v1661, 7
  %v1666 = vlaneseq
  %v1667 = vshrl.u32 %v1666, 7
  %vm1668 = vcmp.lt.s32.totalorder %v1667, 1
  %v1669 = vsel %vm1668, %v1664, %v1665
  %v1670 = vsel %vm1668, %v1663, %v1664
  %v1671 = vsel %vm1668, %v1662, %v1663
  %v1672 = vsel %vm1668, %v1665, %v1662
  %1673 = vset.pattern.permute.xlu0 1
  %1674 = vperm.xlu0 %1673, %v36
  %v1675 = vpop.permute.xlu0 %1674
  %1677 = vset.pattern.permute.xlu0 1
  %1678 = vperm.xlu0 %1677, %v37
  %v1679 = vpop.permute.xlu0 %1678
  %1681 = vset.pattern.permute.xlu0 1
  %1682 = vperm.xlu0 %1681, %v38
  %v1683 = vpop.permute.xlu0 %1682
  %1685 = vset.pattern.permute.xlu0 1
  %1686 = vperm.xlu0 %1685, %v39
  %v1687 = vpop.permute.xlu0 %1686
  %v1689 = vmul.f32 %v1672, %v1675
  %v1690 = vmul.f32 %v1671, %v1679
  %v1691 = vmul.f32 %v1670, %v1683
  %v1692 = vmul.f32 %v1669, %v1687
  %v1693 = vrot.slane %v1658, 1
  %v1694 = vrot.slane %v1659, 1
  %v1695 = vrot.slane %v1660, 1
  %v1696 = vrot.slane %v1661, 1
  %vm1697 = vcmp.lt.s32.totalorder %v1667, 7
  %v1698 = vsel %vm1697, %v1695, %v1696
  %v1699 = vsel %vm1697, %v1694, %v1695
  %v1700 = vsel %vm1697, %v1693, %v1694
  %v1701 = vsel %vm1697, %v1696, %v1693
  %1702 = vset.pattern.permute.xlu0 2
  %1703 = vperm.xlu0 %1702, %v36
  %v1704 = vpop.permute.xlu0 %1703
  %1706 = vset.pattern.permute.xlu0 2
  %1707 = vperm.xlu0 %1706, %v37
  %v1708 = vpop.permute.xlu0 %1707
  %1710 = vset.pattern.permute.xlu0 2
  %1711 = vperm.xlu0 %1710, %v38
  %v1712 = vpop.permute.xlu0 %1711
  %1714 = vset.pattern.permute.xlu0 2
  %1715 = vperm.xlu0 %1714, %v39
  %v1716 = vpop.permute.xlu0 %1715
  %v1718 = vmul.f32 %v1700, %v1704
  %v1719 = vmul.f32 %v1699, %v1708
  %v1720 = vmul.f32 %v1698, %v1712
  %v1721 = vmul.f32 %v1701, %v1716
  %1726 = vrot.lane.b32.xlu0 %v1658, 32
  %v1727 = vpop.permute.xlu0 %1726
  %1728 = vrot.lane.b32.xlu0 %v1659, 32
  %v1729 = vpop.permute.xlu0 %1728
  %1730 = vrot.lane.b32.xlu0 %v1660, 32
  %v1731 = vpop.permute.xlu0 %1730
  %1732 = vrot.lane.b32.xlu0 %v1661, 32
  %v1733 = vpop.permute.xlu0 %1732
  %1742 = vrot.lane.b32.xlu0 %v1718, 64
  %v1743 = vpop.permute.xlu0 %1742
  %1744 = vrot.lane.b32.xlu0 %v1719, 64
  %v1745 = vpop.permute.xlu0 %1744
  %1746 = vrot.lane.b32.xlu0 %v1720, 64
  %v1747 = vpop.permute.xlu0 %1746
  %1748 = vrot.lane.b32.xlu0 %v1721, 64
  %v1749 = vpop.permute.xlu0 %1748
  %v1754 = vsel %vm74, %v1689, %v1727
  %v1755 = vsel %vm74, %v1690, %v1729
  %v1756 = vsel %vm74, %v1691, %v1731
  %v1757 = vsel %vm74, %v1692, %v1733
  %v1758 = vsel %vm916, %v1754, %v1743
  %v1759 = vsel %vm916, %v1755, %v1745
  %v1760 = vsel %vm916, %v1756, %v1747
  %v1761 = vsel %vm916, %v1757, %v1749
  %v1762 = vld [vmem:[%s6] sm:$0xff]
  %v1763 = vld [vmem:[%s6 + $0x8] sm:$0xff]
  %v1764 = vld [vmem:[%s6 + $0x10] sm:$0xff]
  %v1765 = vld [vmem:[%s6 + $0x18] sm:$0xff]
  %v1766 = vld [vmem:[%s6 + $0x20] sm:$0xff]
  %v1767 = vld [vmem:[%s6 + $0x28] sm:$0xff]
  %v1768 = vld [vmem:[%s6 + $0x30] sm:$0xff]
  %v1769 = vld [vmem:[%s6 + $0x38] sm:$0xff]
  %v1770 = vld [vmem:[%s6 + $0x40] sm:$0xff]
  %v1771 = vld [vmem:[%s6 + $0x48] sm:$0xff]
  %v1772 = vld [vmem:[%s6 + $0x50] sm:$0xff]
  %v1773 = vld [vmem:[%s6 + $0x58] sm:$0xff]
  %v1774 = vld [vmem:[%s8 + $0x4] sm:$0x1]
  %v1775 = vperm.slane %v1774, 0
  %vm1776 = vcmask 785408
  %v1778 = vsel %vm1776, %v1758, 0
  %v1781 = vsel %vm1776, %v1759, 0
  %v1784 = vsel %vm1776, %v1760, 0
  %v1787 = vsel %vm1776, %v1761, 0
  %1789 = vmatpush.msra.mxu0 0.0
  %1790 = vmatpush.msra.mxu0 0.0
  %1791 = vmatpush.msra.mxu0 0.0
  %1792 = vmatpush.msra.mxu0 0.0
  %1793 = vmatpush.msra.mxu0 %v1773
  %1794 = vmatpush.msra.mxu0 %v1772
  %1795 = vmatpush.msra.mxu0 %v1771
  %1796 = vmatpush.msra.mxu0 %v1770
  %1797 = vmatpush.msra.mxu0 %v1769
  %1798 = vmatpush.msra.mxu0 %v1768
  %1799 = vmatpush.msra.mxu0 %v1767
  %1800 = vmatpush.msra.mxu0 %v1766
  %1801 = vmatpush.msra.mxu0 %v1765
  %1802 = vmatpush.msra.mxu0 %v1764
  %1803 = vmatpush.msra.mxu0 %v1763
  %1804 = vmatpush.msra.mxu0 %v1762
  %1805 = vmatmul.f32.gmra.mxu0 %v1778
  %v1806 = vpop.f32.mrf.mxu0
  %v1807 = vadd.f32 %v1775, %v1806
  %1808 = vmatmul.f32.gmra.mxu0 %v1781
  %v1809 = vpop.f32.mrf.mxu0
  %v1810 = vadd.f32 %v1775, %v1809
  %1811 = vmatmul.f32.gmra.mxu0 %v1784
  %v1812 = vpop.f32.mrf.mxu0
  %v1813 = vadd.f32 %v1775, %v1812
  %1814 = vmatmul.f32.gmra.mxu0 %v1787
  %v1815 = vpop.f32.mrf.mxu0
  %v1816 = vadd.f32 %v1775, %v1815
  %1817 = vdwg.mxu0
  %v1818 = vmax.f32 %v1807, 0.0
  %v1819 = vmax.f32 %v1810, 0.0
  %v1820 = vmax.f32 %v1813, 0.0
  %v1821 = vmax.f32 %v1816, 0.0
  %v1822 = vmul.f32 %v1818, %v47
  %v1823 = vmul.f32 %v1819, %v52
  %v1824 = vmul.f32 %v1820, %v57
  %v1825 = vmul.f32 %v1821, %v62
  %v1826 = vrot.slane %v1822, 7
  %v1827 = vrot.slane %v1823, 7
  %v1828 = vrot.slane %v1824, 7
  %v1829 = vrot.slane %v1825, 7
  %v1830 = vsel %vm1668, %v1828, %v1829
  %v1831 = vsel %vm1668, %v1827, %v1828
  %v1832 = vsel %vm1668, %v1826, %v1827
  %v1833 = vsel %vm1668, %v1829, %v1826
  %v1834 = vmul.f32 %v1833, %v1675
  %v1835 = vmul.f32 %v1832, %v1679
  %v1836 = vmul.f32 %v1831, %v1683
  %v1837 = vmul.f32 %v1830, %v1687
  %v1838 = vrot.slane %v1822, 1
  %v1839 = vrot.slane %v1823, 1
  %v1840 = vrot.slane %v1824, 1
  %v1841 = vrot.slane %v1825, 1
  %v1842 = vsel %vm1697, %v1840, %v1841
  %v1843 = vsel %vm1697, %v1839, %v1840
  %v1844 = vsel %vm1697, %v1838, %v1839
  %v1845 = vsel %vm1697, %v1841, %v1838
  %v1846 = vmul.f32 %v1844, %v1704
  %v1847 = vmul.f32 %v1843, %v1708
  %v1848 = vmul.f32 %v1842, %v1712
  %v1849 = vmul.f32 %v1845, %v1716
  %1854 = vrot.lane.b32.xlu0 %v1822, 64
  %v1855 = vpop.permute.xlu0 %1854
  %1856 = vrot.lane.b32.xlu0 %v1823, 64
  %v1857 = vpop.permute.xlu0 %1856
  %1858 = vrot.lane.b32.xlu0 %v1824, 64
  %v1859 = vpop.permute.xlu0 %1858
  %1860 = vrot.lane.b32.xlu0 %v1825, 64
  %v1861 = vpop.permute.xlu0 %1860
  %v1866 = vsel %vm916, %v1834, %v1855
  %v1867 = vsel %vm916, %v1835, %v1857
  %v1868 = vsel %vm916, %v1836, %v1859
  %v1869 = vsel %vm916, %v1837, %v1861
  %v1870 = vld [vmem:[%s7] sm:$0xff]
  %v1871 = vld [vmem:[%s7 + $0x8] sm:$0xff]
  %v1872 = vld [vmem:[%s7 + $0x10] sm:$0xff]
  %v1873 = vld [vmem:[%s7 + $0x18] sm:$0xff]
  %v1874 = vld [vmem:[%s7 + $0x20] sm:$0xff]
  %v1875 = vld [vmem:[%s7 + $0x28] sm:$0xff]
  %v1876 = vld [vmem:[%s7 + $0x30] sm:$0xff]
  %v1877 = vld [vmem:[%s7 + $0x38] sm:$0xff]
  %v1878 = vld [vmem:[%s7 + $0x40] sm:$0xff]
  %v1879 = vld [vmem:[%s7 + $0x48] sm:$0xff]
  %v1880 = vld [vmem:[%s7 + $0x50] sm:$0xff]
  %v1881 = vld [vmem:[%s7 + $0x58] sm:$0xff]
  %v1882 = vld [vmem:[%s7 + $0x60] sm:$0xff]
  %v1883 = vld [vmem:[%s7 + $0x68] sm:$0xff]
  %v1884 = vld [vmem:[%s7 + $0x70] sm:$0xff]
  %v1885 = vld [vmem:[%s7 + $0x78] sm:$0xff]
  %v1886 = vld [vmem:[%s7 + $0x80] sm:$0xff]
  %v1887 = vld [vmem:[%s7 + $0x88] sm:$0xff]
  %v1888 = vld [vmem:[%s7 + $0x90] sm:$0xff]
  %v1889 = vld [vmem:[%s7 + $0x98] sm:$0xff]
  %v1890 = vld [vmem:[%s7 + $0xa0] sm:$0xff]
  %v1891 = vld [vmem:[%s7 + $0xa8] sm:$0xff]
  %v1892 = vld [vmem:[%s7 + $0xb0] sm:$0xff]
  %v1893 = vld [vmem:[%s7 + $0xb8] sm:$0xff]
  %v1894 = vld [vmem:[%s8 + $0x5] sm:$0x1]
  %v1895 = vperm.slane %v1894, 0
  %v1897 = vsel %vm916, %v1846, 0
  %v1900 = vsel %vm916, %v1847, 0
  %v1903 = vsel %vm916, %v1848, 0
  %v1906 = vsel %vm916, %v1849, 0
  %1908 = vmatpush.msra.mxu0 %v1885
  %1909 = vmatpush.msra.mxu0 %v1884
  %1910 = vmatpush.msra.mxu0 %v1883
  %1911 = vmatpush.msra.mxu0 %v1882
  %1912 = vmatpush.msra.mxu0 %v1881
  %1913 = vmatpush.msra.mxu0 %v1880
  %1914 = vmatpush.msra.mxu0 %v1879
  %1915 = vmatpush.msra.mxu0 %v1878
  %1916 = vmatpush.msra.mxu0 %v1877
  %1917 = vmatpush.msra.mxu0 %v1876
  %1918 = vmatpush.msra.mxu0 %v1875
  %1919 = vmatpush.msra.mxu0 %v1874
  %1920 = vmatpush.msra.mxu0 %v1873
  %1921 = vmatpush.msra.mxu0 %v1872
  %1922 = vmatpush.msra.mxu0 %v1871
  %1923 = vmatpush.msra.mxu0 %v1870
  %1924 = vmatmul.f32.gmra.mxu0 %v1866
  %v1925 = vpop.f32.mrf.mxu0
  %v1926 = vadd.f32 %v1895, %v1925
  %1927 = vmatmul.f32.gmra.mxu0 %v1867
  %v1928 = vpop.f32.mrf.mxu0
  %v1929 = vadd.f32 %v1895, %v1928
  %1930 = vmatmul.f32.gmra.mxu0 %v1868
  %v1931 = vpop.f32.mrf.mxu0
  %v1932 = vadd.f32 %v1895, %v1931
  %1933 = vmatmul.f32.gmra.mxu0 %v1869
  %v1934 = vpop.f32.mrf.mxu0
  %v1935 = vadd.f32 %v1895, %v1934
  %1936 = vdwg.mxu0
  %1937 = vmatpush.msra.mxu0 0.0
  %1938 = vmatpush.msra.mxu0 0.0
  %1939 = vmatpush.msra.mxu0 0.0
  %1940 = vmatpush.msra.mxu0 0.0
  %1941 = vmatpush.msra.mxu0 0.0
  %1942 = vmatpush.msra.mxu0 0.0
  %1943 = vmatpush.msra.mxu0 0.0
  %1944 = vmatpush.msra.mxu0 0.0
  %1945 = vmatpush.msra.mxu0 %v1893
  %1946 = vmatpush.msra.mxu0 %v1892
  %1947 = vmatpush.msra.mxu0 %v1891
  %1948 = vmatpush.msra.mxu0 %v1890
  %1949 = vmatpush.msra.mxu0 %v1889
  %1950 = vmatpush.msra.mxu0 %v1888
  %1951 = vmatpush.msra.mxu0 %v1887
  %1952 = vmatpush.msra.mxu0 %v1886
  %1953 = vmatmul.f32.gmra.mxu0 %v1897
  %v1954 = vpop.f32.mrf.mxu0
  %v1955 = vadd.f32 %v1926, %v1954
  %1956 = vmatmul.f32.gmra.mxu0 %v1900
  %v1957 = vpop.f32.mrf.mxu0
  %v1958 = vadd.f32 %v1929, %v1957
  %1959 = vmatmul.f32.gmra.mxu0 %v1903
  %v1960 = vpop.f32.mrf.mxu0
  %v1961 = vadd.f32 %v1932, %v1960
  %1962 = vmatmul.f32.gmra.mxu0 %v1906
  %v1963 = vpop.f32.mrf.mxu0
  %v1964 = vadd.f32 %v1935, %v1963
  %1965 = vdwg.mxu0
  %v1966 = vmul.f32 %v1955, %v47
  %v1967 = vmul.f32 %v1958, %v52
  %v1968 = vmul.f32 %v1961, %v57
  %v1969 = vmul.f32 %v1964, %v62
  %v1970 = vadd.f32 %v1654, %v1966
  %v1971 = vadd.f32 %v1655, %v1967
  %v1972 = vadd.f32 %v1656, %v1968
  %v1973 = vadd.f32 %v1657, %v1969
  %v1974 = vld [vmem:[%s8 + $0x6] sm:$0x1]
  %v1975 = vld [vmem:[%s8 + $0x7] sm:$0x1]
  %v1976 = vsel %vm74, %v1970, 0.0
  %1977 = vadd.xlane.f32.xlu0 %v1976
  %v1978 = vpop.xlane.xlu0 %1977
  %v1979 = vsel %vm74, %v1971, 0.0
  %1980 = vadd.xlane.f32.xlu0 %v1979
  %v1981 = vpop.xlane.xlu0 %1980
  %v1982 = vsel %vm74, %v1972, 0.0
  %1983 = vadd.xlane.f32.xlu0 %v1982
  %v1984 = vpop.xlane.xlu0 %1983
  %v1985 = vsel %vm74, %v1973, 0.0
  %1986 = vadd.xlane.f32.xlu0 %v1985
  %v1987 = vpop.xlane.xlu0 %1986
  %v1988 = vmul.f32 %v1978, %v1571
  %v1989 = vmul.f32 %v1981, %v1571
  %v1990 = vmul.f32 %v1984, %v1571
  %v1991 = vmul.f32 %v1987, %v1571
  %v1992 = vsub.f32 %v1970, %v1988
  %v1993 = vsub.f32 %v1971, %v1989
  %v1994 = vsub.f32 %v1972, %v1990
  %v1995 = vsub.f32 %v1973, %v1991
  %v1996 = vmul.f32 %v1992, %v1992
  %v1997 = vmul.f32 %v1993, %v1993
  %v1998 = vmul.f32 %v1994, %v1994
  %v1999 = vmul.f32 %v1995, %v1995
  %v2000 = vsel %vm74, %v1996, 0.0
  %2001 = vadd.xlane.f32.xlu0 %v2000
  %v2002 = vpop.xlane.xlu0 %2001
  %v2003 = vsel %vm74, %v1997, 0.0
  %2004 = vadd.xlane.f32.xlu0 %v2003
  %v2005 = vpop.xlane.xlu0 %2004
  %v2006 = vsel %vm74, %v1998, 0.0
  %2007 = vadd.xlane.f32.xlu0 %v2006
  %v2008 = vpop.xlane.xlu0 %2007
  %v2009 = vsel %vm74, %v1999, 0.0
  %2010 = vadd.xlane.f32.xlu0 %v2009
  %v2011 = vpop.xlane.xlu0 %2010
  %v2012 = vmul.f32 %v2002, %v1571
  %v2013 = vmul.f32 %v2005, %v1571
  %v2014 = vmul.f32 %v2008, %v1571
  %v2015 = vmul.f32 %v2011, %v1571
  %v2016 = vadd.f32 %v2012, 1e-05
  %v2017 = vadd.f32 %v2013, 1e-05
  %v2018 = vadd.f32 %v2014, 1e-05
  %v2019 = vadd.f32 %v2015, 1e-05
  %v2020 = vrsqrt.pop %v2016
  %v2021 = vmul.f32 %v2020, %v2016
  %v2022 = vmul.f32 %v2021, %v2020
  %v2023 = vmul.f32 0.5, %v2022
  %v2024 = vsub.f32 1.5, %v2023
  %v2025 = vmul.f32 %v2020, %v2024
  %vm2026 = vweird.f32 %v2016
  %vm2027 = vweird.f32 %v2020
  %vm2028 = vmor %vm2026, %vm2027
  %v2029 = vsel %vm2028, %v2020, %v2025
  %v2030 = vrsqrt.pop %v2017
  %v2031 = vmul.f32 %v2030, %v2017
  %v2032 = vmul.f32 %v2031, %v2030
  %v2033 = vmul.f32 0.5, %v2032
  %v2034 = vsub.f32 1.5, %v2033
  %v2035 = vmul.f32 %v2030, %v2034
  %vm2036 = vweird.f32 %v2017
  %vm2037 = vweird.f32 %v2030
  %vm2038 = vmor %vm2036, %vm2037
  %v2039 = vsel %vm2038, %v2030, %v2035
  %v2040 = vrsqrt.pop %v2018
  %v2041 = vmul.f32 %v2040, %v2018
  %v2042 = vmul.f32 %v2041, %v2040
  %v2043 = vmul.f32 0.5, %v2042
  %v2044 = vsub.f32 1.5, %v2043
  %v2045 = vmul.f32 %v2040, %v2044
  %vm2046 = vweird.f32 %v2018
  %vm2047 = vweird.f32 %v2040
  %vm2048 = vmor %vm2046, %vm2047
  %v2049 = vsel %vm2048, %v2040, %v2045
  %v2050 = vrsqrt.pop %v2019
  %v2051 = vmul.f32 %v2050, %v2019
  %v2052 = vmul.f32 %v2051, %v2050
  %v2053 = vmul.f32 0.5, %v2052
  %v2054 = vsub.f32 1.5, %v2053
  %v2055 = vmul.f32 %v2050, %v2054
  %vm2056 = vweird.f32 %v2019
  %vm2057 = vweird.f32 %v2050
  %vm2058 = vmor %vm2056, %vm2057
  %v2059 = vsel %vm2058, %v2050, %v2055
  %v2060 = vmul.f32 %v1992, %v2029
  %v2061 = vmul.f32 %v1993, %v2039
  %v2062 = vmul.f32 %v1994, %v2049
  %v2063 = vmul.f32 %v1995, %v2059
  %v2064 = vperm.slane %v1974, 0
  %v2065 = vmul.f32 %v2060, %v2064
  %v2066 = vmul.f32 %v2061, %v2064
  %v2067 = vmul.f32 %v2062, %v2064
  %v2068 = vmul.f32 %v2063, %v2064
  %v2069 = vperm.slane %v1975, 0
  %v2070 = vadd.f32 %v2065, %v2069
  %v2071 = vadd.f32 %v2066, %v2069
  %v2072 = vadd.f32 %v2067, %v2069
  %v2073 = vadd.f32 %v2068, %v2069
  %v2074 = vmul.f32 %v2070, %v47
  %v2075 = vmul.f32 %v2071, %v52
  %v2076 = vmul.f32 %v2072, %v57
  %v2077 = vmul.f32 %v2073, %v62
  %s2078 = scalar_lea.vmem %s4, 64
  %v2079 = vld [vmem:[%s2078] sm:$0xff]
  %v2080 = vld [vmem:[%s2078 + $0x10] sm:$0xff]
  %v2081 = vld [vmem:[%s2078 + $0x20] sm:$0xff]
  %v2082 = vld [vmem:[%s2078 + $0x30] sm:$0xff]
  %s2083 = scalar_lea.vmem %s8, 8
  %v2084 = vld [vmem:[%s2083] sm:$0x1]
  %v2085 = vperm.slane %v2084, 0
  %v2087 = vsel %vm74, %v2074, 0
  %v2090 = vsel %vm74, %v2075, 0
  %v2093 = vsel %vm74, %v2076, 0
  %v2096 = vsel %vm74, %v2077, 0
  %2098 = vmatpush.msra.mxu0 0.0
  %2099 = vmatpush.msra.mxu0 0.0
  %2100 = vmatpush.msra.mxu0 0.0
  %2101 = vmatpush.msra.mxu0 0.0
  %2102 = vmatpush.msra.mxu0 0.0
  %2103 = vmatpush.msra.mxu0 0.0
  %2104 = vmatpush.msra.mxu0 0.0
  %2105 = vmatpush.msra.mxu0 0.0
  %2106 = vmatpush.msra.mxu0 0.0
  %2107 = vmatpush.msra.mxu0 0.0
  %2108 = vmatpush.msra.mxu0 0.0
  %2109 = vmatpush.msra.mxu0 0.0
  %2110 = vmatpush.msra.mxu0 %v2082
  %2111 = vmatpush.msra.mxu0 %v2081
  %2112 = vmatpush.msra.mxu0 %v2080
  %2113 = vmatpush.msra.mxu0 %v2079
  %2114 = vmatmul.f32.gmra.mxu0 %v2087
  %v2115 = vpop.f32.mrf.mxu0
  %v2116 = vadd.f32 %v2085, %v2115
  %2117 = vmatmul.f32.gmra.mxu0 %v2090
  %v2118 = vpop.f32.mrf.mxu0
  %v2119 = vadd.f32 %v2085, %v2118
  %2120 = vmatmul.f32.gmra.mxu0 %v2093
  %v2121 = vpop.f32.mrf.mxu0
  %v2122 = vadd.f32 %v2085, %v2121
  %2123 = vmatmul.f32.gmra.mxu0 %v2096
  %v2124 = vpop.f32.mrf.mxu0
  %v2125 = vadd.f32 %v2085, %v2124
  %2126 = vdwg.mxu0
  %v2127 = vmul.f32 %v2116, 0.25
  %v2128 = vmul.f32 %v2119, 0.25
  %v2129 = vmul.f32 %v2122, 0.25
  %v2130 = vmul.f32 %v2125, 0.25
  %2135 = vrot.lane.b32.xlu0 %v2079, 32
  %v2136 = vpop.permute.xlu0 %2135
  %2137 = vrot.lane.b32.xlu0 %v2080, 32
  %v2138 = vpop.permute.xlu0 %2137
  %2139 = vrot.lane.b32.xlu0 %v2081, 32
  %v2140 = vpop.permute.xlu0 %2139
  %2141 = vrot.lane.b32.xlu0 %v2082, 32
  %v2142 = vpop.permute.xlu0 %2141
  %v2148 = vsel %vm74, %v2127, 0
  %v2151 = vsel %vm74, %v2128, 0
  %v2154 = vsel %vm74, %v2129, 0
  %v2157 = vsel %vm74, %v2130, 0
  %2159 = vmatpush.msra.mxu0 0.0
  %2160 = vmatpush.msra.mxu0 0.0
  %2161 = vmatpush.msra.mxu0 0.0
  %2162 = vmatpush.msra.mxu0 0.0
  %2163 = vmatpush.msra.mxu0 0.0
  %2164 = vmatpush.msra.mxu0 0.0
  %2165 = vmatpush.msra.mxu0 0.0
  %2166 = vmatpush.msra.mxu0 0.0
  %2167 = vmatpush.msra.mxu0 0.0
  %2168 = vmatpush.msra.mxu0 0.0
  %2169 = vmatpush.msra.mxu0 0.0
  %2170 = vmatpush.msra.mxu0 0.0
  %2171 = vmatpush.msra.mxu0 %v2142
  %2172 = vmatpush.msra.mxu0 %v2140
  %2173 = vmatpush.msra.mxu0 %v2138
  %2174 = vmatpush.msra.mxu0 %v2136
  %2175 = vmatmul.f32.gmra.mxu0 %v2148
  %v2176 = vpop.f32.mrf.mxu0
  %v2177 = vadd.f32 0.0, %v2176
  %2178 = vmatmul.f32.gmra.mxu0 %v2151
  %v2179 = vpop.f32.mrf.mxu0
  %v2180 = vadd.f32 0.0, %v2179
  %2181 = vmatmul.f32.gmra.mxu0 %v2154
  %v2182 = vpop.f32.mrf.mxu0
  %v2183 = vadd.f32 0.0, %v2182
  %2184 = vmatmul.f32.gmra.mxu0 %v2157
  %v2185 = vpop.f32.mrf.mxu0
  %v2186 = vadd.f32 0.0, %v2185
  %2187 = vdwg.mxu0
  %2192 = vrot.lane.b32.xlu0 %v2116, 96
  %v2193 = vpop.permute.xlu0 %2192
  %2194 = vrot.lane.b32.xlu0 %v2119, 96
  %v2195 = vpop.permute.xlu0 %2194
  %2196 = vrot.lane.b32.xlu0 %v2122, 96
  %v2197 = vpop.permute.xlu0 %2196
  %2198 = vrot.lane.b32.xlu0 %v2125, 96
  %v2199 = vpop.permute.xlu0 %2198
  %v2200 = vsel %vm189, %v2127, 0
  %v2202 = vsel %vm189, %v2128, 0
  %v2204 = vsel %vm189, %v2129, 0
  %v2206 = vsel %vm189, %v2130, 0
  %v2208 = vsel %vm189, %v2193, 0
  %v2210 = vsel %vm189, %v2195, 0
  %v2212 = vsel %vm189, %v2197, 0
  %v2214 = vsel %vm189, %v2199, 0
  %2216 = vmatpush.xpose.msra.mxu0 0.0
  %2217 = vmatpush.xpose.msra.mxu0 0.0
  %2218 = vmatpush.xpose.msra.mxu0 0.0
  %2219 = vmatpush.xpose.msra.mxu0 0.0
  %2220 = vmatpush.xpose.msra.mxu0 0.0
  %2221 = vmatpush.xpose.msra.mxu0 0.0
  %2222 = vmatpush.xpose.msra.mxu0 0.0
  %2223 = vmatpush.xpose.msra.mxu0 0.0
  %2224 = vmatpush.xpose.msra.mxu0 0.0
  %2225 = vmatpush.xpose.msra.mxu0 0.0
  %2226 = vmatpush.xpose.msra.mxu0 0.0
  %2227 = vmatpush.xpose.msra.mxu0 0.0
  %2228 = vmatpush.xpose.msra.mxu0 %v2214
  %2229 = vmatpush.xpose.msra.mxu0 %v2212
  %2230 = vmatpush.xpose.msra.mxu0 %v2210
  %2231 = vmatpush.xpose.msra.mxu0 %v2208
  %2232 = vmatmul.f32.gmra.mxu0 %v2200
  %v2233 = vpop.f32.mrf.mxu0
  %v2234 = vadd.f32 %v40, %v2233
  %2235 = vmatmul.f32.gmra.mxu0 %v2202
  %v2236 = vpop.f32.mrf.mxu0
  %v2237 = vadd.f32 %v41, %v2236
  %2238 = vmatmul.f32.gmra.mxu0 %v2204
  %v2239 = vpop.f32.mrf.mxu0
  %v2240 = vadd.f32 %v42, %v2239
  %2241 = vmatmul.f32.gmra.mxu0 %v2206
  %v2242 = vpop.f32.mrf.mxu0
  %v2243 = vadd.f32 %v43, %v2242
  %2244 = vdwg.mxu0
  %2246 = vset.pattern.permute.xlu0 0
  %2247 = vperm.xlu0 %2246, %v2177
  %v2248 = vpop.permute.xlu0 %2247
  %2251 = vset.pattern.permute.xlu0 0
  %2252 = vperm.xlu0 %2251, %v2180
  %v2253 = vpop.permute.xlu0 %2252
  %2256 = vset.pattern.permute.xlu0 0
  %2257 = vperm.xlu0 %2256, %v2183
  %v2258 = vpop.permute.xlu0 %2257
  %2261 = vset.pattern.permute.xlu0 0
  %2262 = vperm.xlu0 %2261, %v2186
  %v2263 = vpop.permute.xlu0 %2262
  %v2265 = vmul.f32 %v235, %v2248
  %v2266 = vmul.f32 %v236, %v2253
  %v2267 = vmul.f32 %v237, %v2258
  %v2268 = vmul.f32 %v238, %v2263
  %v2269 = vadd.f32 %v2234, %v2265
  %v2270 = vadd.f32 %v2237, %v2266
  %v2271 = vadd.f32 %v2240, %v2267
  %v2272 = vadd.f32 %v2243, %v2268
  %2273 = vset.pattern.permute.xlu0 1
  %2274 = vperm.xlu0 %2273, %v2177
  %v2275 = vpop.permute.xlu0 %2274
  %2277 = vset.pattern.permute.xlu0 1
  %2278 = vperm.xlu0 %2277, %v2180
  %v2279 = vpop.permute.xlu0 %2278
  %2281 = vset.pattern.permute.xlu0 1
  %2282 = vperm.xlu0 %2281, %v2183
  %v2283 = vpop.permute.xlu0 %2282
  %2285 = vset.pattern.permute.xlu0 1
  %2286 = vperm.xlu0 %2285, %v2186
  %v2287 = vpop.permute.xlu0 %2286
  %v2289 = vmul.f32 %v268, %v2275
  %v2290 = vmul.f32 %v269, %v2279
  %v2291 = vmul.f32 %v270, %v2283
  %v2292 = vmul.f32 %v271, %v2287
  %v2293 = vadd.f32 %v2269, %v2289
  %v2294 = vadd.f32 %v2270, %v2290
  %v2295 = vadd.f32 %v2271, %v2291
  %v2296 = vadd.f32 %v2272, %v2292
  %2297 = vset.pattern.permute.xlu0 2
  %2298 = vperm.xlu0 %2297, %v2177
  %v2299 = vpop.permute.xlu0 %2298
  %2301 = vset.pattern.permute.xlu0 2
  %2302 = vperm.xlu0 %2301, %v2180
  %v2303 = vpop.permute.xlu0 %2302
  %2305 = vset.pattern.permute.xlu0 2
  %2306 = vperm.xlu0 %2305, %v2183
  %v2307 = vpop.permute.xlu0 %2306
  %2309 = vset.pattern.permute.xlu0 2
  %2310 = vperm.xlu0 %2309, %v2186
  %v2311 = vpop.permute.xlu0 %2310
  %v2313 = vmul.f32 %v297, %v2299
  %v2314 = vmul.f32 %v298, %v2303
  %v2315 = vmul.f32 %v299, %v2307
  %v2316 = vmul.f32 %v300, %v2311
  %v2317 = vadd.f32 %v2293, %v2313
  %v2318 = vadd.f32 %v2294, %v2314
  %v2319 = vadd.f32 %v2295, %v2315
  %v2320 = vadd.f32 %v2296, %v2316
  %2321 = vset.pattern.permute.xlu0 3
  %2322 = vperm.xlu0 %2321, %v2177
  %v2323 = vpop.permute.xlu0 %2322
  %2325 = vset.pattern.permute.xlu0 3
  %2326 = vperm.xlu0 %2325, %v2180
  %v2327 = vpop.permute.xlu0 %2326
  %2329 = vset.pattern.permute.xlu0 3
  %2330 = vperm.xlu0 %2329, %v2183
  %v2331 = vpop.permute.xlu0 %2330
  %2333 = vset.pattern.permute.xlu0 3
  %2334 = vperm.xlu0 %2333, %v2186
  %v2335 = vpop.permute.xlu0 %2334
  %v2337 = vmul.f32 %v326, %v2323
  %v2338 = vmul.f32 %v327, %v2327
  %v2339 = vmul.f32 %v328, %v2331
  %v2340 = vmul.f32 %v329, %v2335
  %v2341 = vadd.f32 %v2317, %v2337
  %v2342 = vadd.f32 %v2318, %v2338
  %v2343 = vadd.f32 %v2319, %v2339
  %v2344 = vadd.f32 %v2320, %v2340
  %2345 = vset.pattern.permute.xlu0 4
  %2346 = vperm.xlu0 %2345, %v2177
  %v2347 = vpop.permute.xlu0 %2346
  %2349 = vset.pattern.permute.xlu0 4
  %2350 = vperm.xlu0 %2349, %v2180
  %v2351 = vpop.permute.xlu0 %2350
  %2353 = vset.pattern.permute.xlu0 4
  %2354 = vperm.xlu0 %2353, %v2183
  %v2355 = vpop.permute.xlu0 %2354
  %2357 = vset.pattern.permute.xlu0 4
  %2358 = vperm.xlu0 %2357, %v2186
  %v2359 = vpop.permute.xlu0 %2358
  %v2361 = vmul.f32 %v355, %v2347
  %v2362 = vmul.f32 %v356, %v2351
  %v2363 = vmul.f32 %v357, %v2355
  %v2364 = vmul.f32 %v358, %v2359
  %v2365 = vadd.f32 %v2341, %v2361
  %v2366 = vadd.f32 %v2342, %v2362
  %v2367 = vadd.f32 %v2343, %v2363
  %v2368 = vadd.f32 %v2344, %v2364
  %2369 = vset.pattern.permute.xlu0 5
  %2370 = vperm.xlu0 %2369, %v2177
  %v2371 = vpop.permute.xlu0 %2370
  %2373 = vset.pattern.permute.xlu0 5
  %2374 = vperm.xlu0 %2373, %v2180
  %v2375 = vpop.permute.xlu0 %2374
  %2377 = vset.pattern.permute.xlu0 5
  %2378 = vperm.xlu0 %2377, %v2183
  %v2379 = vpop.permute.xlu0 %2378
  %2381 = vset.pattern.permute.xlu0 5
  %2382 = vperm.xlu0 %2381, %v2186
  %v2383 = vpop.permute.xlu0 %2382
  %v2385 = vmul.f32 %v384, %v2371
  %v2386 = vmul.f32 %v385, %v2375
  %v2387 = vmul.f32 %v386, %v2379
  %v2388 = vmul.f32 %v387, %v2383
  %v2389 = vadd.f32 %v2365, %v2385
  %v2390 = vadd.f32 %v2366, %v2386
  %v2391 = vadd.f32 %v2367, %v2387
  %v2392 = vadd.f32 %v2368, %v2388
  %2393 = vset.pattern.permute.xlu0 6
  %2394 = vperm.xlu0 %2393, %v2177
  %v2395 = vpop.permute.xlu0 %2394
  %2397 = vset.pattern.permute.xlu0 6
  %2398 = vperm.xlu0 %2397, %v2180
  %v2399 = vpop.permute.xlu0 %2398
  %2401 = vset.pattern.permute.xlu0 6
  %2402 = vperm.xlu0 %2401, %v2183
  %v2403 = vpop.permute.xlu0 %2402
  %2405 = vset.pattern.permute.xlu0 6
  %2406 = vperm.xlu0 %2405, %v2186
  %v2407 = vpop.permute.xlu0 %2406
  %v2409 = vmul.f32 %v413, %v2395
  %v2410 = vmul.f32 %v414, %v2399
  %v2411 = vmul.f32 %v415, %v2403
  %v2412 = vmul.f32 %v416, %v2407
  %v2413 = vadd.f32 %v2389, %v2409
  %v2414 = vadd.f32 %v2390, %v2410
  %v2415 = vadd.f32 %v2391, %v2411
  %v2416 = vadd.f32 %v2392, %v2412
  %2417 = vset.pattern.permute.xlu0 7
  %2418 = vperm.xlu0 %2417, %v2177
  %v2419 = vpop.permute.xlu0 %2418
  %2421 = vset.pattern.permute.xlu0 7
  %2422 = vperm.xlu0 %2421, %v2180
  %v2423 = vpop.permute.xlu0 %2422
  %2425 = vset.pattern.permute.xlu0 7
  %2426 = vperm.xlu0 %2425, %v2183
  %v2427 = vpop.permute.xlu0 %2426
  %2429 = vset.pattern.permute.xlu0 7
  %2430 = vperm.xlu0 %2429, %v2186
  %v2431 = vpop.permute.xlu0 %2430
  %v2433 = vmul.f32 %v442, %v2419
  %v2434 = vmul.f32 %v443, %v2423
  %v2435 = vmul.f32 %v444, %v2427
  %v2436 = vmul.f32 %v445, %v2431
  %v2437 = vadd.f32 %v2413, %v2433
  %v2438 = vadd.f32 %v2414, %v2434
  %v2439 = vadd.f32 %v2415, %v2435
  %v2440 = vadd.f32 %v2416, %v2436
  %2441 = vset.pattern.permute.xlu0 8
  %2442 = vperm.xlu0 %2441, %v2177
  %v2443 = vpop.permute.xlu0 %2442
  %2445 = vset.pattern.permute.xlu0 8
  %2446 = vperm.xlu0 %2445, %v2180
  %v2447 = vpop.permute.xlu0 %2446
  %2449 = vset.pattern.permute.xlu0 8
  %2450 = vperm.xlu0 %2449, %v2183
  %v2451 = vpop.permute.xlu0 %2450
  %2453 = vset.pattern.permute.xlu0 8
  %2454 = vperm.xlu0 %2453, %v2186
  %v2455 = vpop.permute.xlu0 %2454
  %v2457 = vmul.f32 %v471, %v2443
  %v2458 = vmul.f32 %v472, %v2447
  %v2459 = vmul.f32 %v473, %v2451
  %v2460 = vmul.f32 %v474, %v2455
  %v2461 = vadd.f32 %v2437, %v2457
  %v2462 = vadd.f32 %v2438, %v2458
  %v2463 = vadd.f32 %v2439, %v2459
  %v2464 = vadd.f32 %v2440, %v2460
  %v2465 = vsel %vm74, %v2461, -inf
  %2466 = vmax.xlane.f32.xlu0 %v2465
  %v2467 = vpop.xlane.xlu0 %2466
  %v2468 = vsel %vm74, %v2462, -inf
  %2469 = vmax.xlane.f32.xlu0 %v2468
  %v2470 = vpop.xlane.xlu0 %2469
  %v2471 = vsel %vm74, %v2463, -inf
  %2472 = vmax.xlane.f32.xlu0 %v2471
  %v2473 = vpop.xlane.xlu0 %2472
  %v2474 = vsel %vm74, %v2464, -inf
  %2475 = vmax.xlane.f32.xlu0 %v2474
  %v2476 = vpop.xlane.xlu0 %2475
  %v2477 = vsub.f32 %v2461, %v2467
  %v2478 = vsub.f32 %v2462, %v2470
  %v2479 = vsub.f32 %v2463, %v2473
  %v2480 = vsub.f32 %v2464, %v2476
  %v2481 = vmul.f32 %v2477, 1.442695
  %v2482 = vpow.pop %v2481
  %v2483 = vmul.f32 %v2478, 1.442695
  %v2484 = vpow.pop %v2483
  %v2485 = vmul.f32 %v2479, 1.442695
  %v2486 = vpow.pop %v2485
  %v2487 = vmul.f32 %v2480, 1.442695
  %v2488 = vpow.pop %v2487
  %v2489 = vsel %vm74, %v2482, 0.0
  %2490 = vadd.xlane.f32.xlu0 %v2489
  %v2491 = vpop.xlane.xlu0 %2490
  %v2492 = vsel %vm74, %v2484, 0.0
  %2493 = vadd.xlane.f32.xlu0 %v2492
  %v2494 = vpop.xlane.xlu0 %2493
  %v2495 = vsel %vm74, %v2486, 0.0
  %2496 = vadd.xlane.f32.xlu0 %v2495
  %v2497 = vpop.xlane.xlu0 %2496
  %v2498 = vsel %vm74, %v2488, 0.0
  %2499 = vadd.xlane.f32.xlu0 %v2498
  %v2500 = vpop.xlane.xlu0 %2499
  %v2501 = vrcp.pop %v2491
  %v2502 = vrcp.pop %v2494
  %v2503 = vrcp.pop %v2497
  %v2504 = vrcp.pop %v2500
  %v2505 = vmul.f32 %v2482, %v2501
  %v2506 = vmul.f32 %v2484, %v2502
  %v2507 = vmul.f32 %v2486, %v2503
  %v2508 = vmul.f32 %v2488, %v2504
  %2509 = vrot.lane.b32.xlu0 %v2127, 112
  %v2510 = vpop.permute.xlu0 %2509
  %2511 = vrot.lane.b32.xlu0 %v2128, 112
  %v2512 = vpop.permute.xlu0 %2511
  %2513 = vrot.lane.b32.xlu0 %v2129, 112
  %v2514 = vpop.permute.xlu0 %2513
  %2515 = vrot.lane.b32.xlu0 %v2130, 112
  %v2516 = vpop.permute.xlu0 %2515
  %2517 = vrot.lane.b32.xlu0 %v2116, 80
  %v2518 = vpop.permute.xlu0 %2517
  %2519 = vrot.lane.b32.xlu0 %v2119, 80
  %v2520 = vpop.permute.xlu0 %2519
  %2521 = vrot.lane.b32.xlu0 %v2122, 80
  %v2522 = vpop.permute.xlu0 %2521
  %2523 = vrot.lane.b32.xlu0 %v2125, 80
  %v2524 = vpop.permute.xlu0 %2523
  %v2525 = vsel %vm189, %v2510, 0
  %v2527 = vsel %vm189, %v2512, 0
  %v2529 = vsel %vm189, %v2514, 0
  %v2531 = vsel %vm189, %v2516, 0
  %v2533 = vsel %vm189, %v2518, 0
  %v2535 = vsel %vm189, %v2520, 0
  %v2537 = vsel %vm189, %v2522, 0
  %v2539 = vsel %vm189, %v2524, 0
  %2541 = vmatpush.xpose.msra.mxu0 0.0
  %2542 = vmatpush.xpose.msra.mxu0 0.0
  %2543 = vmatpush.xpose.msra.mxu0 0.0
  %2544 = vmatpush.xpose.msra.mxu0 0.0
  %2545 = vmatpush.xpose.msra.mxu0 0.0
  %2546 = vmatpush.xpose.msra.mxu0 0.0
  %2547 = vmatpush.xpose.msra.mxu0 0.0
  %2548 = vmatpush.xpose.msra.mxu0 0.0
  %2549 = vmatpush.xpose.msra.mxu0 0.0
  %2550 = vmatpush.xpose.msra.mxu0 0.0
  %2551 = vmatpush.xpose.msra.mxu0 0.0
  %2552 = vmatpush.xpose.msra.mxu0 0.0
  %2553 = vmatpush.xpose.msra.mxu0 %v2539
  %2554 = vmatpush.xpose.msra.mxu0 %v2537
  %2555 = vmatpush.xpose.msra.mxu0 %v2535
  %2556 = vmatpush.xpose.msra.mxu0 %v2533
  %2557 = vmatmul.f32.gmra.mxu0 %v2525
  %v2558 = vpop.f32.mrf.mxu0
  %v2559 = vadd.f32 %v40, %v2558
  %2560 = vmatmul.f32.gmra.mxu0 %v2527
  %v2561 = vpop.f32.mrf.mxu0
  %v2562 = vadd.f32 %v41, %v2561
  %2563 = vmatmul.f32.gmra.mxu0 %v2529
  %v2564 = vpop.f32.mrf.mxu0
  %v2565 = vadd.f32 %v42, %v2564
  %2566 = vmatmul.f32.gmra.mxu0 %v2531
  %v2567 = vpop.f32.mrf.mxu0
  %v2568 = vadd.f32 %v43, %v2567
  %2569 = vdwg.mxu0
  %2570 = vset.pattern.permute.xlu0 9
  %2571 = vperm.xlu0 %2570, %v2177
  %v2572 = vpop.permute.xlu0 %2571
  %2574 = vset.pattern.permute.xlu0 9
  %2575 = vperm.xlu0 %2574, %v2180
  %v2576 = vpop.permute.xlu0 %2575
  %2578 = vset.pattern.permute.xlu0 9
  %2579 = vperm.xlu0 %2578, %v2183
  %v2580 = vpop.permute.xlu0 %2579
  %2582 = vset.pattern.permute.xlu0 9
  %2583 = vperm.xlu0 %2582, %v2186
  %v2584 = vpop.permute.xlu0 %2583
  %v2586 = vmul.f32 %v235, %v2572
  %v2587 = vmul.f32 %v236, %v2576
  %v2588 = vmul.f32 %v237, %v2580
  %v2589 = vmul.f32 %v238, %v2584
  %v2590 = vadd.f32 %v2559, %v2586
  %v2591 = vadd.f32 %v2562, %v2587
  %v2592 = vadd.f32 %v2565, %v2588
  %v2593 = vadd.f32 %v2568, %v2589
  %2594 = vset.pattern.permute.xlu0 10
  %2595 = vperm.xlu0 %2594, %v2177
  %v2596 = vpop.permute.xlu0 %2595
  %2598 = vset.pattern.permute.xlu0 10
  %2599 = vperm.xlu0 %2598, %v2180
  %v2600 = vpop.permute.xlu0 %2599
  %2602 = vset.pattern.permute.xlu0 10
  %2603 = vperm.xlu0 %2602, %v2183
  %v2604 = vpop.permute.xlu0 %2603
  %2606 = vset.pattern.permute.xlu0 10
  %2607 = vperm.xlu0 %2606, %v2186
  %v2608 = vpop.permute.xlu0 %2607
  %v2610 = vmul.f32 %v268, %v2596
  %v2611 = vmul.f32 %v269, %v2600
  %v2612 = vmul.f32 %v270, %v2604
  %v2613 = vmul.f32 %v271, %v2608
  %v2614 = vadd.f32 %v2590, %v2610
  %v2615 = vadd.f32 %v2591, %v2611
  %v2616 = vadd.f32 %v2592, %v2612
  %v2617 = vadd.f32 %v2593, %v2613
  %2618 = vset.pattern.permute.xlu0 11
  %2619 = vperm.xlu0 %2618, %v2177
  %v2620 = vpop.permute.xlu0 %2619
  %2622 = vset.pattern.permute.xlu0 11
  %2623 = vperm.xlu0 %2622, %v2180
  %v2624 = vpop.permute.xlu0 %2623
  %2626 = vset.pattern.permute.xlu0 11
  %2627 = vperm.xlu0 %2626, %v2183
  %v2628 = vpop.permute.xlu0 %2627
  %2630 = vset.pattern.permute.xlu0 11
  %2631 = vperm.xlu0 %2630, %v2186
  %v2632 = vpop.permute.xlu0 %2631
  %v2634 = vmul.f32 %v297, %v2620
  %v2635 = vmul.f32 %v298, %v2624
  %v2636 = vmul.f32 %v299, %v2628
  %v2637 = vmul.f32 %v300, %v2632
  %v2638 = vadd.f32 %v2614, %v2634
  %v2639 = vadd.f32 %v2615, %v2635
  %v2640 = vadd.f32 %v2616, %v2636
  %v2641 = vadd.f32 %v2617, %v2637
  %2642 = vset.pattern.permute.xlu0 12
  %2643 = vperm.xlu0 %2642, %v2177
  %v2644 = vpop.permute.xlu0 %2643
  %2646 = vset.pattern.permute.xlu0 12
  %2647 = vperm.xlu0 %2646, %v2180
  %v2648 = vpop.permute.xlu0 %2647
  %2650 = vset.pattern.permute.xlu0 12
  %2651 = vperm.xlu0 %2650, %v2183
  %v2652 = vpop.permute.xlu0 %2651
  %2654 = vset.pattern.permute.xlu0 12
  %2655 = vperm.xlu0 %2654, %v2186
  %v2656 = vpop.permute.xlu0 %2655
  %v2658 = vmul.f32 %v326, %v2644
  %v2659 = vmul.f32 %v327, %v2648
  %v2660 = vmul.f32 %v328, %v2652
  %v2661 = vmul.f32 %v329, %v2656
  %v2662 = vadd.f32 %v2638, %v2658
  %v2663 = vadd.f32 %v2639, %v2659
  %v2664 = vadd.f32 %v2640, %v2660
  %v2665 = vadd.f32 %v2641, %v2661
  %2666 = vset.pattern.permute.xlu0 13
  %2667 = vperm.xlu0 %2666, %v2177
  %v2668 = vpop.permute.xlu0 %2667
  %2670 = vset.pattern.permute.xlu0 13
  %2671 = vperm.xlu0 %2670, %v2180
  %v2672 = vpop.permute.xlu0 %2671
  %2674 = vset.pattern.permute.xlu0 13
  %2675 = vperm.xlu0 %2674, %v2183
  %v2676 = vpop.permute.xlu0 %2675
  %2678 = vset.pattern.permute.xlu0 13
  %2679 = vperm.xlu0 %2678, %v2186
  %v2680 = vpop.permute.xlu0 %2679
  %v2682 = vmul.f32 %v355, %v2668
  %v2683 = vmul.f32 %v356, %v2672
  %v2684 = vmul.f32 %v357, %v2676
  %v2685 = vmul.f32 %v358, %v2680
  %v2686 = vadd.f32 %v2662, %v2682
  %v2687 = vadd.f32 %v2663, %v2683
  %v2688 = vadd.f32 %v2664, %v2684
  %v2689 = vadd.f32 %v2665, %v2685
  %2690 = vset.pattern.permute.xlu0 14
  %2691 = vperm.xlu0 %2690, %v2177
  %v2692 = vpop.permute.xlu0 %2691
  %2694 = vset.pattern.permute.xlu0 14
  %2695 = vperm.xlu0 %2694, %v2180
  %v2696 = vpop.permute.xlu0 %2695
  %2698 = vset.pattern.permute.xlu0 14
  %2699 = vperm.xlu0 %2698, %v2183
  %v2700 = vpop.permute.xlu0 %2699
  %2702 = vset.pattern.permute.xlu0 14
  %2703 = vperm.xlu0 %2702, %v2186
  %v2704 = vpop.permute.xlu0 %2703
  %v2706 = vmul.f32 %v384, %v2692
  %v2707 = vmul.f32 %v385, %v2696
  %v2708 = vmul.f32 %v386, %v2700
  %v2709 = vmul.f32 %v387, %v2704
  %v2710 = vadd.f32 %v2686, %v2706
  %v2711 = vadd.f32 %v2687, %v2707
  %v2712 = vadd.f32 %v2688, %v2708
  %v2713 = vadd.f32 %v2689, %v2709
  %2714 = vset.pattern.permute.xlu0 15
  %2715 = vperm.xlu0 %2714, %v2177
  %v2716 = vpop.permute.xlu0 %2715
  %2718 = vset.pattern.permute.xlu0 15
  %2719 = vperm.xlu0 %2718, %v2180
  %v2720 = vpop.permute.xlu0 %2719
  %2722 = vset.pattern.permute.xlu0 15
  %2723 = vperm.xlu0 %2722, %v2183
  %v2724 = vpop.permute.xlu0 %2723
  %2726 = vset.pattern.permute.xlu0 15
  %2727 = vperm.xlu0 %2726, %v2186
  %v2728 = vpop.permute.xlu0 %2727
  %v2730 = vmul.f32 %v413, %v2716
  %v2731 = vmul.f32 %v414, %v2720
  %v2732 = vmul.f32 %v415, %v2724
  %v2733 = vmul.f32 %v416, %v2728
  %v2734 = vadd.f32 %v2710, %v2730
  %v2735 = vadd.f32 %v2711, %v2731
  %v2736 = vadd.f32 %v2712, %v2732
  %v2737 = vadd.f32 %v2713, %v2733
  %2738 = vset.pattern.permute.xlu0 16
  %2739 = vperm.xlu0 %2738, %v2177
  %v2740 = vpop.permute.xlu0 %2739
  %2742 = vset.pattern.permute.xlu0 16
  %2743 = vperm.xlu0 %2742, %v2180
  %v2744 = vpop.permute.xlu0 %2743
  %2746 = vset.pattern.permute.xlu0 16
  %2747 = vperm.xlu0 %2746, %v2183
  %v2748 = vpop.permute.xlu0 %2747
  %2750 = vset.pattern.permute.xlu0 16
  %2751 = vperm.xlu0 %2750, %v2186
  %v2752 = vpop.permute.xlu0 %2751
  %v2754 = vmul.f32 %v442, %v2740
  %v2755 = vmul.f32 %v443, %v2744
  %v2756 = vmul.f32 %v444, %v2748
  %v2757 = vmul.f32 %v445, %v2752
  %v2758 = vadd.f32 %v2734, %v2754
  %v2759 = vadd.f32 %v2735, %v2755
  %v2760 = vadd.f32 %v2736, %v2756
  %v2761 = vadd.f32 %v2737, %v2757
  %2762 = vset.pattern.permute.xlu0 17
  %2763 = vperm.xlu0 %2762, %v2177
  %v2764 = vpop.permute.xlu0 %2763
  %2766 = vset.pattern.permute.xlu0 17
  %2767 = vperm.xlu0 %2766, %v2180
  %v2768 = vpop.permute.xlu0 %2767
  %2770 = vset.pattern.permute.xlu0 17
  %2771 = vperm.xlu0 %2770, %v2183
  %v2772 = vpop.permute.xlu0 %2771
  %2774 = vset.pattern.permute.xlu0 17
  %2775 = vperm.xlu0 %2774, %v2186
  %v2776 = vpop.permute.xlu0 %2775
  %v2778 = vmul.f32 %v471, %v2764
  %v2779 = vmul.f32 %v472, %v2768
  %v2780 = vmul.f32 %v473, %v2772
  %v2781 = vmul.f32 %v474, %v2776
  %v2782 = vadd.f32 %v2758, %v2778
  %v2783 = vadd.f32 %v2759, %v2779
  %v2784 = vadd.f32 %v2760, %v2780
  %v2785 = vadd.f32 %v2761, %v2781
  %v2786 = vsel %vm74, %v2782, -inf
  %2787 = vmax.xlane.f32.xlu0 %v2786
  %v2788 = vpop.xlane.xlu0 %2787
  %v2789 = vsel %vm74, %v2783, -inf
  %2790 = vmax.xlane.f32.xlu0 %v2789
  %v2791 = vpop.xlane.xlu0 %2790
  %v2792 = vsel %vm74, %v2784, -inf
  %2793 = vmax.xlane.f32.xlu0 %v2792
  %v2794 = vpop.xlane.xlu0 %2793
  %v2795 = vsel %vm74, %v2785, -inf
  %2796 = vmax.xlane.f32.xlu0 %v2795
  %v2797 = vpop.xlane.xlu0 %2796
  %v2798 = vsub.f32 %v2782, %v2788
  %v2799 = vsub.f32 %v2783, %v2791
  %v2800 = vsub.f32 %v2784, %v2794
  %v2801 = vsub.f32 %v2785, %v2797
  %v2802 = vmul.f32 %v2798, 1.442695
  %v2803 = vpow.pop %v2802
  %v2804 = vmul.f32 %v2799, 1.442695
  %v2805 = vpow.pop %v2804
  %v2806 = vmul.f32 %v2800, 1.442695
  %v2807 = vpow.pop %v2806
  %v2808 = vmul.f32 %v2801, 1.442695
  %v2809 = vpow.pop %v2808
  %v2810 = vsel %vm74, %v2803, 0.0
  %2811 = vadd.xlane.f32.xlu0 %v2810
  %v2812 = vpop.xlane.xlu0 %2811
  %v2813 = vsel %vm74, %v2805, 0.0
  %2814 = vadd.xlane.f32.xlu0 %v2813
  %v2815 = vpop.xlane.xlu0 %2814
  %v2816 = vsel %vm74, %v2807, 0.0
  %2817 = vadd.xlane.f32.xlu0 %v2816
  %v2818 = vpop.xlane.xlu0 %2817
  %v2819 = vsel %vm74, %v2809, 0.0
  %2820 = vadd.xlane.f32.xlu0 %v2819
  %v2821 = vpop.xlane.xlu0 %2820
  %v2822 = vrcp.pop %v2812
  %v2823 = vrcp.pop %v2815
  %v2824 = vrcp.pop %v2818
  %v2825 = vrcp.pop %v2821
  %v2826 = vmul.f32 %v2803, %v2822
  %v2827 = vmul.f32 %v2805, %v2823
  %v2828 = vmul.f32 %v2807, %v2824
  %v2829 = vmul.f32 %v2809, %v2825
  %2834 = vrot.lane.b32.xlu0 %v2826, 32
  %v2835 = vpop.permute.xlu0 %2834
  %2836 = vrot.lane.b32.xlu0 %v2827, 32
  %v2837 = vpop.permute.xlu0 %2836
  %2838 = vrot.lane.b32.xlu0 %v2828, 32
  %v2839 = vpop.permute.xlu0 %2838
  %2840 = vrot.lane.b32.xlu0 %v2829, 32
  %v2841 = vpop.permute.xlu0 %2840
  %v2846 = vsel %vm74, %v2505, %v2835
  %v2847 = vsel %vm74, %v2506, %v2837
  %v2848 = vsel %vm74, %v2507, %v2839
  %v2849 = vsel %vm74, %v2508, %v2841
  %2850 = vrot.lane.b32.xlu0 %v2116, 64
  %v2851 = vpop.permute.xlu0 %2850
  %2852 = vrot.lane.b32.xlu0 %v2119, 64
  %v2853 = vpop.permute.xlu0 %2852
  %2854 = vrot.lane.b32.xlu0 %v2122, 64
  %v2855 = vpop.permute.xlu0 %2854
  %2856 = vrot.lane.b32.xlu0 %v2125, 64
  %v2857 = vpop.permute.xlu0 %2856
  %v2862 = vsel %vm189, %v2851, 0.0
  %v2863 = vsel %vm189, %v2853, 0.0
  %v2864 = vsel %vm189, %v2855, 0.0
  %v2865 = vsel %vm189, %v2857, 0.0
  %v2866 = vsel %vm189, 0.0, %v2851
  %v2867 = vsel %vm189, 0.0, %v2853
  %v2868 = vsel %vm189, 0.0, %v2855
  %v2869 = vsel %vm189, 0.0, %v2857
  %v2870 = vmul.f32 %v2846, %v235
  %v2871 = vmul.f32 %v2847, %v236
  %v2872 = vmul.f32 %v2848, %v237
  %v2873 = vmul.f32 %v2849, %v238
  %s2874 = scalar_lea.vmem %s5, 576
  %v2875 = vld [vmem:[%s2874] sm:$0xff]
  %v2876 = vld [vmem:[%s2874 + $0x8] sm:$0xff]
  %v2877 = vld [vmem:[%s2874 + $0x10] sm:$0xff]
  %v2878 = vld [vmem:[%s2874 + $0x18] sm:$0xff]
  %v2879 = vld [vmem:[%s2874 + $0x20] sm:$0xff]
  %v2880 = vld [vmem:[%s2874 + $0x28] sm:$0xff]
  %v2881 = vld [vmem:[%s2874 + $0x30] sm:$0xff]
  %v2882 = vld [vmem:[%s2874 + $0x38] sm:$0xff]
  %v2884 = vsel %vm916, %v2870, 0
  %v2887 = vsel %vm916, %v2871, 0
  %v2890 = vsel %vm916, %v2872, 0
  %v2893 = vsel %vm916, %v2873, 0
  %2895 = vmatpush.msra.mxu0 0.0
  %2896 = vmatpush.msra.mxu0 0.0
  %2897 = vmatpush.msra.mxu0 0.0
  %2898 = vmatpush.msra.mxu0 0.0
  %2899 = vmatpush.msra.mxu0 0.0
  %2900 = vmatpush.msra.mxu0 0.0
  %2901 = vmatpush.msra.mxu0 0.0
  %2902 = vmatpush.msra.mxu0 0.0
  %2903 = vmatpush.msra.mxu0 %v2882
  %2904 = vmatpush.msra.mxu0 %v2881
  %2905 = vmatpush.msra.mxu0 %v2880
  %2906 = vmatpush.msra.mxu0 %v2879
  %2907 = vmatpush.msra.mxu0 %v2878
  %2908 = vmatpush.msra.mxu0 %v2877
  %2909 = vmatpush.msra.mxu0 %v2876
  %2910 = vmatpush.msra.mxu0 %v2875
  %2911 = vmatmul.f32.gmra.mxu0 %v2884
  %v2912 = vpop.f32.mrf.mxu0
  %v2913 = vadd.f32 0.0, %v2912
  %2914 = vmatmul.f32.gmra.mxu0 %v2887
  %v2915 = vpop.f32.mrf.mxu0
  %v2916 = vadd.f32 0.0, %v2915
  %2917 = vmatmul.f32.gmra.mxu0 %v2890
  %v2918 = vpop.f32.mrf.mxu0
  %v2919 = vadd.f32 0.0, %v2918
  %2920 = vmatmul.f32.gmra.mxu0 %v2893
  %v2921 = vpop.f32.mrf.mxu0
  %v2922 = vadd.f32 0.0, %v2921
  %2923 = vdwg.mxu0
  %v2925 = vsel %vm916, %v2846, 0
  %v2928 = vsel %vm916, %v2847, 0
  %v2931 = vsel %vm916, %v2848, 0
  %v2934 = vsel %vm916, %v2849, 0
  %2936 = vmatpush.msra.mxu0 0.0
  %2937 = vmatpush.msra.mxu0 0.0
  %2938 = vmatpush.msra.mxu0 0.0
  %2939 = vmatpush.msra.mxu0 0.0
  %2940 = vmatpush.msra.mxu0 0.0
  %2941 = vmatpush.msra.mxu0 0.0
  %2942 = vmatpush.msra.mxu0 0.0
  %2943 = vmatpush.msra.mxu0 0.0
  %2944 = vmatpush.msra.mxu0 %v2869
  %2945 = vmatpush.msra.mxu0 %v2868
  %2946 = vmatpush.msra.mxu0 %v2867
  %2947 = vmatpush.msra.mxu0 %v2866
  %2948 = vmatpush.msra.mxu0 %v2865
  %2949 = vmatpush.msra.mxu0 %v2864
  %2950 = vmatpush.msra.mxu0 %v2863
  %2951 = vmatpush.msra.mxu0 %v2862
  %2952 = vmatmul.f32.gmra.mxu0 %v2925
  %v2953 = vpop.f32.mrf.mxu0
  %v2954 = vadd.f32 %v2913, %v2953
  %2955 = vmatmul.f32.gmra.mxu0 %v2928
  %v2956 = vpop.f32.mrf.mxu0
  %v2957 = vadd.f32 %v2916, %v2956
  %2958 = vmatmul.f32.gmra.mxu0 %v2931
  %v2959 = vpop.f32.mrf.mxu0
  %v2960 = vadd.f32 %v2919, %v2959
  %2961 = vmatmul.f32.gmra.mxu0 %v2934
  %v2962 = vpop.f32.mrf.mxu0
  %v2963 = vadd.f32 %v2922, %v2962
  %2964 = vdwg.mxu0
  %v2965 = vmul.f32 %v2846, %v268
  %v2966 = vmul.f32 %v2847, %v269
  %v2967 = vmul.f32 %v2848, %v270
  %v2968 = vmul.f32 %v2849, %v271
  %s2969 = scalar_lea.vmem %s5, 640
  %v2970 = vld [vmem:[%s2969] sm:$0xff]
  %v2971 = vld [vmem:[%s2969 + $0x8] sm:$0xff]
  %v2972 = vld [vmem:[%s2969 + $0x10] sm:$0xff]
  %v2973 = vld [vmem:[%s2969 + $0x18] sm:$0xff]
  %v2974 = vld [vmem:[%s2969 + $0x20] sm:$0xff]
  %v2975 = vld [vmem:[%s2969 + $0x28] sm:$0xff]
  %v2976 = vld [vmem:[%s2969 + $0x30] sm:$0xff]
  %v2977 = vld [vmem:[%s2969 + $0x38] sm:$0xff]
  %v2979 = vsel %vm916, %v2965, 0
  %v2982 = vsel %vm916, %v2966, 0
  %v2985 = vsel %vm916, %v2967, 0
  %v2988 = vsel %vm916, %v2968, 0
  %2990 = vmatpush.msra.mxu0 0.0
  %2991 = vmatpush.msra.mxu0 0.0
  %2992 = vmatpush.msra.mxu0 0.0
  %2993 = vmatpush.msra.mxu0 0.0
  %2994 = vmatpush.msra.mxu0 0.0
  %2995 = vmatpush.msra.mxu0 0.0
  %2996 = vmatpush.msra.mxu0 0.0
  %2997 = vmatpush.msra.mxu0 0.0
  %2998 = vmatpush.msra.mxu0 %v2977
  %2999 = vmatpush.msra.mxu0 %v2976
  %3000 = vmatpush.msra.mxu0 %v2975
  %3001 = vmatpush.msra.mxu0 %v2974
  %3002 = vmatpush.msra.mxu0 %v2973
  %3003 = vmatpush.msra.mxu0 %v2972
  %3004 = vmatpush.msra.mxu0 %v2971
  %3005 = vmatpush.msra.mxu0 %v2970
  %3006 = vmatmul.f32.gmra.mxu0 %v2979
  %v3007 = vpop.f32.mrf.mxu0
  %v3008 = vadd.f32 0.0, %v3007
  %3009 = vmatmul.f32.gmra.mxu0 %v2982
  %v3010 = vpop.f32.mrf.mxu0
  %v3011 = vadd.f32 0.0, %v3010
  %3012 = vmatmul.f32.gmra.mxu0 %v2985
  %v3013 = vpop.f32.mrf.mxu0
  %v3014 = vadd.f32 0.0, %v3013
  %3015 = vmatmul.f32.gmra.mxu0 %v2988
  %v3016 = vpop.f32.mrf.mxu0
  %v3017 = vadd.f32 0.0, %v3016
  %3018 = vdwg.mxu0
  %v3019 = vadd.f32 %v2954, %v3008
  %v3020 = vadd.f32 %v2957, %v3011
  %v3021 = vadd.f32 %v2960, %v3014
  %v3022 = vadd.f32 %v2963, %v3017
  %v3023 = vmul.f32 %v2846, %v297
  %v3024 = vmul.f32 %v2847, %v298
  %v3025 = vmul.f32 %v2848, %v299
  %v3026 = vmul.f32 %v2849, %v300
  %s3027 = scalar_lea.vmem %s5, 704
  %v3028 = vld [vmem:[%s3027] sm:$0xff]
  %v3029 = vld [vmem:[%s3027 + $0x8] sm:$0xff]
  %v3030 = vld [vmem:[%s3027 + $0x10] sm:$0xff]
  %v3031 = vld [vmem:[%s3027 + $0x18] sm:$0xff]
  %v3032 = vld [vmem:[%s3027 + $0x20] sm:$0xff]
  %v3033 = vld [vmem:[%s3027 + $0x28] sm:$0xff]
  %v3034 = vld [vmem:[%s3027 + $0x30] sm:$0xff]
  %v3035 = vld [vmem:[%s3027 + $0x38] sm:$0xff]
  %v3037 = vsel %vm916, %v3023, 0
  %v3040 = vsel %vm916, %v3024, 0
  %v3043 = vsel %vm916, %v3025, 0
  %v3046 = vsel %vm916, %v3026, 0
  %3048 = vmatpush.msra.mxu0 0.0
  %3049 = vmatpush.msra.mxu0 0.0
  %3050 = vmatpush.msra.mxu0 0.0
  %3051 = vmatpush.msra.mxu0 0.0
  %3052 = vmatpush.msra.mxu0 0.0
  %3053 = vmatpush.msra.mxu0 0.0
  %3054 = vmatpush.msra.mxu0 0.0
  %3055 = vmatpush.msra.mxu0 0.0
  %3056 = vmatpush.msra.mxu0 %v3035
  %3057 = vmatpush.msra.mxu0 %v3034
  %3058 = vmatpush.msra.mxu0 %v3033
  %3059 = vmatpush.msra.mxu0 %v3032
  %3060 = vmatpush.msra.mxu0 %v3031
  %3061 = vmatpush.msra.mxu0 %v3030
  %3062 = vmatpush.msra.mxu0 %v3029
  %3063 = vmatpush.msra.mxu0 %v3028
  %3064 = vmatmul.f32.gmra.mxu0 %v3037
  %v3065 = vpop.f32.mrf.mxu0
  %v3066 = vadd.f32 0.0, %v3065
  %3067 = vmatmul.f32.gmra.mxu0 %v3040
  %v3068 = vpop.f32.mrf.mxu0
  %v3069 = vadd.f32 0.0, %v3068
  %3070 = vmatmul.f32.gmra.mxu0 %v3043
  %v3071 = vpop.f32.mrf.mxu0
  %v3072 = vadd.f32 0.0, %v3071
  %3073 = vmatmul.f32.gmra.mxu0 %v3046
  %v3074 = vpop.f32.mrf.mxu0
  %v3075 = vadd.f32 0.0, %v3074
  %3076 = vdwg.mxu0
  %v3077 = vadd.f32 %v3019, %v3066
  %v3078 = vadd.f32 %v3020, %v3069
  %v3079 = vadd.f32 %v3021, %v3072
  %v3080 = vadd.f32 %v3022, %v3075
  %v3081 = vmul.f32 %v2846, %v326
  %v3082 = vmul.f32 %v2847, %v327
  %v3083 = vmul.f32 %v2848, %v328
  %v3084 = vmul.f32 %v2849, %v329
  %s3085 = scalar_lea.vmem %s5, 768
  %v3086 = vld [vmem:[%s3085] sm:$0xff]
  %v3087 = vld [vmem:[%s3085 + $0x8] sm:$0xff]
  %v3088 = vld [vmem:[%s3085 + $0x10] sm:$0xff]
  %v3089 = vld [vmem:[%s3085 + $0x18] sm:$0xff]
  %v3090 = vld [vmem:[%s3085 + $0x20] sm:$0xff]
  %v3091 = vld [vmem:[%s3085 + $0x28] sm:$0xff]
  %v3092 = vld [vmem:[%s3085 + $0x30] sm:$0xff]
  %v3093 = vld [vmem:[%s3085 + $0x38] sm:$0xff]
  %v3095 = vsel %vm916, %v3081, 0
  %v3098 = vsel %vm916, %v3082, 0
  %v3101 = vsel %vm916, %v3083, 0
  %v3104 = vsel %vm916, %v3084, 0
  %3106 = vmatpush.msra.mxu0 0.0
  %3107 = vmatpush.msra.mxu0 0.0
  %3108 = vmatpush.msra.mxu0 0.0
  %3109 = vmatpush.msra.mxu0 0.0
  %3110 = vmatpush.msra.mxu0 0.0
  %3111 = vmatpush.msra.mxu0 0.0
  %3112 = vmatpush.msra.mxu0 0.0
  %3113 = vmatpush.msra.mxu0 0.0
  %3114 = vmatpush.msra.mxu0 %v3093
  %3115 = vmatpush.msra.mxu0 %v3092
  %3116 = vmatpush.msra.mxu0 %v3091
  %3117 = vmatpush.msra.mxu0 %v3090
  %3118 = vmatpush.msra.mxu0 %v3089
  %3119 = vmatpush.msra.mxu0 %v3088
  %3120 = vmatpush.msra.mxu0 %v3087
  %3121 = vmatpush.msra.mxu0 %v3086
  %3122 = vmatmul.f32.gmra.mxu0 %v3095
  %v3123 = vpop.f32.mrf.mxu0
  %v3124 = vadd.f32 0.0, %v3123
  %3125 = vmatmul.f32.gmra.mxu0 %v3098
  %v3126 = vpop.f32.mrf.mxu0
  %v3127 = vadd.f32 0.0, %v3126
  %3128 = vmatmul.f32.gmra.mxu0 %v3101
  %v3129 = vpop.f32.mrf.mxu0
  %v3130 = vadd.f32 0.0, %v3129
  %3131 = vmatmul.f32.gmra.mxu0 %v3104
  %v3132 = vpop.f32.mrf.mxu0
  %v3133 = vadd.f32 0.0, %v3132
  %3134 = vdwg.mxu0
  %v3135 = vadd.f32 %v3077, %v3124
  %v3136 = vadd.f32 %v3078, %v3127
  %v3137 = vadd.f32 %v3079, %v3130
  %v3138 = vadd.f32 %v3080, %v3133
  %v3139 = vmul.f32 %v2846, %v355
  %v3140 = vmul.f32 %v2847, %v356
  %v3141 = vmul.f32 %v2848, %v357
  %v3142 = vmul.f32 %v2849, %v358
  %s3143 = scalar_lea.vmem %s5, 832
  %v3144 = vld [vmem:[%s3143] sm:$0xff]
  %v3145 = vld [vmem:[%s3143 + $0x8] sm:$0xff]
  %v3146 = vld [vmem:[%s3143 + $0x10] sm:$0xff]
  %v3147 = vld [vmem:[%s3143 + $0x18] sm:$0xff]
  %v3148 = vld [vmem:[%s3143 + $0x20] sm:$0xff]
  %v3149 = vld [vmem:[%s3143 + $0x28] sm:$0xff]
  %v3150 = vld [vmem:[%s3143 + $0x30] sm:$0xff]
  %v3151 = vld [vmem:[%s3143 + $0x38] sm:$0xff]
  %v3153 = vsel %vm916, %v3139, 0
  %v3156 = vsel %vm916, %v3140, 0
  %v3159 = vsel %vm916, %v3141, 0
  %v3162 = vsel %vm916, %v3142, 0
  %3164 = vmatpush.msra.mxu0 0.0
  %3165 = vmatpush.msra.mxu0 0.0
  %3166 = vmatpush.msra.mxu0 0.0
  %3167 = vmatpush.msra.mxu0 0.0
  %3168 = vmatpush.msra.mxu0 0.0
  %3169 = vmatpush.msra.mxu0 0.0
  %3170 = vmatpush.msra.mxu0 0.0
  %3171 = vmatpush.msra.mxu0 0.0
  %3172 = vmatpush.msra.mxu0 %v3151
  %3173 = vmatpush.msra.mxu0 %v3150
  %3174 = vmatpush.msra.mxu0 %v3149
  %3175 = vmatpush.msra.mxu0 %v3148
  %3176 = vmatpush.msra.mxu0 %v3147
  %3177 = vmatpush.msra.mxu0 %v3146
  %3178 = vmatpush.msra.mxu0 %v3145
  %3179 = vmatpush.msra.mxu0 %v3144
  %3180 = vmatmul.f32.gmra.mxu0 %v3153
  %v3181 = vpop.f32.mrf.mxu0
  %v3182 = vadd.f32 0.0, %v3181
  %3183 = vmatmul.f32.gmra.mxu0 %v3156
  %v3184 = vpop.f32.mrf.mxu0
  %v3185 = vadd.f32 0.0, %v3184
  %3186 = vmatmul.f32.gmra.mxu0 %v3159
  %v3187 = vpop.f32.mrf.mxu0
  %v3188 = vadd.f32 0.0, %v3187
  %3189 = vmatmul.f32.gmra.mxu0 %v3162
  %v3190 = vpop.f32.mrf.mxu0
  %v3191 = vadd.f32 0.0, %v3190
  %3192 = vdwg.mxu0
  %v3193 = vadd.f32 %v3135, %v3182
  %v3194 = vadd.f32 %v3136, %v3185
  %v3195 = vadd.f32 %v3137, %v3188
  %v3196 = vadd.f32 %v3138, %v3191
  %v3197 = vmul.f32 %v2846, %v384
  %v3198 = vmul.f32 %v2847, %v385
  %v3199 = vmul.f32 %v2848, %v386
  %v3200 = vmul.f32 %v2849, %v387
  %s3201 = scalar_lea.vmem %s5, 896
  %v3202 = vld [vmem:[%s3201] sm:$0xff]
  %v3203 = vld [vmem:[%s3201 + $0x8] sm:$0xff]
  %v3204 = vld [vmem:[%s3201 + $0x10] sm:$0xff]
  %v3205 = vld [vmem:[%s3201 + $0x18] sm:$0xff]
  %v3206 = vld [vmem:[%s3201 + $0x20] sm:$0xff]
  %v3207 = vld [vmem:[%s3201 + $0x28] sm:$0xff]
  %v3208 = vld [vmem:[%s3201 + $0x30] sm:$0xff]
  %v3209 = vld [vmem:[%s3201 + $0x38] sm:$0xff]
  %v3211 = vsel %vm916, %v3197, 0
  %v3214 = vsel %vm916, %v3198, 0
  %v3217 = vsel %vm916, %v3199, 0
  %v3220 = vsel %vm916, %v3200, 0
  %3222 = vmatpush.msra.mxu0 0.0
  %3223 = vmatpush.msra.mxu0 0.0
  %3224 = vmatpush.msra.mxu0 0.0
  %3225 = vmatpush.msra.mxu0 0.0
  %3226 = vmatpush.msra.mxu0 0.0
  %3227 = vmatpush.msra.mxu0 0.0
  %3228 = vmatpush.msra.mxu0 0.0
  %3229 = vmatpush.msra.mxu0 0.0
  %3230 = vmatpush.msra.mxu0 %v3209
  %3231 = vmatpush.msra.mxu0 %v3208
  %3232 = vmatpush.msra.mxu0 %v3207
  %3233 = vmatpush.msra.mxu0 %v3206
  %3234 = vmatpush.msra.mxu0 %v3205
  %3235 = vmatpush.msra.mxu0 %v3204
  %3236 = vmatpush.msra.mxu0 %v3203
  %3237 = vmatpush.msra.mxu0 %v3202
  %3238 = vmatmul.f32.gmra.mxu0 %v3211
  %v3239 = vpop.f32.mrf.mxu0
  %v3240 = vadd.f32 0.0, %v3239
  %3241 = vmatmul.f32.gmra.mxu0 %v3214
  %v3242 = vpop.f32.mrf.mxu0
  %v3243 = vadd.f32 0.0, %v3242
  %3244 = vmatmul.f32.gmra.mxu0 %v3217
  %v3245 = vpop.f32.mrf.mxu0
  %v3246 = vadd.f32 0.0, %v3245
  %3247 = vmatmul.f32.gmra.mxu0 %v3220
  %v3248 = vpop.f32.mrf.mxu0
  %v3249 = vadd.f32 0.0, %v3248
  %3250 = vdwg.mxu0
  %v3251 = vadd.f32 %v3193, %v3240
  %v3252 = vadd.f32 %v3194, %v3243
  %v3253 = vadd.f32 %v3195, %v3246
  %v3254 = vadd.f32 %v3196, %v3249
  %v3255 = vmul.f32 %v2846, %v413
  %v3256 = vmul.f32 %v2847, %v414
  %v3257 = vmul.f32 %v2848, %v415
  %v3258 = vmul.f32 %v2849, %v416
  %s3259 = scalar_lea.vmem %s5, 960
  %v3260 = vld [vmem:[%s3259] sm:$0xff]
  %v3261 = vld [vmem:[%s3259 + $0x8] sm:$0xff]
  %v3262 = vld [vmem:[%s3259 + $0x10] sm:$0xff]
  %v3263 = vld [vmem:[%s3259 + $0x18] sm:$0xff]
  %v3264 = vld [vmem:[%s3259 + $0x20] sm:$0xff]
  %v3265 = vld [vmem:[%s3259 + $0x28] sm:$0xff]
  %v3266 = vld [vmem:[%s3259 + $0x30] sm:$0xff]
  %v3267 = vld [vmem:[%s3259 + $0x38] sm:$0xff]
  %v3269 = vsel %vm916, %v3255, 0
  %v3272 = vsel %vm916, %v3256, 0
  %v3275 = vsel %vm916, %v3257, 0
  %v3278 = vsel %vm916, %v3258, 0
  %3280 = vmatpush.msra.mxu0 0.0
  %3281 = vmatpush.msra.mxu0 0.0
  %3282 = vmatpush.msra.mxu0 0.0
  %3283 = vmatpush.msra.mxu0 0.0
  %3284 = vmatpush.msra.mxu0 0.0
  %3285 = vmatpush.msra.mxu0 0.0
  %3286 = vmatpush.msra.mxu0 0.0
  %3287 = vmatpush.msra.mxu0 0.0
  %3288 = vmatpush.msra.mxu0 %v3267
  %3289 = vmatpush.msra.mxu0 %v3266
  %3290 = vmatpush.msra.mxu0 %v3265
  %3291 = vmatpush.msra.mxu0 %v3264
  %3292 = vmatpush.msra.mxu0 %v3263
  %3293 = vmatpush.msra.mxu0 %v3262
  %3294 = vmatpush.msra.mxu0 %v3261
  %3295 = vmatpush.msra.mxu0 %v3260
  %3296 = vmatmul.f32.gmra.mxu0 %v3269
  %v3297 = vpop.f32.mrf.mxu0
  %v3298 = vadd.f32 0.0, %v3297
  %3299 = vmatmul.f32.gmra.mxu0 %v3272
  %v3300 = vpop.f32.mrf.mxu0
  %v3301 = vadd.f32 0.0, %v3300
  %3302 = vmatmul.f32.gmra.mxu0 %v3275
  %v3303 = vpop.f32.mrf.mxu0
  %v3304 = vadd.f32 0.0, %v3303
  %3305 = vmatmul.f32.gmra.mxu0 %v3278
  %v3306 = vpop.f32.mrf.mxu0
  %v3307 = vadd.f32 0.0, %v3306
  %3308 = vdwg.mxu0
  %v3309 = vadd.f32 %v3251, %v3298
  %v3310 = vadd.f32 %v3252, %v3301
  %v3311 = vadd.f32 %v3253, %v3304
  %v3312 = vadd.f32 %v3254, %v3307
  %v3313 = vmul.f32 %v2846, %v442
  %v3314 = vmul.f32 %v2847, %v443
  %v3315 = vmul.f32 %v2848, %v444
  %v3316 = vmul.f32 %v2849, %v445
  %s3317 = scalar_lea.vmem %s5, 1024
  %v3318 = vld [vmem:[%s3317] sm:$0xff]
  %v3319 = vld [vmem:[%s3317 + $0x8] sm:$0xff]
  %v3320 = vld [vmem:[%s3317 + $0x10] sm:$0xff]
  %v3321 = vld [vmem:[%s3317 + $0x18] sm:$0xff]
  %v3322 = vld [vmem:[%s3317 + $0x20] sm:$0xff]
  %v3323 = vld [vmem:[%s3317 + $0x28] sm:$0xff]
  %v3324 = vld [vmem:[%s3317 + $0x30] sm:$0xff]
  %v3325 = vld [vmem:[%s3317 + $0x38] sm:$0xff]
  %v3327 = vsel %vm916, %v3313, 0
  %v3330 = vsel %vm916, %v3314, 0
  %v3333 = vsel %vm916, %v3315, 0
  %v3336 = vsel %vm916, %v3316, 0
  %3338 = vmatpush.msra.mxu0 0.0
  %3339 = vmatpush.msra.mxu0 0.0
  %3340 = vmatpush.msra.mxu0 0.0
  %3341 = vmatpush.msra.mxu0 0.0
  %3342 = vmatpush.msra.mxu0 0.0
  %3343 = vmatpush.msra.mxu0 0.0
  %3344 = vmatpush.msra.mxu0 0.0
  %3345 = vmatpush.msra.mxu0 0.0
  %3346 = vmatpush.msra.mxu0 %v3325
  %3347 = vmatpush.msra.mxu0 %v3324
  %3348 = vmatpush.msra.mxu0 %v3323
  %3349 = vmatpush.msra.mxu0 %v3322
  %3350 = vmatpush.msra.mxu0 %v3321
  %3351 = vmatpush.msra.mxu0 %v3320
  %3352 = vmatpush.msra.mxu0 %v3319
  %3353 = vmatpush.msra.mxu0 %v3318
  %3354 = vmatmul.f32.gmra.mxu0 %v3327
  %v3355 = vpop.f32.mrf.mxu0
  %v3356 = vadd.f32 0.0, %v3355
  %3357 = vmatmul.f32.gmra.mxu0 %v3330
  %v3358 = vpop.f32.mrf.mxu0
  %v3359 = vadd.f32 0.0, %v3358
  %3360 = vmatmul.f32.gmra.mxu0 %v3333
  %v3361 = vpop.f32.mrf.mxu0
  %v3362 = vadd.f32 0.0, %v3361
  %3363 = vmatmul.f32.gmra.mxu0 %v3336
  %v3364 = vpop.f32.mrf.mxu0
  %v3365 = vadd.f32 0.0, %v3364
  %3366 = vdwg.mxu0
  %v3367 = vadd.f32 %v3309, %v3356
  %v3368 = vadd.f32 %v3310, %v3359
  %v3369 = vadd.f32 %v3311, %v3362
  %v3370 = vadd.f32 %v3312, %v3365
  %v3371 = vmul.f32 %v2846, %v471
  %v3372 = vmul.f32 %v2847, %v472
  %v3373 = vmul.f32 %v2848, %v473
  %v3374 = vmul.f32 %v2849, %v474
  %s3375 = scalar_lea.vmem %s5, 1088
  %v3376 = vld [vmem:[%s3375] sm:$0xff]
  %v3377 = vld [vmem:[%s3375 + $0x8] sm:$0xff]
  %v3378 = vld [vmem:[%s3375 + $0x10] sm:$0xff]
  %v3379 = vld [vmem:[%s3375 + $0x18] sm:$0xff]
  %v3380 = vld [vmem:[%s3375 + $0x20] sm:$0xff]
  %v3381 = vld [vmem:[%s3375 + $0x28] sm:$0xff]
  %v3382 = vld [vmem:[%s3375 + $0x30] sm:$0xff]
  %v3383 = vld [vmem:[%s3375 + $0x38] sm:$0xff]
  %v3385 = vsel %vm916, %v3371, 0
  %v3388 = vsel %vm916, %v3372, 0
  %v3391 = vsel %vm916, %v3373, 0
  %v3394 = vsel %vm916, %v3374, 0
  %3396 = vmatpush.msra.mxu0 0.0
  %3397 = vmatpush.msra.mxu0 0.0
  %3398 = vmatpush.msra.mxu0 0.0
  %3399 = vmatpush.msra.mxu0 0.0
  %3400 = vmatpush.msra.mxu0 0.0
  %3401 = vmatpush.msra.mxu0 0.0
  %3402 = vmatpush.msra.mxu0 0.0
  %3403 = vmatpush.msra.mxu0 0.0
  %3404 = vmatpush.msra.mxu0 %v3383
  %3405 = vmatpush.msra.mxu0 %v3382
  %3406 = vmatpush.msra.mxu0 %v3381
  %3407 = vmatpush.msra.mxu0 %v3380
  %3408 = vmatpush.msra.mxu0 %v3379
  %3409 = vmatpush.msra.mxu0 %v3378
  %3410 = vmatpush.msra.mxu0 %v3377
  %3411 = vmatpush.msra.mxu0 %v3376
  %3412 = vmatmul.f32.gmra.mxu0 %v3385
  %v3413 = vpop.f32.mrf.mxu0
  %v3414 = vadd.f32 0.0, %v3413
  %3415 = vmatmul.f32.gmra.mxu0 %v3388
  %v3416 = vpop.f32.mrf.mxu0
  %v3417 = vadd.f32 0.0, %v3416
  %3418 = vmatmul.f32.gmra.mxu0 %v3391
  %v3419 = vpop.f32.mrf.mxu0
  %v3420 = vadd.f32 0.0, %v3419
  %3421 = vmatmul.f32.gmra.mxu0 %v3394
  %v3422 = vpop.f32.mrf.mxu0
  %v3423 = vadd.f32 0.0, %v3422
  %3424 = vdwg.mxu0
  %v3425 = vadd.f32 %v3367, %v3414
  %v3426 = vadd.f32 %v3368, %v3417
  %v3427 = vadd.f32 %v3369, %v3420
  %v3428 = vadd.f32 %v3370, %v3423
  %v3429 = vld [vmem:[%s2078] sm:$0xff]
  %v3430 = vld [vmem:[%s2078 + $0x8] sm:$0xff]
  %v3431 = vld [vmem:[%s2078 + $0x10] sm:$0xff]
  %v3432 = vld [vmem:[%s2078 + $0x18] sm:$0xff]
  %v3433 = vld [vmem:[%s2078 + $0x20] sm:$0xff]
  %v3434 = vld [vmem:[%s2078 + $0x28] sm:$0xff]
  %v3435 = vld [vmem:[%s2078 + $0x30] sm:$0xff]
  %v3436 = vld [vmem:[%s2078 + $0x38] sm:$0xff]
  %v3437 = vld [vmem:[%s2083 + $0x1] sm:$0x1]
  %v3438 = vperm.slane %v3437, 0
  %3447 = vrot.lane.b32.xlu0 %v3429, 14
  %v3448 = vpop.permute.xlu0 %3447
  %3449 = vrot.lane.b32.xlu0 %v3430, 14
  %v3450 = vpop.permute.xlu0 %3449
  %3451 = vrot.lane.b32.xlu0 %v3431, 14
  %v3452 = vpop.permute.xlu0 %3451
  %3453 = vrot.lane.b32.xlu0 %v3432, 14
  %v3454 = vpop.permute.xlu0 %3453
  %3455 = vrot.lane.b32.xlu0 %v3433, 14
  %v3456 = vpop.permute.xlu0 %3455
  %3457 = vrot.lane.b32.xlu0 %v3434, 14
  %v3458 = vpop.permute.xlu0 %3457
  %3459 = vrot.lane.b32.xlu0 %v3435, 14
  %v3460 = vpop.permute.xlu0 %3459
  %3461 = vrot.lane.b32.xlu0 %v3436, 14
  %v3462 = vpop.permute.xlu0 %3461
  %v3463 = vsel %vm1497, %v3448, %v3450
  %v3464 = vsel %vm1497, %v3452, %v3454
  %v3465 = vsel %vm1497, %v3456, %v3458
  %v3466 = vsel %vm1497, %v3460, %v3462
  %v3472 = vsel %vm74, %v3425, 0
  %v3475 = vsel %vm74, %v3426, 0
  %v3478 = vsel %vm74, %v3427, 0
  %v3481 = vsel %vm74, %v3428, 0
  %3483 = vmatpush.msra.mxu0 0.0
  %3484 = vmatpush.msra.mxu0 0.0
  %3485 = vmatpush.msra.mxu0 0.0
  %3486 = vmatpush.msra.mxu0 0.0
  %3487 = vmatpush.msra.mxu0 0.0
  %3488 = vmatpush.msra.mxu0 0.0
  %3489 = vmatpush.msra.mxu0 0.0
  %3490 = vmatpush.msra.mxu0 0.0
  %3491 = vmatpush.msra.mxu0 0.0
  %3492 = vmatpush.msra.mxu0 0.0
  %3493 = vmatpush.msra.mxu0 0.0
  %3494 = vmatpush.msra.mxu0 0.0
  %3495 = vmatpush.msra.mxu0 %v3466
  %3496 = vmatpush.msra.mxu0 %v3465
  %3497 = vmatpush.msra.mxu0 %v3464
  %3498 = vmatpush.msra.mxu0 %v3463
  %3499 = vmatmul.f32.gmra.mxu0 %v3472
  %v3500 = vpop.f32.mrf.mxu0
  %v3501 = vadd.f32 %v3438, %v3500
  %3502 = vmatmul.f32.gmra.mxu0 %v3475
  %v3503 = vpop.f32.mrf.mxu0
  %v3504 = vadd.f32 %v3438, %v3503
  %3505 = vmatmul.f32.gmra.mxu0 %v3478
  %v3506 = vpop.f32.mrf.mxu0
  %v3507 = vadd.f32 %v3438, %v3506
  %3508 = vmatmul.f32.gmra.mxu0 %v3481
  %v3509 = vpop.f32.mrf.mxu0
  %v3510 = vadd.f32 %v3438, %v3509
  %3511 = vdwg.mxu0
  %v3512 = vadd.f32 %v2074, %v3501
  %v3513 = vadd.f32 %v2075, %v3504
  %v3514 = vadd.f32 %v2076, %v3507
  %v3515 = vadd.f32 %v2077, %v3510
  %v3516 = vld [vmem:[%s2083 + $0x2] sm:$0x1]
  %v3517 = vld [vmem:[%s2083 + $0x3] sm:$0x1]
  %v3518 = vsel %vm74, %v3512, 0.0
  %3519 = vadd.xlane.f32.xlu0 %v3518
  %v3520 = vpop.xlane.xlu0 %3519
  %v3521 = vsel %vm74, %v3513, 0.0
  %3522 = vadd.xlane.f32.xlu0 %v3521
  %v3523 = vpop.xlane.xlu0 %3522
  %v3524 = vsel %vm74, %v3514, 0.0
  %3525 = vadd.xlane.f32.xlu0 %v3524
  %v3526 = vpop.xlane.xlu0 %3525
  %v3527 = vsel %vm74, %v3515, 0.0
  %3528 = vadd.xlane.f32.xlu0 %v3527
  %v3529 = vpop.xlane.xlu0 %3528
  %v3530 = vmul.f32 %v3520, %v1571
  %v3531 = vmul.f32 %v3523, %v1571
  %v3532 = vmul.f32 %v3526, %v1571
  %v3533 = vmul.f32 %v3529, %v1571
  %v3534 = vsub.f32 %v3512, %v3530
  %v3535 = vsub.f32 %v3513, %v3531
  %v3536 = vsub.f32 %v3514, %v3532
  %v3537 = vsub.f32 %v3515, %v3533
  %v3538 = vmul.f32 %v3534, %v3534
  %v3539 = vmul.f32 %v3535, %v3535
  %v3540 = vmul.f32 %v3536, %v3536
  %v3541 = vmul.f32 %v3537, %v3537
  %v3542 = vsel %vm74, %v3538, 0.0
  %3543 = vadd.xlane.f32.xlu0 %v3542
  %v3544 = vpop.xlane.xlu0 %3543
  %v3545 = vsel %vm74, %v3539, 0.0
  %3546 = vadd.xlane.f32.xlu0 %v3545
  %v3547 = vpop.xlane.xlu0 %3546
  %v3548 = vsel %vm74, %v3540, 0.0
  %3549 = vadd.xlane.f32.xlu0 %v3548
  %v3550 = vpop.xlane.xlu0 %3549
  %v3551 = vsel %vm74, %v3541, 0.0
  %3552 = vadd.xlane.f32.xlu0 %v3551
  %v3553 = vpop.xlane.xlu0 %3552
  %v3554 = vmul.f32 %v3544, %v1571
  %v3555 = vmul.f32 %v3547, %v1571
  %v3556 = vmul.f32 %v3550, %v1571
  %v3557 = vmul.f32 %v3553, %v1571
  %v3558 = vadd.f32 %v3554, 1e-05
  %v3559 = vadd.f32 %v3555, 1e-05
  %v3560 = vadd.f32 %v3556, 1e-05
  %v3561 = vadd.f32 %v3557, 1e-05
  %v3562 = vrsqrt.pop %v3558
  %v3563 = vmul.f32 %v3562, %v3558
  %v3564 = vmul.f32 %v3563, %v3562
  %v3565 = vmul.f32 0.5, %v3564
  %v3566 = vsub.f32 1.5, %v3565
  %v3567 = vmul.f32 %v3562, %v3566
  %vm3568 = vweird.f32 %v3558
  %vm3569 = vweird.f32 %v3562
  %vm3570 = vmor %vm3568, %vm3569
  %v3571 = vsel %vm3570, %v3562, %v3567
  %v3572 = vrsqrt.pop %v3559
  %v3573 = vmul.f32 %v3572, %v3559
  %v3574 = vmul.f32 %v3573, %v3572
  %v3575 = vmul.f32 0.5, %v3574
  %v3576 = vsub.f32 1.5, %v3575
  %v3577 = vmul.f32 %v3572, %v3576
  %vm3578 = vweird.f32 %v3559
  %vm3579 = vweird.f32 %v3572
  %vm3580 = vmor %vm3578, %vm3579
  %v3581 = vsel %vm3580, %v3572, %v3577
  %v3582 = vrsqrt.pop %v3560
  %v3583 = vmul.f32 %v3582, %v3560
  %v3584 = vmul.f32 %v3583, %v3582
  %v3585 = vmul.f32 0.5, %v3584
  %v3586 = vsub.f32 1.5, %v3585
  %v3587 = vmul.f32 %v3582, %v3586
  %vm3588 = vweird.f32 %v3560
  %vm3589 = vweird.f32 %v3582
  %vm3590 = vmor %vm3588, %vm3589
  %v3591 = vsel %vm3590, %v3582, %v3587
  %v3592 = vrsqrt.pop %v3561
  %v3593 = vmul.f32 %v3592, %v3561
  %v3594 = vmul.f32 %v3593, %v3592
  %v3595 = vmul.f32 0.5, %v3594
  %v3596 = vsub.f32 1.5, %v3595
  %v3597 = vmul.f32 %v3592, %v3596
  %vm3598 = vweird.f32 %v3561
  %vm3599 = vweird.f32 %v3592
  %vm3600 = vmor %vm3598, %vm3599
  %v3601 = vsel %vm3600, %v3592, %v3597
  %v3602 = vmul.f32 %v3534, %v3571
  %v3603 = vmul.f32 %v3535, %v3581
  %v3604 = vmul.f32 %v3536, %v3591
  %v3605 = vmul.f32 %v3537, %v3601
  %v3606 = vperm.slane %v3516, 0
  %v3607 = vmul.f32 %v3602, %v3606
  %v3608 = vmul.f32 %v3603, %v3606
  %v3609 = vmul.f32 %v3604, %v3606
  %v3610 = vmul.f32 %v3605, %v3606
  %v3611 = vperm.slane %v3517, 0
  %v3612 = vadd.f32 %v3607, %v3611
  %v3613 = vadd.f32 %v3608, %v3611
  %v3614 = vadd.f32 %v3609, %v3611
  %v3615 = vadd.f32 %v3610, %v3611
  %v3616 = vmul.f32 %v3612, %v47
  %v3617 = vmul.f32 %v3613, %v52
  %v3618 = vmul.f32 %v3614, %v57
  %v3619 = vmul.f32 %v3615, %v62
  %v3620 = vrot.slane %v3616, 7
  %v3621 = vrot.slane %v3617, 7
  %v3622 = vrot.slane %v3618, 7
  %v3623 = vrot.slane %v3619, 7
  %v3624 = vsel %vm1668, %v3622, %v3623
  %v3625 = vsel %vm1668, %v3621, %v3622
  %v3626 = vsel %vm1668, %v3620, %v3621
  %v3627 = vsel %vm1668, %v3623, %v3620
  %v3628 = vmul.f32 %v3627, %v1675
  %v3629 = vmul.f32 %v3626, %v1679
  %v3630 = vmul.f32 %v3625, %v1683
  %v3631 = vmul.f32 %v3624, %v1687
  %v3632 = vrot.slane %v3616, 1
  %v3633 = vrot.slane %v3617, 1
  %v3634 = vrot.slane %v3618, 1
  %v3635 = vrot.slane %v3619, 1
  %v3636 = vsel %vm1697, %v3634, %v3635
  %v3637 = vsel %vm1697, %v3633, %v3634
  %v3638 = vsel %vm1697, %v3632, %v3633
  %v3639 = vsel %vm1697, %v3635, %v3632
  %v3640 = vmul.f32 %v3638, %v1704
  %v3641 = vmul.f32 %v3637, %v1708
  %v3642 = vmul.f32 %v3636, %v1712
  %v3643 = vmul.f32 %v3639, %v1716
  %3648 = vrot.lane.b32.xlu0 %v3616, 32
  %v3649 = vpop.permute.xlu0 %3648
  %3650 = vrot.lane.b32.xlu0 %v3617, 32
  %v3651 = vpop.permute.xlu0 %3650
  %3652 = vrot.lane.b32.xlu0 %v3618, 32
  %v3653 = vpop.permute.xlu0 %3652
  %3654 = vrot.lane.b32.xlu0 %v3619, 32
  %v3655 = vpop.permute.xlu0 %3654
  %3664 = vrot.lane.b32.xlu0 %v3640, 64
  %v3665 = vpop.permute.xlu0 %3664
  %3666 = vrot.lane.b32.xlu0 %v3641, 64
  %v3667 = vpop.permute.xlu0 %3666
  %3668 = vrot.lane.b32.xlu0 %v3642, 64
  %v3669 = vpop.permute.xlu0 %3668
  %3670 = vrot.lane.b32.xlu0 %v3643, 64
  %v3671 = vpop.permute.xlu0 %3670
  %v3676 = vsel %vm74, %v3628, %v3649
  %v3677 = vsel %vm74, %v3629, %v3651
  %v3678 = vsel %vm74, %v3630, %v3653
  %v3679 = vsel %vm74, %v3631, %v3655
  %v3680 = vsel %vm916, %v3676, %v3665
  %v3681 = vsel %vm916, %v3677, %v3667
  %v3682 = vsel %vm916, %v3678, %v3669
  %v3683 = vsel %vm916, %v3679, %v3671
  %s3684 = scalar_lea.vmem %s6, 96
  %v3685 = vld [vmem:[%s3684] sm:$0xff]
  %v3686 = vld [vmem:[%s3684 + $0x8] sm:$0xff]
  %v3687 = vld [vmem:[%s3684 + $0x10] sm:$0xff]
  %v3688 = vld [vmem:[%s3684 + $0x18] sm:$0xff]
  %v3689 = vld [vmem:[%s3684 + $0x20] sm:$0xff]
  %v3690 = vld [vmem:[%s3684 + $0x28] sm:$0xff]
  %v3691 = vld [vmem:[%s3684 + $0x30] sm:$0xff]
  %v3692 = vld [vmem:[%s3684 + $0x38] sm:$0xff]
  %v3693 = vld [vmem:[%s3684 + $0x40] sm:$0xff]
  %v3694 = vld [vmem:[%s3684 + $0x48] sm:$0xff]
  %v3695 = vld [vmem:[%s3684 + $0x50] sm:$0xff]
  %v3696 = vld [vmem:[%s3684 + $0x58] sm:$0xff]
  %v3697 = vld [vmem:[%s2083 + $0x4] sm:$0x1]
  %v3698 = vperm.slane %v3697, 0
  %v3700 = vsel %vm1776, %v3680, 0
  %v3703 = vsel %vm1776, %v3681, 0
  %v3706 = vsel %vm1776, %v3682, 0
  %v3709 = vsel %vm1776, %v3683, 0
  %3711 = vmatpush.msra.mxu0 0.0
  %3712 = vmatpush.msra.mxu0 0.0
  %3713 = vmatpush.msra.mxu0 0.0
  %3714 = vmatpush.msra.mxu0 0.0
  %3715 = vmatpush.msra.mxu0 %v3696
  %3716 = vmatpush.msra.mxu0 %v3695
  %3717 = vmatpush.msra.mxu0 %v3694
  %3718 = vmatpush.msra.mxu0 %v3693
  %3719 = vmatpush.msra.mxu0 %v3692
  %3720 = vmatpush.msra.mxu0 %v3691
  %3721 = vmatpush.msra.mxu0 %v3690
  %3722 = vmatpush.msra.mxu0 %v3689
  %3723 = vmatpush.msra.mxu0 %v3688
  %3724 = vmatpush.msra.mxu0 %v3687
  %3725 = vmatpush.msra.mxu0 %v3686
  %3726 = vmatpush.msra.mxu0 %v3685
  %3727 = vmatmul.f32.gmra.mxu0 %v3700
  %v3728 = vpop.f32.mrf.mxu0
  %v3729 = vadd.f32 %v3698, %v3728
  %3730 = vmatmul.f32.gmra.mxu0 %v3703
  %v3731 = vpop.f32.mrf.mxu0
  %v3732 = vadd.f32 %v3698, %v3731
  %3733 = vmatmul.f32.gmra.mxu0 %v3706
  %v3734 = vpop.f32.mrf.mxu0
  %v3735 = vadd.f32 %v3698, %v3734
  %3736 = vmatmul.f32.gmra.mxu0 %v3709
  %v3737 = vpop.f32.mrf.mxu0
  %v3738 = vadd.f32 %v3698, %v3737
  %3739 = vdwg.mxu0
  %v3740 = vmax.f32 %v3729, 0.0
  %v3741 = vmax.f32 %v3732, 0.0
  %v3742 = vmax.f32 %v3735, 0.0
  %v3743 = vmax.f32 %v3738, 0.0
  %v3744 = vmul.f32 %v3740, %v47
  %v3745 = vmul.f32 %v3741, %v52
  %v3746 = vmul.f32 %v3742, %v57
  %v3747 = vmul.f32 %v3743, %v62
  %v3748 = vrot.slane %v3744, 7
  %v3749 = vrot.slane %v3745, 7
  %v3750 = vrot.slane %v3746, 7
  %v3751 = vrot.slane %v3747, 7
  %v3752 = vsel %vm1668, %v3750, %v3751
  %v3753 = vsel %vm1668, %v3749, %v3750
  %v3754 = vsel %vm1668, %v3748, %v3749
  %v3755 = vsel %vm1668, %v3751, %v3748
  %v3756 = vmul.f32 %v3755, %v1675
  %v3757 = vmul.f32 %v3754, %v1679
  %v3758 = vmul.f32 %v3753, %v1683
  %v3759 = vmul.f32 %v3752, %v1687
  %v3760 = vrot.slane %v3744, 1
  %v3761 = vrot.slane %v3745, 1
  %v3762 = vrot.slane %v3746, 1
  %v3763 = vrot.slane %v3747, 1
  %v3764 = vsel %vm1697, %v3762, %v3763
  %v3765 = vsel %vm1697, %v3761, %v3762
  %v3766 = vsel %vm1697, %v3760, %v3761
  %v3767 = vsel %vm1697, %v3763, %v3760
  %v3768 = vmul.f32 %v3766, %v1704
  %v3769 = vmul.f32 %v3765, %v1708
  %v3770 = vmul.f32 %v3764, %v1712
  %v3771 = vmul.f32 %v3767, %v1716
  %3776 = vrot.lane.b32.xlu0 %v3744, 64
  %v3777 = vpop.permute.xlu0 %3776
  %3778 = vrot.lane.b32.xlu0 %v3745, 64
  %v3779 = vpop.permute.xlu0 %3778
  %3780 = vrot.lane.b32.xlu0 %v3746, 64
  %v3781 = vpop.permute.xlu0 %3780
  %3782 = vrot.lane.b32.xlu0 %v3747, 64
  %v3783 = vpop.permute.xlu0 %3782
  %v3788 = vsel %vm916, %v3756, %v3777
  %v3789 = vsel %vm916, %v3757, %v3779
  %v3790 = vsel %vm916, %v3758, %v3781
  %v3791 = vsel %vm916, %v3759, %v3783
  %s3792 = scalar_lea.vmem %s7, 192
  %v3793 = vld [vmem:[%s3792] sm:$0xff]
  %v3794 = vld [vmem:[%s3792 + $0x8] sm:$0xff]
  %v3795 = vld [vmem:[%s3792 + $0x10] sm:$0xff]
  %v3796 = vld [vmem:[%s3792 + $0x18] sm:$0xff]
  %v3797 = vld [vmem:[%s3792 + $0x20] sm:$0xff]
  %v3798 = vld [vmem:[%s3792 + $0x28] sm:$0xff]
  %v3799 = vld [vmem:[%s3792 + $0x30] sm:$0xff]
  %v3800 = vld [vmem:[%s3792 + $0x38] sm:$0xff]
  %v3801 = vld [vmem:[%s3792 + $0x40] sm:$0xff]
  %v3802 = vld [vmem:[%s3792 + $0x48] sm:$0xff]
  %v3803 = vld [vmem:[%s3792 + $0x50] sm:$0xff]
  %v3804 = vld [vmem:[%s3792 + $0x58] sm:$0xff]
  %v3805 = vld [vmem:[%s3792 + $0x60] sm:$0xff]
  %v3806 = vld [vmem:[%s3792 + $0x68] sm:$0xff]
  %v3807 = vld [vmem:[%s3792 + $0x70] sm:$0xff]
  %v3808 = vld [vmem:[%s3792 + $0x78] sm:$0xff]
  %v3809 = vld [vmem:[%s3792 + $0x80] sm:$0xff]
  %v3810 = vld [vmem:[%s3792 + $0x88] sm:$0xff]
  %v3811 = vld [vmem:[%s3792 + $0x90] sm:$0xff]
  %v3812 = vld [vmem:[%s3792 + $0x98] sm:$0xff]
  %v3813 = vld [vmem:[%s3792 + $0xa0] sm:$0xff]
  %v3814 = vld [vmem:[%s3792 + $0xa8] sm:$0xff]
  %v3815 = vld [vmem:[%s3792 + $0xb0] sm:$0xff]
  %v3816 = vld [vmem:[%s3792 + $0xb8] sm:$0xff]
  %v3817 = vld [vmem:[%s2083 + $0x5] sm:$0x1]
  %v3818 = vperm.slane %v3817, 0
  %v3820 = vsel %vm916, %v3768, 0
  %v3823 = vsel %vm916, %v3769, 0
  %v3826 = vsel %vm916, %v3770, 0
  %v3829 = vsel %vm916, %v3771, 0
  %3831 = vmatpush.msra.mxu0 %v3808
  %3832 = vmatpush.msra.mxu0 %v3807
  %3833 = vmatpush.msra.mxu0 %v3806
  %3834 = vmatpush.msra.mxu0 %v3805
  %3835 = vmatpush.msra.mxu0 %v3804
  %3836 = vmatpush.msra.mxu0 %v3803
  %3837 = vmatpush.msra.mxu0 %v3802
  %3838 = vmatpush.msra.mxu0 %v3801
  %3839 = vmatpush.msra.mxu0 %v3800
  %3840 = vmatpush.msra.mxu0 %v3799
  %3841 = vmatpush.msra.mxu0 %v3798
  %3842 = vmatpush.msra.mxu0 %v3797
  %3843 = vmatpush.msra.mxu0 %v3796
  %3844 = vmatpush.msra.mxu0 %v3795
  %3845 = vmatpush.msra.mxu0 %v3794
  %3846 = vmatpush.msra.mxu0 %v3793
  %3847 = vmatmul.f32.gmra.mxu0 %v3788
  %v3848 = vpop.f32.mrf.mxu0
  %v3849 = vadd.f32 %v3818, %v3848
  %3850 = vmatmul.f32.gmra.mxu0 %v3789
  %v3851 = vpop.f32.mrf.mxu0
  %v3852 = vadd.f32 %v3818, %v3851
  %3853 = vmatmul.f32.gmra.mxu0 %v3790
  %v3854 = vpop.f32.mrf.mxu0
  %v3855 = vadd.f32 %v3818, %v3854
  %3856 = vmatmul.f32.gmra.mxu0 %v3791
  %v3857 = vpop.f32.mrf.mxu0
  %v3858 = vadd.f32 %v3818, %v3857
  %3859 = vdwg.mxu0
  %3860 = vmatpush.msra.mxu0 0.0
  %3861 = vmatpush.msra.mxu0 0.0
  %3862 = vmatpush.msra.mxu0 0.0
  %3863 = vmatpush.msra.mxu0 0.0
  %3864 = vmatpush.msra.mxu0 0.0
  %3865 = vmatpush.msra.mxu0 0.0
  %3866 = vmatpush.msra.mxu0 0.0
  %3867 = vmatpush.msra.mxu0 0.0
  %3868 = vmatpush.msra.mxu0 %v3816
  %3869 = vmatpush.msra.mxu0 %v3815
  %3870 = vmatpush.msra.mxu0 %v3814
  %3871 = vmatpush.msra.mxu0 %v3813
  %3872 = vmatpush.msra.mxu0 %v3812
  %3873 = vmatpush.msra.mxu0 %v3811
  %3874 = vmatpush.msra.mxu0 %v3810
  %3875 = vmatpush.msra.mxu0 %v3809
  %3876 = vmatmul.f32.gmra.mxu0 %v3820
  %v3877 = vpop.f32.mrf.mxu0
  %v3878 = vadd.f32 %v3849, %v3877
  %3879 = vmatmul.f32.gmra.mxu0 %v3823
  %v3880 = vpop.f32.mrf.mxu0
  %v3881 = vadd.f32 %v3852, %v3880
  %3882 = vmatmul.f32.gmra.mxu0 %v3826
  %v3883 = vpop.f32.mrf.mxu0
  %v3884 = vadd.f32 %v3855, %v3883
  %3885 = vmatmul.f32.gmra.mxu0 %v3829
  %v3886 = vpop.f32.mrf.mxu0
  %v3887 = vadd.f32 %v3858, %v3886
  %3888 = vdwg.mxu0
  %v3889 = vmul.f32 %v3878, %v36
  %v3890 = vmul.f32 %v3881, %v37
  %v3891 = vmul.f32 %v3884, %v38
  %v3892 = vmul.f32 %v3887, %v39
  %3893 = vrot.lane.b32.xlu0 %v3430, 110
  %v3894 = vpop.permute.xlu0 %3893
  %3895 = vrot.lane.b32.xlu0 %v3432, 110
  %v3896 = vpop.permute.xlu0 %3895
  %3897 = vrot.lane.b32.xlu0 %v3434, 110
  %v3898 = vpop.permute.xlu0 %3897
  %3899 = vrot.lane.b32.xlu0 %v3436, 110
  %v3900 = vpop.permute.xlu0 %3899
  %3906 = vrot.lane.b32.xlu0 %v3438, 96
  %v3907 = vpop.permute.xlu0 %3906
  %v3910 = vsel %vm74, %v3612, 0
  %v3913 = vsel %vm74, %v3613, 0
  %v3916 = vsel %vm74, %v3614, 0
  %v3919 = vsel %vm74, %v3615, 0
  %3921 = vmatpush.msra.mxu0 0.0
  %3922 = vmatpush.msra.mxu0 0.0
  %3923 = vmatpush.msra.mxu0 0.0
  %3924 = vmatpush.msra.mxu0 0.0
  %3925 = vmatpush.msra.mxu0 0.0
  %3926 = vmatpush.msra.mxu0 0.0
  %3927 = vmatpush.msra.mxu0 0.0
  %3928 = vmatpush.msra.mxu0 0.0
  %3929 = vmatpush.msra.mxu0 0.0
  %3930 = vmatpush.msra.mxu0 0.0
  %3931 = vmatpush.msra.mxu0 0.0
  %3932 = vmatpush.msra.mxu0 0.0
  %3933 = vmatpush.msra.mxu0 %v3900
  %3934 = vmatpush.msra.mxu0 %v3898
  %3935 = vmatpush.msra.mxu0 %v3896
  %3936 = vmatpush.msra.mxu0 %v3894
  %3937 = vmatmul.f32.gmra.mxu0 %v3910
  %v3938 = vpop.f32.mrf.mxu0
  %v3939 = vadd.f32 %v3907, %v3938
  %3940 = vmatmul.f32.gmra.mxu0 %v3913
  %v3941 = vpop.f32.mrf.mxu0
  %v3942 = vadd.f32 %v3907, %v3941
  %3943 = vmatmul.f32.gmra.mxu0 %v3916
  %v3944 = vpop.f32.mrf.mxu0
  %v3945 = vadd.f32 %v3907, %v3944
  %3946 = vmatmul.f32.gmra.mxu0 %v3919
  %v3947 = vpop.f32.mrf.mxu0
  %v3948 = vadd.f32 %v3907, %v3947
  %3949 = vdwg.mxu0
  %v3950 = vadd.f32 %v3939, %v3889
  %v3951 = vadd.f32 %v3942, %v3890
  %v3952 = vadd.f32 %v3945, %v3891
  %v3953 = vadd.f32 %v3948, %v3892
  %v3954 = vld [vmem:[%s2083 + $0x6] sm:$0x1]
  %v3955 = vld [vmem:[%s2083 + $0x7] sm:$0x1]
  %v3956 = vadd.f32 %v3950, 0.0
  %v3957 = vadd.f32 %v3951, 0.0
  %v3958 = vadd.f32 %v3952, 0.0
  %v3959 = vadd.f32 %v3953, 0.0
  %v3960 = vsub.f32 %v3950, %v3956
  %v3961 = vsub.f32 %v3951, %v3957
  %v3962 = vsub.f32 %v3952, %v3958
  %v3963 = vsub.f32 %v3953, %v3959
  %v3964 = vmul.f32 %v3960, %v3960
  %v3965 = vmul.f32 %v3961, %v3961
  %v3966 = vmul.f32 %v3962, %v3962
  %v3967 = vmul.f32 %v3963, %v3963
  %v3968 = vadd.f32 %v3964, 0.0
  %v3969 = vadd.f32 %v3965, 0.0
  %v3970 = vadd.f32 %v3966, 0.0
  %v3971 = vadd.f32 %v3967, 0.0
  %v3972 = vadd.f32 %v3968, 1e-05
  %v3973 = vadd.f32 %v3969, 1e-05
  %v3974 = vadd.f32 %v3970, 1e-05
  %v3975 = vadd.f32 %v3971, 1e-05
  %v3976 = vrsqrt.pop %v3972
  %v3977 = vmul.f32 %v3976, %v3972
  %v3978 = vmul.f32 %v3977, %v3976
  %v3979 = vmul.f32 0.5, %v3978
  %v3980 = vsub.f32 1.5, %v3979
  %v3981 = vmul.f32 %v3976, %v3980
  %vm3982 = vweird.f32 %v3972
  %vm3983 = vweird.f32 %v3976
  %vm3984 = vmor %vm3982, %vm3983
  %v3985 = vsel %vm3984, %v3976, %v3981
  %v3986 = vrsqrt.pop %v3973
  %v3987 = vmul.f32 %v3986, %v3973
  %v3988 = vmul.f32 %v3987, %v3986
  %v3989 = vmul.f32 0.5, %v3988
  %v3990 = vsub.f32 1.5, %v3989
  %v3991 = vmul.f32 %v3986, %v3990
  %vm3992 = vweird.f32 %v3973
  %vm3993 = vweird.f32 %v3986
  %vm3994 = vmor %vm3992, %vm3993
  %v3995 = vsel %vm3994, %v3986, %v3991
  %v3996 = vrsqrt.pop %v3974
  %v3997 = vmul.f32 %v3996, %v3974
  %v3998 = vmul.f32 %v3997, %v3996
  %v3999 = vmul.f32 0.5, %v3998
  %v4000 = vsub.f32 1.5, %v3999
  %v4001 = vmul.f32 %v3996, %v4000
  %vm4002 = vweird.f32 %v3974
  %vm4003 = vweird.f32 %v3996
  %vm4004 = vmor %vm4002, %vm4003
  %v4005 = vsel %vm4004, %v3996, %v4001
  %v4006 = vrsqrt.pop %v3975
  %v4007 = vmul.f32 %v4006, %v3975
  %v4008 = vmul.f32 %v4007, %v4006
  %v4009 = vmul.f32 0.5, %v4008
  %v4010 = vsub.f32 1.5, %v4009
  %v4011 = vmul.f32 %v4006, %v4010
  %vm4012 = vweird.f32 %v3975
  %vm4013 = vweird.f32 %v4006
  %vm4014 = vmor %vm4012, %vm4013
  %v4015 = vsel %vm4014, %v4006, %v4011
  %v4016 = vmul.f32 %v3960, %v3985
  %v4017 = vmul.f32 %v3961, %v3995
  %v4018 = vmul.f32 %v3962, %v4005
  %v4019 = vmul.f32 %v3963, %v4015
  %v4020 = vperm.slane %v3954, 0
  %v4021 = vmul.f32 %v4016, %v4020
  %v4022 = vmul.f32 %v4017, %v4020
  %v4023 = vmul.f32 %v4018, %v4020
  %v4024 = vmul.f32 %v4019, %v4020
  %v4025 = vperm.slane %v3955, 0
  %v4026 = vadd.f32 %v4021, %v4025
  %v4027 = vadd.f32 %v4022, %v4025
  %v4028 = vadd.f32 %v4023, %v4025
  %v4029 = vadd.f32 %v4024, %v4025
  %v4030 = vmul.f32 %v4026, %v36
  %v4031 = vmul.f32 %v4027, %v37
  %v4032 = vmul.f32 %v4028, %v38
  %v4033 = vmul.f32 %v4029, %v39
  %vm4034 = vcmask 7168
  %4035 = vst.msk [vmem:[%s9] sm:$0xff] %vm4034, %v4030
  %4036 = vst.msk [vmem:[%s9 + $0x8] sm:$0xff] %vm4034, %v4031
  %4037 = vst.msk [vmem:[%s9 + $0x10] sm:$0xff] %vm4034, %v4032
  %4038 = vst.msk [vmem:[%s9 + $0x18] sm:$0xff] %vm4034, %v4033
  // Predicated region
  $region38: #{rel_pos_pitch_energy_encoder.1} parent=0 // pred_check
    _
  $region39: #{rel_pos_pitch_energy_encoder.1} parent=0 // pred_check_branch
    %4040 = sbr.rel (0) target = $region41
  $region40: #{rel_pos_pitch_energy_encoder.1} parent=0 // pred_region
    _
  $region41: #{rel_pos_pitch_energy_encoder.1} parent=0 // pred_fallthru
    _
  // Predicated region
  $region42: #{rel_pos_pitch_energy_encoder.1} parent=0 // pred_check
    _
  $region43: #{rel_pos_pitch_energy_encoder.1} parent=0 // pred_check_branch
    %4042 = sbr.rel (0) target = $region45
  $region44: #{rel_pos_pitch_energy_encoder.1} parent=0 // pred_region
    _
  $region45: #{rel_pos_pitch_energy_encoder.1} parent=0 // pred_fallthru
    _

</llo_original>
